<compile_context>
chip_gen: v7x
topology: tpu7x:2x2x1
jax: 0.10.0
libtpu: 0.0.40
codegen_flags: <defaults>
</compile_context>

<pallas_src>
import functools

import numpy as np

import jax
import jax.numpy as jnp
from jax import lax
from jax.experimental import pallas as pl
from jax.experimental.pallas import tpu as pltpu


# --------------------------------------------------------------------------
# one-time weight folding (runs outside the jitted hot path)
# --------------------------------------------------------------------------

def _conv_g(w_oihw, win):
    """3x3 / pad=1 conv -> three banded matrices G[dh] of shape
    (win*Cin, win*Cout):  out_row(h) = sum_dh x_row(h-1+dh) @ G[dh]."""
    cout, cin, _, _ = w_oihw.shape
    gs = []
    for dh in range(3):
        g = jnp.zeros((win * cin, win * cout), jnp.float32)
        for dw in range(3):
            band = np.eye(win, k=1 - dw, dtype=np.float32)     # w_in = w_out - 1 + dw
            g = g + jnp.kron(jnp.asarray(band),
                             jnp.transpose(w_oihw[:, :, dh, dw]))  # (Cin, Cout)
        gs.append(g)
    return jnp.stack(gs)                                        # (3, win*Cin, win*Cout)


def _deconv_t(w_iohw, wi):
    """ConvTranspose2d(k=3, s=2, p=1, op=1) -> T[kh] of shape
    (wi*Cin, 2*wi*Cout):  even rows = x @ T[1]; odd = x @ T[2] + x(+1) @ T[0]."""
    cin, cout, _, _ = w_iohw.shape
    wo = 2 * wi
    ts = []
    for kh in range(3):
        t = jnp.zeros((wi * cin, wo * cout), jnp.float32)
        for kw in range(3):
            u = np.zeros((wi, wo), np.float32)
            for a in range(wi):
                o = 2 * a + kw - 1
                if 0 <= o < wo:
                    u[a, o] = 1.0
            t = t + jnp.kron(jnp.asarray(u), w_iohw[:, :, kh, kw])  # (Cin, Cout)
        ts.append(t)
    return jnp.stack(ts)                                        # (3, wi*Cin, wo*Cout)


def _pool_mats(win, c, h):
    """0/1 selectors for 2x2 max pool in the (H, W*C) layout (per image)."""
    eye_w = np.eye(win, dtype=np.float32)
    eye_c = np.eye(c, dtype=np.float32)
    swe = np.kron(eye_w[:, 0::2], eye_c)          # (win*c, win//2*c) select even w
    swo = np.kron(eye_w[:, 1::2], eye_c)          # select odd w
    eye_h = np.eye(h, dtype=np.float32)
    she = eye_h[0::2, :]                          # (h//2, h) select even rows
    sho = eye_h[1::2, :]                          # select odd rows
    return swe, swo, she, sho


def _interleave_mats(hi):
    """Place rows of E / O at even / odd output rows (per image)."""
    re = np.zeros((2 * hi, hi), np.float32)
    ro = np.zeros((2 * hi, hi), np.float32)
    re[0::2, :] = np.eye(hi, dtype=np.float32)
    ro[1::2, :] = np.eye(hi, dtype=np.float32)
    return re, ro


_ORDER = ["g1", "b1", "sd1", "su1", "swe1", "swo1", "she1", "sho1",
          "g2", "b2", "sd2", "su2", "swe2", "swo2", "she2", "sho2",
          "t3", "b3", "su3", "re3", "ro3",
          "t4", "b4", "su4", "re4", "ro4"]


def prepare_params(p, block_batch=1):
    """Fold PyTorch-layout weights into kernel-ready constant matrices.

    Row-wise structural matrices are made block-diagonal over `block_batch`
    images (images are stacked along the row axis inside the kernel)."""
    bb = int(block_batch)
    eye_b = np.eye(bb, dtype=np.float32)

    def bdiag(m):                                   # block-diagonal over images
        return np.kron(eye_b, np.asarray(m, np.float32))

    kp = {}
    # encoder: Conv2d(3, 16) on 16x16, Conv2d(16, 8) on 8x8
    kp["g1"] = _conv_g(p["w1"], 16)
    kp["b1"] = jnp.tile(p["b1"], 16).reshape(1, -1)              # (1, 256)
    kp["sd1"] = bdiag(np.eye(16, k=-1, dtype=np.float32))        # row h -> h-1
    kp["su1"] = bdiag(np.eye(16, k=1, dtype=np.float32))         # row h -> h+1
    swe1, swo1, she1, sho1 = _pool_mats(16, 16, 16)
    kp["swe1"], kp["swo1"] = swe1, swo1                          # lane selectors
    kp["she1"], kp["sho1"] = bdiag(she1), bdiag(sho1)            # row selectors

    kp["g2"] = _conv_g(p["w2"], 8)
    kp["b2"] = jnp.tile(p["b2"], 8).reshape(1, -1)               # (1, 64)
    kp["sd2"] = bdiag(np.eye(8, k=-1, dtype=np.float32))
    kp["su2"] = bdiag(np.eye(8, k=1, dtype=np.float32))
    swe2, swo2, she2, sho2 = _pool_mats(8, 8, 8)
    kp["swe2"], kp["swo2"] = swe2, swo2
    kp["she2"], kp["sho2"] = bdiag(she2), bdiag(sho2)

    # decoder: ConvTranspose2d(8, 16) on 4x4 -> 8x8, ConvTranspose2d(16, 3) -> 16x16
    kp["t3"] = _deconv_t(p["w3"], 4)
    kp["b3"] = jnp.tile(p["b3"], 8).reshape(1, -1)               # (1, 128)
    kp["su3"] = bdiag(np.eye(4, k=1, dtype=np.float32))
    re3, ro3 = _interleave_mats(4)
    kp["re3"], kp["ro3"] = bdiag(re3), bdiag(ro3)

    kp["t4"] = _deconv_t(p["w4"], 8)
    kp["b4"] = jnp.tile(p["b4"], 16).reshape(1, -1)              # (1, 48)
    kp["su4"] = bdiag(np.eye(8, k=1, dtype=np.float32))
    re4, ro4 = _interleave_mats(8)
    kp["re4"], kp["ro4"] = bdiag(re4), bdiag(ro4)

    return {k: jnp.asarray(v, jnp.float32) for k, v in kp.items()}


# --------------------------------------------------------------------------
# fused Pallas kernel
# --------------------------------------------------------------------------

def _fused_kernel(x_ref,
                  g1, b1, sd1, su1, swe1, swo1, she1, sho1,
                  g2, b2, sd2, su2, swe2, swo2, she2, sho2,
                  t3, b3, su3, re3, ro3,
                  t4, b4, su4, re4, ro4,
                  o_ref):
    f32 = jnp.float32
    exact = jax.lax.Precision.HIGHEST

    def mm(a, b):                       # weight GEMMs: default precision (fast)
        return jnp.dot(a, b, preferred_element_type=f32)

    def sel(a, b):                      # 0/1 structural matmuls: exact pass-through
        return jnp.dot(a, b, preferred_element_type=f32, precision=exact)

    def conv(x, g, bt, sd, su):
        xd = sel(sd[...], x)            # row h -> x[h-1]   (zero row at image top)
        xu = sel(su[...], x)            # row h -> x[h+1]   (zero row at image bottom)
        return mm(xd, g[0]) + mm(x, g[1]) + mm(xu, g[2]) + bt[...]

    def pool(y, swe, swo, she, sho):    # fused 2x2 max pool
        m = jnp.maximum(sel(y, swe[...]), sel(y, swo[...]))      # pair along W
        return jnp.maximum(sel(she[...], m), sel(sho[...], m))   # pair along H

    def deconv(x, t, bt, su, re, ro):   # parity-decomposed ConvTranspose2d
        xs = sel(su[...], x)            # row a -> x[a+1]   (zero row at image bottom)
        ev = mm(x, t[1])                                    # even output rows
        od = mm(x, t[2]) + mm(xs, t[0])                     # odd output rows
        return sel(re[...], ev) + sel(ro[...], od) + bt[...]

    x = x_ref[0]                                            # (bb*16, 48)  [b*h, w*3+c]
    y = jnp.maximum(conv(x, g1, b1, sd1, su1), 0.0)         # (bb*16, 256)
    y = pool(y, swe1, swo1, she1, sho1)                     # (bb*8, 128)
    y = jnp.maximum(conv(y, g2, b2, sd2, su2), 0.0)         # (bb*8, 64)
    y = pool(y, swe2, swo2, she2, sho2)                     # (bb*4, 32)
    y = jnp.maximum(deconv(y, t3, b3, su3, re3, ro3), 0.0)  # (bb*8, 128)
    y = jax.nn.sigmoid(deconv(y, t4, b4, su4, re4, ro4))    # (bb*16, 48)
    o_ref[0] = y


def _const_spec(a):
    zeros = (0,) * a.ndim
    return pl.BlockSpec(a.shape, lambda i, _z=zeros: _z)


def autoencoder_forward(x_nchw, kp, block_batch):
    n, c, h, w = x_nchw.shape
    bb = int(block_batch)
    num_chunks = -(-n // bb)
    n_pad = num_chunks * bb
    if n_pad != n:
        x_nchw = jnp.pad(x_nchw, ((0, n_pad - n), (0, 0), (0, 0), (0, 0)))
    # NCHW -> (chunks, bb*H, W*C); images stacked along rows inside a chunk.
    xk = jnp.transpose(x_nchw, (0, 2, 3, 1)).reshape(num_chunks, bb * h, w * c)
    consts = [kp[k] for k in _ORDER]
    in_specs = [pl.BlockSpec((1, bb * h, w * c), lambda i: (i, 0, 0))]
    in_specs += [_const_spec(a) for a in consts]
    out = pl.pallas_call(
        _fused_kernel,
        out_shape=jax.ShapeDtypeStruct((num_chunks, bb * h, 3 * w), jnp.float32),
        grid=(num_chunks,),
        in_specs=in_specs,
        out_specs=pl.BlockSpec((1, bb * h, 3 * w), lambda i: (i, 0, 0)),
        compiler_params=pltpu.CompilerParams(
            dimension_semantics=("parallel",)),
    )(xk, *consts)
    out = out.reshape(n_pad, h, w, 3)[:n]
    return jnp.transpose(out, (0, 3, 1, 2))


# --------------------------------------------------------------------------
# pure-JAX reference (independent, high precision)
# --------------------------------------------------------------------------

def reference_forward(x_nchw, params):
    dn = ("NCHW", "OIHW", "NCHW")
    hp = jax.lax.Precision.HIGHEST

    def conv(x, w, b, pad):
        y = lax.conv_general_dilated(x, w, (1, 1), ((pad, pad), (pad, pad)),
                                     dimension_numbers=dn, precision=hp)
        return y + b[None, :, None, None]

    def deconv(x, w_io, b):
        w_eq = jnp.flip(jnp.transpose(w_io, (1, 0, 2, 3)), axis=(2, 3))
        y = lax.conv_general_dilated(x, w_eq, (1, 1), ((1, 2), (1, 2)),
                                     lhs_dilation=(2, 2),
                                     dimension_numbers=dn, precision=hp)
        return y + b[None, :, None, None]

    def pool(x):
        return lax.reduce_window(x, -jnp.inf, lax.max,
                                 (1, 1, 2, 2), (1, 1, 2, 2), "VALID")

    x = jax.nn.relu(conv(x_nchw, params["w1"], params["b1"], 1))
    x = pool(x)
    x = jax.nn.relu(conv(x, params["w2"], params["b2"], 1))
    x = pool(x)
    x = jax.nn.relu(deconv(x, params["w3"], params["b3"]))
    x = jax.nn.sigmoid(deconv(x, params["w4"], params["b4"]))
    return x


# --------------------------------------------------------------------------
# main
# --------------------------------------------------------------------------

if __name__ == "__main__":
    key = jax.random.PRNGKey(0)
    keys = jax.random.split(key, 9)

    def init(k, shape, scale=0.1):
        return scale * jax.random.normal(k, shape, dtype=jnp.float32)

    params = {
        # Conv2d(3, 16, 3): weight (Cout, Cin, kh, kw)
        "w1": init(keys[0], (16, 3, 3, 3)), "b1": init(keys[1], (16,)),
        # Conv2d(16, 8, 3)
        "w2": init(keys[2], (8, 16, 3, 3)), "b2": init(keys[3], (8,)),
        # ConvTranspose2d(8, 16, 3): weight (Cin, Cout, kh, kw)
        "w3": init(keys[4], (8, 16, 3, 3)), "b3": init(keys[5], (16,)),
        # ConvTranspose2d(16, 3, 3)
        "w4": init(keys[6], (16, 3, 3, 3)), "b4": init(keys[7], (3,)),
    }

    x = jax.random.uniform(keys[8], (2, 3, 16, 16), dtype=jnp.float32)

    # Stack up to 8 images per grid step (whole batch here -> single step).
    BB = min(x.shape[0], 8)
    kp = prepare_params(params, block_batch=BB)       # one-time weight folding
    fwd = jax.jit(functools.partial(autoencoder_forward, block_batch=BB))

    out = jax.block_until_ready(fwd(x, kp))
    assert out.shape == (2, 3, 16, 16), out.shape

    ref = jax.block_until_ready(reference_forward(x, params))
    max_err = float(jnp.max(jnp.abs(out - ref)))
    # weight GEMMs run at default (bf16-pass) MXU precision -> modest tolerance
    assert jnp.allclose(out, ref, atol=3e-3, rtol=3e-2), max_err

    print("KERNEL_OK")
</pallas_src>

<mosaic_0001>
module attributes {stable_mosaic.version = 11 : i64} {
  func.func @_fused_kernel(%arg0: i32, %arg1: memref<1x32x48xf32, #tpu.memory_space<vmem>>, %arg2: memref<3x48x256xf32, #tpu.memory_space<vmem>>, %arg3: memref<1x256xf32, #tpu.memory_space<vmem>>, %arg4: memref<32x32xf32, #tpu.memory_space<vmem>>, %arg5: memref<32x32xf32, #tpu.memory_space<vmem>>, %arg6: memref<256x128xf32, #tpu.memory_space<vmem>>, %arg7: memref<256x128xf32, #tpu.memory_space<vmem>>, %arg8: memref<16x32xf32, #tpu.memory_space<vmem>>, %arg9: memref<16x32xf32, #tpu.memory_space<vmem>>, %arg10: memref<3x128x64xf32, #tpu.memory_space<vmem>>, %arg11: memref<1x64xf32, #tpu.memory_space<vmem>>, %arg12: memref<16x16xf32, #tpu.memory_space<vmem>>, %arg13: memref<16x16xf32, #tpu.memory_space<vmem>>, %arg14: memref<64x32xf32, #tpu.memory_space<vmem>>, %arg15: memref<64x32xf32, #tpu.memory_space<vmem>>, %arg16: memref<8x16xf32, #tpu.memory_space<vmem>>, %arg17: memref<8x16xf32, #tpu.memory_space<vmem>>, %arg18: memref<3x32x128xf32, #tpu.memory_space<vmem>>, %arg19: memref<1x128xf32, #tpu.memory_space<vmem>>, %arg20: memref<8x8xf32, #tpu.memory_space<vmem>>, %arg21: memref<16x8xf32, #tpu.memory_space<vmem>>, %arg22: memref<16x8xf32, #tpu.memory_space<vmem>>, %arg23: memref<3x128x48xf32, #tpu.memory_space<vmem>>, %arg24: memref<1x48xf32, #tpu.memory_space<vmem>>, %arg25: memref<16x16xf32, #tpu.memory_space<vmem>>, %arg26: memref<32x16xf32, #tpu.memory_space<vmem>>, %arg27: memref<32x16xf32, #tpu.memory_space<vmem>>, %arg28: memref<1x32x48xf32, #tpu.memory_space<vmem>>) attributes {dimension_semantics = [#tpu.dimension_semantics<parallel>], iteration_bounds = array<i64: 1>, scalar_prefetch = 0 : i64, scratch_operands = 0 : i64, tpu.core_type = #tpu.core_type<tc>, window_params = [{transform_indices = @transform_0, window_bounds = array<i64: 1, 32, 48>}, {pipeline_mode = #tpu.pipeline_mode<synchronous>, transform_indices = @transform_1, window_bounds = array<i64: 3, 48, 256>}, {pipeline_mode = #tpu.pipeline_mode<synchronous>, transform_indices = @transform_2, window_bounds = array<i64: 1, 256>}, {pipeline_mode = #tpu.pipeline_mode<synchronous>, transform_indices = @transform_3, window_bounds = array<i64: 32, 32>}, {pipeline_mode = #tpu.pipeline_mode<synchronous>, transform_indices = @transform_4, window_bounds = array<i64: 32, 32>}, {pipeline_mode = #tpu.pipeline_mode<synchronous>, transform_indices = @transform_5, window_bounds = array<i64: 256, 128>}, {pipeline_mode = #tpu.pipeline_mode<synchronous>, transform_indices = @transform_6, window_bounds = array<i64: 256, 128>}, {pipeline_mode = #tpu.pipeline_mode<synchronous>, transform_indices = @transform_7, window_bounds = array<i64: 16, 32>}, {pipeline_mode = #tpu.pipeline_mode<synchronous>, transform_indices = @transform_8, window_bounds = array<i64: 16, 32>}, {pipeline_mode = #tpu.pipeline_mode<synchronous>, transform_indices = @transform_9, window_bounds = array<i64: 3, 128, 64>}, {pipeline_mode = #tpu.pipeline_mode<synchronous>, transform_indices = @transform_10, window_bounds = array<i64: 1, 64>}, {pipeline_mode = #tpu.pipeline_mode<synchronous>, transform_indices = @transform_11, window_bounds = array<i64: 16, 16>}, {pipeline_mode = #tpu.pipeline_mode<synchronous>, transform_indices = @transform_12, window_bounds = array<i64: 16, 16>}, {pipeline_mode = #tpu.pipeline_mode<synchronous>, transform_indices = @transform_13, window_bounds = array<i64: 64, 32>}, {pipeline_mode = #tpu.pipeline_mode<synchronous>, transform_indices = @transform_14, window_bounds = array<i64: 64, 32>}, {pipeline_mode = #tpu.pipeline_mode<synchronous>, transform_indices = @transform_15, window_bounds = array<i64: 8, 16>}, {pipeline_mode = #tpu.pipeline_mode<synchronous>, transform_indices = @transform_16, window_bounds = array<i64: 8, 16>}, {pipeline_mode = #tpu.pipeline_mode<synchronous>, transform_indices = @transform_17, window_bounds = array<i64: 3, 32, 128>}, {pipeline_mode = #tpu.pipeline_mode<synchronous>, transform_indices = @transform_18, window_bounds = array<i64: 1, 128>}, {pipeline_mode = #tpu.pipeline_mode<synchronous>, transform_indices = @transform_19, window_bounds = array<i64: 8, 8>}, {pipeline_mode = #tpu.pipeline_mode<synchronous>, transform_indices = @transform_20, window_bounds = array<i64: 16, 8>}, {pipeline_mode = #tpu.pipeline_mode<synchronous>, transform_indices = @transform_21, window_bounds = array<i64: 16, 8>}, {pipeline_mode = #tpu.pipeline_mode<synchronous>, transform_indices = @transform_22, window_bounds = array<i64: 3, 128, 48>}, {pipeline_mode = #tpu.pipeline_mode<synchronous>, transform_indices = @transform_23, window_bounds = array<i64: 1, 48>}, {pipeline_mode = #tpu.pipeline_mode<synchronous>, transform_indices = @transform_24, window_bounds = array<i64: 16, 16>}, {pipeline_mode = #tpu.pipeline_mode<synchronous>, transform_indices = @transform_25, window_bounds = array<i64: 32, 16>}, {pipeline_mode = #tpu.pipeline_mode<synchronous>, transform_indices = @transform_26, window_bounds = array<i64: 32, 16>}, {transform_indices = @transform_27, window_bounds = array<i64: 1, 32, 48>}]} {
    %c0 = arith.constant 0 : index
    %c0_0 = arith.constant 0 : index
    %c0_1 = arith.constant 0 : index
    %0 = vector.load %arg1[%c0, %c0_0, %c0_1] : memref<1x32x48xf32, #tpu.memory_space<vmem>>, vector<1x32x48xf32>
    %1 = vector.shape_cast %0 : vector<1x32x48xf32> to vector<32x48xf32>
    %c0_2 = arith.constant 0 : index
    %c0_3 = arith.constant 0 : index
    %2 = vector.load %arg4[%c0_2, %c0_3] : memref<32x32xf32, #tpu.memory_space<vmem>>, vector<32x32xf32>
    %cst = arith.constant dense<0.000000e+00> : vector<32x48xf32>
    %3 = tpu.matmul %2, %1, %cst {dimension_numbers = #tpu.dot_dimension_numbers<[1], [0], [0], [1], [0, 0, 1, 1], [], []>, precision = #tpu.contract_precision<fp32>} : vector<32x32xf32>, vector<32x48xf32>, vector<32x48xf32> -> vector<32x48xf32>
    %c0_4 = arith.constant 0 : index
    %c0_5 = arith.constant 0 : index
    %4 = vector.load %arg5[%c0_4, %c0_5] : memref<32x32xf32, #tpu.memory_space<vmem>>, vector<32x32xf32>
    %cst_6 = arith.constant dense<0.000000e+00> : vector<32x48xf32>
    %5 = tpu.matmul %4, %1, %cst_6 {dimension_numbers = #tpu.dot_dimension_numbers<[1], [0], [0], [1], [0, 0, 1, 1], [], []>, precision = #tpu.contract_precision<fp32>} : vector<32x32xf32>, vector<32x48xf32>, vector<32x48xf32> -> vector<32x48xf32>
    %c0_7 = arith.constant 0 : index
    %c0_8 = arith.constant 0 : index
    %c0_9 = arith.constant 0 : index
    %6 = vector.load %arg2[%c0_7, %c0_8, %c0_9] : memref<3x48x256xf32, #tpu.memory_space<vmem>>, vector<1x48x256xf32>
    %7 = vector.shape_cast %6 : vector<1x48x256xf32> to vector<48x256xf32>
    %cst_10 = arith.constant dense<0.000000e+00> : vector<32x256xf32>
    %8 = tpu.matmul %3, %7, %cst_10 {dimension_numbers = #tpu.dot_dimension_numbers<[1], [0], [0], [1], [0, 0, 1, 1], [], []>} : vector<32x48xf32>, vector<48x256xf32>, vector<32x256xf32> -> vector<32x256xf32>
    %c1 = arith.constant 1 : index
    %c0_11 = arith.constant 0 : index
    %c0_12 = arith.constant 0 : index
    %9 = vector.load %arg2[%c1, %c0_11, %c0_12] : memref<3x48x256xf32, #tpu.memory_space<vmem>>, vector<1x48x256xf32>
    %10 = vector.shape_cast %9 : vector<1x48x256xf32> to vector<48x256xf32>
    %cst_13 = arith.constant dense<0.000000e+00> : vector<32x256xf32>
    %11 = tpu.matmul %1, %10, %cst_13 {dimension_numbers = #tpu.dot_dimension_numbers<[1], [0], [0], [1], [0, 0, 1, 1], [], []>} : vector<32x48xf32>, vector<48x256xf32>, vector<32x256xf32> -> vector<32x256xf32>
    %12 = arith.addf %8, %11 : vector<32x256xf32>
    %c2 = arith.constant 2 : index
    %c0_14 = arith.constant 0 : index
    %c0_15 = arith.constant 0 : index
    %13 = vector.load %arg2[%c2, %c0_14, %c0_15] : memref<3x48x256xf32, #tpu.memory_space<vmem>>, vector<1x48x256xf32>
    %14 = vector.shape_cast %13 : vector<1x48x256xf32> to vector<48x256xf32>
    %cst_16 = arith.constant dense<0.000000e+00> : vector<32x256xf32>
    %15 = tpu.matmul %5, %14, %cst_16 {dimension_numbers = #tpu.dot_dimension_numbers<[1], [0], [0], [1], [0, 0, 1, 1], [], []>} : vector<32x48xf32>, vector<48x256xf32>, vector<32x256xf32> -> vector<32x256xf32>
    %16 = arith.addf %12, %15 : vector<32x256xf32>
    %c0_17 = arith.constant 0 : index
    %c0_18 = arith.constant 0 : index
    %17 = vector.load %arg3[%c0_17, %c0_18] : memref<1x256xf32, #tpu.memory_space<vmem>>, vector<1x256xf32>
    %18 = vector.broadcast %17 : vector<1x256xf32> to vector<32x256xf32>
    %19 = arith.addf %16, %18 : vector<32x256xf32>
    %cst_19 = arith.constant 0.000000e+00 : f32
    %20 = vector.broadcast %cst_19 : f32 to vector<32x256xf32>
    %21 = arith.maximumf %19, %20 : vector<32x256xf32>
    %c0_20 = arith.constant 0 : index
    %c0_21 = arith.constant 0 : index
    %22 = vector.load %arg6[%c0_20, %c0_21] : memref<256x128xf32, #tpu.memory_space<vmem>>, vector<256x128xf32>
    %cst_22 = arith.constant dense<0.000000e+00> : vector<32x128xf32>
    %23 = tpu.matmul %21, %22, %cst_22 {dimension_numbers = #tpu.dot_dimension_numbers<[1], [0], [0], [1], [0, 0, 1, 1], [], []>, precision = #tpu.contract_precision<fp32>} : vector<32x256xf32>, vector<256x128xf32>, vector<32x128xf32> -> vector<32x128xf32>
    %c0_23 = arith.constant 0 : index
    %c0_24 = arith.constant 0 : index
    %24 = vector.load %arg7[%c0_23, %c0_24] : memref<256x128xf32, #tpu.memory_space<vmem>>, vector<256x128xf32>
    %cst_25 = arith.constant dense<0.000000e+00> : vector<32x128xf32>
    %25 = tpu.matmul %21, %24, %cst_25 {dimension_numbers = #tpu.dot_dimension_numbers<[1], [0], [0], [1], [0, 0, 1, 1], [], []>, precision = #tpu.contract_precision<fp32>} : vector<32x256xf32>, vector<256x128xf32>, vector<32x128xf32> -> vector<32x128xf32>
    %26 = arith.maximumf %23, %25 : vector<32x128xf32>
    %c0_26 = arith.constant 0 : index
    %c0_27 = arith.constant 0 : index
    %27 = vector.load %arg8[%c0_26, %c0_27] : memref<16x32xf32, #tpu.memory_space<vmem>>, vector<16x32xf32>
    %cst_28 = arith.constant dense<0.000000e+00> : vector<16x128xf32>
    %28 = tpu.matmul %27, %26, %cst_28 {dimension_numbers = #tpu.dot_dimension_numbers<[1], [0], [0], [1], [0, 0, 1, 1], [], []>, precision = #tpu.contract_precision<fp32>} : vector<16x32xf32>, vector<32x128xf32>, vector<16x128xf32> -> vector<16x128xf32>
    %c0_29 = arith.constant 0 : index
    %c0_30 = arith.constant 0 : index
    %29 = vector.load %arg9[%c0_29, %c0_30] : memref<16x32xf32, #tpu.memory_space<vmem>>, vector<16x32xf32>
    %cst_31 = arith.constant dense<0.000000e+00> : vector<16x128xf32>
    %30 = tpu.matmul %29, %26, %cst_31 {dimension_numbers = #tpu.dot_dimension_numbers<[1], [0], [0], [1], [0, 0, 1, 1], [], []>, precision = #tpu.contract_precision<fp32>} : vector<16x32xf32>, vector<32x128xf32>, vector<16x128xf32> -> vector<16x128xf32>
    %31 = arith.maximumf %28, %30 : vector<16x128xf32>
    %c0_32 = arith.constant 0 : index
    %c0_33 = arith.constant 0 : index
    %32 = vector.load %arg12[%c0_32, %c0_33] : memref<16x16xf32, #tpu.memory_space<vmem>>, vector<16x16xf32>
    %cst_34 = arith.constant dense<0.000000e+00> : vector<16x128xf32>
    %33 = tpu.matmul %32, %31, %cst_34 {dimension_numbers = #tpu.dot_dimension_numbers<[1], [0], [0], [1], [0, 0, 1, 1], [], []>, precision = #tpu.contract_precision<fp32>} : vector<16x16xf32>, vector<16x128xf32>, vector<16x128xf32> -> vector<16x128xf32>
    %c0_35 = arith.constant 0 : index
    %c0_36 = arith.constant 0 : index
    %34 = vector.load %arg13[%c0_35, %c0_36] : memref<16x16xf32, #tpu.memory_space<vmem>>, vector<16x16xf32>
    %cst_37 = arith.constant dense<0.000000e+00> : vector<16x128xf32>
    %35 = tpu.matmul %34, %31, %cst_37 {dimension_numbers = #tpu.dot_dimension_numbers<[1], [0], [0], [1], [0, 0, 1, 1], [], []>, precision = #tpu.contract_precision<fp32>} : vector<16x16xf32>, vector<16x128xf32>, vector<16x128xf32> -> vector<16x128xf32>
    %c0_38 = arith.constant 0 : index
    %c0_39 = arith.constant 0 : index
    %c0_40 = arith.constant 0 : index
    %36 = vector.load %arg10[%c0_38, %c0_39, %c0_40] : memref<3x128x64xf32, #tpu.memory_space<vmem>>, vector<1x128x64xf32>
    %37 = vector.shape_cast %36 : vector<1x128x64xf32> to vector<128x64xf32>
    %cst_41 = arith.constant dense<0.000000e+00> : vector<16x64xf32>
    %38 = tpu.matmul %33, %37, %cst_41 {dimension_numbers = #tpu.dot_dimension_numbers<[1], [0], [0], [1], [0, 0, 1, 1], [], []>} : vector<16x128xf32>, vector<128x64xf32>, vector<16x64xf32> -> vector<16x64xf32>
    %c1_42 = arith.constant 1 : index
    %c0_43 = arith.constant 0 : index
    %c0_44 = arith.constant 0 : index
    %39 = vector.load %arg10[%c1_42, %c0_43, %c0_44] : memref<3x128x64xf32, #tpu.memory_space<vmem>>, vector<1x128x64xf32>
    %40 = vector.shape_cast %39 : vector<1x128x64xf32> to vector<128x64xf32>
    %cst_45 = arith.constant dense<0.000000e+00> : vector<16x64xf32>
    %41 = tpu.matmul %31, %40, %cst_45 {dimension_numbers = #tpu.dot_dimension_numbers<[1], [0], [0], [1], [0, 0, 1, 1], [], []>} : vector<16x128xf32>, vector<128x64xf32>, vector<16x64xf32> -> vector<16x64xf32>
    %42 = arith.addf %38, %41 : vector<16x64xf32>
    %c2_46 = arith.constant 2 : index
    %c0_47 = arith.constant 0 : index
    %c0_48 = arith.constant 0 : index
    %43 = vector.load %arg10[%c2_46, %c0_47, %c0_48] : memref<3x128x64xf32, #tpu.memory_space<vmem>>, vector<1x128x64xf32>
    %44 = vector.shape_cast %43 : vector<1x128x64xf32> to vector<128x64xf32>
    %cst_49 = arith.constant dense<0.000000e+00> : vector<16x64xf32>
    %45 = tpu.matmul %35, %44, %cst_49 {dimension_numbers = #tpu.dot_dimension_numbers<[1], [0], [0], [1], [0, 0, 1, 1], [], []>} : vector<16x128xf32>, vector<128x64xf32>, vector<16x64xf32> -> vector<16x64xf32>
    %46 = arith.addf %42, %45 : vector<16x64xf32>
    %c0_50 = arith.constant 0 : index
    %c0_51 = arith.constant 0 : index
    %47 = vector.load %arg11[%c0_50, %c0_51] : memref<1x64xf32, #tpu.memory_space<vmem>>, vector<1x64xf32>
    %48 = vector.broadcast %47 : vector<1x64xf32> to vector<16x64xf32>
    %49 = arith.addf %46, %48 : vector<16x64xf32>
    %cst_52 = arith.constant 0.000000e+00 : f32
    %50 = vector.broadcast %cst_52 : f32 to vector<16x64xf32>
    %51 = arith.maximumf %49, %50 : vector<16x64xf32>
    %c0_53 = arith.constant 0 : index
    %c0_54 = arith.constant 0 : index
    %52 = vector.load %arg14[%c0_53, %c0_54] : memref<64x32xf32, #tpu.memory_space<vmem>>, vector<64x32xf32>
    %cst_55 = arith.constant dense<0.000000e+00> : vector<16x32xf32>
    %53 = tpu.matmul %51, %52, %cst_55 {dimension_numbers = #tpu.dot_dimension_numbers<[1], [0], [0], [1], [0, 0, 1, 1], [], []>, precision = #tpu.contract_precision<fp32>} : vector<16x64xf32>, vector<64x32xf32>, vector<16x32xf32> -> vector<16x32xf32>
    %c0_56 = arith.constant 0 : index
    %c0_57 = arith.constant 0 : index
    %54 = vector.load %arg15[%c0_56, %c0_57] : memref<64x32xf32, #tpu.memory_space<vmem>>, vector<64x32xf32>
    %cst_58 = arith.constant dense<0.000000e+00> : vector<16x32xf32>
    %55 = tpu.matmul %51, %54, %cst_58 {dimension_numbers = #tpu.dot_dimension_numbers<[1], [0], [0], [1], [0, 0, 1, 1], [], []>, precision = #tpu.contract_precision<fp32>} : vector<16x64xf32>, vector<64x32xf32>, vector<16x32xf32> -> vector<16x32xf32>
    %56 = arith.maximumf %53, %55 : vector<16x32xf32>
    %c0_59 = arith.constant 0 : index
    %c0_60 = arith.constant 0 : index
    %57 = vector.load %arg16[%c0_59, %c0_60] : memref<8x16xf32, #tpu.memory_space<vmem>>, vector<8x16xf32>
    %cst_61 = arith.constant dense<0.000000e+00> : vector<8x32xf32>
    %58 = tpu.matmul %57, %56, %cst_61 {dimension_numbers = #tpu.dot_dimension_numbers<[1], [0], [0], [1], [0, 0, 1, 1], [], []>, precision = #tpu.contract_precision<fp32>} : vector<8x16xf32>, vector<16x32xf32>, vector<8x32xf32> -> vector<8x32xf32>
    %c0_62 = arith.constant 0 : index
    %c0_63 = arith.constant 0 : index
    %59 = vector.load %arg17[%c0_62, %c0_63] : memref<8x16xf32, #tpu.memory_space<vmem>>, vector<8x16xf32>
    %cst_64 = arith.constant dense<0.000000e+00> : vector<8x32xf32>
    %60 = tpu.matmul %59, %56, %cst_64 {dimension_numbers = #tpu.dot_dimension_numbers<[1], [0], [0], [1], [0, 0, 1, 1], [], []>, precision = #tpu.contract_precision<fp32>} : vector<8x16xf32>, vector<16x32xf32>, vector<8x32xf32> -> vector<8x32xf32>
    %61 = arith.maximumf %58, %60 : vector<8x32xf32>
    %c0_65 = arith.constant 0 : index
    %c0_66 = arith.constant 0 : index
    %62 = vector.load %arg20[%c0_65, %c0_66] : memref<8x8xf32, #tpu.memory_space<vmem>>, vector<8x8xf32>
    %cst_67 = arith.constant dense<0.000000e+00> : vector<8x32xf32>
    %63 = tpu.matmul %62, %61, %cst_67 {dimension_numbers = #tpu.dot_dimension_numbers<[1], [0], [0], [1], [0, 0, 1, 1], [], []>, precision = #tpu.contract_precision<fp32>} : vector<8x8xf32>, vector<8x32xf32>, vector<8x32xf32> -> vector<8x32xf32>
    %c1_68 = arith.constant 1 : index
    %c0_69 = arith.constant 0 : index
    %c0_70 = arith.constant 0 : index
    %64 = vector.load %arg18[%c1_68, %c0_69, %c0_70] : memref<3x32x128xf32, #tpu.memory_space<vmem>>, vector<1x32x128xf32>
    %65 = vector.shape_cast %64 : vector<1x32x128xf32> to vector<32x128xf32>
    %cst_71 = arith.constant dense<0.000000e+00> : vector<8x128xf32>
    %66 = tpu.matmul %61, %65, %cst_71 {dimension_numbers = #tpu.dot_dimension_numbers<[1], [0], [0], [1], [0, 0, 1, 1], [], []>} : vector<8x32xf32>, vector<32x128xf32>, vector<8x128xf32> -> vector<8x128xf32>
    %c2_72 = arith.constant 2 : index
    %c0_73 = arith.constant 0 : index
    %c0_74 = arith.constant 0 : index
    %67 = vector.load %arg18[%c2_72, %c0_73, %c0_74] : memref<3x32x128xf32, #tpu.memory_space<vmem>>, vector<1x32x128xf32>
    %68 = vector.shape_cast %67 : vector<1x32x128xf32> to vector<32x128xf32>
    %cst_75 = arith.constant dense<0.000000e+00> : vector<8x128xf32>
    %69 = tpu.matmul %61, %68, %cst_75 {dimension_numbers = #tpu.dot_dimension_numbers<[1], [0], [0], [1], [0, 0, 1, 1], [], []>} : vector<8x32xf32>, vector<32x128xf32>, vector<8x128xf32> -> vector<8x128xf32>
    %c0_76 = arith.constant 0 : index
    %c0_77 = arith.constant 0 : index
    %c0_78 = arith.constant 0 : index
    %70 = vector.load %arg18[%c0_76, %c0_77, %c0_78] : memref<3x32x128xf32, #tpu.memory_space<vmem>>, vector<1x32x128xf32>
    %71 = vector.shape_cast %70 : vector<1x32x128xf32> to vector<32x128xf32>
    %cst_79 = arith.constant dense<0.000000e+00> : vector<8x128xf32>
    %72 = tpu.matmul %63, %71, %cst_79 {dimension_numbers = #tpu.dot_dimension_numbers<[1], [0], [0], [1], [0, 0, 1, 1], [], []>} : vector<8x32xf32>, vector<32x128xf32>, vector<8x128xf32> -> vector<8x128xf32>
    %73 = arith.addf %69, %72 : vector<8x128xf32>
    %c0_80 = arith.constant 0 : index
    %c0_81 = arith.constant 0 : index
    %74 = vector.load %arg21[%c0_80, %c0_81] : memref<16x8xf32, #tpu.memory_space<vmem>>, vector<16x8xf32>
    %cst_82 = arith.constant dense<0.000000e+00> : vector<16x128xf32>
    %75 = tpu.matmul %74, %66, %cst_82 {dimension_numbers = #tpu.dot_dimension_numbers<[1], [0], [0], [1], [0, 0, 1, 1], [], []>, precision = #tpu.contract_precision<fp32>} : vector<16x8xf32>, vector<8x128xf32>, vector<16x128xf32> -> vector<16x128xf32>
    %c0_83 = arith.constant 0 : index
    %c0_84 = arith.constant 0 : index
    %76 = vector.load %arg22[%c0_83, %c0_84] : memref<16x8xf32, #tpu.memory_space<vmem>>, vector<16x8xf32>
    %cst_85 = arith.constant dense<0.000000e+00> : vector<16x128xf32>
    %77 = tpu.matmul %76, %73, %cst_85 {dimension_numbers = #tpu.dot_dimension_numbers<[1], [0], [0], [1], [0, 0, 1, 1], [], []>, precision = #tpu.contract_precision<fp32>} : vector<16x8xf32>, vector<8x128xf32>, vector<16x128xf32> -> vector<16x128xf32>
    %78 = arith.addf %75, %77 : vector<16x128xf32>
    %c0_86 = arith.constant 0 : index
    %c0_87 = arith.constant 0 : index
    %79 = vector.load %arg19[%c0_86, %c0_87] : memref<1x128xf32, #tpu.memory_space<vmem>>, vector<1x128xf32>
    %80 = vector.broadcast %79 : vector<1x128xf32> to vector<16x128xf32>
    %81 = arith.addf %78, %80 : vector<16x128xf32>
    %cst_88 = arith.constant 0.000000e+00 : f32
    %82 = vector.broadcast %cst_88 : f32 to vector<16x128xf32>
    %83 = arith.maximumf %81, %82 : vector<16x128xf32>
    %c0_89 = arith.constant 0 : index
    %c0_90 = arith.constant 0 : index
    %84 = vector.load %arg25[%c0_89, %c0_90] : memref<16x16xf32, #tpu.memory_space<vmem>>, vector<16x16xf32>
    %cst_91 = arith.constant dense<0.000000e+00> : vector<16x128xf32>
    %85 = tpu.matmul %84, %83, %cst_91 {dimension_numbers = #tpu.dot_dimension_numbers<[1], [0], [0], [1], [0, 0, 1, 1], [], []>, precision = #tpu.contract_precision<fp32>} : vector<16x16xf32>, vector<16x128xf32>, vector<16x128xf32> -> vector<16x128xf32>
    %c1_92 = arith.constant 1 : index
    %c0_93 = arith.constant 0 : index
    %c0_94 = arith.constant 0 : index
    %86 = vector.load %arg23[%c1_92, %c0_93, %c0_94] : memref<3x128x48xf32, #tpu.memory_space<vmem>>, vector<1x128x48xf32>
    %87 = vector.shape_cast %86 : vector<1x128x48xf32> to vector<128x48xf32>
    %cst_95 = arith.constant dense<0.000000e+00> : vector<16x48xf32>
    %88 = tpu.matmul %83, %87, %cst_95 {dimension_numbers = #tpu.dot_dimension_numbers<[1], [0], [0], [1], [0, 0, 1, 1], [], []>} : vector<16x128xf32>, vector<128x48xf32>, vector<16x48xf32> -> vector<16x48xf32>
    %c2_96 = arith.constant 2 : index
    %c0_97 = arith.constant 0 : index
    %c0_98 = arith.constant 0 : index
    %89 = vector.load %arg23[%c2_96, %c0_97, %c0_98] : memref<3x128x48xf32, #tpu.memory_space<vmem>>, vector<1x128x48xf32>
    %90 = vector.shape_cast %89 : vector<1x128x48xf32> to vector<128x48xf32>
    %cst_99 = arith.constant dense<0.000000e+00> : vector<16x48xf32>
    %91 = tpu.matmul %83, %90, %cst_99 {dimension_numbers = #tpu.dot_dimension_numbers<[1], [0], [0], [1], [0, 0, 1, 1], [], []>} : vector<16x128xf32>, vector<128x48xf32>, vector<16x48xf32> -> vector<16x48xf32>
    %c0_100 = arith.constant 0 : index
    %c0_101 = arith.constant 0 : index
    %c0_102 = arith.constant 0 : index
    %92 = vector.load %arg23[%c0_100, %c0_101, %c0_102] : memref<3x128x48xf32, #tpu.memory_space<vmem>>, vector<1x128x48xf32>
    %93 = vector.shape_cast %92 : vector<1x128x48xf32> to vector<128x48xf32>
    %cst_103 = arith.constant dense<0.000000e+00> : vector<16x48xf32>
    %94 = tpu.matmul %85, %93, %cst_103 {dimension_numbers = #tpu.dot_dimension_numbers<[1], [0], [0], [1], [0, 0, 1, 1], [], []>} : vector<16x128xf32>, vector<128x48xf32>, vector<16x48xf32> -> vector<16x48xf32>
    %95 = arith.addf %91, %94 : vector<16x48xf32>
    %c0_104 = arith.constant 0 : index
    %c0_105 = arith.constant 0 : index
    %96 = vector.load %arg26[%c0_104, %c0_105] : memref<32x16xf32, #tpu.memory_space<vmem>>, vector<32x16xf32>
    %cst_106 = arith.constant dense<0.000000e+00> : vector<32x48xf32>
    %97 = tpu.matmul %96, %88, %cst_106 {dimension_numbers = #tpu.dot_dimension_numbers<[1], [0], [0], [1], [0, 0, 1, 1], [], []>, precision = #tpu.contract_precision<fp32>} : vector<32x16xf32>, vector<16x48xf32>, vector<32x48xf32> -> vector<32x48xf32>
    %c0_107 = arith.constant 0 : index
    %c0_108 = arith.constant 0 : index
    %98 = vector.load %arg27[%c0_107, %c0_108] : memref<32x16xf32, #tpu.memory_space<vmem>>, vector<32x16xf32>
    %cst_109 = arith.constant dense<0.000000e+00> : vector<32x48xf32>
    %99 = tpu.matmul %98, %95, %cst_109 {dimension_numbers = #tpu.dot_dimension_numbers<[1], [0], [0], [1], [0, 0, 1, 1], [], []>, precision = #tpu.contract_precision<fp32>} : vector<32x16xf32>, vector<16x48xf32>, vector<32x48xf32> -> vector<32x48xf32>
    %100 = arith.addf %97, %99 : vector<32x48xf32>
    %c0_110 = arith.constant 0 : index
    %c0_111 = arith.constant 0 : index
    %101 = vector.load %arg24[%c0_110, %c0_111] : memref<1x48xf32, #tpu.memory_space<vmem>>, vector<1x48xf32>
    %102 = vector.broadcast %101 : vector<1x48xf32> to vector<32x48xf32>
    %103 = arith.addf %100, %102 : vector<32x48xf32>
    %104 = arith.negf %103 : vector<32x48xf32>
    %105 = math.exp %104 : vector<32x48xf32>
    %cst_112 = arith.constant 1.000000e+00 : f32
    %106 = vector.broadcast %cst_112 : f32 to vector<32x48xf32>
    %107 = arith.addf %106, %105 : vector<32x48xf32>
    %108 = arith.divf %106, %107 : vector<32x48xf32>
    %c0_113 = arith.constant 0 : index
    %c0_114 = arith.constant 0 : index
    %c0_115 = arith.constant 0 : index
    %109 = vector.load %arg28[%c0_113, %c0_114, %c0_115] : memref<1x32x48xf32, #tpu.memory_space<vmem>>, vector<1x32x48xf32>
    %110 = vector.shape_cast %109 : vector<1x32x48xf32> to vector<32x48xf32>
    %111 = vector.shape_cast %108 : vector<32x48xf32> to vector<1x32x48xf32>
    tpu.vector_store %arg28[%c0_113, %c0_114, %c0_115], %111 {strides = array<i32>} : memref<1x32x48xf32, #tpu.memory_space<vmem>>, vector<1x32x48xf32>,
    return
  }
  func.func @transform_0(%arg0: i32) -> (i32, i32, i32) {
    %c0_i32 = arith.constant 0 : i32
    %c0_i32_0 = arith.constant 0 : i32
    %c0_i32_1 = arith.constant 0 : i32
    return %arg0, %c0_i32, %c0_i32_0 : i32, i32, i32
  }
  func.func @transform_1(%arg0: i32) -> (i32, i32, i32) {
    %c0_i32 = arith.constant 0 : i32
    %c0_i32_0 = arith.constant 0 : i32
    %c0_i32_1 = arith.constant 0 : i32
    %c0_i32_2 = arith.constant 0 : i32
    return %c0_i32, %c0_i32_0, %c0_i32_1 : i32, i32, i32
  }
  func.func @transform_2(%arg0: i32) -> (i32, i32) {
    %c0_i32 = arith.constant 0 : i32
    %c0_i32_0 = arith.constant 0 : i32
    %c0_i32_1 = arith.constant 0 : i32
    return %c0_i32, %c0_i32_0 : i32, i32
  }
  func.func @transform_3(%arg0: i32) -> (i32, i32) {
    %c0_i32 = arith.constant 0 : i32
    %c0_i32_0 = arith.constant 0 : i32
    %c0_i32_1 = arith.constant 0 : i32
    return %c0_i32, %c0_i32_0 : i32, i32
  }
  func.func @transform_4(%arg0: i32) -> (i32, i32) {
    %c0_i32 = arith.constant 0 : i32
    %c0_i32_0 = arith.constant 0 : i32
    %c0_i32_1 = arith.constant 0 : i32
    return %c0_i32, %c0_i32_0 : i32, i32
  }
  func.func @transform_5(%arg0: i32) -> (i32, i32) {
    %c0_i32 = arith.constant 0 : i32
    %c0_i32_0 = arith.constant 0 : i32
    %c0_i32_1 = arith.constant 0 : i32
    return %c0_i32, %c0_i32_0 : i32, i32
  }
  func.func @transform_6(%arg0: i32) -> (i32, i32) {
    %c0_i32 = arith.constant 0 : i32
    %c0_i32_0 = arith.constant 0 : i32
    %c0_i32_1 = arith.constant 0 : i32
    return %c0_i32, %c0_i32_0 : i32, i32
  }
  func.func @transform_7(%arg0: i32) -> (i32, i32) {
    %c0_i32 = arith.constant 0 : i32
    %c0_i32_0 = arith.constant 0 : i32
    %c0_i32_1 = arith.constant 0 : i32
    return %c0_i32, %c0_i32_0 : i32, i32
  }
  func.func @transform_8(%arg0: i32) -> (i32, i32) {
    %c0_i32 = arith.constant 0 : i32
    %c0_i32_0 = arith.constant 0 : i32
    %c0_i32_1 = arith.constant 0 : i32
    return %c0_i32, %c0_i32_0 : i32, i32
  }
  func.func @transform_9(%arg0: i32) -> (i32, i32, i32) {
    %c0_i32 = arith.constant 0 : i32
    %c0_i32_0 = arith.constant 0 : i32
    %c0_i32_1 = arith.constant 0 : i32
    %c0_i32_2 = arith.constant 0 : i32
    return %c0_i32, %c0_i32_0, %c0_i32_1 : i32, i32, i32
  }
  func.func @transform_10(%arg0: i32) -> (i32, i32) {
    %c0_i32 = arith.constant 0 : i32
    %c0_i32_0 = arith.constant 0 : i32
    %c0_i32_1 = arith.constant 0 : i32
    return %c0_i32, %c0_i32_0 : i32, i32
  }
  func.func @transform_11(%arg0: i32) -> (i32, i32) {
    %c0_i32 = arith.constant 0 : i32
    %c0_i32_0 = arith.constant 0 : i32
    %c0_i32_1 = arith.constant 0 : i32
    return %c0_i32, %c0_i32_0 : i32, i32
  }
  func.func @transform_12(%arg0: i32) -> (i32, i32) {
    %c0_i32 = arith.constant 0 : i32
    %c0_i32_0 = arith.constant 0 : i32
    %c0_i32_1 = arith.constant 0 : i32
    return %c0_i32, %c0_i32_0 : i32, i32
  }
  func.func @transform_13(%arg0: i32) -> (i32, i32) {
    %c0_i32 = arith.constant 0 : i32
    %c0_i32_0 = arith.constant 0 : i32
    %c0_i32_1 = arith.constant 0 : i32
    return %c0_i32, %c0_i32_0 : i32, i32
  }
  func.func @transform_14(%arg0: i32) -> (i32, i32) {
    %c0_i32 = arith.constant 0 : i32
    %c0_i32_0 = arith.constant 0 : i32
    %c0_i32_1 = arith.constant 0 : i32
    return %c0_i32, %c0_i32_0 : i32, i32
  }
  func.func @transform_15(%arg0: i32) -> (i32, i32) {
    %c0_i32 = arith.constant 0 : i32
    %c0_i32_0 = arith.constant 0 : i32
    %c0_i32_1 = arith.constant 0 : i32
    return %c0_i32, %c0_i32_0 : i32, i32
  }
  func.func @transform_16(%arg0: i32) -> (i32, i32) {
    %c0_i32 = arith.constant 0 : i32
    %c0_i32_0 = arith.constant 0 : i32
    %c0_i32_1 = arith.constant 0 : i32
    return %c0_i32, %c0_i32_0 : i32, i32
  }
  func.func @transform_17(%arg0: i32) -> (i32, i32, i32) {
    %c0_i32 = arith.constant 0 : i32
    %c0_i32_0 = arith.constant 0 : i32
    %c0_i32_1 = arith.constant 0 : i32
    %c0_i32_2 = arith.constant 0 : i32
    return %c0_i32, %c0_i32_0, %c0_i32_1 : i32, i32, i32
  }
  func.func @transform_18(%arg0: i32) -> (i32, i32) {
    %c0_i32 = arith.constant 0 : i32
    %c0_i32_0 = arith.constant 0 : i32
    %c0_i32_1 = arith.constant 0 : i32
    return %c0_i32, %c0_i32_0 : i32, i32
  }
  func.func @transform_19(%arg0: i32) -> (i32, i32) {
    %c0_i32 = arith.constant 0 : i32
    %c0_i32_0 = arith.constant 0 : i32
    %c0_i32_1 = arith.constant 0 : i32
    return %c0_i32, %c0_i32_0 : i32, i32
  }
  func.func @transform_20(%arg0: i32) -> (i32, i32) {
    %c0_i32 = arith.constant 0 : i32
    %c0_i32_0 = arith.constant 0 : i32
    %c0_i32_1 = arith.constant 0 : i32
    return %c0_i32, %c0_i32_0 : i32, i32
  }
  func.func @transform_21(%arg0: i32) -> (i32, i32) {
    %c0_i32 = arith.constant 0 : i32
    %c0_i32_0 = arith.constant 0 : i32
    %c0_i32_1 = arith.constant 0 : i32
    return %c0_i32, %c0_i32_0 : i32, i32
  }
  func.func @transform_22(%arg0: i32) -> (i32, i32, i32) {
    %c0_i32 = arith.constant 0 : i32
    %c0_i32_0 = arith.constant 0 : i32
    %c0_i32_1 = arith.constant 0 : i32
    %c0_i32_2 = arith.constant 0 : i32
    return %c0_i32, %c0_i32_0, %c0_i32_1 : i32, i32, i32
  }
  func.func @transform_23(%arg0: i32) -> (i32, i32) {
    %c0_i32 = arith.constant 0 : i32
    %c0_i32_0 = arith.constant 0 : i32
    %c0_i32_1 = arith.constant 0 : i32
    return %c0_i32, %c0_i32_0 : i32, i32
  }
  func.func @transform_24(%arg0: i32) -> (i32, i32) {
    %c0_i32 = arith.constant 0 : i32
    %c0_i32_0 = arith.constant 0 : i32
    %c0_i32_1 = arith.constant 0 : i32
    return %c0_i32, %c0_i32_0 : i32, i32
  }
  func.func @transform_25(%arg0: i32) -> (i32, i32) {
    %c0_i32 = arith.constant 0 : i32
    %c0_i32_0 = arith.constant 0 : i32
    %c0_i32_1 = arith.constant 0 : i32
    return %c0_i32, %c0_i32_0 : i32, i32
  }
  func.func @transform_26(%arg0: i32) -> (i32, i32) {
    %c0_i32 = arith.constant 0 : i32
    %c0_i32_0 = arith.constant 0 : i32
    %c0_i32_1 = arith.constant 0 : i32
    return %c0_i32, %c0_i32_0 : i32, i32
  }
  func.func @transform_27(%arg0: i32) -> (i32, i32, i32) {
    %c0_i32 = arith.constant 0 : i32
    %c0_i32_0 = arith.constant 0 : i32
    %c0_i32_1 = arith.constant 0 : i32
    return %arg0, %c0_i32, %c0_i32_0 : i32, i32, i32
  }
}

</mosaic_0001>

<llo_original>
// kernel: autoencoder_forward.1
$region0: #{autoencoder_forward.1}
  #allocation0 [shape = 'u32[]', space=smem, size = 0x4, offset = 0x4, fixed_abs, tag = 'smem constant byte address 0x4 - core index']
  #allocation1 [shape = 'u32[144,128]{1,0:T(1,128)}', space=vmem, size = 0x12000, scoped, tag = 'internal scratch']
  %s0 = inlined_call_operand.vmem [shape: f32[1,32,48], index: 0, kind: input, shape index: {}]
  %s1 = inlined_call_operand.vmem [shape: f32[3,48,256], index: 1, kind: input, shape index: {}]
  %s2 = inlined_call_operand.vmem [shape: f32[1,256], index: 2, kind: input, shape index: {}]
  %s3 = inlined_call_operand.vmem [shape: f32[32,32], index: 3, kind: input, shape index: {}]
  %s4 = inlined_call_operand.vmem [shape: f32[32,32], index: 4, kind: input, shape index: {}]
  %s5 = inlined_call_operand.vmem [shape: f32[256,128], index: 5, kind: input, shape index: {}]
  %s6 = inlined_call_operand.vmem [shape: f32[256,128], index: 6, kind: input, shape index: {}]
  %s7 = inlined_call_operand.vmem [shape: f32[16,32], index: 7, kind: input, shape index: {}]
  %s8 = inlined_call_operand.vmem [shape: f32[16,32], index: 8, kind: input, shape index: {}]
  %s9 = inlined_call_operand.vmem [shape: f32[3,128,64], index: 9, kind: input, shape index: {}]
  %s10 = inlined_call_operand.vmem [shape: f32[1,64], index: 10, kind: input, shape index: {}]
  %s11 = inlined_call_operand.vmem [shape: f32[16,16], index: 11, kind: input, shape index: {}]
  %s12 = inlined_call_operand.vmem [shape: f32[16,16], index: 12, kind: input, shape index: {}]
  %s13 = inlined_call_operand.vmem [shape: f32[64,32], index: 13, kind: input, shape index: {}]
  %s14 = inlined_call_operand.vmem [shape: f32[64,32], index: 14, kind: input, shape index: {}]
  %s15 = inlined_call_operand.vmem [shape: f32[8,16], index: 15, kind: input, shape index: {}]
  %s16 = inlined_call_operand.vmem [shape: f32[8,16], index: 16, kind: input, shape index: {}]
  %s17 = inlined_call_operand.vmem [shape: f32[3,32,128], index: 17, kind: input, shape index: {}]
  %s18 = inlined_call_operand.vmem [shape: f32[1,128], index: 18, kind: input, shape index: {}]
  %s19 = inlined_call_operand.vmem [shape: f32[8,8], index: 19, kind: input, shape index: {}]
  %s20 = inlined_call_operand.vmem [shape: f32[16,8], index: 20, kind: input, shape index: {}]
  %s21 = inlined_call_operand.vmem [shape: f32[16,8], index: 21, kind: input, shape index: {}]
  %s22 = inlined_call_operand.vmem [shape: f32[3,128,48], index: 22, kind: input, shape index: {}]
  %s23 = inlined_call_operand.vmem [shape: f32[1,48], index: 23, kind: input, shape index: {}]
  %s24 = inlined_call_operand.vmem [shape: f32[16,16], index: 24, kind: input, shape index: {}]
  %s25 = inlined_call_operand.vmem [shape: f32[32,16], index: 25, kind: input, shape index: {}]
  %s26 = inlined_call_operand.vmem [shape: f32[32,16], index: 26, kind: input, shape index: {}]
  %s27 = inlined_call_operand.vmem [shape: f32[1,32,48], index: 27, kind: output, shape index: {}]
  %s28 = sld [smem:[#allocation0]]
  $region118: #{autoencoder_forward.1} parent=0
    _
  %s30 = ssub.s32 1, %s28
  %s31 = scalar_select 0, %s30, %s28
  // Predicated region
  $region2: #{autoencoder_forward.1} parent=0 // pred_check
    _
  $region3: #{autoencoder_forward.1} parent=0 // pred_check_branch
    %33 = sbr.rel (0) target = $region5
  $region4: #{autoencoder_forward.1} parent=0 // pred_region
    _
  $region5: #{autoencoder_forward.1} parent=0 // pred_fallthru
    _
  // Predicated region
  $region6: #{autoencoder_forward.1} parent=0 // pred_check
    _
  $region7: #{autoencoder_forward.1} parent=0 // pred_check_branch
    %35 = sbr.rel (0) target = $region9
  $region8: #{autoencoder_forward.1} parent=0 // pred_region
    _
  $region9: #{autoencoder_forward.1} parent=0 // pred_fallthru
    _
  // Predicated region
  $region10: #{autoencoder_forward.1} parent=0 // pred_check
    _
  $region11: #{autoencoder_forward.1} parent=0 // pred_check_branch
    %37 = sbr.rel (0) target = $region13
  $region12: #{autoencoder_forward.1} parent=0 // pred_region
    _
  $region13: #{autoencoder_forward.1} parent=0 // pred_fallthru
    _
  // Predicated region
  $region14: #{autoencoder_forward.1} parent=0 // pred_check
    _
  $region15: #{autoencoder_forward.1} parent=0 // pred_check_branch
    %39 = sbr.rel (0) target = $region17
  $region16: #{autoencoder_forward.1} parent=0 // pred_region
    _
  $region17: #{autoencoder_forward.1} parent=0 // pred_fallthru
    _
  // Predicated region
  $region18: #{autoencoder_forward.1} parent=0 // pred_check
    _
  $region19: #{autoencoder_forward.1} parent=0 // pred_check_branch
    %41 = sbr.rel (0) target = $region21
  $region20: #{autoencoder_forward.1} parent=0 // pred_region
    _
  $region21: #{autoencoder_forward.1} parent=0 // pred_fallthru
    _
  // Predicated region
  $region22: #{autoencoder_forward.1} parent=0 // pred_check
    _
  $region23: #{autoencoder_forward.1} parent=0 // pred_check_branch
    %43 = sbr.rel (0) target = $region25
  $region24: #{autoencoder_forward.1} parent=0 // pred_region
    _
  $region25: #{autoencoder_forward.1} parent=0 // pred_fallthru
    _
  // Predicated region
  $region26: #{autoencoder_forward.1} parent=0 // pred_check
    _
  $region27: #{autoencoder_forward.1} parent=0 // pred_check_branch
    %45 = sbr.rel (0) target = $region29
  $region28: #{autoencoder_forward.1} parent=0 // pred_region
    _
  $region29: #{autoencoder_forward.1} parent=0 // pred_fallthru
    _
  // Predicated region
  $region30: #{autoencoder_forward.1} parent=0 // pred_check
    _
  $region31: #{autoencoder_forward.1} parent=0 // pred_check_branch
    %47 = sbr.rel (0) target = $region33
  $region32: #{autoencoder_forward.1} parent=0 // pred_region
    _
  $region33: #{autoencoder_forward.1} parent=0 // pred_fallthru
    _
  // Predicated region
  $region34: #{autoencoder_forward.1} parent=0 // pred_check
    _
  $region35: #{autoencoder_forward.1} parent=0 // pred_check_branch
    %49 = sbr.rel (0) target = $region37
  $region36: #{autoencoder_forward.1} parent=0 // pred_region
    _
  $region37: #{autoencoder_forward.1} parent=0 // pred_fallthru
    _
  // Predicated region
  $region38: #{autoencoder_forward.1} parent=0 // pred_check
    _
  $region39: #{autoencoder_forward.1} parent=0 // pred_check_branch
    %51 = sbr.rel (0) target = $region41
  $region40: #{autoencoder_forward.1} parent=0 // pred_region
    _
  $region41: #{autoencoder_forward.1} parent=0 // pred_fallthru
    _
  // Predicated region
  $region42: #{autoencoder_forward.1} parent=0 // pred_check
    _
  $region43: #{autoencoder_forward.1} parent=0 // pred_check_branch
    %53 = sbr.rel (0) target = $region45
  $region44: #{autoencoder_forward.1} parent=0 // pred_region
    _
  $region45: #{autoencoder_forward.1} parent=0 // pred_fallthru
    _
  // Predicated region
  $region46: #{autoencoder_forward.1} parent=0 // pred_check
    _
  $region47: #{autoencoder_forward.1} parent=0 // pred_check_branch
    %55 = sbr.rel (0) target = $region49
  $region48: #{autoencoder_forward.1} parent=0 // pred_region
    _
  $region49: #{autoencoder_forward.1} parent=0 // pred_fallthru
    _
  // Predicated region
  $region50: #{autoencoder_forward.1} parent=0 // pred_check
    _
  $region51: #{autoencoder_forward.1} parent=0 // pred_check_branch
    %57 = sbr.rel (0) target = $region53
  $region52: #{autoencoder_forward.1} parent=0 // pred_region
    _
  $region53: #{autoencoder_forward.1} parent=0 // pred_fallthru
    _
  // Predicated region
  $region54: #{autoencoder_forward.1} parent=0 // pred_check
    _
  $region55: #{autoencoder_forward.1} parent=0 // pred_check_branch
    %59 = sbr.rel (0) target = $region57
  $region56: #{autoencoder_forward.1} parent=0 // pred_region
    _
  $region57: #{autoencoder_forward.1} parent=0 // pred_fallthru
    _
  // Predicated region
  $region58: #{autoencoder_forward.1} parent=0 // pred_check
    _
  $region59: #{autoencoder_forward.1} parent=0 // pred_check_branch
    %61 = sbr.rel (0) target = $region61
  $region60: #{autoencoder_forward.1} parent=0 // pred_region
    _
  $region61: #{autoencoder_forward.1} parent=0 // pred_fallthru
    _
  // Predicated region
  $region62: #{autoencoder_forward.1} parent=0 // pred_check
    _
  $region63: #{autoencoder_forward.1} parent=0 // pred_check_branch
    %63 = sbr.rel (0) target = $region65
  $region64: #{autoencoder_forward.1} parent=0 // pred_region
    _
  $region65: #{autoencoder_forward.1} parent=0 // pred_fallthru
    _
  // Predicated region
  $region66: #{autoencoder_forward.1} parent=0 // pred_check
    _
  $region67: #{autoencoder_forward.1} parent=0 // pred_check_branch
    %65 = sbr.rel (0) target = $region69
  $region68: #{autoencoder_forward.1} parent=0 // pred_region
    _
  $region69: #{autoencoder_forward.1} parent=0 // pred_fallthru
    _
  // Predicated region
  $region70: #{autoencoder_forward.1} parent=0 // pred_check
    _
  $region71: #{autoencoder_forward.1} parent=0 // pred_check_branch
    %67 = sbr.rel (0) target = $region73
  $region72: #{autoencoder_forward.1} parent=0 // pred_region
    _
  $region73: #{autoencoder_forward.1} parent=0 // pred_fallthru
    _
  // Predicated region
  $region74: #{autoencoder_forward.1} parent=0 // pred_check
    _
  $region75: #{autoencoder_forward.1} parent=0 // pred_check_branch
    %69 = sbr.rel (0) target = $region77
  $region76: #{autoencoder_forward.1} parent=0 // pred_region
    _
  $region77: #{autoencoder_forward.1} parent=0 // pred_fallthru
    _
  // Predicated region
  $region78: #{autoencoder_forward.1} parent=0 // pred_check
    _
  $region79: #{autoencoder_forward.1} parent=0 // pred_check_branch
    %71 = sbr.rel (0) target = $region81
  $region80: #{autoencoder_forward.1} parent=0 // pred_region
    _
  $region81: #{autoencoder_forward.1} parent=0 // pred_fallthru
    _
  // Predicated region
  $region82: #{autoencoder_forward.1} parent=0 // pred_check
    _
  $region83: #{autoencoder_forward.1} parent=0 // pred_check_branch
    %73 = sbr.rel (0) target = $region85
  $region84: #{autoencoder_forward.1} parent=0 // pred_region
    _
  $region85: #{autoencoder_forward.1} parent=0 // pred_fallthru
    _
  // Predicated region
  $region86: #{autoencoder_forward.1} parent=0 // pred_check
    _
  $region87: #{autoencoder_forward.1} parent=0 // pred_check_branch
    %75 = sbr.rel (0) target = $region89
  $region88: #{autoencoder_forward.1} parent=0 // pred_region
    _
  $region89: #{autoencoder_forward.1} parent=0 // pred_fallthru
    _
  // Predicated region
  $region90: #{autoencoder_forward.1} parent=0 // pred_check
    _
  $region91: #{autoencoder_forward.1} parent=0 // pred_check_branch
    %77 = sbr.rel (0) target = $region93
  $region92: #{autoencoder_forward.1} parent=0 // pred_region
    _
  $region93: #{autoencoder_forward.1} parent=0 // pred_fallthru
    _
  // Predicated region
  $region94: #{autoencoder_forward.1} parent=0 // pred_check
    _
  $region95: #{autoencoder_forward.1} parent=0 // pred_check_branch
    %79 = sbr.rel (0) target = $region97
  $region96: #{autoencoder_forward.1} parent=0 // pred_region
    _
  $region97: #{autoencoder_forward.1} parent=0 // pred_fallthru
    _
  // Predicated region
  $region98: #{autoencoder_forward.1} parent=0 // pred_check
    _
  $region99: #{autoencoder_forward.1} parent=0 // pred_check_branch
    %81 = sbr.rel (0) target = $region101
  $region100: #{autoencoder_forward.1} parent=0 // pred_region
    _
  $region101: #{autoencoder_forward.1} parent=0 // pred_fallthru
    _
  // Predicated region
  $region102: #{autoencoder_forward.1} parent=0 // pred_check
    _
  $region103: #{autoencoder_forward.1} parent=0 // pred_check_branch
    %83 = sbr.rel (0) target = $region105
  $region104: #{autoencoder_forward.1} parent=0 // pred_region
    _
  $region105: #{autoencoder_forward.1} parent=0 // pred_fallthru
    _
  // Predicated region
  $region106: #{autoencoder_forward.1} parent=0 // pred_check
    _
  $region107: #{autoencoder_forward.1} parent=0 // pred_check_branch
    %85 = sbr.rel (0) target = $region109
  $region108: #{autoencoder_forward.1} parent=0 // pred_region
    _
  $region109: #{autoencoder_forward.1} parent=0 // pred_fallthru
    _
  %v86 = vld [vmem:[%s0] sm:$0xff]
  %v87 = vld [vmem:[%s0 + $0x8] sm:$0xff]
  %v88 = vld [vmem:[%s0 + $0x10] sm:$0xff]
  %v89 = vld [vmem:[%s0 + $0x18] sm:$0xff]
  %v90 = vld [vmem:[%s3] sm:$0xff]
  %v91 = vld [vmem:[%s3 + $0x8] sm:$0xff]
  %v92 = vld [vmem:[%s3 + $0x10] sm:$0xff]
  %v93 = vld [vmem:[%s3 + $0x18] sm:$0xff]
  %vm94 = vcmask 261120
  %v96 = vsel %vm94, %v90, 0
  %v99 = vsel %vm94, %v91, 0
  %v102 = vsel %vm94, %v92, 0
  %v105 = vsel %vm94, %v93, 0
  %107 = vmatprep.subr.mxu0 0.0
  %v108 = vand.u32 %v86, 4294901760
  %109 = vmatpush1.msra.mxu0 %v108
  %110 = vmatprep.subr.mxu0 0.0
  %v111 = vand.u32 %v87, 4294901760
  %112 = vmatpush1.msra.mxu0 %v111
  %113 = vmatprep.subr.mxu0 0.0
  %v114 = vand.u32 %v88, 4294901760
  %115 = vmatpush1.msra.mxu0 %v114
  %116 = vmatprep.subr.mxu0 0.0
  %v117 = vand.u32 %v89, 4294901760
  %118 = vmatpush1.msra.mxu0 %v117
  %119 = vmatprep.subr.mxu0 0.0
  %120 = vmatpush1.msra.mxu0 0.0
  %121 = vmatprep.subr.mxu0 0.0
  %122 = vmatpush1.msra.mxu0 0.0
  %123 = vmatprep.subr.mxu0 0.0
  %124 = vmatpush1.msra.mxu0 0.0
  %125 = vmatprep.subr.mxu0 0.0
  %126 = vmatpush1.msra.mxu0 0.0
  %127 = vmatprep.subr.mxu0 0.0
  %128 = vmatpush1.msra.mxu0 0.0
  %129 = vmatprep.subr.mxu0 0.0
  %130 = vmatpush1.msra.mxu0 0.0
  %131 = vmatprep.subr.mxu0 0.0
  %132 = vmatpush1.msra.mxu0 0.0
  %133 = vmatprep.subr.mxu0 0.0
  %134 = vmatpush1.msra.mxu0 0.0
  %135 = vmatprep.subr.mxu0 0.0
  %136 = vmatpush1.msra.mxu0 0.0
  %137 = vmatprep.subr.mxu0 0.0
  %138 = vmatpush1.msra.mxu0 0.0
  %139 = vmatprep.subr.mxu0 0.0
  %140 = vmatpush1.msra.mxu0 0.0
  %141 = vmatprep.subr.mxu0 0.0
  %142 = vmatpush1.msra.mxu0 0.0
  %143 = vmatprep.subr.mxu0 0.0
  %144 = vmatpush1.msra.mxu0 0.0
  %145 = vmatprep.subr.mxu0 0.0
  %146 = vmatpush1.msra.mxu0 0.0
  %147 = vmatprep.subr.mxu0 0.0
  %148 = vmatpush1.msra.mxu0 0.0
  %149 = vmatprep.subr.mxu0 0.0
  %150 = vmatpush1.msra.mxu0 0.0
  %151 = vmatprep.subr.mxu0 0.0
  %152 = vmatpush1.msra.mxu0 0.0
  %153 = vmatprep.subr.mxu0 0.0
  %154 = vmatpush1.msra.mxu0 0.0
  %155 = vmatprep.subr.mxu0 0.0
  %156 = vmatpush1.msra.mxu0 0.0
  %157 = vmatprep.subr.mxu0 0.0
  %158 = vmatpush1.msra.mxu0 0.0
  %159 = vmatprep.subr.mxu0 0.0
  %160 = vmatpush1.msra.mxu0 0.0
  %161 = vmatprep.subr.mxu0 0.0
  %162 = vmatpush1.msra.mxu0 0.0
  %163 = vmatprep.subr.mxu0 0.0
  %164 = vmatpush1.msra.mxu0 0.0
  %165 = vmatprep.subr.mxu0 0.0
  %166 = vmatpush1.msra.mxu0 0.0
  %167 = vmatprep.subr.mxu0 0.0
  %168 = vmatpush1.msra.mxu0 0.0
  %169 = vmatprep.subr.mxu0 0.0
  %170 = vmatpush1.msra.mxu0 0.0
  %171 = vmatprep.subr.mxu0 0.0
  %172 = vmatpush1.msra.mxu0 0.0
  %173 = vmatprep.subr.mxu0 0.0
  %174 = vmatpush1.msra.mxu0 0.0
  %175 = vmatprep.mubr.f32.mxu0 0.0
  %v176 = vand.u32 %v96, 4294901760
  %v177 = vsub.f32 %v96, %v176
  %v178 = vand.u32 %v177, 4294901760
  %v179 = vsub.f32 %v177, %v178
  %v180 = vand.u32 %v179, 4294901760
  %181 = vmatmul.mubr.f32.gmra.mrb[0].mxu0 %v180
  %v182 = vpop.f32.mrb[0].mxu0
  %v183 = vadd.f32 0.0, %v182
  %v184 = vpop.f32.mrb[0].mxu0
  %185 = vmatprep.mubr.f32.mxu0 0.0
  %v186 = vand.u32 %v99, 4294901760
  %v187 = vsub.f32 %v99, %v186
  %v188 = vand.u32 %v187, 4294901760
  %v189 = vsub.f32 %v187, %v188
  %v190 = vand.u32 %v189, 4294901760
  %191 = vmatmul.mubr.f32.gmra.mrb[0].mxu0 %v190
  %v192 = vpop.f32.mrb[0].mxu0
  %v193 = vadd.f32 0.0, %v192
  %v194 = vpop.f32.mrb[0].mxu0
  %195 = vmatprep.mubr.f32.mxu0 0.0
  %v196 = vand.u32 %v102, 4294901760
  %v197 = vsub.f32 %v102, %v196
  %v198 = vand.u32 %v197, 4294901760
  %v199 = vsub.f32 %v197, %v198
  %v200 = vand.u32 %v199, 4294901760
  %201 = vmatmul.mubr.f32.gmra.mrb[0].mxu0 %v200
  %v202 = vpop.f32.mrb[0].mxu0
  %v203 = vadd.f32 0.0, %v202
  %v204 = vpop.f32.mrb[0].mxu0
  %205 = vmatprep.mubr.f32.mxu0 0.0
  %v206 = vand.u32 %v105, 4294901760
  %v207 = vsub.f32 %v105, %v206
  %v208 = vand.u32 %v207, 4294901760
  %v209 = vsub.f32 %v207, %v208
  %v210 = vand.u32 %v209, 4294901760
  %211 = vmatmul.mubr.f32.gmra.mrb[0].mxu0 %v210
  %v212 = vpop.f32.mrb[0].mxu0
  %v213 = vadd.f32 0.0, %v212
  %v214 = vpop.f32.mrb[0].mxu0
  %215 = vdwg.mxu0
  %216 = vmatprep.subr.mxu0 0.0
  %v217 = vand.u32 %v86, 4294901760
  %v218 = vsub.f32 %v86, %v217
  %v219 = vand.u32 %v218, 4294901760
  %v220 = vsub.f32 %v218, %v219
  %v221 = vand.u32 %v220, 4294901760
  %222 = vmatpush1.msra.mxu0 %v221
  %223 = vmatprep.subr.mxu0 0.0
  %v224 = vand.u32 %v87, 4294901760
  %v225 = vsub.f32 %v87, %v224
  %v226 = vand.u32 %v225, 4294901760
  %v227 = vsub.f32 %v225, %v226
  %v228 = vand.u32 %v227, 4294901760
  %229 = vmatpush1.msra.mxu0 %v228
  %230 = vmatprep.subr.mxu0 0.0
  %v231 = vand.u32 %v88, 4294901760
  %v232 = vsub.f32 %v88, %v231
  %v233 = vand.u32 %v232, 4294901760
  %v234 = vsub.f32 %v232, %v233
  %v235 = vand.u32 %v234, 4294901760
  %236 = vmatpush1.msra.mxu0 %v235
  %237 = vmatprep.subr.mxu0 0.0
  %v238 = vand.u32 %v89, 4294901760
  %v239 = vsub.f32 %v89, %v238
  %v240 = vand.u32 %v239, 4294901760
  %v241 = vsub.f32 %v239, %v240
  %v242 = vand.u32 %v241, 4294901760
  %243 = vmatpush1.msra.mxu0 %v242
  %244 = vmatprep.subr.mxu0 0.0
  %245 = vmatpush1.msra.mxu0 0.0
  %246 = vmatprep.subr.mxu0 0.0
  %247 = vmatpush1.msra.mxu0 0.0
  %248 = vmatprep.subr.mxu0 0.0
  %249 = vmatpush1.msra.mxu0 0.0
  %250 = vmatprep.subr.mxu0 0.0
  %251 = vmatpush1.msra.mxu0 0.0
  %252 = vmatprep.subr.mxu0 0.0
  %253 = vmatpush1.msra.mxu0 0.0
  %254 = vmatprep.subr.mxu0 0.0
  %255 = vmatpush1.msra.mxu0 0.0
  %256 = vmatprep.subr.mxu0 0.0
  %257 = vmatpush1.msra.mxu0 0.0
  %258 = vmatprep.subr.mxu0 0.0
  %259 = vmatpush1.msra.mxu0 0.0
  %260 = vmatprep.subr.mxu0 0.0
  %261 = vmatpush1.msra.mxu0 0.0
  %262 = vmatprep.subr.mxu0 0.0
  %263 = vmatpush1.msra.mxu0 0.0
  %264 = vmatprep.subr.mxu0 0.0
  %265 = vmatpush1.msra.mxu0 0.0
  %266 = vmatprep.subr.mxu0 0.0
  %267 = vmatpush1.msra.mxu0 0.0
  %268 = vmatprep.subr.mxu0 0.0
  %269 = vmatpush1.msra.mxu0 0.0
  %270 = vmatprep.subr.mxu0 0.0
  %271 = vmatpush1.msra.mxu0 0.0
  %272 = vmatprep.subr.mxu0 0.0
  %273 = vmatpush1.msra.mxu0 0.0
  %274 = vmatprep.subr.mxu0 0.0
  %275 = vmatpush1.msra.mxu0 0.0
  %276 = vmatprep.subr.mxu0 0.0
  %277 = vmatpush1.msra.mxu0 0.0
  %278 = vmatprep.subr.mxu0 0.0
  %279 = vmatpush1.msra.mxu0 0.0
  %280 = vmatprep.subr.mxu0 0.0
  %281 = vmatpush1.msra.mxu0 0.0
  %282 = vmatprep.subr.mxu0 0.0
  %283 = vmatpush1.msra.mxu0 0.0
  %284 = vmatprep.subr.mxu0 0.0
  %285 = vmatpush1.msra.mxu0 0.0
  %286 = vmatprep.subr.mxu0 0.0
  %287 = vmatpush1.msra.mxu0 0.0
  %288 = vmatprep.subr.mxu0 0.0
  %289 = vmatpush1.msra.mxu0 0.0
  %290 = vmatprep.subr.mxu0 0.0
  %291 = vmatpush1.msra.mxu0 0.0
  %292 = vmatprep.subr.mxu0 0.0
  %293 = vmatpush1.msra.mxu0 0.0
  %294 = vmatprep.subr.mxu0 0.0
  %295 = vmatpush1.msra.mxu0 0.0
  %296 = vmatprep.subr.mxu0 0.0
  %297 = vmatpush1.msra.mxu0 0.0
  %298 = vmatprep.subr.mxu0 0.0
  %299 = vmatpush1.msra.mxu0 0.0
  %300 = vmatprep.mubr.f32.mxu0 0.0
  %v301 = vand.u32 %v96, 4294901760
  %302 = vmatmul.mubr.f32.gmra.mrb[0].mxu0 %v301
  %v303 = vpop.f32.mrb[0].mxu0
  %v304 = vadd.f32 %v183, %v303
  %v305 = vpop.f32.mrb[0].mxu0
  %306 = vmatprep.mubr.f32.mxu0 0.0
  %v307 = vand.u32 %v99, 4294901760
  %308 = vmatmul.mubr.f32.gmra.mrb[0].mxu0 %v307
  %v309 = vpop.f32.mrb[0].mxu0
  %v310 = vadd.f32 %v193, %v309
  %v311 = vpop.f32.mrb[0].mxu0
  %312 = vmatprep.mubr.f32.mxu0 0.0
  %v313 = vand.u32 %v102, 4294901760
  %314 = vmatmul.mubr.f32.gmra.mrb[0].mxu0 %v313
  %v315 = vpop.f32.mrb[0].mxu0
  %v316 = vadd.f32 %v203, %v315
  %v317 = vpop.f32.mrb[0].mxu0
  %318 = vmatprep.mubr.f32.mxu0 0.0
  %v319 = vand.u32 %v105, 4294901760
  %320 = vmatmul.mubr.f32.gmra.mrb[0].mxu0 %v319
  %v321 = vpop.f32.mrb[0].mxu0
  %v322 = vadd.f32 %v213, %v321
  %v323 = vpop.f32.mrb[0].mxu0
  %324 = vdwg.mxu0
  %325 = vmatprep.subr.mxu0 0.0
  %v326 = vand.u32 %v86, 4294901760
  %v327 = vsub.f32 %v86, %v326
  %328 = vmatpush1.msra.mxu0 %v327
  %329 = vmatprep.subr.mxu0 0.0
  %v330 = vand.u32 %v87, 4294901760
  %v331 = vsub.f32 %v87, %v330
  %332 = vmatpush1.msra.mxu0 %v331
  %333 = vmatprep.subr.mxu0 0.0
  %v334 = vand.u32 %v88, 4294901760
  %v335 = vsub.f32 %v88, %v334
  %336 = vmatpush1.msra.mxu0 %v335
  %337 = vmatprep.subr.mxu0 0.0
  %v338 = vand.u32 %v89, 4294901760
  %v339 = vsub.f32 %v89, %v338
  %340 = vmatpush1.msra.mxu0 %v339
  %341 = vmatprep.subr.mxu0 0.0
  %342 = vmatpush1.msra.mxu0 0.0
  %343 = vmatprep.subr.mxu0 0.0
  %344 = vmatpush1.msra.mxu0 0.0
  %345 = vmatprep.subr.mxu0 0.0
  %346 = vmatpush1.msra.mxu0 0.0
  %347 = vmatprep.subr.mxu0 0.0
  %348 = vmatpush1.msra.mxu0 0.0
  %349 = vmatprep.subr.mxu0 0.0
  %350 = vmatpush1.msra.mxu0 0.0
  %351 = vmatprep.subr.mxu0 0.0
  %352 = vmatpush1.msra.mxu0 0.0
  %353 = vmatprep.subr.mxu0 0.0
  %354 = vmatpush1.msra.mxu0 0.0
  %355 = vmatprep.subr.mxu0 0.0
  %356 = vmatpush1.msra.mxu0 0.0
  %357 = vmatprep.subr.mxu0 0.0
  %358 = vmatpush1.msra.mxu0 0.0
  %359 = vmatprep.subr.mxu0 0.0
  %360 = vmatpush1.msra.mxu0 0.0
  %361 = vmatprep.subr.mxu0 0.0
  %362 = vmatpush1.msra.mxu0 0.0
  %363 = vmatprep.subr.mxu0 0.0
  %364 = vmatpush1.msra.mxu0 0.0
  %365 = vmatprep.subr.mxu0 0.0
  %366 = vmatpush1.msra.mxu0 0.0
  %367 = vmatprep.subr.mxu0 0.0
  %368 = vmatpush1.msra.mxu0 0.0
  %369 = vmatprep.subr.mxu0 0.0
  %370 = vmatpush1.msra.mxu0 0.0
  %371 = vmatprep.subr.mxu0 0.0
  %372 = vmatpush1.msra.mxu0 0.0
  %373 = vmatprep.subr.mxu0 0.0
  %374 = vmatpush1.msra.mxu0 0.0
  %375 = vmatprep.subr.mxu0 0.0
  %376 = vmatpush1.msra.mxu0 0.0
  %377 = vmatprep.subr.mxu0 0.0
  %378 = vmatpush1.msra.mxu0 0.0
  %379 = vmatprep.subr.mxu0 0.0
  %380 = vmatpush1.msra.mxu0 0.0
  %381 = vmatprep.subr.mxu0 0.0
  %382 = vmatpush1.msra.mxu0 0.0
  %383 = vmatprep.subr.mxu0 0.0
  %384 = vmatpush1.msra.mxu0 0.0
  %385 = vmatprep.subr.mxu0 0.0
  %386 = vmatpush1.msra.mxu0 0.0
  %387 = vmatprep.subr.mxu0 0.0
  %388 = vmatpush1.msra.mxu0 0.0
  %389 = vmatprep.subr.mxu0 0.0
  %390 = vmatpush1.msra.mxu0 0.0
  %391 = vmatprep.subr.mxu0 0.0
  %392 = vmatpush1.msra.mxu0 0.0
  %393 = vmatprep.subr.mxu0 0.0
  %394 = vmatpush1.msra.mxu0 0.0
  %395 = vmatprep.subr.mxu0 0.0
  %396 = vmatpush1.msra.mxu0 0.0
  %397 = vmatprep.mubr.f32.mxu0 0.0
  %v398 = vand.u32 %v96, 4294901760
  %v399 = vsub.f32 %v96, %v398
  %400 = vmatmul.mubr.f32.gmra.mrb[0].mxu0 %v399
  %v401 = vpop.f32.mrb[0].mxu0
  %v402 = vadd.f32 %v304, %v401
  %v403 = vpop.f32.mrb[0].mxu0
  %404 = vmatprep.mubr.f32.mxu0 0.0
  %v405 = vand.u32 %v99, 4294901760
  %v406 = vsub.f32 %v99, %v405
  %407 = vmatmul.mubr.f32.gmra.mrb[0].mxu0 %v406
  %v408 = vpop.f32.mrb[0].mxu0
  %v409 = vadd.f32 %v310, %v408
  %v410 = vpop.f32.mrb[0].mxu0
  %411 = vmatprep.mubr.f32.mxu0 0.0
  %v412 = vand.u32 %v102, 4294901760
  %v413 = vsub.f32 %v102, %v412
  %414 = vmatmul.mubr.f32.gmra.mrb[0].mxu0 %v413
  %v415 = vpop.f32.mrb[0].mxu0
  %v416 = vadd.f32 %v316, %v415
  %v417 = vpop.f32.mrb[0].mxu0
  %418 = vmatprep.mubr.f32.mxu0 0.0
  %v419 = vand.u32 %v105, 4294901760
  %v420 = vsub.f32 %v105, %v419
  %421 = vmatmul.mubr.f32.gmra.mrb[0].mxu0 %v420
  %v422 = vpop.f32.mrb[0].mxu0
  %v423 = vadd.f32 %v322, %v422
  %v424 = vpop.f32.mrb[0].mxu0
  %425 = vdwg.mxu0
  %426 = vmatprep.subr.mxu0 0.0
  %v427 = vand.u32 %v86, 4294901760
  %428 = vmatpush1.msra.mxu0 %v427
  %429 = vmatprep.subr.mxu0 0.0
  %v430 = vand.u32 %v87, 4294901760
  %431 = vmatpush1.msra.mxu0 %v430
  %432 = vmatprep.subr.mxu0 0.0
  %v433 = vand.u32 %v88, 4294901760
  %434 = vmatpush1.msra.mxu0 %v433
  %435 = vmatprep.subr.mxu0 0.0
  %v436 = vand.u32 %v89, 4294901760
  %437 = vmatpush1.msra.mxu0 %v436
  %438 = vmatprep.subr.mxu0 0.0
  %439 = vmatpush1.msra.mxu0 0.0
  %440 = vmatprep.subr.mxu0 0.0
  %441 = vmatpush1.msra.mxu0 0.0
  %442 = vmatprep.subr.mxu0 0.0
  %443 = vmatpush1.msra.mxu0 0.0
  %444 = vmatprep.subr.mxu0 0.0
  %445 = vmatpush1.msra.mxu0 0.0
  %446 = vmatprep.subr.mxu0 0.0
  %447 = vmatpush1.msra.mxu0 0.0
  %448 = vmatprep.subr.mxu0 0.0
  %449 = vmatpush1.msra.mxu0 0.0
  %450 = vmatprep.subr.mxu0 0.0
  %451 = vmatpush1.msra.mxu0 0.0
  %452 = vmatprep.subr.mxu0 0.0
  %453 = vmatpush1.msra.mxu0 0.0
  %454 = vmatprep.subr.mxu0 0.0
  %455 = vmatpush1.msra.mxu0 0.0
  %456 = vmatprep.subr.mxu0 0.0
  %457 = vmatpush1.msra.mxu0 0.0
  %458 = vmatprep.subr.mxu0 0.0
  %459 = vmatpush1.msra.mxu0 0.0
  %460 = vmatprep.subr.mxu0 0.0
  %461 = vmatpush1.msra.mxu0 0.0
  %462 = vmatprep.subr.mxu0 0.0
  %463 = vmatpush1.msra.mxu0 0.0
  %464 = vmatprep.subr.mxu0 0.0
  %465 = vmatpush1.msra.mxu0 0.0
  %466 = vmatprep.subr.mxu0 0.0
  %467 = vmatpush1.msra.mxu0 0.0
  %468 = vmatprep.subr.mxu0 0.0
  %469 = vmatpush1.msra.mxu0 0.0
  %470 = vmatprep.subr.mxu0 0.0
  %471 = vmatpush1.msra.mxu0 0.0
  %472 = vmatprep.subr.mxu0 0.0
  %473 = vmatpush1.msra.mxu0 0.0
  %474 = vmatprep.subr.mxu0 0.0
  %475 = vmatpush1.msra.mxu0 0.0
  %476 = vmatprep.subr.mxu0 0.0
  %477 = vmatpush1.msra.mxu0 0.0
  %478 = vmatprep.subr.mxu0 0.0
  %479 = vmatpush1.msra.mxu0 0.0
  %480 = vmatprep.subr.mxu0 0.0
  %481 = vmatpush1.msra.mxu0 0.0
  %482 = vmatprep.subr.mxu0 0.0
  %483 = vmatpush1.msra.mxu0 0.0
  %484 = vmatprep.subr.mxu0 0.0
  %485 = vmatpush1.msra.mxu0 0.0
  %486 = vmatprep.subr.mxu0 0.0
  %487 = vmatpush1.msra.mxu0 0.0
  %488 = vmatprep.subr.mxu0 0.0
  %489 = vmatpush1.msra.mxu0 0.0
  %490 = vmatprep.subr.mxu0 0.0
  %491 = vmatpush1.msra.mxu0 0.0
  %492 = vmatprep.subr.mxu0 0.0
  %493 = vmatpush1.msra.mxu0 0.0
  %494 = vmatprep.mubr.f32.mxu0 0.0
  %v495 = vand.u32 %v96, 4294901760
  %v496 = vsub.f32 %v96, %v495
  %v497 = vand.u32 %v496, 4294901760
  %498 = vmatmul.mubr.f32.gmra.mrb[0].mxu0 %v497
  %v499 = vpop.f32.mrb[0].mxu0
  %v500 = vadd.f32 %v402, %v499
  %v501 = vpop.f32.mrb[0].mxu0
  %502 = vmatprep.mubr.f32.mxu0 0.0
  %v503 = vand.u32 %v99, 4294901760
  %v504 = vsub.f32 %v99, %v503
  %v505 = vand.u32 %v504, 4294901760
  %506 = vmatmul.mubr.f32.gmra.mrb[0].mxu0 %v505
  %v507 = vpop.f32.mrb[0].mxu0
  %v508 = vadd.f32 %v409, %v507
  %v509 = vpop.f32.mrb[0].mxu0
  %510 = vmatprep.mubr.f32.mxu0 0.0
  %v511 = vand.u32 %v102, 4294901760
  %v512 = vsub.f32 %v102, %v511
  %v513 = vand.u32 %v512, 4294901760
  %514 = vmatmul.mubr.f32.gmra.mrb[0].mxu0 %v513
  %v515 = vpop.f32.mrb[0].mxu0
  %v516 = vadd.f32 %v416, %v515
  %v517 = vpop.f32.mrb[0].mxu0
  %518 = vmatprep.mubr.f32.mxu0 0.0
  %v519 = vand.u32 %v105, 4294901760
  %v520 = vsub.f32 %v105, %v519
  %v521 = vand.u32 %v520, 4294901760
  %522 = vmatmul.mubr.f32.gmra.mrb[0].mxu0 %v521
  %v523 = vpop.f32.mrb[0].mxu0
  %v524 = vadd.f32 %v423, %v523
  %v525 = vpop.f32.mrb[0].mxu0
  %526 = vdwg.mxu0
  %527 = vmatprep.subr.mxu0 0.0
  %v528 = vand.u32 %v86, 4294901760
  %v529 = vsub.f32 %v86, %v528
  %v530 = vand.u32 %v529, 4294901760
  %531 = vmatpush1.msra.mxu0 %v530
  %532 = vmatprep.subr.mxu0 0.0
  %v533 = vand.u32 %v87, 4294901760
  %v534 = vsub.f32 %v87, %v533
  %v535 = vand.u32 %v534, 4294901760
  %536 = vmatpush1.msra.mxu0 %v535
  %537 = vmatprep.subr.mxu0 0.0
  %v538 = vand.u32 %v88, 4294901760
  %v539 = vsub.f32 %v88, %v538
  %v540 = vand.u32 %v539, 4294901760
  %541 = vmatpush1.msra.mxu0 %v540
  %542 = vmatprep.subr.mxu0 0.0
  %v543 = vand.u32 %v89, 4294901760
  %v544 = vsub.f32 %v89, %v543
  %v545 = vand.u32 %v544, 4294901760
  %546 = vmatpush1.msra.mxu0 %v545
  %547 = vmatprep.subr.mxu0 0.0
  %548 = vmatpush1.msra.mxu0 0.0
  %549 = vmatprep.subr.mxu0 0.0
  %550 = vmatpush1.msra.mxu0 0.0
  %551 = vmatprep.subr.mxu0 0.0
  %552 = vmatpush1.msra.mxu0 0.0
  %553 = vmatprep.subr.mxu0 0.0
  %554 = vmatpush1.msra.mxu0 0.0
  %555 = vmatprep.subr.mxu0 0.0
  %556 = vmatpush1.msra.mxu0 0.0
  %557 = vmatprep.subr.mxu0 0.0
  %558 = vmatpush1.msra.mxu0 0.0
  %559 = vmatprep.subr.mxu0 0.0
  %560 = vmatpush1.msra.mxu0 0.0
  %561 = vmatprep.subr.mxu0 0.0
  %562 = vmatpush1.msra.mxu0 0.0
  %563 = vmatprep.subr.mxu0 0.0
  %564 = vmatpush1.msra.mxu0 0.0
  %565 = vmatprep.subr.mxu0 0.0
  %566 = vmatpush1.msra.mxu0 0.0
  %567 = vmatprep.subr.mxu0 0.0
  %568 = vmatpush1.msra.mxu0 0.0
  %569 = vmatprep.subr.mxu0 0.0
  %570 = vmatpush1.msra.mxu0 0.0
  %571 = vmatprep.subr.mxu0 0.0
  %572 = vmatpush1.msra.mxu0 0.0
  %573 = vmatprep.subr.mxu0 0.0
  %574 = vmatpush1.msra.mxu0 0.0
  %575 = vmatprep.subr.mxu0 0.0
  %576 = vmatpush1.msra.mxu0 0.0
  %577 = vmatprep.subr.mxu0 0.0
  %578 = vmatpush1.msra.mxu0 0.0
  %579 = vmatprep.subr.mxu0 0.0
  %580 = vmatpush1.msra.mxu0 0.0
  %581 = vmatprep.subr.mxu0 0.0
  %582 = vmatpush1.msra.mxu0 0.0
  %583 = vmatprep.subr.mxu0 0.0
  %584 = vmatpush1.msra.mxu0 0.0
  %585 = vmatprep.subr.mxu0 0.0
  %586 = vmatpush1.msra.mxu0 0.0
  %587 = vmatprep.subr.mxu0 0.0
  %588 = vmatpush1.msra.mxu0 0.0
  %589 = vmatprep.subr.mxu0 0.0
  %590 = vmatpush1.msra.mxu0 0.0
  %591 = vmatprep.subr.mxu0 0.0
  %592 = vmatpush1.msra.mxu0 0.0
  %593 = vmatprep.subr.mxu0 0.0
  %594 = vmatpush1.msra.mxu0 0.0
  %595 = vmatprep.subr.mxu0 0.0
  %596 = vmatpush1.msra.mxu0 0.0
  %597 = vmatprep.subr.mxu0 0.0
  %598 = vmatpush1.msra.mxu0 0.0
  %599 = vmatprep.subr.mxu0 0.0
  %600 = vmatpush1.msra.mxu0 0.0
  %601 = vmatprep.subr.mxu0 0.0
  %602 = vmatpush1.msra.mxu0 0.0
  %603 = vmatprep.mubr.f32.mxu0 0.0
  %v604 = vand.u32 %v96, 4294901760
  %605 = vmatmul.mubr.f32.gmra.mrb[0].mxu0 %v604
  %v606 = vpop.f32.mrb[0].mxu0
  %v607 = vadd.f32 %v500, %v606
  %v608 = vpop.f32.mrb[0].mxu0
  %609 = vmatprep.mubr.f32.mxu0 0.0
  %v610 = vand.u32 %v99, 4294901760
  %611 = vmatmul.mubr.f32.gmra.mrb[0].mxu0 %v610
  %v612 = vpop.f32.mrb[0].mxu0
  %v613 = vadd.f32 %v508, %v612
  %v614 = vpop.f32.mrb[0].mxu0
  %615 = vmatprep.mubr.f32.mxu0 0.0
  %v616 = vand.u32 %v102, 4294901760
  %617 = vmatmul.mubr.f32.gmra.mrb[0].mxu0 %v616
  %v618 = vpop.f32.mrb[0].mxu0
  %v619 = vadd.f32 %v516, %v618
  %v620 = vpop.f32.mrb[0].mxu0
  %621 = vmatprep.mubr.f32.mxu0 0.0
  %v622 = vand.u32 %v105, 4294901760
  %623 = vmatmul.mubr.f32.gmra.mrb[0].mxu0 %v622
  %v624 = vpop.f32.mrb[0].mxu0
  %v625 = vadd.f32 %v524, %v624
  %v626 = vpop.f32.mrb[0].mxu0
  %627 = vdwg.mxu0
  %628 = vmatprep.subr.mxu0 0.0
  %v629 = vand.u32 %v86, 4294901760
  %630 = vmatpush1.msra.mxu0 %v629
  %631 = vmatprep.subr.mxu0 0.0
  %v632 = vand.u32 %v87, 4294901760
  %633 = vmatpush1.msra.mxu0 %v632
  %634 = vmatprep.subr.mxu0 0.0
  %v635 = vand.u32 %v88, 4294901760
  %636 = vmatpush1.msra.mxu0 %v635
  %637 = vmatprep.subr.mxu0 0.0
  %v638 = vand.u32 %v89, 4294901760
  %639 = vmatpush1.msra.mxu0 %v638
  %640 = vmatprep.subr.mxu0 0.0
  %641 = vmatpush1.msra.mxu0 0.0
  %642 = vmatprep.subr.mxu0 0.0
  %643 = vmatpush1.msra.mxu0 0.0
  %644 = vmatprep.subr.mxu0 0.0
  %645 = vmatpush1.msra.mxu0 0.0
  %646 = vmatprep.subr.mxu0 0.0
  %647 = vmatpush1.msra.mxu0 0.0
  %648 = vmatprep.subr.mxu0 0.0
  %649 = vmatpush1.msra.mxu0 0.0
  %650 = vmatprep.subr.mxu0 0.0
  %651 = vmatpush1.msra.mxu0 0.0
  %652 = vmatprep.subr.mxu0 0.0
  %653 = vmatpush1.msra.mxu0 0.0
  %654 = vmatprep.subr.mxu0 0.0
  %655 = vmatpush1.msra.mxu0 0.0
  %656 = vmatprep.subr.mxu0 0.0
  %657 = vmatpush1.msra.mxu0 0.0
  %658 = vmatprep.subr.mxu0 0.0
  %659 = vmatpush1.msra.mxu0 0.0
  %660 = vmatprep.subr.mxu0 0.0
  %661 = vmatpush1.msra.mxu0 0.0
  %662 = vmatprep.subr.mxu0 0.0
  %663 = vmatpush1.msra.mxu0 0.0
  %664 = vmatprep.subr.mxu0 0.0
  %665 = vmatpush1.msra.mxu0 0.0
  %666 = vmatprep.subr.mxu0 0.0
  %667 = vmatpush1.msra.mxu0 0.0
  %668 = vmatprep.subr.mxu0 0.0
  %669 = vmatpush1.msra.mxu0 0.0
  %670 = vmatprep.subr.mxu0 0.0
  %671 = vmatpush1.msra.mxu0 0.0
  %672 = vmatprep.subr.mxu0 0.0
  %673 = vmatpush1.msra.mxu0 0.0
  %674 = vmatprep.subr.mxu0 0.0
  %675 = vmatpush1.msra.mxu0 0.0
  %676 = vmatprep.subr.mxu0 0.0
  %677 = vmatpush1.msra.mxu0 0.0
  %678 = vmatprep.subr.mxu0 0.0
  %679 = vmatpush1.msra.mxu0 0.0
  %680 = vmatprep.subr.mxu0 0.0
  %681 = vmatpush1.msra.mxu0 0.0
  %682 = vmatprep.subr.mxu0 0.0
  %683 = vmatpush1.msra.mxu0 0.0
  %684 = vmatprep.subr.mxu0 0.0
  %685 = vmatpush1.msra.mxu0 0.0
  %686 = vmatprep.subr.mxu0 0.0
  %687 = vmatpush1.msra.mxu0 0.0
  %688 = vmatprep.subr.mxu0 0.0
  %689 = vmatpush1.msra.mxu0 0.0
  %690 = vmatprep.subr.mxu0 0.0
  %691 = vmatpush1.msra.mxu0 0.0
  %692 = vmatprep.subr.mxu0 0.0
  %693 = vmatpush1.msra.mxu0 0.0
  %694 = vmatprep.subr.mxu0 0.0
  %695 = vmatpush1.msra.mxu0 0.0
  %696 = vmatprep.mubr.f32.mxu0 0.0
  %v697 = vand.u32 %v96, 4294901760
  %698 = vmatmul.mubr.f32.gmra.mrb[0].mxu0 %v697
  %v699 = vpop.f32.mrb[0].mxu0
  %v700 = vadd.f32 %v607, %v699
  %v701 = vpop.f32.mrb[0].mxu0
  %702 = vmatprep.mubr.f32.mxu0 0.0
  %v703 = vand.u32 %v99, 4294901760
  %704 = vmatmul.mubr.f32.gmra.mrb[0].mxu0 %v703
  %v705 = vpop.f32.mrb[0].mxu0
  %v706 = vadd.f32 %v613, %v705
  %v707 = vpop.f32.mrb[0].mxu0
  %708 = vmatprep.mubr.f32.mxu0 0.0
  %v709 = vand.u32 %v102, 4294901760
  %710 = vmatmul.mubr.f32.gmra.mrb[0].mxu0 %v709
  %v711 = vpop.f32.mrb[0].mxu0
  %v712 = vadd.f32 %v619, %v711
  %v713 = vpop.f32.mrb[0].mxu0
  %714 = vmatprep.mubr.f32.mxu0 0.0
  %v715 = vand.u32 %v105, 4294901760
  %716 = vmatmul.mubr.f32.gmra.mrb[0].mxu0 %v715
  %v717 = vpop.f32.mrb[0].mxu0
  %v718 = vadd.f32 %v625, %v717
  %v719 = vpop.f32.mrb[0].mxu0
  %720 = vdwg.mxu0
  %v721 = vld [vmem:[%s4] sm:$0xff]
  %v722 = vld [vmem:[%s4 + $0x8] sm:$0xff]
  %v723 = vld [vmem:[%s4 + $0x10] sm:$0xff]
  %v724 = vld [vmem:[%s4 + $0x18] sm:$0xff]
  %v726 = vsel %vm94, %v721, 0
  %v729 = vsel %vm94, %v722, 0
  %v732 = vsel %vm94, %v723, 0
  %v735 = vsel %vm94, %v724, 0
  %737 = vmatprep.subr.mxu0 0.0
  %v738 = vand.u32 %v86, 4294901760
  %739 = vmatpush1.msra.mxu0 %v738
  %740 = vmatprep.subr.mxu0 0.0
  %v741 = vand.u32 %v87, 4294901760
  %742 = vmatpush1.msra.mxu0 %v741
  %743 = vmatprep.subr.mxu0 0.0
  %v744 = vand.u32 %v88, 4294901760
  %745 = vmatpush1.msra.mxu0 %v744
  %746 = vmatprep.subr.mxu0 0.0
  %v747 = vand.u32 %v89, 4294901760
  %748 = vmatpush1.msra.mxu0 %v747
  %749 = vmatprep.subr.mxu0 0.0
  %750 = vmatpush1.msra.mxu0 0.0
  %751 = vmatprep.subr.mxu0 0.0
  %752 = vmatpush1.msra.mxu0 0.0
  %753 = vmatprep.subr.mxu0 0.0
  %754 = vmatpush1.msra.mxu0 0.0
  %755 = vmatprep.subr.mxu0 0.0
  %756 = vmatpush1.msra.mxu0 0.0
  %757 = vmatprep.subr.mxu0 0.0
  %758 = vmatpush1.msra.mxu0 0.0
  %759 = vmatprep.subr.mxu0 0.0
  %760 = vmatpush1.msra.mxu0 0.0
  %761 = vmatprep.subr.mxu0 0.0
  %762 = vmatpush1.msra.mxu0 0.0
  %763 = vmatprep.subr.mxu0 0.0
  %764 = vmatpush1.msra.mxu0 0.0
  %765 = vmatprep.subr.mxu0 0.0
  %766 = vmatpush1.msra.mxu0 0.0
  %767 = vmatprep.subr.mxu0 0.0
  %768 = vmatpush1.msra.mxu0 0.0
  %769 = vmatprep.subr.mxu0 0.0
  %770 = vmatpush1.msra.mxu0 0.0
  %771 = vmatprep.subr.mxu0 0.0
  %772 = vmatpush1.msra.mxu0 0.0
  %773 = vmatprep.subr.mxu0 0.0
  %774 = vmatpush1.msra.mxu0 0.0
  %775 = vmatprep.subr.mxu0 0.0
  %776 = vmatpush1.msra.mxu0 0.0
  %777 = vmatprep.subr.mxu0 0.0
  %778 = vmatpush1.msra.mxu0 0.0
  %779 = vmatprep.subr.mxu0 0.0
  %780 = vmatpush1.msra.mxu0 0.0
  %781 = vmatprep.subr.mxu0 0.0
  %782 = vmatpush1.msra.mxu0 0.0
  %783 = vmatprep.subr.mxu0 0.0
  %784 = vmatpush1.msra.mxu0 0.0
  %785 = vmatprep.subr.mxu0 0.0
  %786 = vmatpush1.msra.mxu0 0.0
  %787 = vmatprep.subr.mxu0 0.0
  %788 = vmatpush1.msra.mxu0 0.0
  %789 = vmatprep.subr.mxu0 0.0
  %790 = vmatpush1.msra.mxu0 0.0
  %791 = vmatprep.subr.mxu0 0.0
  %792 = vmatpush1.msra.mxu0 0.0
  %793 = vmatprep.subr.mxu0 0.0
  %794 = vmatpush1.msra.mxu0 0.0
  %795 = vmatprep.subr.mxu0 0.0
  %796 = vmatpush1.msra.mxu0 0.0
  %797 = vmatprep.subr.mxu0 0.0
  %798 = vmatpush1.msra.mxu0 0.0
  %799 = vmatprep.subr.mxu0 0.0
  %800 = vmatpush1.msra.mxu0 0.0
  %801 = vmatprep.subr.mxu0 0.0
  %802 = vmatpush1.msra.mxu0 0.0
  %803 = vmatprep.subr.mxu0 0.0
  %804 = vmatpush1.msra.mxu0 0.0
  %805 = vmatprep.mubr.f32.mxu0 0.0
  %v806 = vand.u32 %v726, 4294901760
  %v807 = vsub.f32 %v726, %v806
  %v808 = vand.u32 %v807, 4294901760
  %v809 = vsub.f32 %v807, %v808
  %v810 = vand.u32 %v809, 4294901760
  %811 = vmatmul.mubr.f32.gmra.mrb[0].mxu0 %v810
  %v812 = vpop.f32.mrb[0].mxu0
  %v813 = vadd.f32 0.0, %v812
  %v814 = vpop.f32.mrb[0].mxu0
  %815 = vmatprep.mubr.f32.mxu0 0.0
  %v816 = vand.u32 %v729, 4294901760
  %v817 = vsub.f32 %v729, %v816
  %v818 = vand.u32 %v817, 4294901760
  %v819 = vsub.f32 %v817, %v818
  %v820 = vand.u32 %v819, 4294901760
  %821 = vmatmul.mubr.f32.gmra.mrb[0].mxu0 %v820
  %v822 = vpop.f32.mrb[0].mxu0
  %v823 = vadd.f32 0.0, %v822
  %v824 = vpop.f32.mrb[0].mxu0
  %825 = vmatprep.mubr.f32.mxu0 0.0
  %v826 = vand.u32 %v732, 4294901760
  %v827 = vsub.f32 %v732, %v826
  %v828 = vand.u32 %v827, 4294901760
  %v829 = vsub.f32 %v827, %v828
  %v830 = vand.u32 %v829, 4294901760
  %831 = vmatmul.mubr.f32.gmra.mrb[0].mxu0 %v830
  %v832 = vpop.f32.mrb[0].mxu0
  %v833 = vadd.f32 0.0, %v832
  %v834 = vpop.f32.mrb[0].mxu0
  %835 = vmatprep.mubr.f32.mxu0 0.0
  %v836 = vand.u32 %v735, 4294901760
  %v837 = vsub.f32 %v735, %v836
  %v838 = vand.u32 %v837, 4294901760
  %v839 = vsub.f32 %v837, %v838
  %v840 = vand.u32 %v839, 4294901760
  %841 = vmatmul.mubr.f32.gmra.mrb[0].mxu0 %v840
  %v842 = vpop.f32.mrb[0].mxu0
  %v843 = vadd.f32 0.0, %v842
  %v844 = vpop.f32.mrb[0].mxu0
  %845 = vdwg.mxu0
  %846 = vmatprep.subr.mxu0 0.0
  %v847 = vand.u32 %v86, 4294901760
  %v848 = vsub.f32 %v86, %v847
  %v849 = vand.u32 %v848, 4294901760
  %v850 = vsub.f32 %v848, %v849
  %v851 = vand.u32 %v850, 4294901760
  %852 = vmatpush1.msra.mxu0 %v851
  %853 = vmatprep.subr.mxu0 0.0
  %v854 = vand.u32 %v87, 4294901760
  %v855 = vsub.f32 %v87, %v854
  %v856 = vand.u32 %v855, 4294901760
  %v857 = vsub.f32 %v855, %v856
  %v858 = vand.u32 %v857, 4294901760
  %859 = vmatpush1.msra.mxu0 %v858
  %860 = vmatprep.subr.mxu0 0.0
  %v861 = vand.u32 %v88, 4294901760
  %v862 = vsub.f32 %v88, %v861
  %v863 = vand.u32 %v862, 4294901760
  %v864 = vsub.f32 %v862, %v863
  %v865 = vand.u32 %v864, 4294901760
  %866 = vmatpush1.msra.mxu0 %v865
  %867 = vmatprep.subr.mxu0 0.0
  %v868 = vand.u32 %v89, 4294901760
  %v869 = vsub.f32 %v89, %v868
  %v870 = vand.u32 %v869, 4294901760
  %v871 = vsub.f32 %v869, %v870
  %v872 = vand.u32 %v871, 4294901760
  %873 = vmatpush1.msra.mxu0 %v872
  %874 = vmatprep.subr.mxu0 0.0
  %875 = vmatpush1.msra.mxu0 0.0
  %876 = vmatprep.subr.mxu0 0.0
  %877 = vmatpush1.msra.mxu0 0.0
  %878 = vmatprep.subr.mxu0 0.0
  %879 = vmatpush1.msra.mxu0 0.0
  %880 = vmatprep.subr.mxu0 0.0
  %881 = vmatpush1.msra.mxu0 0.0
  %882 = vmatprep.subr.mxu0 0.0
  %883 = vmatpush1.msra.mxu0 0.0
  %884 = vmatprep.subr.mxu0 0.0
  %885 = vmatpush1.msra.mxu0 0.0
  %886 = vmatprep.subr.mxu0 0.0
  %887 = vmatpush1.msra.mxu0 0.0
  %888 = vmatprep.subr.mxu0 0.0
  %889 = vmatpush1.msra.mxu0 0.0
  %890 = vmatprep.subr.mxu0 0.0
  %891 = vmatpush1.msra.mxu0 0.0
  %892 = vmatprep.subr.mxu0 0.0
  %893 = vmatpush1.msra.mxu0 0.0
  %894 = vmatprep.subr.mxu0 0.0
  %895 = vmatpush1.msra.mxu0 0.0
  %896 = vmatprep.subr.mxu0 0.0
  %897 = vmatpush1.msra.mxu0 0.0
  %898 = vmatprep.subr.mxu0 0.0
  %899 = vmatpush1.msra.mxu0 0.0
  %900 = vmatprep.subr.mxu0 0.0
  %901 = vmatpush1.msra.mxu0 0.0
  %902 = vmatprep.subr.mxu0 0.0
  %903 = vmatpush1.msra.mxu0 0.0
  %904 = vmatprep.subr.mxu0 0.0
  %905 = vmatpush1.msra.mxu0 0.0
  %906 = vmatprep.subr.mxu0 0.0
  %907 = vmatpush1.msra.mxu0 0.0
  %908 = vmatprep.subr.mxu0 0.0
  %909 = vmatpush1.msra.mxu0 0.0
  %910 = vmatprep.subr.mxu0 0.0
  %911 = vmatpush1.msra.mxu0 0.0
  %912 = vmatprep.subr.mxu0 0.0
  %913 = vmatpush1.msra.mxu0 0.0
  %914 = vmatprep.subr.mxu0 0.0
  %915 = vmatpush1.msra.mxu0 0.0
  %916 = vmatprep.subr.mxu0 0.0
  %917 = vmatpush1.msra.mxu0 0.0
  %918 = vmatprep.subr.mxu0 0.0
  %919 = vmatpush1.msra.mxu0 0.0
  %920 = vmatprep.subr.mxu0 0.0
  %921 = vmatpush1.msra.mxu0 0.0
  %922 = vmatprep.subr.mxu0 0.0
  %923 = vmatpush1.msra.mxu0 0.0
  %924 = vmatprep.subr.mxu0 0.0
  %925 = vmatpush1.msra.mxu0 0.0
  %926 = vmatprep.subr.mxu0 0.0
  %927 = vmatpush1.msra.mxu0 0.0
  %928 = vmatprep.subr.mxu0 0.0
  %929 = vmatpush1.msra.mxu0 0.0
  %930 = vmatprep.mubr.f32.mxu0 0.0
  %v931 = vand.u32 %v726, 4294901760
  %932 = vmatmul.mubr.f32.gmra.mrb[0].mxu0 %v931
  %v933 = vpop.f32.mrb[0].mxu0
  %v934 = vadd.f32 %v813, %v933
  %v935 = vpop.f32.mrb[0].mxu0
  %936 = vmatprep.mubr.f32.mxu0 0.0
  %v937 = vand.u32 %v729, 4294901760
  %938 = vmatmul.mubr.f32.gmra.mrb[0].mxu0 %v937
  %v939 = vpop.f32.mrb[0].mxu0
  %v940 = vadd.f32 %v823, %v939
  %v941 = vpop.f32.mrb[0].mxu0
  %942 = vmatprep.mubr.f32.mxu0 0.0
  %v943 = vand.u32 %v732, 4294901760
  %944 = vmatmul.mubr.f32.gmra.mrb[0].mxu0 %v943
  %v945 = vpop.f32.mrb[0].mxu0
  %v946 = vadd.f32 %v833, %v945
  %v947 = vpop.f32.mrb[0].mxu0
  %948 = vmatprep.mubr.f32.mxu0 0.0
  %v949 = vand.u32 %v735, 4294901760
  %950 = vmatmul.mubr.f32.gmra.mrb[0].mxu0 %v949
  %v951 = vpop.f32.mrb[0].mxu0
  %v952 = vadd.f32 %v843, %v951
  %v953 = vpop.f32.mrb[0].mxu0
  %954 = vdwg.mxu0
  %955 = vmatprep.subr.mxu0 0.0
  %v956 = vand.u32 %v86, 4294901760
  %v957 = vsub.f32 %v86, %v956
  %958 = vmatpush1.msra.mxu0 %v957
  %959 = vmatprep.subr.mxu0 0.0
  %v960 = vand.u32 %v87, 4294901760
  %v961 = vsub.f32 %v87, %v960
  %962 = vmatpush1.msra.mxu0 %v961
  %963 = vmatprep.subr.mxu0 0.0
  %v964 = vand.u32 %v88, 4294901760
  %v965 = vsub.f32 %v88, %v964
  %966 = vmatpush1.msra.mxu0 %v965
  %967 = vmatprep.subr.mxu0 0.0
  %v968 = vand.u32 %v89, 4294901760
  %v969 = vsub.f32 %v89, %v968
  %970 = vmatpush1.msra.mxu0 %v969
  %971 = vmatprep.subr.mxu0 0.0
  %972 = vmatpush1.msra.mxu0 0.0
  %973 = vmatprep.subr.mxu0 0.0
  %974 = vmatpush1.msra.mxu0 0.0
  %975 = vmatprep.subr.mxu0 0.0
  %976 = vmatpush1.msra.mxu0 0.0
  %977 = vmatprep.subr.mxu0 0.0
  %978 = vmatpush1.msra.mxu0 0.0
  %979 = vmatprep.subr.mxu0 0.0
  %980 = vmatpush1.msra.mxu0 0.0
  %981 = vmatprep.subr.mxu0 0.0
  %982 = vmatpush1.msra.mxu0 0.0
  %983 = vmatprep.subr.mxu0 0.0
  %984 = vmatpush1.msra.mxu0 0.0
  %985 = vmatprep.subr.mxu0 0.0
  %986 = vmatpush1.msra.mxu0 0.0
  %987 = vmatprep.subr.mxu0 0.0
  %988 = vmatpush1.msra.mxu0 0.0
  %989 = vmatprep.subr.mxu0 0.0
  %990 = vmatpush1.msra.mxu0 0.0
  %991 = vmatprep.subr.mxu0 0.0
  %992 = vmatpush1.msra.mxu0 0.0
  %993 = vmatprep.subr.mxu0 0.0
  %994 = vmatpush1.msra.mxu0 0.0
  %995 = vmatprep.subr.mxu0 0.0
  %996 = vmatpush1.msra.mxu0 0.0
  %997 = vmatprep.subr.mxu0 0.0
  %998 = vmatpush1.msra.mxu0 0.0
  %999 = vmatprep.subr.mxu0 0.0
  %1000 = vmatpush1.msra.mxu0 0.0
  %1001 = vmatprep.subr.mxu0 0.0
  %1002 = vmatpush1.msra.mxu0 0.0
  %1003 = vmatprep.subr.mxu0 0.0
  %1004 = vmatpush1.msra.mxu0 0.0
  %1005 = vmatprep.subr.mxu0 0.0
  %1006 = vmatpush1.msra.mxu0 0.0
  %1007 = vmatprep.subr.mxu0 0.0
  %1008 = vmatpush1.msra.mxu0 0.0
  %1009 = vmatprep.subr.mxu0 0.0
  %1010 = vmatpush1.msra.mxu0 0.0
  %1011 = vmatprep.subr.mxu0 0.0
  %1012 = vmatpush1.msra.mxu0 0.0
  %1013 = vmatprep.subr.mxu0 0.0
  %1014 = vmatpush1.msra.mxu0 0.0
  %1015 = vmatprep.subr.mxu0 0.0
  %1016 = vmatpush1.msra.mxu0 0.0
  %1017 = vmatprep.subr.mxu0 0.0
  %1018 = vmatpush1.msra.mxu0 0.0
  %1019 = vmatprep.subr.mxu0 0.0
  %1020 = vmatpush1.msra.mxu0 0.0
  %1021 = vmatprep.subr.mxu0 0.0
  %1022 = vmatpush1.msra.mxu0 0.0
  %1023 = vmatprep.subr.mxu0 0.0
  %1024 = vmatpush1.msra.mxu0 0.0
  %1025 = vmatprep.subr.mxu0 0.0
  %1026 = vmatpush1.msra.mxu0 0.0
  %1027 = vmatprep.mubr.f32.mxu0 0.0
  %v1028 = vand.u32 %v726, 4294901760
  %v1029 = vsub.f32 %v726, %v1028
  %1030 = vmatmul.mubr.f32.gmra.mrb[0].mxu0 %v1029
  %v1031 = vpop.f32.mrb[0].mxu0
  %v1032 = vadd.f32 %v934, %v1031
  %v1033 = vpop.f32.mrb[0].mxu0
  %1034 = vmatprep.mubr.f32.mxu0 0.0
  %v1035 = vand.u32 %v729, 4294901760
  %v1036 = vsub.f32 %v729, %v1035
  %1037 = vmatmul.mubr.f32.gmra.mrb[0].mxu0 %v1036
  %v1038 = vpop.f32.mrb[0].mxu0
  %v1039 = vadd.f32 %v940, %v1038
  %v1040 = vpop.f32.mrb[0].mxu0
  %1041 = vmatprep.mubr.f32.mxu0 0.0
  %v1042 = vand.u32 %v732, 4294901760
  %v1043 = vsub.f32 %v732, %v1042
  %1044 = vmatmul.mubr.f32.gmra.mrb[0].mxu0 %v1043
  %v1045 = vpop.f32.mrb[0].mxu0
  %v1046 = vadd.f32 %v946, %v1045
  %v1047 = vpop.f32.mrb[0].mxu0
  %1048 = vmatprep.mubr.f32.mxu0 0.0
  %v1049 = vand.u32 %v735, 4294901760
  %v1050 = vsub.f32 %v735, %v1049
  %1051 = vmatmul.mubr.f32.gmra.mrb[0].mxu0 %v1050
  %v1052 = vpop.f32.mrb[0].mxu0
  %v1053 = vadd.f32 %v952, %v1052
  %v1054 = vpop.f32.mrb[0].mxu0
  %1055 = vdwg.mxu0
  %1056 = vmatprep.subr.mxu0 0.0
  %v1057 = vand.u32 %v86, 4294901760
  %1058 = vmatpush1.msra.mxu0 %v1057
  %1059 = vmatprep.subr.mxu0 0.0
  %v1060 = vand.u32 %v87, 4294901760
  %1061 = vmatpush1.msra.mxu0 %v1060
  %1062 = vmatprep.subr.mxu0 0.0
  %v1063 = vand.u32 %v88, 4294901760
  %1064 = vmatpush1.msra.mxu0 %v1063
  %1065 = vmatprep.subr.mxu0 0.0
  %v1066 = vand.u32 %v89, 4294901760
  %1067 = vmatpush1.msra.mxu0 %v1066
  %1068 = vmatprep.subr.mxu0 0.0
  %1069 = vmatpush1.msra.mxu0 0.0
  %1070 = vmatprep.subr.mxu0 0.0
  %1071 = vmatpush1.msra.mxu0 0.0
  %1072 = vmatprep.subr.mxu0 0.0
  %1073 = vmatpush1.msra.mxu0 0.0
  %1074 = vmatprep.subr.mxu0 0.0
  %1075 = vmatpush1.msra.mxu0 0.0
  %1076 = vmatprep.subr.mxu0 0.0
  %1077 = vmatpush1.msra.mxu0 0.0
  %1078 = vmatprep.subr.mxu0 0.0
  %1079 = vmatpush1.msra.mxu0 0.0
  %1080 = vmatprep.subr.mxu0 0.0
  %1081 = vmatpush1.msra.mxu0 0.0
  %1082 = vmatprep.subr.mxu0 0.0
  %1083 = vmatpush1.msra.mxu0 0.0
  %1084 = vmatprep.subr.mxu0 0.0
  %1085 = vmatpush1.msra.mxu0 0.0
  %1086 = vmatprep.subr.mxu0 0.0
  %1087 = vmatpush1.msra.mxu0 0.0
  %1088 = vmatprep.subr.mxu0 0.0
  %1089 = vmatpush1.msra.mxu0 0.0
  %1090 = vmatprep.subr.mxu0 0.0
  %1091 = vmatpush1.msra.mxu0 0.0
  %1092 = vmatprep.subr.mxu0 0.0
  %1093 = vmatpush1.msra.mxu0 0.0
  %1094 = vmatprep.subr.mxu0 0.0
  %1095 = vmatpush1.msra.mxu0 0.0
  %1096 = vmatprep.subr.mxu0 0.0
  %1097 = vmatpush1.msra.mxu0 0.0
  %1098 = vmatprep.subr.mxu0 0.0
  %1099 = vmatpush1.msra.mxu0 0.0
  %1100 = vmatprep.subr.mxu0 0.0
  %1101 = vmatpush1.msra.mxu0 0.0
  %1102 = vmatprep.subr.mxu0 0.0
  %1103 = vmatpush1.msra.mxu0 0.0
  %1104 = vmatprep.subr.mxu0 0.0
  %1105 = vmatpush1.msra.mxu0 0.0
  %1106 = vmatprep.subr.mxu0 0.0
  %1107 = vmatpush1.msra.mxu0 0.0
  %1108 = vmatprep.subr.mxu0 0.0
  %1109 = vmatpush1.msra.mxu0 0.0
  %1110 = vmatprep.subr.mxu0 0.0
  %1111 = vmatpush1.msra.mxu0 0.0
  %1112 = vmatprep.subr.mxu0 0.0
  %1113 = vmatpush1.msra.mxu0 0.0
  %1114 = vmatprep.subr.mxu0 0.0
  %1115 = vmatpush1.msra.mxu0 0.0
  %1116 = vmatprep.subr.mxu0 0.0
  %1117 = vmatpush1.msra.mxu0 0.0
  %1118 = vmatprep.subr.mxu0 0.0
  %1119 = vmatpush1.msra.mxu0 0.0
  %1120 = vmatprep.subr.mxu0 0.0
  %1121 = vmatpush1.msra.mxu0 0.0
  %1122 = vmatprep.subr.mxu0 0.0
  %1123 = vmatpush1.msra.mxu0 0.0
  %1124 = vmatprep.mubr.f32.mxu0 0.0
  %v1125 = vand.u32 %v726, 4294901760
  %v1126 = vsub.f32 %v726, %v1125
  %v1127 = vand.u32 %v1126, 4294901760
  %1128 = vmatmul.mubr.f32.gmra.mrb[0].mxu0 %v1127
  %v1129 = vpop.f32.mrb[0].mxu0
  %v1130 = vadd.f32 %v1032, %v1129
  %v1131 = vpop.f32.mrb[0].mxu0
  %1132 = vmatprep.mubr.f32.mxu0 0.0
  %v1133 = vand.u32 %v729, 4294901760
  %v1134 = vsub.f32 %v729, %v1133
  %v1135 = vand.u32 %v1134, 4294901760
  %1136 = vmatmul.mubr.f32.gmra.mrb[0].mxu0 %v1135
  %v1137 = vpop.f32.mrb[0].mxu0
  %v1138 = vadd.f32 %v1039, %v1137
  %v1139 = vpop.f32.mrb[0].mxu0
  %1140 = vmatprep.mubr.f32.mxu0 0.0
  %v1141 = vand.u32 %v732, 4294901760
  %v1142 = vsub.f32 %v732, %v1141
  %v1143 = vand.u32 %v1142, 4294901760
  %1144 = vmatmul.mubr.f32.gmra.mrb[0].mxu0 %v1143
  %v1145 = vpop.f32.mrb[0].mxu0
  %v1146 = vadd.f32 %v1046, %v1145
  %v1147 = vpop.f32.mrb[0].mxu0
  %1148 = vmatprep.mubr.f32.mxu0 0.0
  %v1149 = vand.u32 %v735, 4294901760
  %v1150 = vsub.f32 %v735, %v1149
  %v1151 = vand.u32 %v1150, 4294901760
  %1152 = vmatmul.mubr.f32.gmra.mrb[0].mxu0 %v1151
  %v1153 = vpop.f32.mrb[0].mxu0
  %v1154 = vadd.f32 %v1053, %v1153
  %v1155 = vpop.f32.mrb[0].mxu0
  %1156 = vdwg.mxu0
  %1157 = vmatprep.subr.mxu0 0.0
  %v1158 = vand.u32 %v86, 4294901760
  %v1159 = vsub.f32 %v86, %v1158
  %v1160 = vand.u32 %v1159, 4294901760
  %1161 = vmatpush1.msra.mxu0 %v1160
  %1162 = vmatprep.subr.mxu0 0.0
  %v1163 = vand.u32 %v87, 4294901760
  %v1164 = vsub.f32 %v87, %v1163
  %v1165 = vand.u32 %v1164, 4294901760
  %1166 = vmatpush1.msra.mxu0 %v1165
  %1167 = vmatprep.subr.mxu0 0.0
  %v1168 = vand.u32 %v88, 4294901760
  %v1169 = vsub.f32 %v88, %v1168
  %v1170 = vand.u32 %v1169, 4294901760
  %1171 = vmatpush1.msra.mxu0 %v1170
  %1172 = vmatprep.subr.mxu0 0.0
  %v1173 = vand.u32 %v89, 4294901760
  %v1174 = vsub.f32 %v89, %v1173
  %v1175 = vand.u32 %v1174, 4294901760
  %1176 = vmatpush1.msra.mxu0 %v1175
  %1177 = vmatprep.subr.mxu0 0.0
  %1178 = vmatpush1.msra.mxu0 0.0
  %1179 = vmatprep.subr.mxu0 0.0
  %1180 = vmatpush1.msra.mxu0 0.0
  %1181 = vmatprep.subr.mxu0 0.0
  %1182 = vmatpush1.msra.mxu0 0.0
  %1183 = vmatprep.subr.mxu0 0.0
  %1184 = vmatpush1.msra.mxu0 0.0
  %1185 = vmatprep.subr.mxu0 0.0
  %1186 = vmatpush1.msra.mxu0 0.0
  %1187 = vmatprep.subr.mxu0 0.0
  %1188 = vmatpush1.msra.mxu0 0.0
  %1189 = vmatprep.subr.mxu0 0.0
  %1190 = vmatpush1.msra.mxu0 0.0
  %1191 = vmatprep.subr.mxu0 0.0
  %1192 = vmatpush1.msra.mxu0 0.0
  %1193 = vmatprep.subr.mxu0 0.0
  %1194 = vmatpush1.msra.mxu0 0.0
  %1195 = vmatprep.subr.mxu0 0.0
  %1196 = vmatpush1.msra.mxu0 0.0
  %1197 = vmatprep.subr.mxu0 0.0
  %1198 = vmatpush1.msra.mxu0 0.0
  %1199 = vmatprep.subr.mxu0 0.0
  %1200 = vmatpush1.msra.mxu0 0.0
  %1201 = vmatprep.subr.mxu0 0.0
  %1202 = vmatpush1.msra.mxu0 0.0
  %1203 = vmatprep.subr.mxu0 0.0
  %1204 = vmatpush1.msra.mxu0 0.0
  %1205 = vmatprep.subr.mxu0 0.0
  %1206 = vmatpush1.msra.mxu0 0.0
  %1207 = vmatprep.subr.mxu0 0.0
  %1208 = vmatpush1.msra.mxu0 0.0
  %1209 = vmatprep.subr.mxu0 0.0
  %1210 = vmatpush1.msra.mxu0 0.0
  %1211 = vmatprep.subr.mxu0 0.0
  %1212 = vmatpush1.msra.mxu0 0.0
  %1213 = vmatprep.subr.mxu0 0.0
  %1214 = vmatpush1.msra.mxu0 0.0
  %1215 = vmatprep.subr.mxu0 0.0
  %1216 = vmatpush1.msra.mxu0 0.0
  %1217 = vmatprep.subr.mxu0 0.0
  %1218 = vmatpush1.msra.mxu0 0.0
  %1219 = vmatprep.subr.mxu0 0.0
  %1220 = vmatpush1.msra.mxu0 0.0
  %1221 = vmatprep.subr.mxu0 0.0
  %1222 = vmatpush1.msra.mxu0 0.0
  %1223 = vmatprep.subr.mxu0 0.0
  %1224 = vmatpush1.msra.mxu0 0.0
  %1225 = vmatprep.subr.mxu0 0.0
  %1226 = vmatpush1.msra.mxu0 0.0
  %1227 = vmatprep.subr.mxu0 0.0
  %1228 = vmatpush1.msra.mxu0 0.0
  %1229 = vmatprep.subr.mxu0 0.0
  %1230 = vmatpush1.msra.mxu0 0.0
  %1231 = vmatprep.subr.mxu0 0.0
  %1232 = vmatpush1.msra.mxu0 0.0
  %1233 = vmatprep.mubr.f32.mxu0 0.0
  %v1234 = vand.u32 %v726, 4294901760
  %1235 = vmatmul.mubr.f32.gmra.mrb[0].mxu0 %v1234
  %v1236 = vpop.f32.mrb[0].mxu0
  %v1237 = vadd.f32 %v1130, %v1236
  %v1238 = vpop.f32.mrb[0].mxu0
  %1239 = vmatprep.mubr.f32.mxu0 0.0
  %v1240 = vand.u32 %v729, 4294901760
  %1241 = vmatmul.mubr.f32.gmra.mrb[0].mxu0 %v1240
  %v1242 = vpop.f32.mrb[0].mxu0
  %v1243 = vadd.f32 %v1138, %v1242
  %v1244 = vpop.f32.mrb[0].mxu0
  %1245 = vmatprep.mubr.f32.mxu0 0.0
  %v1246 = vand.u32 %v732, 4294901760
  %1247 = vmatmul.mubr.f32.gmra.mrb[0].mxu0 %v1246
  %v1248 = vpop.f32.mrb[0].mxu0
  %v1249 = vadd.f32 %v1146, %v1248
  %v1250 = vpop.f32.mrb[0].mxu0
  %1251 = vmatprep.mubr.f32.mxu0 0.0
  %v1252 = vand.u32 %v735, 4294901760
  %1253 = vmatmul.mubr.f32.gmra.mrb[0].mxu0 %v1252
  %v1254 = vpop.f32.mrb[0].mxu0
  %v1255 = vadd.f32 %v1154, %v1254
  %v1256 = vpop.f32.mrb[0].mxu0
  %1257 = vdwg.mxu0
  %1258 = vmatprep.subr.mxu0 0.0
  %v1259 = vand.u32 %v86, 4294901760
  %1260 = vmatpush1.msra.mxu0 %v1259
  %1261 = vmatprep.subr.mxu0 0.0
  %v1262 = vand.u32 %v87, 4294901760
  %1263 = vmatpush1.msra.mxu0 %v1262
  %1264 = vmatprep.subr.mxu0 0.0
  %v1265 = vand.u32 %v88, 4294901760
  %1266 = vmatpush1.msra.mxu0 %v1265
  %1267 = vmatprep.subr.mxu0 0.0
  %v1268 = vand.u32 %v89, 4294901760
  %1269 = vmatpush1.msra.mxu0 %v1268
  %1270 = vmatprep.subr.mxu0 0.0
  %1271 = vmatpush1.msra.mxu0 0.0
  %1272 = vmatprep.subr.mxu0 0.0
  %1273 = vmatpush1.msra.mxu0 0.0
  %1274 = vmatprep.subr.mxu0 0.0
  %1275 = vmatpush1.msra.mxu0 0.0
  %1276 = vmatprep.subr.mxu0 0.0
  %1277 = vmatpush1.msra.mxu0 0.0
  %1278 = vmatprep.subr.mxu0 0.0
  %1279 = vmatpush1.msra.mxu0 0.0
  %1280 = vmatprep.subr.mxu0 0.0
  %1281 = vmatpush1.msra.mxu0 0.0
  %1282 = vmatprep.subr.mxu0 0.0
  %1283 = vmatpush1.msra.mxu0 0.0
  %1284 = vmatprep.subr.mxu0 0.0
  %1285 = vmatpush1.msra.mxu0 0.0
  %1286 = vmatprep.subr.mxu0 0.0
  %1287 = vmatpush1.msra.mxu0 0.0
  %1288 = vmatprep.subr.mxu0 0.0
  %1289 = vmatpush1.msra.mxu0 0.0
  %1290 = vmatprep.subr.mxu0 0.0
  %1291 = vmatpush1.msra.mxu0 0.0
  %1292 = vmatprep.subr.mxu0 0.0
  %1293 = vmatpush1.msra.mxu0 0.0
  %1294 = vmatprep.subr.mxu0 0.0
  %1295 = vmatpush1.msra.mxu0 0.0
  %1296 = vmatprep.subr.mxu0 0.0
  %1297 = vmatpush1.msra.mxu0 0.0
  %1298 = vmatprep.subr.mxu0 0.0
  %1299 = vmatpush1.msra.mxu0 0.0
  %1300 = vmatprep.subr.mxu0 0.0
  %1301 = vmatpush1.msra.mxu0 0.0
  %1302 = vmatprep.subr.mxu0 0.0
  %1303 = vmatpush1.msra.mxu0 0.0
  %1304 = vmatprep.subr.mxu0 0.0
  %1305 = vmatpush1.msra.mxu0 0.0
  %1306 = vmatprep.subr.mxu0 0.0
  %1307 = vmatpush1.msra.mxu0 0.0
  %1308 = vmatprep.subr.mxu0 0.0
  %1309 = vmatpush1.msra.mxu0 0.0
  %1310 = vmatprep.subr.mxu0 0.0
  %1311 = vmatpush1.msra.mxu0 0.0
  %1312 = vmatprep.subr.mxu0 0.0
  %1313 = vmatpush1.msra.mxu0 0.0
  %1314 = vmatprep.subr.mxu0 0.0
  %1315 = vmatpush1.msra.mxu0 0.0
  %1316 = vmatprep.subr.mxu0 0.0
  %1317 = vmatpush1.msra.mxu0 0.0
  %1318 = vmatprep.subr.mxu0 0.0
  %1319 = vmatpush1.msra.mxu0 0.0
  %1320 = vmatprep.subr.mxu0 0.0
  %1321 = vmatpush1.msra.mxu0 0.0
  %1322 = vmatprep.subr.mxu0 0.0
  %1323 = vmatpush1.msra.mxu0 0.0
  %1324 = vmatprep.subr.mxu0 0.0
  %1325 = vmatpush1.msra.mxu0 0.0
  %1326 = vmatprep.mubr.f32.mxu0 0.0
  %v1327 = vand.u32 %v726, 4294901760
  %1328 = vmatmul.mubr.f32.gmra.mrb[0].mxu0 %v1327
  %v1329 = vpop.f32.mrb[0].mxu0
  %v1330 = vadd.f32 %v1237, %v1329
  %v1331 = vpop.f32.mrb[0].mxu0
  %1332 = vmatprep.mubr.f32.mxu0 0.0
  %v1333 = vand.u32 %v729, 4294901760
  %1334 = vmatmul.mubr.f32.gmra.mrb[0].mxu0 %v1333
  %v1335 = vpop.f32.mrb[0].mxu0
  %v1336 = vadd.f32 %v1243, %v1335
  %v1337 = vpop.f32.mrb[0].mxu0
  %1338 = vmatprep.mubr.f32.mxu0 0.0
  %v1339 = vand.u32 %v732, 4294901760
  %1340 = vmatmul.mubr.f32.gmra.mrb[0].mxu0 %v1339
  %v1341 = vpop.f32.mrb[0].mxu0
  %v1342 = vadd.f32 %v1249, %v1341
  %v1343 = vpop.f32.mrb[0].mxu0
  %1344 = vmatprep.mubr.f32.mxu0 0.0
  %v1345 = vand.u32 %v735, 4294901760
  %1346 = vmatmul.mubr.f32.gmra.mrb[0].mxu0 %v1345
  %v1347 = vpop.f32.mrb[0].mxu0
  %v1348 = vadd.f32 %v1255, %v1347
  %v1349 = vpop.f32.mrb[0].mxu0
  %1350 = vdwg.mxu0
  %v1351 = vld [vmem:[%s1] sm:$0xff]
  %v1352 = vld [vmem:[%s1 + $0x8] sm:$0xff]
  %v1353 = vld [vmem:[%s1 + $0x10] sm:$0xff]
  %v1354 = vld [vmem:[%s1 + $0x18] sm:$0xff]
  %v1355 = vld [vmem:[%s1 + $0x20] sm:$0xff]
  %v1356 = vld [vmem:[%s1 + $0x28] sm:$0xff]
  %v1357 = vld [vmem:[%s1 + $0x30] sm:$0xff]
  %v1358 = vld [vmem:[%s1 + $0x38] sm:$0xff]
  %v1359 = vld [vmem:[%s1 + $0x40] sm:$0xff]
  %v1360 = vld [vmem:[%s1 + $0x48] sm:$0xff]
  %v1361 = vld [vmem:[%s1 + $0x50] sm:$0xff]
  %v1362 = vld [vmem:[%s1 + $0x58] sm:$0xff]
  %s1363 = scalar_lea.vmem %s1, 96
  %v1364 = vld [vmem:[%s1363] sm:$0xff]
  %v1365 = vld [vmem:[%s1363 + $0x8] sm:$0xff]
  %v1366 = vld [vmem:[%s1363 + $0x10] sm:$0xff]
  %v1367 = vld [vmem:[%s1363 + $0x18] sm:$0xff]
  %v1368 = vld [vmem:[%s1363 + $0x20] sm:$0xff]
  %v1369 = vld [vmem:[%s1363 + $0x28] sm:$0xff]
  %v1370 = vld [vmem:[%s1363 + $0x30] sm:$0xff]
  %v1371 = vld [vmem:[%s1363 + $0x38] sm:$0xff]
  %v1372 = vld [vmem:[%s1363 + $0x40] sm:$0xff]
  %v1373 = vld [vmem:[%s1363 + $0x48] sm:$0xff]
  %v1374 = vld [vmem:[%s1363 + $0x50] sm:$0xff]
  %v1375 = vld [vmem:[%s1363 + $0x58] sm:$0xff]
  %vm1376 = vcmask 392192
  %v1378 = vsel %vm1376, %v86, 0
  %v1381 = vsel %vm1376, %v87, 0
  %v1384 = vsel %vm1376, %v88, 0
  %v1387 = vsel %vm1376, %v89, 0
  %1389 = vmatprep.subr.mxu0 %v1365
  %1390 = vmatpush1.msra.mxu0 %v1364
  %1391 = vmatprep.subr.mxu0 %v1367
  %1392 = vmatpush1.msra.mxu0 %v1366
  %1393 = vmatprep.subr.mxu0 %v1369
  %1394 = vmatpush1.msra.mxu0 %v1368
  %1395 = vmatprep.subr.mxu0 %v1371
  %1396 = vmatpush1.msra.mxu0 %v1370
  %1397 = vmatprep.subr.mxu0 %v1373
  %1398 = vmatpush1.msra.mxu0 %v1372
  %1399 = vmatprep.subr.mxu0 %v1375
  %1400 = vmatpush1.msra.mxu0 %v1374
  %1401 = vmatprep.subr.mxu0 0.0
  %1402 = vmatpush1.msra.mxu0 0.0
  %1403 = vmatprep.subr.mxu0 0.0
  %1404 = vmatpush1.msra.mxu0 0.0
  %1405 = vmatprep.subr.mxu0 0.0
  %1406 = vmatpush1.msra.mxu0 0.0
  %1407 = vmatprep.subr.mxu0 0.0
  %1408 = vmatpush1.msra.mxu0 0.0
  %1409 = vmatprep.subr.mxu0 0.0
  %1410 = vmatpush1.msra.mxu0 0.0
  %1411 = vmatprep.subr.mxu0 0.0
  %1412 = vmatpush1.msra.mxu0 0.0
  %1413 = vmatprep.subr.mxu0 0.0
  %1414 = vmatpush1.msra.mxu0 0.0
  %1415 = vmatprep.subr.mxu0 0.0
  %1416 = vmatpush1.msra.mxu0 0.0
  %1417 = vmatprep.subr.mxu0 0.0
  %1418 = vmatpush1.msra.mxu0 0.0
  %1419 = vmatprep.subr.mxu0 0.0
  %1420 = vmatpush1.msra.mxu0 0.0
  %1421 = vmatprep.subr.mxu0 0.0
  %1422 = vmatpush1.msra.mxu0 0.0
  %1423 = vmatprep.subr.mxu0 0.0
  %1424 = vmatpush1.msra.mxu0 0.0
  %1425 = vmatprep.subr.mxu0 0.0
  %1426 = vmatpush1.msra.mxu0 0.0
  %1427 = vmatprep.subr.mxu0 0.0
  %1428 = vmatpush1.msra.mxu0 0.0
  %1429 = vmatprep.subr.mxu0 0.0
  %1430 = vmatpush1.msra.mxu0 0.0
  %1431 = vmatprep.subr.mxu0 0.0
  %1432 = vmatpush1.msra.mxu0 0.0
  %1433 = vmatprep.subr.mxu0 0.0
  %1434 = vmatpush1.msra.mxu0 0.0
  %1435 = vmatprep.subr.mxu0 0.0
  %1436 = vmatpush1.msra.mxu0 0.0
  %1437 = vmatprep.subr.mxu0 0.0
  %1438 = vmatpush1.msra.mxu0 0.0
  %1439 = vmatprep.subr.mxu0 0.0
  %1440 = vmatpush1.msra.mxu0 0.0
  %1441 = vmatprep.subr.mxu0 0.0
  %1442 = vmatpush1.msra.mxu0 0.0
  %1443 = vmatprep.subr.mxu0 0.0
  %1444 = vmatpush1.msra.mxu0 0.0
  %1445 = vmatprep.subr.mxu0 0.0
  %1446 = vmatpush1.msra.mxu0 0.0
  %1447 = vmatprep.subr.mxu0 0.0
  %1448 = vmatpush1.msra.mxu0 0.0
  %1449 = vmatprep.subr.mxu0 0.0
  %1450 = vmatpush1.msra.mxu0 0.0
  %1451 = vmatprep.subr.mxu0 0.0
  %1452 = vmatpush1.msra.mxu0 0.0
  %1453 = vmatprep.mubr.f32.mxu0 0.0
  %1454 = vmatmul.mubr.f32.gmra.mrb[0].mxu0 %v1378
  %v1455 = vpop.f32.mrb[0].mxu0
  %v1456 = vadd.f32 0.0, %v1455
  %v1457 = vpop.f32.mrb[0].mxu0
  %v1458 = vadd.f32 0.0, %v1457
  %1459 = vmatprep.mubr.f32.mxu0 0.0
  %1460 = vmatmul.mubr.f32.gmra.mrb[0].mxu0 %v1381
  %v1461 = vpop.f32.mrb[0].mxu0
  %v1462 = vadd.f32 0.0, %v1461
  %v1463 = vpop.f32.mrb[0].mxu0
  %v1464 = vadd.f32 0.0, %v1463
  %1465 = vmatprep.mubr.f32.mxu0 0.0
  %1466 = vmatmul.mubr.f32.gmra.mrb[0].mxu0 %v1384
  %v1467 = vpop.f32.mrb[0].mxu0
  %v1468 = vadd.f32 0.0, %v1467
  %v1469 = vpop.f32.mrb[0].mxu0
  %v1470 = vadd.f32 0.0, %v1469
  %1471 = vmatprep.mubr.f32.mxu0 0.0
  %1472 = vmatmul.mubr.f32.gmra.mrb[0].mxu0 %v1387
  %v1473 = vpop.f32.mrb[0].mxu0
  %v1474 = vadd.f32 0.0, %v1473
  %v1475 = vpop.f32.mrb[0].mxu0
  %v1476 = vadd.f32 0.0, %v1475
  %1477 = vdwg.mxu0
  %v1479 = vsel %vm1376, %v700, 0
  %v1482 = vsel %vm1376, %v706, 0
  %v1485 = vsel %vm1376, %v712, 0
  %v1488 = vsel %vm1376, %v718, 0
  %1490 = vmatprep.subr.mxu0 %v1352
  %1491 = vmatpush1.msra.mxu0 %v1351
  %1492 = vmatprep.subr.mxu0 %v1354
  %1493 = vmatpush1.msra.mxu0 %v1353
  %1494 = vmatprep.subr.mxu0 %v1356
  %1495 = vmatpush1.msra.mxu0 %v1355
  %1496 = vmatprep.subr.mxu0 %v1358
  %1497 = vmatpush1.msra.mxu0 %v1357
  %1498 = vmatprep.subr.mxu0 %v1360
  %1499 = vmatpush1.msra.mxu0 %v1359
  %1500 = vmatprep.subr.mxu0 %v1362
  %1501 = vmatpush1.msra.mxu0 %v1361
  %1502 = vmatprep.subr.mxu0 0.0
  %1503 = vmatpush1.msra.mxu0 0.0
  %1504 = vmatprep.subr.mxu0 0.0
  %1505 = vmatpush1.msra.mxu0 0.0
  %1506 = vmatprep.subr.mxu0 0.0
  %1507 = vmatpush1.msra.mxu0 0.0
  %1508 = vmatprep.subr.mxu0 0.0
  %1509 = vmatpush1.msra.mxu0 0.0
  %1510 = vmatprep.subr.mxu0 0.0
  %1511 = vmatpush1.msra.mxu0 0.0
  %1512 = vmatprep.subr.mxu0 0.0
  %1513 = vmatpush1.msra.mxu0 0.0
  %1514 = vmatprep.subr.mxu0 0.0
  %1515 = vmatpush1.msra.mxu0 0.0
  %1516 = vmatprep.subr.mxu0 0.0
  %1517 = vmatpush1.msra.mxu0 0.0
  %1518 = vmatprep.subr.mxu0 0.0
  %1519 = vmatpush1.msra.mxu0 0.0
  %1520 = vmatprep.subr.mxu0 0.0
  %1521 = vmatpush1.msra.mxu0 0.0
  %1522 = vmatprep.subr.mxu0 0.0
  %1523 = vmatpush1.msra.mxu0 0.0
  %1524 = vmatprep.subr.mxu0 0.0
  %1525 = vmatpush1.msra.mxu0 0.0
  %1526 = vmatprep.subr.mxu0 0.0
  %1527 = vmatpush1.msra.mxu0 0.0
  %1528 = vmatprep.subr.mxu0 0.0
  %1529 = vmatpush1.msra.mxu0 0.0
  %1530 = vmatprep.subr.mxu0 0.0
  %1531 = vmatpush1.msra.mxu0 0.0
  %1532 = vmatprep.subr.mxu0 0.0
  %1533 = vmatpush1.msra.mxu0 0.0
  %1534 = vmatprep.subr.mxu0 0.0
  %1535 = vmatpush1.msra.mxu0 0.0
  %1536 = vmatprep.subr.mxu0 0.0
  %1537 = vmatpush1.msra.mxu0 0.0
  %1538 = vmatprep.subr.mxu0 0.0
  %1539 = vmatpush1.msra.mxu0 0.0
  %1540 = vmatprep.subr.mxu0 0.0
  %1541 = vmatpush1.msra.mxu0 0.0
  %1542 = vmatprep.subr.mxu0 0.0
  %1543 = vmatpush1.msra.mxu0 0.0
  %1544 = vmatprep.subr.mxu0 0.0
  %1545 = vmatpush1.msra.mxu0 0.0
  %1546 = vmatprep.subr.mxu0 0.0
  %1547 = vmatpush1.msra.mxu0 0.0
  %1548 = vmatprep.subr.mxu0 0.0
  %1549 = vmatpush1.msra.mxu0 0.0
  %1550 = vmatprep.subr.mxu0 0.0
  %1551 = vmatpush1.msra.mxu0 0.0
  %1552 = vmatprep.subr.mxu0 0.0
  %1553 = vmatpush1.msra.mxu0 0.0
  %1554 = vmatprep.mubr.f32.mxu0 0.0
  %1555 = vmatmul.mubr.f32.gmra.mrb[0].mxu0 %v1479
  %v1556 = vpop.f32.mrb[0].mxu0
  %v1557 = vadd.f32 %v1456, %v1556
  %v1558 = vpop.f32.mrb[0].mxu0
  %v1559 = vadd.f32 %v1458, %v1558
  %1560 = vmatprep.mubr.f32.mxu0 0.0
  %1561 = vmatmul.mubr.f32.gmra.mrb[0].mxu0 %v1482
  %v1562 = vpop.f32.mrb[0].mxu0
  %v1563 = vadd.f32 %v1462, %v1562
  %v1564 = vpop.f32.mrb[0].mxu0
  %v1565 = vadd.f32 %v1464, %v1564
  %1566 = vmatprep.mubr.f32.mxu0 0.0
  %1567 = vmatmul.mubr.f32.gmra.mrb[0].mxu0 %v1485
  %v1568 = vpop.f32.mrb[0].mxu0
  %v1569 = vadd.f32 %v1468, %v1568
  %v1570 = vpop.f32.mrb[0].mxu0
  %v1571 = vadd.f32 %v1470, %v1570
  %1572 = vmatprep.mubr.f32.mxu0 0.0
  %1573 = vmatmul.mubr.f32.gmra.mrb[0].mxu0 %v1488
  %v1574 = vpop.f32.mrb[0].mxu0
  %v1575 = vadd.f32 %v1474, %v1574
  %v1576 = vpop.f32.mrb[0].mxu0
  %v1577 = vadd.f32 %v1476, %v1576
  %1578 = vdwg.mxu0
  %s1579 = scalar_lea.vmem %s1, 192
  %v1580 = vld [vmem:[%s1579] sm:$0xff]
  %v1581 = vld [vmem:[%s1579 + $0x8] sm:$0xff]
  %v1582 = vld [vmem:[%s1579 + $0x10] sm:$0xff]
  %v1583 = vld [vmem:[%s1579 + $0x18] sm:$0xff]
  %v1584 = vld [vmem:[%s1579 + $0x20] sm:$0xff]
  %v1585 = vld [vmem:[%s1579 + $0x28] sm:$0xff]
  %v1586 = vld [vmem:[%s1579 + $0x30] sm:$0xff]
  %v1587 = vld [vmem:[%s1579 + $0x38] sm:$0xff]
  %v1588 = vld [vmem:[%s1579 + $0x40] sm:$0xff]
  %v1589 = vld [vmem:[%s1579 + $0x48] sm:$0xff]
  %v1590 = vld [vmem:[%s1579 + $0x50] sm:$0xff]
  %v1591 = vld [vmem:[%s1579 + $0x58] sm:$0xff]
  %v1593 = vsel %vm1376, %v1330, 0
  %v1596 = vsel %vm1376, %v1336, 0
  %v1599 = vsel %vm1376, %v1342, 0
  %v1602 = vsel %vm1376, %v1348, 0
  %1604 = vmatprep.subr.mxu0 %v1581
  %1605 = vmatpush1.msra.mxu0 %v1580
  %1606 = vmatprep.subr.mxu0 %v1583
  %1607 = vmatpush1.msra.mxu0 %v1582
  %1608 = vmatprep.subr.mxu0 %v1585
  %1609 = vmatpush1.msra.mxu0 %v1584
  %1610 = vmatprep.subr.mxu0 %v1587
  %1611 = vmatpush1.msra.mxu0 %v1586
  %1612 = vmatprep.subr.mxu0 %v1589
  %1613 = vmatpush1.msra.mxu0 %v1588
  %1614 = vmatprep.subr.mxu0 %v1591
  %1615 = vmatpush1.msra.mxu0 %v1590
  %1616 = vmatprep.subr.mxu0 0.0
  %1617 = vmatpush1.msra.mxu0 0.0
  %1618 = vmatprep.subr.mxu0 0.0
  %1619 = vmatpush1.msra.mxu0 0.0
  %1620 = vmatprep.subr.mxu0 0.0
  %1621 = vmatpush1.msra.mxu0 0.0
  %1622 = vmatprep.subr.mxu0 0.0
  %1623 = vmatpush1.msra.mxu0 0.0
  %1624 = vmatprep.subr.mxu0 0.0
  %1625 = vmatpush1.msra.mxu0 0.0
  %1626 = vmatprep.subr.mxu0 0.0
  %1627 = vmatpush1.msra.mxu0 0.0
  %1628 = vmatprep.subr.mxu0 0.0
  %1629 = vmatpush1.msra.mxu0 0.0
  %1630 = vmatprep.subr.mxu0 0.0
  %1631 = vmatpush1.msra.mxu0 0.0
  %1632 = vmatprep.subr.mxu0 0.0
  %1633 = vmatpush1.msra.mxu0 0.0
  %1634 = vmatprep.subr.mxu0 0.0
  %1635 = vmatpush1.msra.mxu0 0.0
  %1636 = vmatprep.subr.mxu0 0.0
  %1637 = vmatpush1.msra.mxu0 0.0
  %1638 = vmatprep.subr.mxu0 0.0
  %1639 = vmatpush1.msra.mxu0 0.0
  %1640 = vmatprep.subr.mxu0 0.0
  %1641 = vmatpush1.msra.mxu0 0.0
  %1642 = vmatprep.subr.mxu0 0.0
  %1643 = vmatpush1.msra.mxu0 0.0
  %1644 = vmatprep.subr.mxu0 0.0
  %1645 = vmatpush1.msra.mxu0 0.0
  %1646 = vmatprep.subr.mxu0 0.0
  %1647 = vmatpush1.msra.mxu0 0.0
  %1648 = vmatprep.subr.mxu0 0.0
  %1649 = vmatpush1.msra.mxu0 0.0
  %1650 = vmatprep.subr.mxu0 0.0
  %1651 = vmatpush1.msra.mxu0 0.0
  %1652 = vmatprep.subr.mxu0 0.0
  %1653 = vmatpush1.msra.mxu0 0.0
  %1654 = vmatprep.subr.mxu0 0.0
  %1655 = vmatpush1.msra.mxu0 0.0
  %1656 = vmatprep.subr.mxu0 0.0
  %1657 = vmatpush1.msra.mxu0 0.0
  %1658 = vmatprep.subr.mxu0 0.0
  %1659 = vmatpush1.msra.mxu0 0.0
  %1660 = vmatprep.subr.mxu0 0.0
  %1661 = vmatpush1.msra.mxu0 0.0
  %1662 = vmatprep.subr.mxu0 0.0
  %1663 = vmatpush1.msra.mxu0 0.0
  %1664 = vmatprep.subr.mxu0 0.0
  %1665 = vmatpush1.msra.mxu0 0.0
  %1666 = vmatprep.subr.mxu0 0.0
  %1667 = vmatpush1.msra.mxu0 0.0
  %1668 = vmatprep.mubr.f32.mxu0 0.0
  %1669 = vmatmul.mubr.f32.gmra.mrb[0].mxu0 %v1593
  %v1670 = vpop.f32.mrb[0].mxu0
  %v1671 = vadd.f32 0.0, %v1670
  %v1672 = vpop.f32.mrb[0].mxu0
  %v1673 = vadd.f32 0.0, %v1672
  %1674 = vmatprep.mubr.f32.mxu0 0.0
  %1675 = vmatmul.mubr.f32.gmra.mrb[0].mxu0 %v1596
  %v1676 = vpop.f32.mrb[0].mxu0
  %v1677 = vadd.f32 0.0, %v1676
  %v1678 = vpop.f32.mrb[0].mxu0
  %v1679 = vadd.f32 0.0, %v1678
  %1680 = vmatprep.mubr.f32.mxu0 0.0
  %1681 = vmatmul.mubr.f32.gmra.mrb[0].mxu0 %v1599
  %v1682 = vpop.f32.mrb[0].mxu0
  %v1683 = vadd.f32 0.0, %v1682
  %v1684 = vpop.f32.mrb[0].mxu0
  %v1685 = vadd.f32 0.0, %v1684
  %1686 = vmatprep.mubr.f32.mxu0 0.0
  %1687 = vmatmul.mubr.f32.gmra.mrb[0].mxu0 %v1602
  %v1688 = vpop.f32.mrb[0].mxu0
  %v1689 = vadd.f32 0.0, %v1688
  %v1690 = vpop.f32.mrb[0].mxu0
  %v1691 = vadd.f32 0.0, %v1690
  %1692 = vdwg.mxu0
  %v1693 = vadd.f32 %v1557, %v1671
  %v1694 = vadd.f32 %v1559, %v1673
  %v1695 = vadd.f32 %v1563, %v1677
  %v1696 = vadd.f32 %v1565, %v1679
  %v1697 = vadd.f32 %v1569, %v1683
  %v1698 = vadd.f32 %v1571, %v1685
  %v1699 = vadd.f32 %v1575, %v1689
  %v1700 = vadd.f32 %v1577, %v1691
  %v1701 = vld [vmem:[%s2] sm:$0x3]
  %v1703 = vlaneseq
  %v1704 = vshrl.u32 %v1703, 7
  %v1705 = vsub.s32 0, %v1704
  %v1706 = vrot.slane %v1701, %v1705
  %v1707 = vlaneseq
  %v1708 = vshrl.u32 %v1707, 7
  %v1709 = vsub.s32 1, %v1708
  %v1710 = vrot.slane %v1701, %v1709
  %v1713 = vadd.f32 %v1693, %v1706
  %v1714 = vadd.f32 %v1694, %v1710
  %v1715 = vadd.f32 %v1695, %v1706
  %v1716 = vadd.f32 %v1696, %v1710
  %v1717 = vadd.f32 %v1697, %v1706
  %v1718 = vadd.f32 %v1698, %v1710
  %v1719 = vadd.f32 %v1699, %v1706
  %v1720 = vadd.f32 %v1700, %v1710
  %v1721 = vmax.f32 %v1713, 0.0
  %v1722 = vmax.f32 %v1714, 0.0
  %v1723 = vmax.f32 %v1715, 0.0
  %v1724 = vmax.f32 %v1716, 0.0
  %v1725 = vmax.f32 %v1717, 0.0
  %v1726 = vmax.f32 %v1718, 0.0
  %v1727 = vmax.f32 %v1719, 0.0
  %v1728 = vmax.f32 %v1720, 0.0
  %v1729 = vld [vmem:[%s5] sm:$0xff]
  %v1730 = vld [vmem:[%s5 + $0x8] sm:$0xff]
  %v1731 = vld [vmem:[%s5 + $0x10] sm:$0xff]
  %v1732 = vld [vmem:[%s5 + $0x18] sm:$0xff]
  %v1733 = vld [vmem:[%s5 + $0x20] sm:$0xff]
  %v1734 = vld [vmem:[%s5 + $0x28] sm:$0xff]
  %v1735 = vld [vmem:[%s5 + $0x30] sm:$0xff]
  %v1736 = vld [vmem:[%s5 + $0x38] sm:$0xff]
  %v1737 = vld [vmem:[%s5 + $0x40] sm:$0xff]
  %v1738 = vld [vmem:[%s5 + $0x48] sm:$0xff]
  %v1739 = vld [vmem:[%s5 + $0x50] sm:$0xff]
  %v1740 = vld [vmem:[%s5 + $0x58] sm:$0xff]
  %v1741 = vld [vmem:[%s5 + $0x60] sm:$0xff]
  %v1742 = vld [vmem:[%s5 + $0x68] sm:$0xff]
  %v1743 = vld [vmem:[%s5 + $0x70] sm:$0xff]
  %v1744 = vld [vmem:[%s5 + $0x78] sm:$0xff]
  %v1745 = vld [vmem:[%s5 + $0x80] sm:$0xff]
  %v1746 = vld [vmem:[%s5 + $0x88] sm:$0xff]
  %v1747 = vld [vmem:[%s5 + $0x90] sm:$0xff]
  %v1748 = vld [vmem:[%s5 + $0x98] sm:$0xff]
  %v1749 = vld [vmem:[%s5 + $0xa0] sm:$0xff]
  %v1750 = vld [vmem:[%s5 + $0xa8] sm:$0xff]
  %v1751 = vld [vmem:[%s5 + $0xb0] sm:$0xff]
  %v1752 = vld [vmem:[%s5 + $0xb8] sm:$0xff]
  %v1753 = vld [vmem:[%s5 + $0xc0] sm:$0xff]
  %v1754 = vld [vmem:[%s5 + $0xc8] sm:$0xff]
  %v1755 = vld [vmem:[%s5 + $0xd0] sm:$0xff]
  %v1756 = vld [vmem:[%s5 + $0xd8] sm:$0xff]
  %v1757 = vld [vmem:[%s5 + $0xe0] sm:$0xff]
  %v1758 = vld [vmem:[%s5 + $0xe8] sm:$0xff]
  %v1759 = vld [vmem:[%s5 + $0xf0] sm:$0xff]
  %v1760 = vld [vmem:[%s5 + $0xf8] sm:$0xff]
  %1761 = vmatprep.subr.mxu0 0.0
  %v1762 = vand.u32 %v1729, 4294901760
  %1763 = vmatpush1.msra.mxu0 %v1762
  %1764 = vmatprep.subr.mxu0 0.0
  %v1765 = vand.u32 %v1730, 4294901760
  %1766 = vmatpush1.msra.mxu0 %v1765
  %1767 = vmatprep.subr.mxu0 0.0
  %v1768 = vand.u32 %v1731, 4294901760
  %1769 = vmatpush1.msra.mxu0 %v1768
  %1770 = vmatprep.subr.mxu0 0.0
  %v1771 = vand.u32 %v1732, 4294901760
  %1772 = vmatpush1.msra.mxu0 %v1771
  %1773 = vmatprep.subr.mxu0 0.0
  %v1774 = vand.u32 %v1733, 4294901760
  %1775 = vmatpush1.msra.mxu0 %v1774
  %1776 = vmatprep.subr.mxu0 0.0
  %v1777 = vand.u32 %v1734, 4294901760
  %1778 = vmatpush1.msra.mxu0 %v1777
  %1779 = vmatprep.subr.mxu0 0.0
  %v1780 = vand.u32 %v1735, 4294901760
  %1781 = vmatpush1.msra.mxu0 %v1780
  %1782 = vmatprep.subr.mxu0 0.0
  %v1783 = vand.u32 %v1736, 4294901760
  %1784 = vmatpush1.msra.mxu0 %v1783
  %1785 = vmatprep.subr.mxu0 0.0
  %v1786 = vand.u32 %v1737, 4294901760
  %1787 = vmatpush1.msra.mxu0 %v1786
  %1788 = vmatprep.subr.mxu0 0.0
  %v1789 = vand.u32 %v1738, 4294901760
  %1790 = vmatpush1.msra.mxu0 %v1789
  %1791 = vmatprep.subr.mxu0 0.0
  %v1792 = vand.u32 %v1739, 4294901760
  %1793 = vmatpush1.msra.mxu0 %v1792
  %1794 = vmatprep.subr.mxu0 0.0
  %v1795 = vand.u32 %v1740, 4294901760
  %1796 = vmatpush1.msra.mxu0 %v1795
  %1797 = vmatprep.subr.mxu0 0.0
  %v1798 = vand.u32 %v1741, 4294901760
  %1799 = vmatpush1.msra.mxu0 %v1798
  %1800 = vmatprep.subr.mxu0 0.0
  %v1801 = vand.u32 %v1742, 4294901760
  %1802 = vmatpush1.msra.mxu0 %v1801
  %1803 = vmatprep.subr.mxu0 0.0
  %v1804 = vand.u32 %v1743, 4294901760
  %1805 = vmatpush1.msra.mxu0 %v1804
  %1806 = vmatprep.subr.mxu0 0.0
  %v1807 = vand.u32 %v1744, 4294901760
  %1808 = vmatpush1.msra.mxu0 %v1807
  %1809 = vmatprep.subr.mxu0 0.0
  %v1810 = vand.u32 %v1745, 4294901760
  %1811 = vmatpush1.msra.mxu0 %v1810
  %1812 = vmatprep.subr.mxu0 0.0
  %v1813 = vand.u32 %v1746, 4294901760
  %1814 = vmatpush1.msra.mxu0 %v1813
  %1815 = vmatprep.subr.mxu0 0.0
  %v1816 = vand.u32 %v1747, 4294901760
  %1817 = vmatpush1.msra.mxu0 %v1816
  %1818 = vmatprep.subr.mxu0 0.0
  %v1819 = vand.u32 %v1748, 4294901760
  %1820 = vmatpush1.msra.mxu0 %v1819
  %1821 = vmatprep.subr.mxu0 0.0
  %v1822 = vand.u32 %v1749, 4294901760
  %1823 = vmatpush1.msra.mxu0 %v1822
  %1824 = vmatprep.subr.mxu0 0.0
  %v1825 = vand.u32 %v1750, 4294901760
  %1826 = vmatpush1.msra.mxu0 %v1825
  %1827 = vmatprep.subr.mxu0 0.0
  %v1828 = vand.u32 %v1751, 4294901760
  %1829 = vmatpush1.msra.mxu0 %v1828
  %1830 = vmatprep.subr.mxu0 0.0
  %v1831 = vand.u32 %v1752, 4294901760
  %1832 = vmatpush1.msra.mxu0 %v1831
  %1833 = vmatprep.subr.mxu0 0.0
  %v1834 = vand.u32 %v1753, 4294901760
  %1835 = vmatpush1.msra.mxu0 %v1834
  %1836 = vmatprep.subr.mxu0 0.0
  %v1837 = vand.u32 %v1754, 4294901760
  %1838 = vmatpush1.msra.mxu0 %v1837
  %1839 = vmatprep.subr.mxu0 0.0
  %v1840 = vand.u32 %v1755, 4294901760
  %1841 = vmatpush1.msra.mxu0 %v1840
  %1842 = vmatprep.subr.mxu0 0.0
  %v1843 = vand.u32 %v1756, 4294901760
  %1844 = vmatpush1.msra.mxu0 %v1843
  %1845 = vmatprep.subr.mxu0 0.0
  %v1846 = vand.u32 %v1757, 4294901760
  %1847 = vmatpush1.msra.mxu0 %v1846
  %1848 = vmatprep.subr.mxu0 0.0
  %v1849 = vand.u32 %v1758, 4294901760
  %1850 = vmatpush1.msra.mxu0 %v1849
  %1851 = vmatprep.subr.mxu0 0.0
  %v1852 = vand.u32 %v1759, 4294901760
  %1853 = vmatpush1.msra.mxu0 %v1852
  %1854 = vmatprep.subr.mxu0 0.0
  %v1855 = vand.u32 %v1760, 4294901760
  %1856 = vmatpush1.msra.mxu0 %v1855
  %v1857 = vand.u32 %v1722, 4294901760
  %v1858 = vsub.f32 %v1722, %v1857
  %v1859 = vand.u32 %v1858, 4294901760
  %v1860 = vsub.f32 %v1858, %v1859
  %v1861 = vand.u32 %v1860, 4294901760
  %1862 = vmatprep.mubr.f32.mxu0 %v1861
  %v1863 = vand.u32 %v1721, 4294901760
  %v1864 = vsub.f32 %v1721, %v1863
  %v1865 = vand.u32 %v1864, 4294901760
  %v1866 = vsub.f32 %v1864, %v1865
  %v1867 = vand.u32 %v1866, 4294901760
  %1868 = vmatmul.mubr.f32.gmra.mrb[0].mxu0 %v1867
  %v1869 = vpop.f32.mrb[0].mxu0
  %v1870 = vadd.f32 0.0, %v1869
  %v1871 = vpop.f32.mrb[0].mxu0
  %v1872 = vand.u32 %v1724, 4294901760
  %v1873 = vsub.f32 %v1724, %v1872
  %v1874 = vand.u32 %v1873, 4294901760
  %v1875 = vsub.f32 %v1873, %v1874
  %v1876 = vand.u32 %v1875, 4294901760
  %1877 = vmatprep.mubr.f32.mxu0 %v1876
  %v1878 = vand.u32 %v1723, 4294901760
  %v1879 = vsub.f32 %v1723, %v1878
  %v1880 = vand.u32 %v1879, 4294901760
  %v1881 = vsub.f32 %v1879, %v1880
  %v1882 = vand.u32 %v1881, 4294901760
  %1883 = vmatmul.mubr.f32.gmra.mrb[0].mxu0 %v1882
  %v1884 = vpop.f32.mrb[0].mxu0
  %v1885 = vadd.f32 0.0, %v1884
  %v1886 = vpop.f32.mrb[0].mxu0
  %v1887 = vand.u32 %v1726, 4294901760
  %v1888 = vsub.f32 %v1726, %v1887
  %v1889 = vand.u32 %v1888, 4294901760
  %v1890 = vsub.f32 %v1888, %v1889
  %v1891 = vand.u32 %v1890, 4294901760
  %1892 = vmatprep.mubr.f32.mxu0 %v1891
  %v1893 = vand.u32 %v1725, 4294901760
  %v1894 = vsub.f32 %v1725, %v1893
  %v1895 = vand.u32 %v1894, 4294901760
  %v1896 = vsub.f32 %v1894, %v1895
  %v1897 = vand.u32 %v1896, 4294901760
  %1898 = vmatmul.mubr.f32.gmra.mrb[0].mxu0 %v1897
  %v1899 = vpop.f32.mrb[0].mxu0
  %v1900 = vadd.f32 0.0, %v1899
  %v1901 = vpop.f32.mrb[0].mxu0
  %v1902 = vand.u32 %v1728, 4294901760
  %v1903 = vsub.f32 %v1728, %v1902
  %v1904 = vand.u32 %v1903, 4294901760
  %v1905 = vsub.f32 %v1903, %v1904
  %v1906 = vand.u32 %v1905, 4294901760
  %1907 = vmatprep.mubr.f32.mxu0 %v1906
  %v1908 = vand.u32 %v1727, 4294901760
  %v1909 = vsub.f32 %v1727, %v1908
  %v1910 = vand.u32 %v1909, 4294901760
  %v1911 = vsub.f32 %v1909, %v1910
  %v1912 = vand.u32 %v1911, 4294901760
  %1913 = vmatmul.mubr.f32.gmra.mrb[0].mxu0 %v1912
  %v1914 = vpop.f32.mrb[0].mxu0
  %v1915 = vadd.f32 0.0, %v1914
  %v1916 = vpop.f32.mrb[0].mxu0
  %1917 = vdwg.mxu0
  %1918 = vmatprep.subr.mxu0 0.0
  %v1919 = vand.u32 %v1729, 4294901760
  %v1920 = vsub.f32 %v1729, %v1919
  %v1921 = vand.u32 %v1920, 4294901760
  %v1922 = vsub.f32 %v1920, %v1921
  %v1923 = vand.u32 %v1922, 4294901760
  %1924 = vmatpush1.msra.mxu0 %v1923
  %1925 = vmatprep.subr.mxu0 0.0
  %v1926 = vand.u32 %v1730, 4294901760
  %v1927 = vsub.f32 %v1730, %v1926
  %v1928 = vand.u32 %v1927, 4294901760
  %v1929 = vsub.f32 %v1927, %v1928
  %v1930 = vand.u32 %v1929, 4294901760
  %1931 = vmatpush1.msra.mxu0 %v1930
  %1932 = vmatprep.subr.mxu0 0.0
  %v1933 = vand.u32 %v1731, 4294901760
  %v1934 = vsub.f32 %v1731, %v1933
  %v1935 = vand.u32 %v1934, 4294901760
  %v1936 = vsub.f32 %v1934, %v1935
  %v1937 = vand.u32 %v1936, 4294901760
  %1938 = vmatpush1.msra.mxu0 %v1937
  %1939 = vmatprep.subr.mxu0 0.0
  %v1940 = vand.u32 %v1732, 4294901760
  %v1941 = vsub.f32 %v1732, %v1940
  %v1942 = vand.u32 %v1941, 4294901760
  %v1943 = vsub.f32 %v1941, %v1942
  %v1944 = vand.u32 %v1943, 4294901760
  %1945 = vmatpush1.msra.mxu0 %v1944
  %1946 = vmatprep.subr.mxu0 0.0
  %v1947 = vand.u32 %v1733, 4294901760
  %v1948 = vsub.f32 %v1733, %v1947
  %v1949 = vand.u32 %v1948, 4294901760
  %v1950 = vsub.f32 %v1948, %v1949
  %v1951 = vand.u32 %v1950, 4294901760
  %1952 = vmatpush1.msra.mxu0 %v1951
  %1953 = vmatprep.subr.mxu0 0.0
  %v1954 = vand.u32 %v1734, 4294901760
  %v1955 = vsub.f32 %v1734, %v1954
  %v1956 = vand.u32 %v1955, 4294901760
  %v1957 = vsub.f32 %v1955, %v1956
  %v1958 = vand.u32 %v1957, 4294901760
  %1959 = vmatpush1.msra.mxu0 %v1958
  %1960 = vmatprep.subr.mxu0 0.0
  %v1961 = vand.u32 %v1735, 4294901760
  %v1962 = vsub.f32 %v1735, %v1961
  %v1963 = vand.u32 %v1962, 4294901760
  %v1964 = vsub.f32 %v1962, %v1963
  %v1965 = vand.u32 %v1964, 4294901760
  %1966 = vmatpush1.msra.mxu0 %v1965
  %1967 = vmatprep.subr.mxu0 0.0
  %v1968 = vand.u32 %v1736, 4294901760
  %v1969 = vsub.f32 %v1736, %v1968
  %v1970 = vand.u32 %v1969, 4294901760
  %v1971 = vsub.f32 %v1969, %v1970
  %v1972 = vand.u32 %v1971, 4294901760
  %1973 = vmatpush1.msra.mxu0 %v1972
  %1974 = vmatprep.subr.mxu0 0.0
  %v1975 = vand.u32 %v1737, 4294901760
  %v1976 = vsub.f32 %v1737, %v1975
  %v1977 = vand.u32 %v1976, 4294901760
  %v1978 = vsub.f32 %v1976, %v1977
  %v1979 = vand.u32 %v1978, 4294901760
  %1980 = vmatpush1.msra.mxu0 %v1979
  %1981 = vmatprep.subr.mxu0 0.0
  %v1982 = vand.u32 %v1738, 4294901760
  %v1983 = vsub.f32 %v1738, %v1982
  %v1984 = vand.u32 %v1983, 4294901760
  %v1985 = vsub.f32 %v1983, %v1984
  %v1986 = vand.u32 %v1985, 4294901760
  %1987 = vmatpush1.msra.mxu0 %v1986
  %1988 = vmatprep.subr.mxu0 0.0
  %v1989 = vand.u32 %v1739, 4294901760
  %v1990 = vsub.f32 %v1739, %v1989
  %v1991 = vand.u32 %v1990, 4294901760
  %v1992 = vsub.f32 %v1990, %v1991
  %v1993 = vand.u32 %v1992, 4294901760
  %1994 = vmatpush1.msra.mxu0 %v1993
  %1995 = vmatprep.subr.mxu0 0.0
  %v1996 = vand.u32 %v1740, 4294901760
  %v1997 = vsub.f32 %v1740, %v1996
  %v1998 = vand.u32 %v1997, 4294901760
  %v1999 = vsub.f32 %v1997, %v1998
  %v2000 = vand.u32 %v1999, 4294901760
  %2001 = vmatpush1.msra.mxu0 %v2000
  %2002 = vmatprep.subr.mxu0 0.0
  %v2003 = vand.u32 %v1741, 4294901760
  %v2004 = vsub.f32 %v1741, %v2003
  %v2005 = vand.u32 %v2004, 4294901760
  %v2006 = vsub.f32 %v2004, %v2005
  %v2007 = vand.u32 %v2006, 4294901760
  %2008 = vmatpush1.msra.mxu0 %v2007
  %2009 = vmatprep.subr.mxu0 0.0
  %v2010 = vand.u32 %v1742, 4294901760
  %v2011 = vsub.f32 %v1742, %v2010
  %v2012 = vand.u32 %v2011, 4294901760
  %v2013 = vsub.f32 %v2011, %v2012
  %v2014 = vand.u32 %v2013, 4294901760
  %2015 = vmatpush1.msra.mxu0 %v2014
  %2016 = vmatprep.subr.mxu0 0.0
  %v2017 = vand.u32 %v1743, 4294901760
  %v2018 = vsub.f32 %v1743, %v2017
  %v2019 = vand.u32 %v2018, 4294901760
  %v2020 = vsub.f32 %v2018, %v2019
  %v2021 = vand.u32 %v2020, 4294901760
  %2022 = vmatpush1.msra.mxu0 %v2021
  %2023 = vmatprep.subr.mxu0 0.0
  %v2024 = vand.u32 %v1744, 4294901760
  %v2025 = vsub.f32 %v1744, %v2024
  %v2026 = vand.u32 %v2025, 4294901760
  %v2027 = vsub.f32 %v2025, %v2026
  %v2028 = vand.u32 %v2027, 4294901760
  %2029 = vmatpush1.msra.mxu0 %v2028
  %2030 = vmatprep.subr.mxu0 0.0
  %v2031 = vand.u32 %v1745, 4294901760
  %v2032 = vsub.f32 %v1745, %v2031
  %v2033 = vand.u32 %v2032, 4294901760
  %v2034 = vsub.f32 %v2032, %v2033
  %v2035 = vand.u32 %v2034, 4294901760
  %2036 = vmatpush1.msra.mxu0 %v2035
  %2037 = vmatprep.subr.mxu0 0.0
  %v2038 = vand.u32 %v1746, 4294901760
  %v2039 = vsub.f32 %v1746, %v2038
  %v2040 = vand.u32 %v2039, 4294901760
  %v2041 = vsub.f32 %v2039, %v2040
  %v2042 = vand.u32 %v2041, 4294901760
  %2043 = vmatpush1.msra.mxu0 %v2042
  %2044 = vmatprep.subr.mxu0 0.0
  %v2045 = vand.u32 %v1747, 4294901760
  %v2046 = vsub.f32 %v1747, %v2045
  %v2047 = vand.u32 %v2046, 4294901760
  %v2048 = vsub.f32 %v2046, %v2047
  %v2049 = vand.u32 %v2048, 4294901760
  %2050 = vmatpush1.msra.mxu0 %v2049
  %2051 = vmatprep.subr.mxu0 0.0
  %v2052 = vand.u32 %v1748, 4294901760
  %v2053 = vsub.f32 %v1748, %v2052
  %v2054 = vand.u32 %v2053, 4294901760
  %v2055 = vsub.f32 %v2053, %v2054
  %v2056 = vand.u32 %v2055, 4294901760
  %2057 = vmatpush1.msra.mxu0 %v2056
  %2058 = vmatprep.subr.mxu0 0.0
  %v2059 = vand.u32 %v1749, 4294901760
  %v2060 = vsub.f32 %v1749, %v2059
  %v2061 = vand.u32 %v2060, 4294901760
  %v2062 = vsub.f32 %v2060, %v2061
  %v2063 = vand.u32 %v2062, 4294901760
  %2064 = vmatpush1.msra.mxu0 %v2063
  %2065 = vmatprep.subr.mxu0 0.0
  %v2066 = vand.u32 %v1750, 4294901760
  %v2067 = vsub.f32 %v1750, %v2066
  %v2068 = vand.u32 %v2067, 4294901760
  %v2069 = vsub.f32 %v2067, %v2068
  %v2070 = vand.u32 %v2069, 4294901760
  %2071 = vmatpush1.msra.mxu0 %v2070
  %2072 = vmatprep.subr.mxu0 0.0
  %v2073 = vand.u32 %v1751, 4294901760
  %v2074 = vsub.f32 %v1751, %v2073
  %v2075 = vand.u32 %v2074, 4294901760
  %v2076 = vsub.f32 %v2074, %v2075
  %v2077 = vand.u32 %v2076, 4294901760
  %2078 = vmatpush1.msra.mxu0 %v2077
  %2079 = vmatprep.subr.mxu0 0.0
  %v2080 = vand.u32 %v1752, 4294901760
  %v2081 = vsub.f32 %v1752, %v2080
  %v2082 = vand.u32 %v2081, 4294901760
  %v2083 = vsub.f32 %v2081, %v2082
  %v2084 = vand.u32 %v2083, 4294901760
  %2085 = vmatpush1.msra.mxu0 %v2084
  %2086 = vmatprep.subr.mxu0 0.0
  %v2087 = vand.u32 %v1753, 4294901760
  %v2088 = vsub.f32 %v1753, %v2087
  %v2089 = vand.u32 %v2088, 4294901760
  %v2090 = vsub.f32 %v2088, %v2089
  %v2091 = vand.u32 %v2090, 4294901760
  %2092 = vmatpush1.msra.mxu0 %v2091
  %2093 = vmatprep.subr.mxu0 0.0
  %v2094 = vand.u32 %v1754, 4294901760
  %v2095 = vsub.f32 %v1754, %v2094
  %v2096 = vand.u32 %v2095, 4294901760
  %v2097 = vsub.f32 %v2095, %v2096
  %v2098 = vand.u32 %v2097, 4294901760
  %2099 = vmatpush1.msra.mxu0 %v2098
  %2100 = vmatprep.subr.mxu0 0.0
  %v2101 = vand.u32 %v1755, 4294901760
  %v2102 = vsub.f32 %v1755, %v2101
  %v2103 = vand.u32 %v2102, 4294901760
  %v2104 = vsub.f32 %v2102, %v2103
  %v2105 = vand.u32 %v2104, 4294901760
  %2106 = vmatpush1.msra.mxu0 %v2105
  %2107 = vmatprep.subr.mxu0 0.0
  %v2108 = vand.u32 %v1756, 4294901760
  %v2109 = vsub.f32 %v1756, %v2108
  %v2110 = vand.u32 %v2109, 4294901760
  %v2111 = vsub.f32 %v2109, %v2110
  %v2112 = vand.u32 %v2111, 4294901760
  %2113 = vmatpush1.msra.mxu0 %v2112
  %2114 = vmatprep.subr.mxu0 0.0
  %v2115 = vand.u32 %v1757, 4294901760
  %v2116 = vsub.f32 %v1757, %v2115
  %v2117 = vand.u32 %v2116, 4294901760
  %v2118 = vsub.f32 %v2116, %v2117
  %v2119 = vand.u32 %v2118, 4294901760
  %2120 = vmatpush1.msra.mxu0 %v2119
  %2121 = vmatprep.subr.mxu0 0.0
  %v2122 = vand.u32 %v1758, 4294901760
  %v2123 = vsub.f32 %v1758, %v2122
  %v2124 = vand.u32 %v2123, 4294901760
  %v2125 = vsub.f32 %v2123, %v2124
  %v2126 = vand.u32 %v2125, 4294901760
  %2127 = vmatpush1.msra.mxu0 %v2126
  %2128 = vmatprep.subr.mxu0 0.0
  %v2129 = vand.u32 %v1759, 4294901760
  %v2130 = vsub.f32 %v1759, %v2129
  %v2131 = vand.u32 %v2130, 4294901760
  %v2132 = vsub.f32 %v2130, %v2131
  %v2133 = vand.u32 %v2132, 4294901760
  %2134 = vmatpush1.msra.mxu0 %v2133
  %2135 = vmatprep.subr.mxu0 0.0
  %v2136 = vand.u32 %v1760, 4294901760
  %v2137 = vsub.f32 %v1760, %v2136
  %v2138 = vand.u32 %v2137, 4294901760
  %v2139 = vsub.f32 %v2137, %v2138
  %v2140 = vand.u32 %v2139, 4294901760
  %2141 = vmatpush1.msra.mxu0 %v2140
  %v2142 = vand.u32 %v1722, 4294901760
  %2143 = vmatprep.mubr.f32.mxu0 %v2142
  %v2144 = vand.u32 %v1721, 4294901760
  %2145 = vmatmul.mubr.f32.gmra.mrb[0].mxu0 %v2144
  %v2146 = vpop.f32.mrb[0].mxu0
  %v2147 = vadd.f32 %v1870, %v2146
  %v2148 = vpop.f32.mrb[0].mxu0
  %v2149 = vand.u32 %v1724, 4294901760
  %2150 = vmatprep.mubr.f32.mxu0 %v2149
  %v2151 = vand.u32 %v1723, 4294901760
  %2152 = vmatmul.mubr.f32.gmra.mrb[0].mxu0 %v2151
  %v2153 = vpop.f32.mrb[0].mxu0
  %v2154 = vadd.f32 %v1885, %v2153
  %v2155 = vpop.f32.mrb[0].mxu0
  %v2156 = vand.u32 %v1726, 4294901760
  %2157 = vmatprep.mubr.f32.mxu0 %v2156
  %v2158 = vand.u32 %v1725, 4294901760
  %2159 = vmatmul.mubr.f32.gmra.mrb[0].mxu0 %v2158
  %v2160 = vpop.f32.mrb[0].mxu0
  %v2161 = vadd.f32 %v1900, %v2160
  %v2162 = vpop.f32.mrb[0].mxu0
  %v2163 = vand.u32 %v1728, 4294901760
  %2164 = vmatprep.mubr.f32.mxu0 %v2163
  %v2165 = vand.u32 %v1727, 4294901760
  %2166 = vmatmul.mubr.f32.gmra.mrb[0].mxu0 %v2165
  %v2167 = vpop.f32.mrb[0].mxu0
  %v2168 = vadd.f32 %v1915, %v2167
  %v2169 = vpop.f32.mrb[0].mxu0
  %2170 = vdwg.mxu0
  %2171 = vmatprep.subr.mxu0 0.0
  %v2172 = vand.u32 %v1729, 4294901760
  %v2173 = vsub.f32 %v1729, %v2172
  %2174 = vmatpush1.msra.mxu0 %v2173
  %2175 = vmatprep.subr.mxu0 0.0
  %v2176 = vand.u32 %v1730, 4294901760
  %v2177 = vsub.f32 %v1730, %v2176
  %2178 = vmatpush1.msra.mxu0 %v2177
  %2179 = vmatprep.subr.mxu0 0.0
  %v2180 = vand.u32 %v1731, 4294901760
  %v2181 = vsub.f32 %v1731, %v2180
  %2182 = vmatpush1.msra.mxu0 %v2181
  %2183 = vmatprep.subr.mxu0 0.0
  %v2184 = vand.u32 %v1732, 4294901760
  %v2185 = vsub.f32 %v1732, %v2184
  %2186 = vmatpush1.msra.mxu0 %v2185
  %2187 = vmatprep.subr.mxu0 0.0
  %v2188 = vand.u32 %v1733, 4294901760
  %v2189 = vsub.f32 %v1733, %v2188
  %2190 = vmatpush1.msra.mxu0 %v2189
  %2191 = vmatprep.subr.mxu0 0.0
  %v2192 = vand.u32 %v1734, 4294901760
  %v2193 = vsub.f32 %v1734, %v2192
  %2194 = vmatpush1.msra.mxu0 %v2193
  %2195 = vmatprep.subr.mxu0 0.0
  %v2196 = vand.u32 %v1735, 4294901760
  %v2197 = vsub.f32 %v1735, %v2196
  %2198 = vmatpush1.msra.mxu0 %v2197
  %2199 = vmatprep.subr.mxu0 0.0
  %v2200 = vand.u32 %v1736, 4294901760
  %v2201 = vsub.f32 %v1736, %v2200
  %2202 = vmatpush1.msra.mxu0 %v2201
  %2203 = vmatprep.subr.mxu0 0.0
  %v2204 = vand.u32 %v1737, 4294901760
  %v2205 = vsub.f32 %v1737, %v2204
  %2206 = vmatpush1.msra.mxu0 %v2205
  %2207 = vmatprep.subr.mxu0 0.0
  %v2208 = vand.u32 %v1738, 4294901760
  %v2209 = vsub.f32 %v1738, %v2208
  %2210 = vmatpush1.msra.mxu0 %v2209
  %2211 = vmatprep.subr.mxu0 0.0
  %v2212 = vand.u32 %v1739, 4294901760
  %v2213 = vsub.f32 %v1739, %v2212
  %2214 = vmatpush1.msra.mxu0 %v2213
  %2215 = vmatprep.subr.mxu0 0.0
  %v2216 = vand.u32 %v1740, 4294901760
  %v2217 = vsub.f32 %v1740, %v2216
  %2218 = vmatpush1.msra.mxu0 %v2217
  %2219 = vmatprep.subr.mxu0 0.0
  %v2220 = vand.u32 %v1741, 4294901760
  %v2221 = vsub.f32 %v1741, %v2220
  %2222 = vmatpush1.msra.mxu0 %v2221
  %2223 = vmatprep.subr.mxu0 0.0
  %v2224 = vand.u32 %v1742, 4294901760
  %v2225 = vsub.f32 %v1742, %v2224
  %2226 = vmatpush1.msra.mxu0 %v2225
  %2227 = vmatprep.subr.mxu0 0.0
  %v2228 = vand.u32 %v1743, 4294901760
  %v2229 = vsub.f32 %v1743, %v2228
  %2230 = vmatpush1.msra.mxu0 %v2229
  %2231 = vmatprep.subr.mxu0 0.0
  %v2232 = vand.u32 %v1744, 4294901760
  %v2233 = vsub.f32 %v1744, %v2232
  %2234 = vmatpush1.msra.mxu0 %v2233
  %2235 = vmatprep.subr.mxu0 0.0
  %v2236 = vand.u32 %v1745, 4294901760
  %v2237 = vsub.f32 %v1745, %v2236
  %2238 = vmatpush1.msra.mxu0 %v2237
  %2239 = vmatprep.subr.mxu0 0.0
  %v2240 = vand.u32 %v1746, 4294901760
  %v2241 = vsub.f32 %v1746, %v2240
  %2242 = vmatpush1.msra.mxu0 %v2241
  %2243 = vmatprep.subr.mxu0 0.0
  %v2244 = vand.u32 %v1747, 4294901760
  %v2245 = vsub.f32 %v1747, %v2244
  %2246 = vmatpush1.msra.mxu0 %v2245
  %2247 = vmatprep.subr.mxu0 0.0
  %v2248 = vand.u32 %v1748, 4294901760
  %v2249 = vsub.f32 %v1748, %v2248
  %2250 = vmatpush1.msra.mxu0 %v2249
  %2251 = vmatprep.subr.mxu0 0.0
  %v2252 = vand.u32 %v1749, 4294901760
  %v2253 = vsub.f32 %v1749, %v2252
  %2254 = vmatpush1.msra.mxu0 %v2253
  %2255 = vmatprep.subr.mxu0 0.0
  %v2256 = vand.u32 %v1750, 4294901760
  %v2257 = vsub.f32 %v1750, %v2256
  %2258 = vmatpush1.msra.mxu0 %v2257
  %2259 = vmatprep.subr.mxu0 0.0
  %v2260 = vand.u32 %v1751, 4294901760
  %v2261 = vsub.f32 %v1751, %v2260
  %2262 = vmatpush1.msra.mxu0 %v2261
  %2263 = vmatprep.subr.mxu0 0.0
  %v2264 = vand.u32 %v1752, 4294901760
  %v2265 = vsub.f32 %v1752, %v2264
  %2266 = vmatpush1.msra.mxu0 %v2265
  %2267 = vmatprep.subr.mxu0 0.0
  %v2268 = vand.u32 %v1753, 4294901760
  %v2269 = vsub.f32 %v1753, %v2268
  %2270 = vmatpush1.msra.mxu0 %v2269
  %2271 = vmatprep.subr.mxu0 0.0
  %v2272 = vand.u32 %v1754, 4294901760
  %v2273 = vsub.f32 %v1754, %v2272
  %2274 = vmatpush1.msra.mxu0 %v2273
  %2275 = vmatprep.subr.mxu0 0.0
  %v2276 = vand.u32 %v1755, 4294901760
  %v2277 = vsub.f32 %v1755, %v2276
  %2278 = vmatpush1.msra.mxu0 %v2277
  %2279 = vmatprep.subr.mxu0 0.0
  %v2280 = vand.u32 %v1756, 4294901760
  %v2281 = vsub.f32 %v1756, %v2280
  %2282 = vmatpush1.msra.mxu0 %v2281
  %2283 = vmatprep.subr.mxu0 0.0
  %v2284 = vand.u32 %v1757, 4294901760
  %v2285 = vsub.f32 %v1757, %v2284
  %2286 = vmatpush1.msra.mxu0 %v2285
  %2287 = vmatprep.subr.mxu0 0.0
  %v2288 = vand.u32 %v1758, 4294901760
  %v2289 = vsub.f32 %v1758, %v2288
  %2290 = vmatpush1.msra.mxu0 %v2289
  %2291 = vmatprep.subr.mxu0 0.0
  %v2292 = vand.u32 %v1759, 4294901760
  %v2293 = vsub.f32 %v1759, %v2292
  %2294 = vmatpush1.msra.mxu0 %v2293
  %2295 = vmatprep.subr.mxu0 0.0
  %v2296 = vand.u32 %v1760, 4294901760
  %v2297 = vsub.f32 %v1760, %v2296
  %2298 = vmatpush1.msra.mxu0 %v2297
  %v2299 = vand.u32 %v1722, 4294901760
  %v2300 = vsub.f32 %v1722, %v2299
  %2301 = vmatprep.mubr.f32.mxu0 %v2300
  %v2302 = vand.u32 %v1721, 4294901760
  %v2303 = vsub.f32 %v1721, %v2302
  %2304 = vmatmul.mubr.f32.gmra.mrb[0].mxu0 %v2303
  %v2305 = vpop.f32.mrb[0].mxu0
  %v2306 = vadd.f32 %v2147, %v2305
  %v2307 = vpop.f32.mrb[0].mxu0
  %v2308 = vand.u32 %v1724, 4294901760
  %v2309 = vsub.f32 %v1724, %v2308
  %2310 = vmatprep.mubr.f32.mxu0 %v2309
  %v2311 = vand.u32 %v1723, 4294901760
  %v2312 = vsub.f32 %v1723, %v2311
  %2313 = vmatmul.mubr.f32.gmra.mrb[0].mxu0 %v2312
  %v2314 = vpop.f32.mrb[0].mxu0
  %v2315 = vadd.f32 %v2154, %v2314
  %v2316 = vpop.f32.mrb[0].mxu0
  %v2317 = vand.u32 %v1726, 4294901760
  %v2318 = vsub.f32 %v1726, %v2317
  %2319 = vmatprep.mubr.f32.mxu0 %v2318
  %v2320 = vand.u32 %v1725, 4294901760
  %v2321 = vsub.f32 %v1725, %v2320
  %2322 = vmatmul.mubr.f32.gmra.mrb[0].mxu0 %v2321
  %v2323 = vpop.f32.mrb[0].mxu0
  %v2324 = vadd.f32 %v2161, %v2323
  %v2325 = vpop.f32.mrb[0].mxu0
  %v2326 = vand.u32 %v1728, 4294901760
  %v2327 = vsub.f32 %v1728, %v2326
  %2328 = vmatprep.mubr.f32.mxu0 %v2327
  %v2329 = vand.u32 %v1727, 4294901760
  %v2330 = vsub.f32 %v1727, %v2329
  %2331 = vmatmul.mubr.f32.gmra.mrb[0].mxu0 %v2330
  %v2332 = vpop.f32.mrb[0].mxu0
  %v2333 = vadd.f32 %v2168, %v2332
  %v2334 = vpop.f32.mrb[0].mxu0
  %2335 = vdwg.mxu0
  %2336 = vmatprep.subr.mxu0 0.0
  %v2337 = vand.u32 %v1729, 4294901760
  %2338 = vmatpush1.msra.mxu0 %v2337
  %2339 = vmatprep.subr.mxu0 0.0
  %v2340 = vand.u32 %v1730, 4294901760
  %2341 = vmatpush1.msra.mxu0 %v2340
  %2342 = vmatprep.subr.mxu0 0.0
  %v2343 = vand.u32 %v1731, 4294901760
  %2344 = vmatpush1.msra.mxu0 %v2343
  %2345 = vmatprep.subr.mxu0 0.0
  %v2346 = vand.u32 %v1732, 4294901760
  %2347 = vmatpush1.msra.mxu0 %v2346
  %2348 = vmatprep.subr.mxu0 0.0
  %v2349 = vand.u32 %v1733, 4294901760
  %2350 = vmatpush1.msra.mxu0 %v2349
  %2351 = vmatprep.subr.mxu0 0.0
  %v2352 = vand.u32 %v1734, 4294901760
  %2353 = vmatpush1.msra.mxu0 %v2352
  %2354 = vmatprep.subr.mxu0 0.0
  %v2355 = vand.u32 %v1735, 4294901760
  %2356 = vmatpush1.msra.mxu0 %v2355
  %2357 = vmatprep.subr.mxu0 0.0
  %v2358 = vand.u32 %v1736, 4294901760
  %2359 = vmatpush1.msra.mxu0 %v2358
  %2360 = vmatprep.subr.mxu0 0.0
  %v2361 = vand.u32 %v1737, 4294901760
  %2362 = vmatpush1.msra.mxu0 %v2361
  %2363 = vmatprep.subr.mxu0 0.0
  %v2364 = vand.u32 %v1738, 4294901760
  %2365 = vmatpush1.msra.mxu0 %v2364
  %2366 = vmatprep.subr.mxu0 0.0
  %v2367 = vand.u32 %v1739, 4294901760
  %2368 = vmatpush1.msra.mxu0 %v2367
  %2369 = vmatprep.subr.mxu0 0.0
  %v2370 = vand.u32 %v1740, 4294901760
  %2371 = vmatpush1.msra.mxu0 %v2370
  %2372 = vmatprep.subr.mxu0 0.0
  %v2373 = vand.u32 %v1741, 4294901760
  %2374 = vmatpush1.msra.mxu0 %v2373
  %2375 = vmatprep.subr.mxu0 0.0
  %v2376 = vand.u32 %v1742, 4294901760
  %2377 = vmatpush1.msra.mxu0 %v2376
  %2378 = vmatprep.subr.mxu0 0.0
  %v2379 = vand.u32 %v1743, 4294901760
  %2380 = vmatpush1.msra.mxu0 %v2379
  %2381 = vmatprep.subr.mxu0 0.0
  %v2382 = vand.u32 %v1744, 4294901760
  %2383 = vmatpush1.msra.mxu0 %v2382
  %2384 = vmatprep.subr.mxu0 0.0
  %v2385 = vand.u32 %v1745, 4294901760
  %2386 = vmatpush1.msra.mxu0 %v2385
  %2387 = vmatprep.subr.mxu0 0.0
  %v2388 = vand.u32 %v1746, 4294901760
  %2389 = vmatpush1.msra.mxu0 %v2388
  %2390 = vmatprep.subr.mxu0 0.0
  %v2391 = vand.u32 %v1747, 4294901760
  %2392 = vmatpush1.msra.mxu0 %v2391
  %2393 = vmatprep.subr.mxu0 0.0
  %v2394 = vand.u32 %v1748, 4294901760
  %2395 = vmatpush1.msra.mxu0 %v2394
  %2396 = vmatprep.subr.mxu0 0.0
  %v2397 = vand.u32 %v1749, 4294901760
  %2398 = vmatpush1.msra.mxu0 %v2397
  %2399 = vmatprep.subr.mxu0 0.0
  %v2400 = vand.u32 %v1750, 4294901760
  %2401 = vmatpush1.msra.mxu0 %v2400
  %2402 = vmatprep.subr.mxu0 0.0
  %v2403 = vand.u32 %v1751, 4294901760
  %2404 = vmatpush1.msra.mxu0 %v2403
  %2405 = vmatprep.subr.mxu0 0.0
  %v2406 = vand.u32 %v1752, 4294901760
  %2407 = vmatpush1.msra.mxu0 %v2406
  %2408 = vmatprep.subr.mxu0 0.0
  %v2409 = vand.u32 %v1753, 4294901760
  %2410 = vmatpush1.msra.mxu0 %v2409
  %2411 = vmatprep.subr.mxu0 0.0
  %v2412 = vand.u32 %v1754, 4294901760
  %2413 = vmatpush1.msra.mxu0 %v2412
  %2414 = vmatprep.subr.mxu0 0.0
  %v2415 = vand.u32 %v1755, 4294901760
  %2416 = vmatpush1.msra.mxu0 %v2415
  %2417 = vmatprep.subr.mxu0 0.0
  %v2418 = vand.u32 %v1756, 4294901760
  %2419 = vmatpush1.msra.mxu0 %v2418
  %2420 = vmatprep.subr.mxu0 0.0
  %v2421 = vand.u32 %v1757, 4294901760
  %2422 = vmatpush1.msra.mxu0 %v2421
  %2423 = vmatprep.subr.mxu0 0.0
  %v2424 = vand.u32 %v1758, 4294901760
  %2425 = vmatpush1.msra.mxu0 %v2424
  %2426 = vmatprep.subr.mxu0 0.0
  %v2427 = vand.u32 %v1759, 4294901760
  %2428 = vmatpush1.msra.mxu0 %v2427
  %2429 = vmatprep.subr.mxu0 0.0
  %v2430 = vand.u32 %v1760, 4294901760
  %2431 = vmatpush1.msra.mxu0 %v2430
  %v2432 = vand.u32 %v1722, 4294901760
  %v2433 = vsub.f32 %v1722, %v2432
  %v2434 = vand.u32 %v2433, 4294901760
  %2435 = vmatprep.mubr.f32.mxu0 %v2434
  %v2436 = vand.u32 %v1721, 4294901760
  %v2437 = vsub.f32 %v1721, %v2436
  %v2438 = vand.u32 %v2437, 4294901760
  %2439 = vmatmul.mubr.f32.gmra.mrb[0].mxu0 %v2438
  %v2440 = vpop.f32.mrb[0].mxu0
  %v2441 = vadd.f32 %v2306, %v2440
  %v2442 = vpop.f32.mrb[0].mxu0
  %v2443 = vand.u32 %v1724, 4294901760
  %v2444 = vsub.f32 %v1724, %v2443
  %v2445 = vand.u32 %v2444, 4294901760
  %2446 = vmatprep.mubr.f32.mxu0 %v2445
  %v2447 = vand.u32 %v1723, 4294901760
  %v2448 = vsub.f32 %v1723, %v2447
  %v2449 = vand.u32 %v2448, 4294901760
  %2450 = vmatmul.mubr.f32.gmra.mrb[0].mxu0 %v2449
  %v2451 = vpop.f32.mrb[0].mxu0
  %v2452 = vadd.f32 %v2315, %v2451
  %v2453 = vpop.f32.mrb[0].mxu0
  %v2454 = vand.u32 %v1726, 4294901760
  %v2455 = vsub.f32 %v1726, %v2454
  %v2456 = vand.u32 %v2455, 4294901760
  %2457 = vmatprep.mubr.f32.mxu0 %v2456
  %v2458 = vand.u32 %v1725, 4294901760
  %v2459 = vsub.f32 %v1725, %v2458
  %v2460 = vand.u32 %v2459, 4294901760
  %2461 = vmatmul.mubr.f32.gmra.mrb[0].mxu0 %v2460
  %v2462 = vpop.f32.mrb[0].mxu0
  %v2463 = vadd.f32 %v2324, %v2462
  %v2464 = vpop.f32.mrb[0].mxu0
  %v2465 = vand.u32 %v1728, 4294901760
  %v2466 = vsub.f32 %v1728, %v2465
  %v2467 = vand.u32 %v2466, 4294901760
  %2468 = vmatprep.mubr.f32.mxu0 %v2467
  %v2469 = vand.u32 %v1727, 4294901760
  %v2470 = vsub.f32 %v1727, %v2469
  %v2471 = vand.u32 %v2470, 4294901760
  %2472 = vmatmul.mubr.f32.gmra.mrb[0].mxu0 %v2471
  %v2473 = vpop.f32.mrb[0].mxu0
  %v2474 = vadd.f32 %v2333, %v2473
  %v2475 = vpop.f32.mrb[0].mxu0
  %2476 = vdwg.mxu0
  %2477 = vmatprep.subr.mxu0 0.0
  %v2478 = vand.u32 %v1729, 4294901760
  %v2479 = vsub.f32 %v1729, %v2478
  %v2480 = vand.u32 %v2479, 4294901760
  %2481 = vmatpush1.msra.mxu0 %v2480
  %2482 = vmatprep.subr.mxu0 0.0
  %v2483 = vand.u32 %v1730, 4294901760
  %v2484 = vsub.f32 %v1730, %v2483
  %v2485 = vand.u32 %v2484, 4294901760
  %2486 = vmatpush1.msra.mxu0 %v2485
  %2487 = vmatprep.subr.mxu0 0.0
  %v2488 = vand.u32 %v1731, 4294901760
  %v2489 = vsub.f32 %v1731, %v2488
  %v2490 = vand.u32 %v2489, 4294901760
  %2491 = vmatpush1.msra.mxu0 %v2490
  %2492 = vmatprep.subr.mxu0 0.0
  %v2493 = vand.u32 %v1732, 4294901760
  %v2494 = vsub.f32 %v1732, %v2493
  %v2495 = vand.u32 %v2494, 4294901760
  %2496 = vmatpush1.msra.mxu0 %v2495
  %2497 = vmatprep.subr.mxu0 0.0
  %v2498 = vand.u32 %v1733, 4294901760
  %v2499 = vsub.f32 %v1733, %v2498
  %v2500 = vand.u32 %v2499, 4294901760
  %2501 = vmatpush1.msra.mxu0 %v2500
  %2502 = vmatprep.subr.mxu0 0.0
  %v2503 = vand.u32 %v1734, 4294901760
  %v2504 = vsub.f32 %v1734, %v2503
  %v2505 = vand.u32 %v2504, 4294901760
  %2506 = vmatpush1.msra.mxu0 %v2505
  %2507 = vmatprep.subr.mxu0 0.0
  %v2508 = vand.u32 %v1735, 4294901760
  %v2509 = vsub.f32 %v1735, %v2508
  %v2510 = vand.u32 %v2509, 4294901760
  %2511 = vmatpush1.msra.mxu0 %v2510
  %2512 = vmatprep.subr.mxu0 0.0
  %v2513 = vand.u32 %v1736, 4294901760
  %v2514 = vsub.f32 %v1736, %v2513
  %v2515 = vand.u32 %v2514, 4294901760
  %2516 = vmatpush1.msra.mxu0 %v2515
  %2517 = vmatprep.subr.mxu0 0.0
  %v2518 = vand.u32 %v1737, 4294901760
  %v2519 = vsub.f32 %v1737, %v2518
  %v2520 = vand.u32 %v2519, 4294901760
  %2521 = vmatpush1.msra.mxu0 %v2520
  %2522 = vmatprep.subr.mxu0 0.0
  %v2523 = vand.u32 %v1738, 4294901760
  %v2524 = vsub.f32 %v1738, %v2523
  %v2525 = vand.u32 %v2524, 4294901760
  %2526 = vmatpush1.msra.mxu0 %v2525
  %2527 = vmatprep.subr.mxu0 0.0
  %v2528 = vand.u32 %v1739, 4294901760
  %v2529 = vsub.f32 %v1739, %v2528
  %v2530 = vand.u32 %v2529, 4294901760
  %2531 = vmatpush1.msra.mxu0 %v2530
  %2532 = vmatprep.subr.mxu0 0.0
  %v2533 = vand.u32 %v1740, 4294901760
  %v2534 = vsub.f32 %v1740, %v2533
  %v2535 = vand.u32 %v2534, 4294901760
  %2536 = vmatpush1.msra.mxu0 %v2535
  %2537 = vmatprep.subr.mxu0 0.0
  %v2538 = vand.u32 %v1741, 4294901760
  %v2539 = vsub.f32 %v1741, %v2538
  %v2540 = vand.u32 %v2539, 4294901760
  %2541 = vmatpush1.msra.mxu0 %v2540
  %2542 = vmatprep.subr.mxu0 0.0
  %v2543 = vand.u32 %v1742, 4294901760
  %v2544 = vsub.f32 %v1742, %v2543
  %v2545 = vand.u32 %v2544, 4294901760
  %2546 = vmatpush1.msra.mxu0 %v2545
  %2547 = vmatprep.subr.mxu0 0.0
  %v2548 = vand.u32 %v1743, 4294901760
  %v2549 = vsub.f32 %v1743, %v2548
  %v2550 = vand.u32 %v2549, 4294901760
  %2551 = vmatpush1.msra.mxu0 %v2550
  %2552 = vmatprep.subr.mxu0 0.0
  %v2553 = vand.u32 %v1744, 4294901760
  %v2554 = vsub.f32 %v1744, %v2553
  %v2555 = vand.u32 %v2554, 4294901760
  %2556 = vmatpush1.msra.mxu0 %v2555
  %2557 = vmatprep.subr.mxu0 0.0
  %v2558 = vand.u32 %v1745, 4294901760
  %v2559 = vsub.f32 %v1745, %v2558
  %v2560 = vand.u32 %v2559, 4294901760
  %2561 = vmatpush1.msra.mxu0 %v2560
  %2562 = vmatprep.subr.mxu0 0.0
  %v2563 = vand.u32 %v1746, 4294901760
  %v2564 = vsub.f32 %v1746, %v2563
  %v2565 = vand.u32 %v2564, 4294901760
  %2566 = vmatpush1.msra.mxu0 %v2565
  %2567 = vmatprep.subr.mxu0 0.0
  %v2568 = vand.u32 %v1747, 4294901760
  %v2569 = vsub.f32 %v1747, %v2568
  %v2570 = vand.u32 %v2569, 4294901760
  %2571 = vmatpush1.msra.mxu0 %v2570
  %2572 = vmatprep.subr.mxu0 0.0
  %v2573 = vand.u32 %v1748, 4294901760
  %v2574 = vsub.f32 %v1748, %v2573
  %v2575 = vand.u32 %v2574, 4294901760
  %2576 = vmatpush1.msra.mxu0 %v2575
  %2577 = vmatprep.subr.mxu0 0.0
  %v2578 = vand.u32 %v1749, 4294901760
  %v2579 = vsub.f32 %v1749, %v2578
  %v2580 = vand.u32 %v2579, 4294901760
  %2581 = vmatpush1.msra.mxu0 %v2580
  %2582 = vmatprep.subr.mxu0 0.0
  %v2583 = vand.u32 %v1750, 4294901760
  %v2584 = vsub.f32 %v1750, %v2583
  %v2585 = vand.u32 %v2584, 4294901760
  %2586 = vmatpush1.msra.mxu0 %v2585
  %2587 = vmatprep.subr.mxu0 0.0
  %v2588 = vand.u32 %v1751, 4294901760
  %v2589 = vsub.f32 %v1751, %v2588
  %v2590 = vand.u32 %v2589, 4294901760
  %2591 = vmatpush1.msra.mxu0 %v2590
  %2592 = vmatprep.subr.mxu0 0.0
  %v2593 = vand.u32 %v1752, 4294901760
  %v2594 = vsub.f32 %v1752, %v2593
  %v2595 = vand.u32 %v2594, 4294901760
  %2596 = vmatpush1.msra.mxu0 %v2595
  %2597 = vmatprep.subr.mxu0 0.0
  %v2598 = vand.u32 %v1753, 4294901760
  %v2599 = vsub.f32 %v1753, %v2598
  %v2600 = vand.u32 %v2599, 4294901760
  %2601 = vmatpush1.msra.mxu0 %v2600
  %2602 = vmatprep.subr.mxu0 0.0
  %v2603 = vand.u32 %v1754, 4294901760
  %v2604 = vsub.f32 %v1754, %v2603
  %v2605 = vand.u32 %v2604, 4294901760
  %2606 = vmatpush1.msra.mxu0 %v2605
  %2607 = vmatprep.subr.mxu0 0.0
  %v2608 = vand.u32 %v1755, 4294901760
  %v2609 = vsub.f32 %v1755, %v2608
  %v2610 = vand.u32 %v2609, 4294901760
  %2611 = vmatpush1.msra.mxu0 %v2610
  %2612 = vmatprep.subr.mxu0 0.0
  %v2613 = vand.u32 %v1756, 4294901760
  %v2614 = vsub.f32 %v1756, %v2613
  %v2615 = vand.u32 %v2614, 4294901760
  %2616 = vmatpush1.msra.mxu0 %v2615
  %2617 = vmatprep.subr.mxu0 0.0
  %v2618 = vand.u32 %v1757, 4294901760
  %v2619 = vsub.f32 %v1757, %v2618
  %v2620 = vand.u32 %v2619, 4294901760
  %2621 = vmatpush1.msra.mxu0 %v2620
  %2622 = vmatprep.subr.mxu0 0.0
  %v2623 = vand.u32 %v1758, 4294901760
  %v2624 = vsub.f32 %v1758, %v2623
  %v2625 = vand.u32 %v2624, 4294901760
  %2626 = vmatpush1.msra.mxu0 %v2625
  %2627 = vmatprep.subr.mxu0 0.0
  %v2628 = vand.u32 %v1759, 4294901760
  %v2629 = vsub.f32 %v1759, %v2628
  %v2630 = vand.u32 %v2629, 4294901760
  %2631 = vmatpush1.msra.mxu0 %v2630
  %2632 = vmatprep.subr.mxu0 0.0
  %v2633 = vand.u32 %v1760, 4294901760
  %v2634 = vsub.f32 %v1760, %v2633
  %v2635 = vand.u32 %v2634, 4294901760
  %2636 = vmatpush1.msra.mxu0 %v2635
  %v2637 = vand.u32 %v1722, 4294901760
  %2638 = vmatprep.mubr.f32.mxu0 %v2637
  %v2639 = vand.u32 %v1721, 4294901760
  %2640 = vmatmul.mubr.f32.gmra.mrb[0].mxu0 %v2639
  %v2641 = vpop.f32.mrb[0].mxu0
  %v2642 = vadd.f32 %v2441, %v2641
  %v2643 = vpop.f32.mrb[0].mxu0
  %v2644 = vand.u32 %v1724, 4294901760
  %2645 = vmatprep.mubr.f32.mxu0 %v2644
  %v2646 = vand.u32 %v1723, 4294901760
  %2647 = vmatmul.mubr.f32.gmra.mrb[0].mxu0 %v2646
  %v2648 = vpop.f32.mrb[0].mxu0
  %v2649 = vadd.f32 %v2452, %v2648
  %v2650 = vpop.f32.mrb[0].mxu0
  %v2651 = vand.u32 %v1726, 4294901760
  %2652 = vmatprep.mubr.f32.mxu0 %v2651
  %v2653 = vand.u32 %v1725, 4294901760
  %2654 = vmatmul.mubr.f32.gmra.mrb[0].mxu0 %v2653
  %v2655 = vpop.f32.mrb[0].mxu0
  %v2656 = vadd.f32 %v2463, %v2655
  %v2657 = vpop.f32.mrb[0].mxu0
  %v2658 = vand.u32 %v1728, 4294901760
  %2659 = vmatprep.mubr.f32.mxu0 %v2658
  %v2660 = vand.u32 %v1727, 4294901760
  %2661 = vmatmul.mubr.f32.gmra.mrb[0].mxu0 %v2660
  %v2662 = vpop.f32.mrb[0].mxu0
  %v2663 = vadd.f32 %v2474, %v2662
  %v2664 = vpop.f32.mrb[0].mxu0
  %2665 = vdwg.mxu0
  %2666 = vmatprep.subr.mxu0 0.0
  %v2667 = vand.u32 %v1729, 4294901760
  %2668 = vmatpush1.msra.mxu0 %v2667
  %2669 = vmatprep.subr.mxu0 0.0
  %v2670 = vand.u32 %v1730, 4294901760
  %2671 = vmatpush1.msra.mxu0 %v2670
  %2672 = vmatprep.subr.mxu0 0.0
  %v2673 = vand.u32 %v1731, 4294901760
  %2674 = vmatpush1.msra.mxu0 %v2673
  %2675 = vmatprep.subr.mxu0 0.0
  %v2676 = vand.u32 %v1732, 4294901760
  %2677 = vmatpush1.msra.mxu0 %v2676
  %2678 = vmatprep.subr.mxu0 0.0
  %v2679 = vand.u32 %v1733, 4294901760
  %2680 = vmatpush1.msra.mxu0 %v2679
  %2681 = vmatprep.subr.mxu0 0.0
  %v2682 = vand.u32 %v1734, 4294901760
  %2683 = vmatpush1.msra.mxu0 %v2682
  %2684 = vmatprep.subr.mxu0 0.0
  %v2685 = vand.u32 %v1735, 4294901760
  %2686 = vmatpush1.msra.mxu0 %v2685
  %2687 = vmatprep.subr.mxu0 0.0
  %v2688 = vand.u32 %v1736, 4294901760
  %2689 = vmatpush1.msra.mxu0 %v2688
  %2690 = vmatprep.subr.mxu0 0.0
  %v2691 = vand.u32 %v1737, 4294901760
  %2692 = vmatpush1.msra.mxu0 %v2691
  %2693 = vmatprep.subr.mxu0 0.0
  %v2694 = vand.u32 %v1738, 4294901760
  %2695 = vmatpush1.msra.mxu0 %v2694
  %2696 = vmatprep.subr.mxu0 0.0
  %v2697 = vand.u32 %v1739, 4294901760
  %2698 = vmatpush1.msra.mxu0 %v2697
  %2699 = vmatprep.subr.mxu0 0.0
  %v2700 = vand.u32 %v1740, 4294901760
  %2701 = vmatpush1.msra.mxu0 %v2700
  %2702 = vmatprep.subr.mxu0 0.0
  %v2703 = vand.u32 %v1741, 4294901760
  %2704 = vmatpush1.msra.mxu0 %v2703
  %2705 = vmatprep.subr.mxu0 0.0
  %v2706 = vand.u32 %v1742, 4294901760
  %2707 = vmatpush1.msra.mxu0 %v2706
  %2708 = vmatprep.subr.mxu0 0.0
  %v2709 = vand.u32 %v1743, 4294901760
  %2710 = vmatpush1.msra.mxu0 %v2709
  %2711 = vmatprep.subr.mxu0 0.0
  %v2712 = vand.u32 %v1744, 4294901760
  %2713 = vmatpush1.msra.mxu0 %v2712
  %2714 = vmatprep.subr.mxu0 0.0
  %v2715 = vand.u32 %v1745, 4294901760
  %2716 = vmatpush1.msra.mxu0 %v2715
  %2717 = vmatprep.subr.mxu0 0.0
  %v2718 = vand.u32 %v1746, 4294901760
  %2719 = vmatpush1.msra.mxu0 %v2718
  %2720 = vmatprep.subr.mxu0 0.0
  %v2721 = vand.u32 %v1747, 4294901760
  %2722 = vmatpush1.msra.mxu0 %v2721
  %2723 = vmatprep.subr.mxu0 0.0
  %v2724 = vand.u32 %v1748, 4294901760
  %2725 = vmatpush1.msra.mxu0 %v2724
  %2726 = vmatprep.subr.mxu0 0.0
  %v2727 = vand.u32 %v1749, 4294901760
  %2728 = vmatpush1.msra.mxu0 %v2727
  %2729 = vmatprep.subr.mxu0 0.0
  %v2730 = vand.u32 %v1750, 4294901760
  %2731 = vmatpush1.msra.mxu0 %v2730
  %2732 = vmatprep.subr.mxu0 0.0
  %v2733 = vand.u32 %v1751, 4294901760
  %2734 = vmatpush1.msra.mxu0 %v2733
  %2735 = vmatprep.subr.mxu0 0.0
  %v2736 = vand.u32 %v1752, 4294901760
  %2737 = vmatpush1.msra.mxu0 %v2736
  %2738 = vmatprep.subr.mxu0 0.0
  %v2739 = vand.u32 %v1753, 4294901760
  %2740 = vmatpush1.msra.mxu0 %v2739
  %2741 = vmatprep.subr.mxu0 0.0
  %v2742 = vand.u32 %v1754, 4294901760
  %2743 = vmatpush1.msra.mxu0 %v2742
  %2744 = vmatprep.subr.mxu0 0.0
  %v2745 = vand.u32 %v1755, 4294901760
  %2746 = vmatpush1.msra.mxu0 %v2745
  %2747 = vmatprep.subr.mxu0 0.0
  %v2748 = vand.u32 %v1756, 4294901760
  %2749 = vmatpush1.msra.mxu0 %v2748
  %2750 = vmatprep.subr.mxu0 0.0
  %v2751 = vand.u32 %v1757, 4294901760
  %2752 = vmatpush1.msra.mxu0 %v2751
  %2753 = vmatprep.subr.mxu0 0.0
  %v2754 = vand.u32 %v1758, 4294901760
  %2755 = vmatpush1.msra.mxu0 %v2754
  %2756 = vmatprep.subr.mxu0 0.0
  %v2757 = vand.u32 %v1759, 4294901760
  %2758 = vmatpush1.msra.mxu0 %v2757
  %2759 = vmatprep.subr.mxu0 0.0
  %v2760 = vand.u32 %v1760, 4294901760
  %2761 = vmatpush1.msra.mxu0 %v2760
  %v2762 = vand.u32 %v1722, 4294901760
  %2763 = vmatprep.mubr.f32.mxu0 %v2762
  %v2764 = vand.u32 %v1721, 4294901760
  %2765 = vmatmul.mubr.f32.gmra.mrb[0].mxu0 %v2764
  %v2766 = vpop.f32.mrb[0].mxu0
  %v2767 = vadd.f32 %v2642, %v2766
  %v2768 = vpop.f32.mrb[0].mxu0
  %v2769 = vand.u32 %v1724, 4294901760
  %2770 = vmatprep.mubr.f32.mxu0 %v2769
  %v2771 = vand.u32 %v1723, 4294901760
  %2772 = vmatmul.mubr.f32.gmra.mrb[0].mxu0 %v2771
  %v2773 = vpop.f32.mrb[0].mxu0
  %v2774 = vadd.f32 %v2649, %v2773
  %v2775 = vpop.f32.mrb[0].mxu0
  %v2776 = vand.u32 %v1726, 4294901760
  %2777 = vmatprep.mubr.f32.mxu0 %v2776
  %v2778 = vand.u32 %v1725, 4294901760
  %2779 = vmatmul.mubr.f32.gmra.mrb[0].mxu0 %v2778
  %v2780 = vpop.f32.mrb[0].mxu0
  %v2781 = vadd.f32 %v2656, %v2780
  %v2782 = vpop.f32.mrb[0].mxu0
  %v2783 = vand.u32 %v1728, 4294901760
  %2784 = vmatprep.mubr.f32.mxu0 %v2783
  %v2785 = vand.u32 %v1727, 4294901760
  %2786 = vmatmul.mubr.f32.gmra.mrb[0].mxu0 %v2785
  %v2787 = vpop.f32.mrb[0].mxu0
  %v2788 = vadd.f32 %v2663, %v2787
  %v2789 = vpop.f32.mrb[0].mxu0
  %2790 = vdwg.mxu0
  %v2791 = vld [vmem:[%s6] sm:$0xff]
  %v2792 = vld [vmem:[%s6 + $0x8] sm:$0xff]
  %v2793 = vld [vmem:[%s6 + $0x10] sm:$0xff]
  %v2794 = vld [vmem:[%s6 + $0x18] sm:$0xff]
  %v2795 = vld [vmem:[%s6 + $0x20] sm:$0xff]
  %v2796 = vld [vmem:[%s6 + $0x28] sm:$0xff]
  %v2797 = vld [vmem:[%s6 + $0x30] sm:$0xff]
  %v2798 = vld [vmem:[%s6 + $0x38] sm:$0xff]
  %v2799 = vld [vmem:[%s6 + $0x40] sm:$0xff]
  %v2800 = vld [vmem:[%s6 + $0x48] sm:$0xff]
  %v2801 = vld [vmem:[%s6 + $0x50] sm:$0xff]
  %v2802 = vld [vmem:[%s6 + $0x58] sm:$0xff]
  %v2803 = vld [vmem:[%s6 + $0x60] sm:$0xff]
  %v2804 = vld [vmem:[%s6 + $0x68] sm:$0xff]
  %v2805 = vld [vmem:[%s6 + $0x70] sm:$0xff]
  %v2806 = vld [vmem:[%s6 + $0x78] sm:$0xff]
  %v2807 = vld [vmem:[%s6 + $0x80] sm:$0xff]
  %v2808 = vld [vmem:[%s6 + $0x88] sm:$0xff]
  %v2809 = vld [vmem:[%s6 + $0x90] sm:$0xff]
  %v2810 = vld [vmem:[%s6 + $0x98] sm:$0xff]
  %v2811 = vld [vmem:[%s6 + $0xa0] sm:$0xff]
  %v2812 = vld [vmem:[%s6 + $0xa8] sm:$0xff]
  %v2813 = vld [vmem:[%s6 + $0xb0] sm:$0xff]
  %v2814 = vld [vmem:[%s6 + $0xb8] sm:$0xff]
  %v2815 = vld [vmem:[%s6 + $0xc0] sm:$0xff]
  %v2816 = vld [vmem:[%s6 + $0xc8] sm:$0xff]
  %v2817 = vld [vmem:[%s6 + $0xd0] sm:$0xff]
  %v2818 = vld [vmem:[%s6 + $0xd8] sm:$0xff]
  %v2819 = vld [vmem:[%s6 + $0xe0] sm:$0xff]
  %v2820 = vld [vmem:[%s6 + $0xe8] sm:$0xff]
  %v2821 = vld [vmem:[%s6 + $0xf0] sm:$0xff]
  %v2822 = vld [vmem:[%s6 + $0xf8] sm:$0xff]
  %2823 = vmatprep.subr.mxu0 0.0
  %v2824 = vand.u32 %v2791, 4294901760
  %2825 = vmatpush1.msra.mxu0 %v2824
  %2826 = vmatprep.subr.mxu0 0.0
  %v2827 = vand.u32 %v2792, 4294901760
  %2828 = vmatpush1.msra.mxu0 %v2827
  %2829 = vmatprep.subr.mxu0 0.0
  %v2830 = vand.u32 %v2793, 4294901760
  %2831 = vmatpush1.msra.mxu0 %v2830
  %2832 = vmatprep.subr.mxu0 0.0
  %v2833 = vand.u32 %v2794, 4294901760
  %2834 = vmatpush1.msra.mxu0 %v2833
  %2835 = vmatprep.subr.mxu0 0.0
  %v2836 = vand.u32 %v2795, 4294901760
  %2837 = vmatpush1.msra.mxu0 %v2836
  %2838 = vmatprep.subr.mxu0 0.0
  %v2839 = vand.u32 %v2796, 4294901760
  %2840 = vmatpush1.msra.mxu0 %v2839
  %2841 = vmatprep.subr.mxu0 0.0
  %v2842 = vand.u32 %v2797, 4294901760
  %2843 = vmatpush1.msra.mxu0 %v2842
  %2844 = vmatprep.subr.mxu0 0.0
  %v2845 = vand.u32 %v2798, 4294901760
  %2846 = vmatpush1.msra.mxu0 %v2845
  %2847 = vmatprep.subr.mxu0 0.0
  %v2848 = vand.u32 %v2799, 4294901760
  %2849 = vmatpush1.msra.mxu0 %v2848
  %2850 = vmatprep.subr.mxu0 0.0
  %v2851 = vand.u32 %v2800, 4294901760
  %2852 = vmatpush1.msra.mxu0 %v2851
  %2853 = vmatprep.subr.mxu0 0.0
  %v2854 = vand.u32 %v2801, 4294901760
  %2855 = vmatpush1.msra.mxu0 %v2854
  %2856 = vmatprep.subr.mxu0 0.0
  %v2857 = vand.u32 %v2802, 4294901760
  %2858 = vmatpush1.msra.mxu0 %v2857
  %2859 = vmatprep.subr.mxu0 0.0
  %v2860 = vand.u32 %v2803, 4294901760
  %2861 = vmatpush1.msra.mxu0 %v2860
  %2862 = vmatprep.subr.mxu0 0.0
  %v2863 = vand.u32 %v2804, 4294901760
  %2864 = vmatpush1.msra.mxu0 %v2863
  %2865 = vmatprep.subr.mxu0 0.0
  %v2866 = vand.u32 %v2805, 4294901760
  %2867 = vmatpush1.msra.mxu0 %v2866
  %2868 = vmatprep.subr.mxu0 0.0
  %v2869 = vand.u32 %v2806, 4294901760
  %2870 = vmatpush1.msra.mxu0 %v2869
  %2871 = vmatprep.subr.mxu0 0.0
  %v2872 = vand.u32 %v2807, 4294901760
  %2873 = vmatpush1.msra.mxu0 %v2872
  %2874 = vmatprep.subr.mxu0 0.0
  %v2875 = vand.u32 %v2808, 4294901760
  %2876 = vmatpush1.msra.mxu0 %v2875
  %2877 = vmatprep.subr.mxu0 0.0
  %v2878 = vand.u32 %v2809, 4294901760
  %2879 = vmatpush1.msra.mxu0 %v2878
  %2880 = vmatprep.subr.mxu0 0.0
  %v2881 = vand.u32 %v2810, 4294901760
  %2882 = vmatpush1.msra.mxu0 %v2881
  %2883 = vmatprep.subr.mxu0 0.0
  %v2884 = vand.u32 %v2811, 4294901760
  %2885 = vmatpush1.msra.mxu0 %v2884
  %2886 = vmatprep.subr.mxu0 0.0
  %v2887 = vand.u32 %v2812, 4294901760
  %2888 = vmatpush1.msra.mxu0 %v2887
  %2889 = vmatprep.subr.mxu0 0.0
  %v2890 = vand.u32 %v2813, 4294901760
  %2891 = vmatpush1.msra.mxu0 %v2890
  %2892 = vmatprep.subr.mxu0 0.0
  %v2893 = vand.u32 %v2814, 4294901760
  %2894 = vmatpush1.msra.mxu0 %v2893
  %2895 = vmatprep.subr.mxu0 0.0
  %v2896 = vand.u32 %v2815, 4294901760
  %2897 = vmatpush1.msra.mxu0 %v2896
  %2898 = vmatprep.subr.mxu0 0.0
  %v2899 = vand.u32 %v2816, 4294901760
  %2900 = vmatpush1.msra.mxu0 %v2899
  %2901 = vmatprep.subr.mxu0 0.0
  %v2902 = vand.u32 %v2817, 4294901760
  %2903 = vmatpush1.msra.mxu0 %v2902
  %2904 = vmatprep.subr.mxu0 0.0
  %v2905 = vand.u32 %v2818, 4294901760
  %2906 = vmatpush1.msra.mxu0 %v2905
  %2907 = vmatprep.subr.mxu0 0.0
  %v2908 = vand.u32 %v2819, 4294901760
  %2909 = vmatpush1.msra.mxu0 %v2908
  %2910 = vmatprep.subr.mxu0 0.0
  %v2911 = vand.u32 %v2820, 4294901760
  %2912 = vmatpush1.msra.mxu0 %v2911
  %2913 = vmatprep.subr.mxu0 0.0
  %v2914 = vand.u32 %v2821, 4294901760
  %2915 = vmatpush1.msra.mxu0 %v2914
  %2916 = vmatprep.subr.mxu0 0.0
  %v2917 = vand.u32 %v2822, 4294901760
  %2918 = vmatpush1.msra.mxu0 %v2917
  %v2919 = vand.u32 %v1722, 4294901760
  %v2920 = vsub.f32 %v1722, %v2919
  %v2921 = vand.u32 %v2920, 4294901760
  %v2922 = vsub.f32 %v2920, %v2921
  %v2923 = vand.u32 %v2922, 4294901760
  %2924 = vmatprep.mubr.f32.mxu0 %v2923
  %v2925 = vand.u32 %v1721, 4294901760
  %v2926 = vsub.f32 %v1721, %v2925
  %v2927 = vand.u32 %v2926, 4294901760
  %v2928 = vsub.f32 %v2926, %v2927
  %v2929 = vand.u32 %v2928, 4294901760
  %2930 = vmatmul.mubr.f32.gmra.mrb[0].mxu0 %v2929
  %v2931 = vpop.f32.mrb[0].mxu0
  %v2932 = vadd.f32 0.0, %v2931
  %v2933 = vpop.f32.mrb[0].mxu0
  %v2934 = vand.u32 %v1724, 4294901760
  %v2935 = vsub.f32 %v1724, %v2934
  %v2936 = vand.u32 %v2935, 4294901760
  %v2937 = vsub.f32 %v2935, %v2936
  %v2938 = vand.u32 %v2937, 4294901760
  %2939 = vmatprep.mubr.f32.mxu0 %v2938
  %v2940 = vand.u32 %v1723, 4294901760
  %v2941 = vsub.f32 %v1723, %v2940
  %v2942 = vand.u32 %v2941, 4294901760
  %v2943 = vsub.f32 %v2941, %v2942
  %v2944 = vand.u32 %v2943, 4294901760
  %2945 = vmatmul.mubr.f32.gmra.mrb[0].mxu0 %v2944
  %v2946 = vpop.f32.mrb[0].mxu0
  %v2947 = vadd.f32 0.0, %v2946
  %v2948 = vpop.f32.mrb[0].mxu0
  %v2949 = vand.u32 %v1726, 4294901760
  %v2950 = vsub.f32 %v1726, %v2949
  %v2951 = vand.u32 %v2950, 4294901760
  %v2952 = vsub.f32 %v2950, %v2951
  %v2953 = vand.u32 %v2952, 4294901760
  %2954 = vmatprep.mubr.f32.mxu0 %v2953
  %v2955 = vand.u32 %v1725, 4294901760
  %v2956 = vsub.f32 %v1725, %v2955
  %v2957 = vand.u32 %v2956, 4294901760
  %v2958 = vsub.f32 %v2956, %v2957
  %v2959 = vand.u32 %v2958, 4294901760
  %2960 = vmatmul.mubr.f32.gmra.mrb[0].mxu0 %v2959
  %v2961 = vpop.f32.mrb[0].mxu0
  %v2962 = vadd.f32 0.0, %v2961
  %v2963 = vpop.f32.mrb[0].mxu0
  %v2964 = vand.u32 %v1728, 4294901760
  %v2965 = vsub.f32 %v1728, %v2964
  %v2966 = vand.u32 %v2965, 4294901760
  %v2967 = vsub.f32 %v2965, %v2966
  %v2968 = vand.u32 %v2967, 4294901760
  %2969 = vmatprep.mubr.f32.mxu0 %v2968
  %v2970 = vand.u32 %v1727, 4294901760
  %v2971 = vsub.f32 %v1727, %v2970
  %v2972 = vand.u32 %v2971, 4294901760
  %v2973 = vsub.f32 %v2971, %v2972
  %v2974 = vand.u32 %v2973, 4294901760
  %2975 = vmatmul.mubr.f32.gmra.mrb[0].mxu0 %v2974
  %v2976 = vpop.f32.mrb[0].mxu0
  %v2977 = vadd.f32 0.0, %v2976
  %v2978 = vpop.f32.mrb[0].mxu0
  %2979 = vdwg.mxu0
  %2980 = vmatprep.subr.mxu0 0.0
  %v2981 = vand.u32 %v2791, 4294901760
  %v2982 = vsub.f32 %v2791, %v2981
  %v2983 = vand.u32 %v2982, 4294901760
  %v2984 = vsub.f32 %v2982, %v2983
  %v2985 = vand.u32 %v2984, 4294901760
  %2986 = vmatpush1.msra.mxu0 %v2985
  %2987 = vmatprep.subr.mxu0 0.0
  %v2988 = vand.u32 %v2792, 4294901760
  %v2989 = vsub.f32 %v2792, %v2988
  %v2990 = vand.u32 %v2989, 4294901760
  %v2991 = vsub.f32 %v2989, %v2990
  %v2992 = vand.u32 %v2991, 4294901760
  %2993 = vmatpush1.msra.mxu0 %v2992
  %2994 = vmatprep.subr.mxu0 0.0
  %v2995 = vand.u32 %v2793, 4294901760
  %v2996 = vsub.f32 %v2793, %v2995
  %v2997 = vand.u32 %v2996, 4294901760
  %v2998 = vsub.f32 %v2996, %v2997
  %v2999 = vand.u32 %v2998, 4294901760
  %3000 = vmatpush1.msra.mxu0 %v2999
  %3001 = vmatprep.subr.mxu0 0.0
  %v3002 = vand.u32 %v2794, 4294901760
  %v3003 = vsub.f32 %v2794, %v3002
  %v3004 = vand.u32 %v3003, 4294901760
  %v3005 = vsub.f32 %v3003, %v3004
  %v3006 = vand.u32 %v3005, 4294901760
  %3007 = vmatpush1.msra.mxu0 %v3006
  %3008 = vmatprep.subr.mxu0 0.0
  %v3009 = vand.u32 %v2795, 4294901760
  %v3010 = vsub.f32 %v2795, %v3009
  %v3011 = vand.u32 %v3010, 4294901760
  %v3012 = vsub.f32 %v3010, %v3011
  %v3013 = vand.u32 %v3012, 4294901760
  %3014 = vmatpush1.msra.mxu0 %v3013
  %3015 = vmatprep.subr.mxu0 0.0
  %v3016 = vand.u32 %v2796, 4294901760
  %v3017 = vsub.f32 %v2796, %v3016
  %v3018 = vand.u32 %v3017, 4294901760
  %v3019 = vsub.f32 %v3017, %v3018
  %v3020 = vand.u32 %v3019, 4294901760
  %3021 = vmatpush1.msra.mxu0 %v3020
  %3022 = vmatprep.subr.mxu0 0.0
  %v3023 = vand.u32 %v2797, 4294901760
  %v3024 = vsub.f32 %v2797, %v3023
  %v3025 = vand.u32 %v3024, 4294901760
  %v3026 = vsub.f32 %v3024, %v3025
  %v3027 = vand.u32 %v3026, 4294901760
  %3028 = vmatpush1.msra.mxu0 %v3027
  %3029 = vmatprep.subr.mxu0 0.0
  %v3030 = vand.u32 %v2798, 4294901760
  %v3031 = vsub.f32 %v2798, %v3030
  %v3032 = vand.u32 %v3031, 4294901760
  %v3033 = vsub.f32 %v3031, %v3032
  %v3034 = vand.u32 %v3033, 4294901760
  %3035 = vmatpush1.msra.mxu0 %v3034
  %3036 = vmatprep.subr.mxu0 0.0
  %v3037 = vand.u32 %v2799, 4294901760
  %v3038 = vsub.f32 %v2799, %v3037
  %v3039 = vand.u32 %v3038, 4294901760
  %v3040 = vsub.f32 %v3038, %v3039
  %v3041 = vand.u32 %v3040, 4294901760
  %3042 = vmatpush1.msra.mxu0 %v3041
  %3043 = vmatprep.subr.mxu0 0.0
  %v3044 = vand.u32 %v2800, 4294901760
  %v3045 = vsub.f32 %v2800, %v3044
  %v3046 = vand.u32 %v3045, 4294901760
  %v3047 = vsub.f32 %v3045, %v3046
  %v3048 = vand.u32 %v3047, 4294901760
  %3049 = vmatpush1.msra.mxu0 %v3048
  %3050 = vmatprep.subr.mxu0 0.0
  %v3051 = vand.u32 %v2801, 4294901760
  %v3052 = vsub.f32 %v2801, %v3051
  %v3053 = vand.u32 %v3052, 4294901760
  %v3054 = vsub.f32 %v3052, %v3053
  %v3055 = vand.u32 %v3054, 4294901760
  %3056 = vmatpush1.msra.mxu0 %v3055
  %3057 = vmatprep.subr.mxu0 0.0
  %v3058 = vand.u32 %v2802, 4294901760
  %v3059 = vsub.f32 %v2802, %v3058
  %v3060 = vand.u32 %v3059, 4294901760
  %v3061 = vsub.f32 %v3059, %v3060
  %v3062 = vand.u32 %v3061, 4294901760
  %3063 = vmatpush1.msra.mxu0 %v3062
  %3064 = vmatprep.subr.mxu0 0.0
  %v3065 = vand.u32 %v2803, 4294901760
  %v3066 = vsub.f32 %v2803, %v3065
  %v3067 = vand.u32 %v3066, 4294901760
  %v3068 = vsub.f32 %v3066, %v3067
  %v3069 = vand.u32 %v3068, 4294901760
  %3070 = vmatpush1.msra.mxu0 %v3069
  %3071 = vmatprep.subr.mxu0 0.0
  %v3072 = vand.u32 %v2804, 4294901760
  %v3073 = vsub.f32 %v2804, %v3072
  %v3074 = vand.u32 %v3073, 4294901760
  %v3075 = vsub.f32 %v3073, %v3074
  %v3076 = vand.u32 %v3075, 4294901760
  %3077 = vmatpush1.msra.mxu0 %v3076
  %3078 = vmatprep.subr.mxu0 0.0
  %v3079 = vand.u32 %v2805, 4294901760
  %v3080 = vsub.f32 %v2805, %v3079
  %v3081 = vand.u32 %v3080, 4294901760
  %v3082 = vsub.f32 %v3080, %v3081
  %v3083 = vand.u32 %v3082, 4294901760
  %3084 = vmatpush1.msra.mxu0 %v3083
  %3085 = vmatprep.subr.mxu0 0.0
  %v3086 = vand.u32 %v2806, 4294901760
  %v3087 = vsub.f32 %v2806, %v3086
  %v3088 = vand.u32 %v3087, 4294901760
  %v3089 = vsub.f32 %v3087, %v3088
  %v3090 = vand.u32 %v3089, 4294901760
  %3091 = vmatpush1.msra.mxu0 %v3090
  %3092 = vmatprep.subr.mxu0 0.0
  %v3093 = vand.u32 %v2807, 4294901760
  %v3094 = vsub.f32 %v2807, %v3093
  %v3095 = vand.u32 %v3094, 4294901760
  %v3096 = vsub.f32 %v3094, %v3095
  %v3097 = vand.u32 %v3096, 4294901760
  %3098 = vmatpush1.msra.mxu0 %v3097
  %3099 = vmatprep.subr.mxu0 0.0
  %v3100 = vand.u32 %v2808, 4294901760
  %v3101 = vsub.f32 %v2808, %v3100
  %v3102 = vand.u32 %v3101, 4294901760
  %v3103 = vsub.f32 %v3101, %v3102
  %v3104 = vand.u32 %v3103, 4294901760
  %3105 = vmatpush1.msra.mxu0 %v3104
  %3106 = vmatprep.subr.mxu0 0.0
  %v3107 = vand.u32 %v2809, 4294901760
  %v3108 = vsub.f32 %v2809, %v3107
  %v3109 = vand.u32 %v3108, 4294901760
  %v3110 = vsub.f32 %v3108, %v3109
  %v3111 = vand.u32 %v3110, 4294901760
  %3112 = vmatpush1.msra.mxu0 %v3111
  %3113 = vmatprep.subr.mxu0 0.0
  %v3114 = vand.u32 %v2810, 4294901760
  %v3115 = vsub.f32 %v2810, %v3114
  %v3116 = vand.u32 %v3115, 4294901760
  %v3117 = vsub.f32 %v3115, %v3116
  %v3118 = vand.u32 %v3117, 4294901760
  %3119 = vmatpush1.msra.mxu0 %v3118
  %3120 = vmatprep.subr.mxu0 0.0
  %v3121 = vand.u32 %v2811, 4294901760
  %v3122 = vsub.f32 %v2811, %v3121
  %v3123 = vand.u32 %v3122, 4294901760
  %v3124 = vsub.f32 %v3122, %v3123
  %v3125 = vand.u32 %v3124, 4294901760
  %3126 = vmatpush1.msra.mxu0 %v3125
  %3127 = vmatprep.subr.mxu0 0.0
  %v3128 = vand.u32 %v2812, 4294901760
  %v3129 = vsub.f32 %v2812, %v3128
  %v3130 = vand.u32 %v3129, 4294901760
  %v3131 = vsub.f32 %v3129, %v3130
  %v3132 = vand.u32 %v3131, 4294901760
  %3133 = vmatpush1.msra.mxu0 %v3132
  %3134 = vmatprep.subr.mxu0 0.0
  %v3135 = vand.u32 %v2813, 4294901760
  %v3136 = vsub.f32 %v2813, %v3135
  %v3137 = vand.u32 %v3136, 4294901760
  %v3138 = vsub.f32 %v3136, %v3137
  %v3139 = vand.u32 %v3138, 4294901760
  %3140 = vmatpush1.msra.mxu0 %v3139
  %3141 = vmatprep.subr.mxu0 0.0
  %v3142 = vand.u32 %v2814, 4294901760
  %v3143 = vsub.f32 %v2814, %v3142
  %v3144 = vand.u32 %v3143, 4294901760
  %v3145 = vsub.f32 %v3143, %v3144
  %v3146 = vand.u32 %v3145, 4294901760
  %3147 = vmatpush1.msra.mxu0 %v3146
  %3148 = vmatprep.subr.mxu0 0.0
  %v3149 = vand.u32 %v2815, 4294901760
  %v3150 = vsub.f32 %v2815, %v3149
  %v3151 = vand.u32 %v3150, 4294901760
  %v3152 = vsub.f32 %v3150, %v3151
  %v3153 = vand.u32 %v3152, 4294901760
  %3154 = vmatpush1.msra.mxu0 %v3153
  %3155 = vmatprep.subr.mxu0 0.0
  %v3156 = vand.u32 %v2816, 4294901760
  %v3157 = vsub.f32 %v2816, %v3156
  %v3158 = vand.u32 %v3157, 4294901760
  %v3159 = vsub.f32 %v3157, %v3158
  %v3160 = vand.u32 %v3159, 4294901760
  %3161 = vmatpush1.msra.mxu0 %v3160
  %3162 = vmatprep.subr.mxu0 0.0
  %v3163 = vand.u32 %v2817, 4294901760
  %v3164 = vsub.f32 %v2817, %v3163
  %v3165 = vand.u32 %v3164, 4294901760
  %v3166 = vsub.f32 %v3164, %v3165
  %v3167 = vand.u32 %v3166, 4294901760
  %3168 = vmatpush1.msra.mxu0 %v3167
  %3169 = vmatprep.subr.mxu0 0.0
  %v3170 = vand.u32 %v2818, 4294901760
  %v3171 = vsub.f32 %v2818, %v3170
  %v3172 = vand.u32 %v3171, 4294901760
  %v3173 = vsub.f32 %v3171, %v3172
  %v3174 = vand.u32 %v3173, 4294901760
  %3175 = vmatpush1.msra.mxu0 %v3174
  %3176 = vmatprep.subr.mxu0 0.0
  %v3177 = vand.u32 %v2819, 4294901760
  %v3178 = vsub.f32 %v2819, %v3177
  %v3179 = vand.u32 %v3178, 4294901760
  %v3180 = vsub.f32 %v3178, %v3179
  %v3181 = vand.u32 %v3180, 4294901760
  %3182 = vmatpush1.msra.mxu0 %v3181
  %3183 = vmatprep.subr.mxu0 0.0
  %v3184 = vand.u32 %v2820, 4294901760
  %v3185 = vsub.f32 %v2820, %v3184
  %v3186 = vand.u32 %v3185, 4294901760
  %v3187 = vsub.f32 %v3185, %v3186
  %v3188 = vand.u32 %v3187, 4294901760
  %3189 = vmatpush1.msra.mxu0 %v3188
  %3190 = vmatprep.subr.mxu0 0.0
  %v3191 = vand.u32 %v2821, 4294901760
  %v3192 = vsub.f32 %v2821, %v3191
  %v3193 = vand.u32 %v3192, 4294901760
  %v3194 = vsub.f32 %v3192, %v3193
  %v3195 = vand.u32 %v3194, 4294901760
  %3196 = vmatpush1.msra.mxu0 %v3195
  %3197 = vmatprep.subr.mxu0 0.0
  %v3198 = vand.u32 %v2822, 4294901760
  %v3199 = vsub.f32 %v2822, %v3198
  %v3200 = vand.u32 %v3199, 4294901760
  %v3201 = vsub.f32 %v3199, %v3200
  %v3202 = vand.u32 %v3201, 4294901760
  %3203 = vmatpush1.msra.mxu0 %v3202
  %v3204 = vand.u32 %v1722, 4294901760
  %3205 = vmatprep.mubr.f32.mxu0 %v3204
  %v3206 = vand.u32 %v1721, 4294901760
  %3207 = vmatmul.mubr.f32.gmra.mrb[0].mxu0 %v3206
  %v3208 = vpop.f32.mrb[0].mxu0
  %v3209 = vadd.f32 %v2932, %v3208
  %v3210 = vpop.f32.mrb[0].mxu0
  %v3211 = vand.u32 %v1724, 4294901760
  %3212 = vmatprep.mubr.f32.mxu0 %v3211
  %v3213 = vand.u32 %v1723, 4294901760
  %3214 = vmatmul.mubr.f32.gmra.mrb[0].mxu0 %v3213
  %v3215 = vpop.f32.mrb[0].mxu0
  %v3216 = vadd.f32 %v2947, %v3215
  %v3217 = vpop.f32.mrb[0].mxu0
  %v3218 = vand.u32 %v1726, 4294901760
  %3219 = vmatprep.mubr.f32.mxu0 %v3218
  %v3220 = vand.u32 %v1725, 4294901760
  %3221 = vmatmul.mubr.f32.gmra.mrb[0].mxu0 %v3220
  %v3222 = vpop.f32.mrb[0].mxu0
  %v3223 = vadd.f32 %v2962, %v3222
  %v3224 = vpop.f32.mrb[0].mxu0
  %v3225 = vand.u32 %v1728, 4294901760
  %3226 = vmatprep.mubr.f32.mxu0 %v3225
  %v3227 = vand.u32 %v1727, 4294901760
  %3228 = vmatmul.mubr.f32.gmra.mrb[0].mxu0 %v3227
  %v3229 = vpop.f32.mrb[0].mxu0
  %v3230 = vadd.f32 %v2977, %v3229
  %v3231 = vpop.f32.mrb[0].mxu0
  %3232 = vdwg.mxu0
  %3233 = vmatprep.subr.mxu0 0.0
  %v3234 = vand.u32 %v2791, 4294901760
  %v3235 = vsub.f32 %v2791, %v3234
  %3236 = vmatpush1.msra.mxu0 %v3235
  %3237 = vmatprep.subr.mxu0 0.0
  %v3238 = vand.u32 %v2792, 4294901760
  %v3239 = vsub.f32 %v2792, %v3238
  %3240 = vmatpush1.msra.mxu0 %v3239
  %3241 = vmatprep.subr.mxu0 0.0
  %v3242 = vand.u32 %v2793, 4294901760
  %v3243 = vsub.f32 %v2793, %v3242
  %3244 = vmatpush1.msra.mxu0 %v3243
  %3245 = vmatprep.subr.mxu0 0.0
  %v3246 = vand.u32 %v2794, 4294901760
  %v3247 = vsub.f32 %v2794, %v3246
  %3248 = vmatpush1.msra.mxu0 %v3247
  %3249 = vmatprep.subr.mxu0 0.0
  %v3250 = vand.u32 %v2795, 4294901760
  %v3251 = vsub.f32 %v2795, %v3250
  %3252 = vmatpush1.msra.mxu0 %v3251
  %3253 = vmatprep.subr.mxu0 0.0
  %v3254 = vand.u32 %v2796, 4294901760
  %v3255 = vsub.f32 %v2796, %v3254
  %3256 = vmatpush1.msra.mxu0 %v3255
  %3257 = vmatprep.subr.mxu0 0.0
  %v3258 = vand.u32 %v2797, 4294901760
  %v3259 = vsub.f32 %v2797, %v3258
  %3260 = vmatpush1.msra.mxu0 %v3259
  %3261 = vmatprep.subr.mxu0 0.0
  %v3262 = vand.u32 %v2798, 4294901760
  %v3263 = vsub.f32 %v2798, %v3262
  %3264 = vmatpush1.msra.mxu0 %v3263
  %3265 = vmatprep.subr.mxu0 0.0
  %v3266 = vand.u32 %v2799, 4294901760
  %v3267 = vsub.f32 %v2799, %v3266
  %3268 = vmatpush1.msra.mxu0 %v3267
  %3269 = vmatprep.subr.mxu0 0.0
  %v3270 = vand.u32 %v2800, 4294901760
  %v3271 = vsub.f32 %v2800, %v3270
  %3272 = vmatpush1.msra.mxu0 %v3271
  %3273 = vmatprep.subr.mxu0 0.0
  %v3274 = vand.u32 %v2801, 4294901760
  %v3275 = vsub.f32 %v2801, %v3274
  %3276 = vmatpush1.msra.mxu0 %v3275
  %3277 = vmatprep.subr.mxu0 0.0
  %v3278 = vand.u32 %v2802, 4294901760
  %v3279 = vsub.f32 %v2802, %v3278
  %3280 = vmatpush1.msra.mxu0 %v3279
  %3281 = vmatprep.subr.mxu0 0.0
  %v3282 = vand.u32 %v2803, 4294901760
  %v3283 = vsub.f32 %v2803, %v3282
  %3284 = vmatpush1.msra.mxu0 %v3283
  %3285 = vmatprep.subr.mxu0 0.0
  %v3286 = vand.u32 %v2804, 4294901760
  %v3287 = vsub.f32 %v2804, %v3286
  %3288 = vmatpush1.msra.mxu0 %v3287
  %3289 = vmatprep.subr.mxu0 0.0
  %v3290 = vand.u32 %v2805, 4294901760
  %v3291 = vsub.f32 %v2805, %v3290
  %3292 = vmatpush1.msra.mxu0 %v3291
  %3293 = vmatprep.subr.mxu0 0.0
  %v3294 = vand.u32 %v2806, 4294901760
  %v3295 = vsub.f32 %v2806, %v3294
  %3296 = vmatpush1.msra.mxu0 %v3295
  %3297 = vmatprep.subr.mxu0 0.0
  %v3298 = vand.u32 %v2807, 4294901760
  %v3299 = vsub.f32 %v2807, %v3298
  %3300 = vmatpush1.msra.mxu0 %v3299
  %3301 = vmatprep.subr.mxu0 0.0
  %v3302 = vand.u32 %v2808, 4294901760
  %v3303 = vsub.f32 %v2808, %v3302
  %3304 = vmatpush1.msra.mxu0 %v3303
  %3305 = vmatprep.subr.mxu0 0.0
  %v3306 = vand.u32 %v2809, 4294901760
  %v3307 = vsub.f32 %v2809, %v3306
  %3308 = vmatpush1.msra.mxu0 %v3307
  %3309 = vmatprep.subr.mxu0 0.0
  %v3310 = vand.u32 %v2810, 4294901760
  %v3311 = vsub.f32 %v2810, %v3310
  %3312 = vmatpush1.msra.mxu0 %v3311
  %3313 = vmatprep.subr.mxu0 0.0
  %v3314 = vand.u32 %v2811, 4294901760
  %v3315 = vsub.f32 %v2811, %v3314
  %3316 = vmatpush1.msra.mxu0 %v3315
  %3317 = vmatprep.subr.mxu0 0.0
  %v3318 = vand.u32 %v2812, 4294901760
  %v3319 = vsub.f32 %v2812, %v3318
  %3320 = vmatpush1.msra.mxu0 %v3319
  %3321 = vmatprep.subr.mxu0 0.0
  %v3322 = vand.u32 %v2813, 4294901760
  %v3323 = vsub.f32 %v2813, %v3322
  %3324 = vmatpush1.msra.mxu0 %v3323
  %3325 = vmatprep.subr.mxu0 0.0
  %v3326 = vand.u32 %v2814, 4294901760
  %v3327 = vsub.f32 %v2814, %v3326
  %3328 = vmatpush1.msra.mxu0 %v3327
  %3329 = vmatprep.subr.mxu0 0.0
  %v3330 = vand.u32 %v2815, 4294901760
  %v3331 = vsub.f32 %v2815, %v3330
  %3332 = vmatpush1.msra.mxu0 %v3331
  %3333 = vmatprep.subr.mxu0 0.0
  %v3334 = vand.u32 %v2816, 4294901760
  %v3335 = vsub.f32 %v2816, %v3334
  %3336 = vmatpush1.msra.mxu0 %v3335
  %3337 = vmatprep.subr.mxu0 0.0
  %v3338 = vand.u32 %v2817, 4294901760
  %v3339 = vsub.f32 %v2817, %v3338
  %3340 = vmatpush1.msra.mxu0 %v3339
  %3341 = vmatprep.subr.mxu0 0.0
  %v3342 = vand.u32 %v2818, 4294901760
  %v3343 = vsub.f32 %v2818, %v3342
  %3344 = vmatpush1.msra.mxu0 %v3343
  %3345 = vmatprep.subr.mxu0 0.0
  %v3346 = vand.u32 %v2819, 4294901760
  %v3347 = vsub.f32 %v2819, %v3346
  %3348 = vmatpush1.msra.mxu0 %v3347
  %3349 = vmatprep.subr.mxu0 0.0
  %v3350 = vand.u32 %v2820, 4294901760
  %v3351 = vsub.f32 %v2820, %v3350
  %3352 = vmatpush1.msra.mxu0 %v3351
  %3353 = vmatprep.subr.mxu0 0.0
  %v3354 = vand.u32 %v2821, 4294901760
  %v3355 = vsub.f32 %v2821, %v3354
  %3356 = vmatpush1.msra.mxu0 %v3355
  %3357 = vmatprep.subr.mxu0 0.0
  %v3358 = vand.u32 %v2822, 4294901760
  %v3359 = vsub.f32 %v2822, %v3358
  %3360 = vmatpush1.msra.mxu0 %v3359
  %v3361 = vand.u32 %v1722, 4294901760
  %v3362 = vsub.f32 %v1722, %v3361
  %3363 = vmatprep.mubr.f32.mxu0 %v3362
  %v3364 = vand.u32 %v1721, 4294901760
  %v3365 = vsub.f32 %v1721, %v3364
  %3366 = vmatmul.mubr.f32.gmra.mrb[0].mxu0 %v3365
  %v3367 = vpop.f32.mrb[0].mxu0
  %v3368 = vadd.f32 %v3209, %v3367
  %v3369 = vpop.f32.mrb[0].mxu0
  %v3370 = vand.u32 %v1724, 4294901760
  %v3371 = vsub.f32 %v1724, %v3370
  %3372 = vmatprep.mubr.f32.mxu0 %v3371
  %v3373 = vand.u32 %v1723, 4294901760
  %v3374 = vsub.f32 %v1723, %v3373
  %3375 = vmatmul.mubr.f32.gmra.mrb[0].mxu0 %v3374
  %v3376 = vpop.f32.mrb[0].mxu0
  %v3377 = vadd.f32 %v3216, %v3376
  %v3378 = vpop.f32.mrb[0].mxu0
  %v3379 = vand.u32 %v1726, 4294901760
  %v3380 = vsub.f32 %v1726, %v3379
  %3381 = vmatprep.mubr.f32.mxu0 %v3380
  %v3382 = vand.u32 %v1725, 4294901760
  %v3383 = vsub.f32 %v1725, %v3382
  %3384 = vmatmul.mubr.f32.gmra.mrb[0].mxu0 %v3383
  %v3385 = vpop.f32.mrb[0].mxu0
  %v3386 = vadd.f32 %v3223, %v3385
  %v3387 = vpop.f32.mrb[0].mxu0
  %v3388 = vand.u32 %v1728, 4294901760
  %v3389 = vsub.f32 %v1728, %v3388
  %3390 = vmatprep.mubr.f32.mxu0 %v3389
  %v3391 = vand.u32 %v1727, 4294901760
  %v3392 = vsub.f32 %v1727, %v3391
  %3393 = vmatmul.mubr.f32.gmra.mrb[0].mxu0 %v3392
  %v3394 = vpop.f32.mrb[0].mxu0
  %v3395 = vadd.f32 %v3230, %v3394
  %v3396 = vpop.f32.mrb[0].mxu0
  %3397 = vdwg.mxu0
  %3398 = vmatprep.subr.mxu0 0.0
  %v3399 = vand.u32 %v2791, 4294901760
  %3400 = vmatpush1.msra.mxu0 %v3399
  %3401 = vmatprep.subr.mxu0 0.0
  %v3402 = vand.u32 %v2792, 4294901760
  %3403 = vmatpush1.msra.mxu0 %v3402
  %3404 = vmatprep.subr.mxu0 0.0
  %v3405 = vand.u32 %v2793, 4294901760
  %3406 = vmatpush1.msra.mxu0 %v3405
  %3407 = vmatprep.subr.mxu0 0.0
  %v3408 = vand.u32 %v2794, 4294901760
  %3409 = vmatpush1.msra.mxu0 %v3408
  %3410 = vmatprep.subr.mxu0 0.0
  %v3411 = vand.u32 %v2795, 4294901760
  %3412 = vmatpush1.msra.mxu0 %v3411
  %3413 = vmatprep.subr.mxu0 0.0
  %v3414 = vand.u32 %v2796, 4294901760
  %3415 = vmatpush1.msra.mxu0 %v3414
  %3416 = vmatprep.subr.mxu0 0.0
  %v3417 = vand.u32 %v2797, 4294901760
  %3418 = vmatpush1.msra.mxu0 %v3417
  %3419 = vmatprep.subr.mxu0 0.0
  %v3420 = vand.u32 %v2798, 4294901760
  %3421 = vmatpush1.msra.mxu0 %v3420
  %3422 = vmatprep.subr.mxu0 0.0
  %v3423 = vand.u32 %v2799, 4294901760
  %3424 = vmatpush1.msra.mxu0 %v3423
  %3425 = vmatprep.subr.mxu0 0.0
  %v3426 = vand.u32 %v2800, 4294901760
  %3427 = vmatpush1.msra.mxu0 %v3426
  %3428 = vmatprep.subr.mxu0 0.0
  %v3429 = vand.u32 %v2801, 4294901760
  %3430 = vmatpush1.msra.mxu0 %v3429
  %3431 = vmatprep.subr.mxu0 0.0
  %v3432 = vand.u32 %v2802, 4294901760
  %3433 = vmatpush1.msra.mxu0 %v3432
  %3434 = vmatprep.subr.mxu0 0.0
  %v3435 = vand.u32 %v2803, 4294901760
  %3436 = vmatpush1.msra.mxu0 %v3435
  %3437 = vmatprep.subr.mxu0 0.0
  %v3438 = vand.u32 %v2804, 4294901760
  %3439 = vmatpush1.msra.mxu0 %v3438
  %3440 = vmatprep.subr.mxu0 0.0
  %v3441 = vand.u32 %v2805, 4294901760
  %3442 = vmatpush1.msra.mxu0 %v3441
  %3443 = vmatprep.subr.mxu0 0.0
  %v3444 = vand.u32 %v2806, 4294901760
  %3445 = vmatpush1.msra.mxu0 %v3444
  %3446 = vmatprep.subr.mxu0 0.0
  %v3447 = vand.u32 %v2807, 4294901760
  %3448 = vmatpush1.msra.mxu0 %v3447
  %3449 = vmatprep.subr.mxu0 0.0
  %v3450 = vand.u32 %v2808, 4294901760
  %3451 = vmatpush1.msra.mxu0 %v3450
  %3452 = vmatprep.subr.mxu0 0.0
  %v3453 = vand.u32 %v2809, 4294901760
  %3454 = vmatpush1.msra.mxu0 %v3453
  %3455 = vmatprep.subr.mxu0 0.0
  %v3456 = vand.u32 %v2810, 4294901760
  %3457 = vmatpush1.msra.mxu0 %v3456
  %3458 = vmatprep.subr.mxu0 0.0
  %v3459 = vand.u32 %v2811, 4294901760
  %3460 = vmatpush1.msra.mxu0 %v3459
  %3461 = vmatprep.subr.mxu0 0.0
  %v3462 = vand.u32 %v2812, 4294901760
  %3463 = vmatpush1.msra.mxu0 %v3462
  %3464 = vmatprep.subr.mxu0 0.0
  %v3465 = vand.u32 %v2813, 4294901760
  %3466 = vmatpush1.msra.mxu0 %v3465
  %3467 = vmatprep.subr.mxu0 0.0
  %v3468 = vand.u32 %v2814, 4294901760
  %3469 = vmatpush1.msra.mxu0 %v3468
  %3470 = vmatprep.subr.mxu0 0.0
  %v3471 = vand.u32 %v2815, 4294901760
  %3472 = vmatpush1.msra.mxu0 %v3471
  %3473 = vmatprep.subr.mxu0 0.0
  %v3474 = vand.u32 %v2816, 4294901760
  %3475 = vmatpush1.msra.mxu0 %v3474
  %3476 = vmatprep.subr.mxu0 0.0
  %v3477 = vand.u32 %v2817, 4294901760
  %3478 = vmatpush1.msra.mxu0 %v3477
  %3479 = vmatprep.subr.mxu0 0.0
  %v3480 = vand.u32 %v2818, 4294901760
  %3481 = vmatpush1.msra.mxu0 %v3480
  %3482 = vmatprep.subr.mxu0 0.0
  %v3483 = vand.u32 %v2819, 4294901760
  %3484 = vmatpush1.msra.mxu0 %v3483
  %3485 = vmatprep.subr.mxu0 0.0
  %v3486 = vand.u32 %v2820, 4294901760
  %3487 = vmatpush1.msra.mxu0 %v3486
  %3488 = vmatprep.subr.mxu0 0.0
  %v3489 = vand.u32 %v2821, 4294901760
  %3490 = vmatpush1.msra.mxu0 %v3489
  %3491 = vmatprep.subr.mxu0 0.0
  %v3492 = vand.u32 %v2822, 4294901760
  %3493 = vmatpush1.msra.mxu0 %v3492
  %v3494 = vand.u32 %v1722, 4294901760
  %v3495 = vsub.f32 %v1722, %v3494
  %v3496 = vand.u32 %v3495, 4294901760
  %3497 = vmatprep.mubr.f32.mxu0 %v3496
  %v3498 = vand.u32 %v1721, 4294901760
  %v3499 = vsub.f32 %v1721, %v3498
  %v3500 = vand.u32 %v3499, 4294901760
  %3501 = vmatmul.mubr.f32.gmra.mrb[0].mxu0 %v3500
  %v3502 = vpop.f32.mrb[0].mxu0
  %v3503 = vadd.f32 %v3368, %v3502
  %v3504 = vpop.f32.mrb[0].mxu0
  %v3505 = vand.u32 %v1724, 4294901760
  %v3506 = vsub.f32 %v1724, %v3505
  %v3507 = vand.u32 %v3506, 4294901760
  %3508 = vmatprep.mubr.f32.mxu0 %v3507
  %v3509 = vand.u32 %v1723, 4294901760
  %v3510 = vsub.f32 %v1723, %v3509
  %v3511 = vand.u32 %v3510, 4294901760
  %3512 = vmatmul.mubr.f32.gmra.mrb[0].mxu0 %v3511
  %v3513 = vpop.f32.mrb[0].mxu0
  %v3514 = vadd.f32 %v3377, %v3513
  %v3515 = vpop.f32.mrb[0].mxu0
  %v3516 = vand.u32 %v1726, 4294901760
  %v3517 = vsub.f32 %v1726, %v3516
  %v3518 = vand.u32 %v3517, 4294901760
  %3519 = vmatprep.mubr.f32.mxu0 %v3518
  %v3520 = vand.u32 %v1725, 4294901760
  %v3521 = vsub.f32 %v1725, %v3520
  %v3522 = vand.u32 %v3521, 4294901760
  %3523 = vmatmul.mubr.f32.gmra.mrb[0].mxu0 %v3522
  %v3524 = vpop.f32.mrb[0].mxu0
  %v3525 = vadd.f32 %v3386, %v3524
  %v3526 = vpop.f32.mrb[0].mxu0
  %v3527 = vand.u32 %v1728, 4294901760
  %v3528 = vsub.f32 %v1728, %v3527
  %v3529 = vand.u32 %v3528, 4294901760
  %3530 = vmatprep.mubr.f32.mxu0 %v3529
  %v3531 = vand.u32 %v1727, 4294901760
  %v3532 = vsub.f32 %v1727, %v3531
  %v3533 = vand.u32 %v3532, 4294901760
  %3534 = vmatmul.mubr.f32.gmra.mrb[0].mxu0 %v3533
  %v3535 = vpop.f32.mrb[0].mxu0
  %v3536 = vadd.f32 %v3395, %v3535
  %v3537 = vpop.f32.mrb[0].mxu0
  %3538 = vdwg.mxu0
  %3539 = vmatprep.subr.mxu0 0.0
  %v3540 = vand.u32 %v2791, 4294901760
  %v3541 = vsub.f32 %v2791, %v3540
  %v3542 = vand.u32 %v3541, 4294901760
  %3543 = vmatpush1.msra.mxu0 %v3542
  %3544 = vmatprep.subr.mxu0 0.0
  %v3545 = vand.u32 %v2792, 4294901760
  %v3546 = vsub.f32 %v2792, %v3545
  %v3547 = vand.u32 %v3546, 4294901760
  %3548 = vmatpush1.msra.mxu0 %v3547
  %3549 = vmatprep.subr.mxu0 0.0
  %v3550 = vand.u32 %v2793, 4294901760
  %v3551 = vsub.f32 %v2793, %v3550
  %v3552 = vand.u32 %v3551, 4294901760
  %3553 = vmatpush1.msra.mxu0 %v3552
  %3554 = vmatprep.subr.mxu0 0.0
  %v3555 = vand.u32 %v2794, 4294901760
  %v3556 = vsub.f32 %v2794, %v3555
  %v3557 = vand.u32 %v3556, 4294901760
  %3558 = vmatpush1.msra.mxu0 %v3557
  %3559 = vmatprep.subr.mxu0 0.0
  %v3560 = vand.u32 %v2795, 4294901760
  %v3561 = vsub.f32 %v2795, %v3560
  %v3562 = vand.u32 %v3561, 4294901760
  %3563 = vmatpush1.msra.mxu0 %v3562
  %3564 = vmatprep.subr.mxu0 0.0
  %v3565 = vand.u32 %v2796, 4294901760
  %v3566 = vsub.f32 %v2796, %v3565
  %v3567 = vand.u32 %v3566, 4294901760
  %3568 = vmatpush1.msra.mxu0 %v3567
  %3569 = vmatprep.subr.mxu0 0.0
  %v3570 = vand.u32 %v2797, 4294901760
  %v3571 = vsub.f32 %v2797, %v3570
  %v3572 = vand.u32 %v3571, 4294901760
  %3573 = vmatpush1.msra.mxu0 %v3572
  %3574 = vmatprep.subr.mxu0 0.0
  %v3575 = vand.u32 %v2798, 4294901760
  %v3576 = vsub.f32 %v2798, %v3575
  %v3577 = vand.u32 %v3576, 4294901760
  %3578 = vmatpush1.msra.mxu0 %v3577
  %3579 = vmatprep.subr.mxu0 0.0
  %v3580 = vand.u32 %v2799, 4294901760
  %v3581 = vsub.f32 %v2799, %v3580
  %v3582 = vand.u32 %v3581, 4294901760
  %3583 = vmatpush1.msra.mxu0 %v3582
  %3584 = vmatprep.subr.mxu0 0.0
  %v3585 = vand.u32 %v2800, 4294901760
  %v3586 = vsub.f32 %v2800, %v3585
  %v3587 = vand.u32 %v3586, 4294901760
  %3588 = vmatpush1.msra.mxu0 %v3587
  %3589 = vmatprep.subr.mxu0 0.0
  %v3590 = vand.u32 %v2801, 4294901760
  %v3591 = vsub.f32 %v2801, %v3590
  %v3592 = vand.u32 %v3591, 4294901760
  %3593 = vmatpush1.msra.mxu0 %v3592
  %3594 = vmatprep.subr.mxu0 0.0
  %v3595 = vand.u32 %v2802, 4294901760
  %v3596 = vsub.f32 %v2802, %v3595
  %v3597 = vand.u32 %v3596, 4294901760
  %3598 = vmatpush1.msra.mxu0 %v3597
  %3599 = vmatprep.subr.mxu0 0.0
  %v3600 = vand.u32 %v2803, 4294901760
  %v3601 = vsub.f32 %v2803, %v3600
  %v3602 = vand.u32 %v3601, 4294901760
  %3603 = vmatpush1.msra.mxu0 %v3602
  %3604 = vmatprep.subr.mxu0 0.0
  %v3605 = vand.u32 %v2804, 4294901760
  %v3606 = vsub.f32 %v2804, %v3605
  %v3607 = vand.u32 %v3606, 4294901760
  %3608 = vmatpush1.msra.mxu0 %v3607
  %3609 = vmatprep.subr.mxu0 0.0
  %v3610 = vand.u32 %v2805, 4294901760
  %v3611 = vsub.f32 %v2805, %v3610
  %v3612 = vand.u32 %v3611, 4294901760
  %3613 = vmatpush1.msra.mxu0 %v3612
  %3614 = vmatprep.subr.mxu0 0.0
  %v3615 = vand.u32 %v2806, 4294901760
  %v3616 = vsub.f32 %v2806, %v3615
  %v3617 = vand.u32 %v3616, 4294901760
  %3618 = vmatpush1.msra.mxu0 %v3617
  %3619 = vmatprep.subr.mxu0 0.0
  %v3620 = vand.u32 %v2807, 4294901760
  %v3621 = vsub.f32 %v2807, %v3620
  %v3622 = vand.u32 %v3621, 4294901760
  %3623 = vmatpush1.msra.mxu0 %v3622
  %3624 = vmatprep.subr.mxu0 0.0
  %v3625 = vand.u32 %v2808, 4294901760
  %v3626 = vsub.f32 %v2808, %v3625
  %v3627 = vand.u32 %v3626, 4294901760
  %3628 = vmatpush1.msra.mxu0 %v3627
  %3629 = vmatprep.subr.mxu0 0.0
  %v3630 = vand.u32 %v2809, 4294901760
  %v3631 = vsub.f32 %v2809, %v3630
  %v3632 = vand.u32 %v3631, 4294901760
  %3633 = vmatpush1.msra.mxu0 %v3632
  %3634 = vmatprep.subr.mxu0 0.0
  %v3635 = vand.u32 %v2810, 4294901760
  %v3636 = vsub.f32 %v2810, %v3635
  %v3637 = vand.u32 %v3636, 4294901760
  %3638 = vmatpush1.msra.mxu0 %v3637
  %3639 = vmatprep.subr.mxu0 0.0
  %v3640 = vand.u32 %v2811, 4294901760
  %v3641 = vsub.f32 %v2811, %v3640
  %v3642 = vand.u32 %v3641, 4294901760
  %3643 = vmatpush1.msra.mxu0 %v3642
  %3644 = vmatprep.subr.mxu0 0.0
  %v3645 = vand.u32 %v2812, 4294901760
  %v3646 = vsub.f32 %v2812, %v3645
  %v3647 = vand.u32 %v3646, 4294901760
  %3648 = vmatpush1.msra.mxu0 %v3647
  %3649 = vmatprep.subr.mxu0 0.0
  %v3650 = vand.u32 %v2813, 4294901760
  %v3651 = vsub.f32 %v2813, %v3650
  %v3652 = vand.u32 %v3651, 4294901760
  %3653 = vmatpush1.msra.mxu0 %v3652
  %3654 = vmatprep.subr.mxu0 0.0
  %v3655 = vand.u32 %v2814, 4294901760
  %v3656 = vsub.f32 %v2814, %v3655
  %v3657 = vand.u32 %v3656, 4294901760
  %3658 = vmatpush1.msra.mxu0 %v3657
  %3659 = vmatprep.subr.mxu0 0.0
  %v3660 = vand.u32 %v2815, 4294901760
  %v3661 = vsub.f32 %v2815, %v3660
  %v3662 = vand.u32 %v3661, 4294901760
  %3663 = vmatpush1.msra.mxu0 %v3662
  %3664 = vmatprep.subr.mxu0 0.0
  %v3665 = vand.u32 %v2816, 4294901760
  %v3666 = vsub.f32 %v2816, %v3665
  %v3667 = vand.u32 %v3666, 4294901760
  %3668 = vmatpush1.msra.mxu0 %v3667
  %3669 = vmatprep.subr.mxu0 0.0
  %v3670 = vand.u32 %v2817, 4294901760
  %v3671 = vsub.f32 %v2817, %v3670
  %v3672 = vand.u32 %v3671, 4294901760
  %3673 = vmatpush1.msra.mxu0 %v3672
  %3674 = vmatprep.subr.mxu0 0.0
  %v3675 = vand.u32 %v2818, 4294901760
  %v3676 = vsub.f32 %v2818, %v3675
  %v3677 = vand.u32 %v3676, 4294901760
  %3678 = vmatpush1.msra.mxu0 %v3677
  %3679 = vmatprep.subr.mxu0 0.0
  %v3680 = vand.u32 %v2819, 4294901760
  %v3681 = vsub.f32 %v2819, %v3680
  %v3682 = vand.u32 %v3681, 4294901760
  %3683 = vmatpush1.msra.mxu0 %v3682
  %3684 = vmatprep.subr.mxu0 0.0
  %v3685 = vand.u32 %v2820, 4294901760
  %v3686 = vsub.f32 %v2820, %v3685
  %v3687 = vand.u32 %v3686, 4294901760
  %3688 = vmatpush1.msra.mxu0 %v3687
  %3689 = vmatprep.subr.mxu0 0.0
  %v3690 = vand.u32 %v2821, 4294901760
  %v3691 = vsub.f32 %v2821, %v3690
  %v3692 = vand.u32 %v3691, 4294901760
  %3693 = vmatpush1.msra.mxu0 %v3692
  %3694 = vmatprep.subr.mxu0 0.0
  %v3695 = vand.u32 %v2822, 4294901760
  %v3696 = vsub.f32 %v2822, %v3695
  %v3697 = vand.u32 %v3696, 4294901760
  %3698 = vmatpush1.msra.mxu0 %v3697
  %v3699 = vand.u32 %v1722, 4294901760
  %3700 = vmatprep.mubr.f32.mxu0 %v3699
  %v3701 = vand.u32 %v1721, 4294901760
  %3702 = vmatmul.mubr.f32.gmra.mrb[0].mxu0 %v3701
  %v3703 = vpop.f32.mrb[0].mxu0
  %v3704 = vadd.f32 %v3503, %v3703
  %v3705 = vpop.f32.mrb[0].mxu0
  %v3706 = vand.u32 %v1724, 4294901760
  %3707 = vmatprep.mubr.f32.mxu0 %v3706
  %v3708 = vand.u32 %v1723, 4294901760
  %3709 = vmatmul.mubr.f32.gmra.mrb[0].mxu0 %v3708
  %v3710 = vpop.f32.mrb[0].mxu0
  %v3711 = vadd.f32 %v3514, %v3710
  %v3712 = vpop.f32.mrb[0].mxu0
  %v3713 = vand.u32 %v1726, 4294901760
  %3714 = vmatprep.mubr.f32.mxu0 %v3713
  %v3715 = vand.u32 %v1725, 4294901760
  %3716 = vmatmul.mubr.f32.gmra.mrb[0].mxu0 %v3715
  %v3717 = vpop.f32.mrb[0].mxu0
  %v3718 = vadd.f32 %v3525, %v3717
  %v3719 = vpop.f32.mrb[0].mxu0
  %v3720 = vand.u32 %v1728, 4294901760
  %3721 = vmatprep.mubr.f32.mxu0 %v3720
  %v3722 = vand.u32 %v1727, 4294901760
  %3723 = vmatmul.mubr.f32.gmra.mrb[0].mxu0 %v3722
  %v3724 = vpop.f32.mrb[0].mxu0
  %v3725 = vadd.f32 %v3536, %v3724
  %v3726 = vpop.f32.mrb[0].mxu0
  %3727 = vdwg.mxu0
  %3728 = vmatprep.subr.mxu0 0.0
  %v3729 = vand.u32 %v2791, 4294901760
  %3730 = vmatpush1.msra.mxu0 %v3729
  %3731 = vmatprep.subr.mxu0 0.0
  %v3732 = vand.u32 %v2792, 4294901760
  %3733 = vmatpush1.msra.mxu0 %v3732
  %3734 = vmatprep.subr.mxu0 0.0
  %v3735 = vand.u32 %v2793, 4294901760
  %3736 = vmatpush1.msra.mxu0 %v3735
  %3737 = vmatprep.subr.mxu0 0.0
  %v3738 = vand.u32 %v2794, 4294901760
  %3739 = vmatpush1.msra.mxu0 %v3738
  %3740 = vmatprep.subr.mxu0 0.0
  %v3741 = vand.u32 %v2795, 4294901760
  %3742 = vmatpush1.msra.mxu0 %v3741
  %3743 = vmatprep.subr.mxu0 0.0
  %v3744 = vand.u32 %v2796, 4294901760
  %3745 = vmatpush1.msra.mxu0 %v3744
  %3746 = vmatprep.subr.mxu0 0.0
  %v3747 = vand.u32 %v2797, 4294901760
  %3748 = vmatpush1.msra.mxu0 %v3747
  %3749 = vmatprep.subr.mxu0 0.0
  %v3750 = vand.u32 %v2798, 4294901760
  %3751 = vmatpush1.msra.mxu0 %v3750
  %3752 = vmatprep.subr.mxu0 0.0
  %v3753 = vand.u32 %v2799, 4294901760
  %3754 = vmatpush1.msra.mxu0 %v3753
  %3755 = vmatprep.subr.mxu0 0.0
  %v3756 = vand.u32 %v2800, 4294901760
  %3757 = vmatpush1.msra.mxu0 %v3756
  %3758 = vmatprep.subr.mxu0 0.0
  %v3759 = vand.u32 %v2801, 4294901760
  %3760 = vmatpush1.msra.mxu0 %v3759
  %3761 = vmatprep.subr.mxu0 0.0
  %v3762 = vand.u32 %v2802, 4294901760
  %3763 = vmatpush1.msra.mxu0 %v3762
  %3764 = vmatprep.subr.mxu0 0.0
  %v3765 = vand.u32 %v2803, 4294901760
  %3766 = vmatpush1.msra.mxu0 %v3765
  %3767 = vmatprep.subr.mxu0 0.0
  %v3768 = vand.u32 %v2804, 4294901760
  %3769 = vmatpush1.msra.mxu0 %v3768
  %3770 = vmatprep.subr.mxu0 0.0
  %v3771 = vand.u32 %v2805, 4294901760
  %3772 = vmatpush1.msra.mxu0 %v3771
  %3773 = vmatprep.subr.mxu0 0.0
  %v3774 = vand.u32 %v2806, 4294901760
  %3775 = vmatpush1.msra.mxu0 %v3774
  %3776 = vmatprep.subr.mxu0 0.0
  %v3777 = vand.u32 %v2807, 4294901760
  %3778 = vmatpush1.msra.mxu0 %v3777
  %3779 = vmatprep.subr.mxu0 0.0
  %v3780 = vand.u32 %v2808, 4294901760
  %3781 = vmatpush1.msra.mxu0 %v3780
  %3782 = vmatprep.subr.mxu0 0.0
  %v3783 = vand.u32 %v2809, 4294901760
  %3784 = vmatpush1.msra.mxu0 %v3783
  %3785 = vmatprep.subr.mxu0 0.0
  %v3786 = vand.u32 %v2810, 4294901760
  %3787 = vmatpush1.msra.mxu0 %v3786
  %3788 = vmatprep.subr.mxu0 0.0
  %v3789 = vand.u32 %v2811, 4294901760
  %3790 = vmatpush1.msra.mxu0 %v3789
  %3791 = vmatprep.subr.mxu0 0.0
  %v3792 = vand.u32 %v2812, 4294901760
  %3793 = vmatpush1.msra.mxu0 %v3792
  %3794 = vmatprep.subr.mxu0 0.0
  %v3795 = vand.u32 %v2813, 4294901760
  %3796 = vmatpush1.msra.mxu0 %v3795
  %3797 = vmatprep.subr.mxu0 0.0
  %v3798 = vand.u32 %v2814, 4294901760
  %3799 = vmatpush1.msra.mxu0 %v3798
  %3800 = vmatprep.subr.mxu0 0.0
  %v3801 = vand.u32 %v2815, 4294901760
  %3802 = vmatpush1.msra.mxu0 %v3801
  %3803 = vmatprep.subr.mxu0 0.0
  %v3804 = vand.u32 %v2816, 4294901760
  %3805 = vmatpush1.msra.mxu0 %v3804
  %3806 = vmatprep.subr.mxu0 0.0
  %v3807 = vand.u32 %v2817, 4294901760
  %3808 = vmatpush1.msra.mxu0 %v3807
  %3809 = vmatprep.subr.mxu0 0.0
  %v3810 = vand.u32 %v2818, 4294901760
  %3811 = vmatpush1.msra.mxu0 %v3810
  %3812 = vmatprep.subr.mxu0 0.0
  %v3813 = vand.u32 %v2819, 4294901760
  %3814 = vmatpush1.msra.mxu0 %v3813
  %3815 = vmatprep.subr.mxu0 0.0
  %v3816 = vand.u32 %v2820, 4294901760
  %3817 = vmatpush1.msra.mxu0 %v3816
  %3818 = vmatprep.subr.mxu0 0.0
  %v3819 = vand.u32 %v2821, 4294901760
  %3820 = vmatpush1.msra.mxu0 %v3819
  %3821 = vmatprep.subr.mxu0 0.0
  %v3822 = vand.u32 %v2822, 4294901760
  %3823 = vmatpush1.msra.mxu0 %v3822
  %v3824 = vand.u32 %v1722, 4294901760
  %3825 = vmatprep.mubr.f32.mxu0 %v3824
  %v3826 = vand.u32 %v1721, 4294901760
  %3827 = vmatmul.mubr.f32.gmra.mrb[0].mxu0 %v3826
  %v3828 = vpop.f32.mrb[0].mxu0
  %v3829 = vadd.f32 %v3704, %v3828
  %v3830 = vpop.f32.mrb[0].mxu0
  %v3831 = vand.u32 %v1724, 4294901760
  %3832 = vmatprep.mubr.f32.mxu0 %v3831
  %v3833 = vand.u32 %v1723, 4294901760
  %3834 = vmatmul.mubr.f32.gmra.mrb[0].mxu0 %v3833
  %v3835 = vpop.f32.mrb[0].mxu0
  %v3836 = vadd.f32 %v3711, %v3835
  %v3837 = vpop.f32.mrb[0].mxu0
  %v3838 = vand.u32 %v1726, 4294901760
  %3839 = vmatprep.mubr.f32.mxu0 %v3838
  %v3840 = vand.u32 %v1725, 4294901760
  %3841 = vmatmul.mubr.f32.gmra.mrb[0].mxu0 %v3840
  %v3842 = vpop.f32.mrb[0].mxu0
  %v3843 = vadd.f32 %v3718, %v3842
  %v3844 = vpop.f32.mrb[0].mxu0
  %v3845 = vand.u32 %v1728, 4294901760
  %3846 = vmatprep.mubr.f32.mxu0 %v3845
  %v3847 = vand.u32 %v1727, 4294901760
  %3848 = vmatmul.mubr.f32.gmra.mrb[0].mxu0 %v3847
  %v3849 = vpop.f32.mrb[0].mxu0
  %v3850 = vadd.f32 %v3725, %v3849
  %v3851 = vpop.f32.mrb[0].mxu0
  %3852 = vdwg.mxu0
  %v3853 = vmax.f32 %v2767, %v3829
  %v3854 = vmax.f32 %v2774, %v3836
  %v3855 = vmax.f32 %v2781, %v3843
  %v3856 = vmax.f32 %v2788, %v3850
  %v3857 = vld [vmem:[%s7] sm:$0xff]
  %v3858 = vld [vmem:[%s7 + $0x8] sm:$0xff]
  %v3860 = vsel %vm94, %v3857, 0
  %v3863 = vsel %vm94, %v3858, 0
  %3865 = vmatprep.subr.mxu0 0.0
  %v3866 = vand.u32 %v3853, 4294901760
  %3867 = vmatpush1.msra.mxu0 %v3866
  %3868 = vmatprep.subr.mxu0 0.0
  %v3869 = vand.u32 %v3854, 4294901760
  %3870 = vmatpush1.msra.mxu0 %v3869
  %3871 = vmatprep.subr.mxu0 0.0
  %v3872 = vand.u32 %v3855, 4294901760
  %3873 = vmatpush1.msra.mxu0 %v3872
  %3874 = vmatprep.subr.mxu0 0.0
  %v3875 = vand.u32 %v3856, 4294901760
  %3876 = vmatpush1.msra.mxu0 %v3875
  %3877 = vmatprep.subr.mxu0 0.0
  %3878 = vmatpush1.msra.mxu0 0.0
  %3879 = vmatprep.subr.mxu0 0.0
  %3880 = vmatpush1.msra.mxu0 0.0
  %3881 = vmatprep.subr.mxu0 0.0
  %3882 = vmatpush1.msra.mxu0 0.0
  %3883 = vmatprep.subr.mxu0 0.0
  %3884 = vmatpush1.msra.mxu0 0.0
  %3885 = vmatprep.subr.mxu0 0.0
  %3886 = vmatpush1.msra.mxu0 0.0
  %3887 = vmatprep.subr.mxu0 0.0
  %3888 = vmatpush1.msra.mxu0 0.0
  %3889 = vmatprep.subr.mxu0 0.0
  %3890 = vmatpush1.msra.mxu0 0.0
  %3891 = vmatprep.subr.mxu0 0.0
  %3892 = vmatpush1.msra.mxu0 0.0
  %3893 = vmatprep.subr.mxu0 0.0
  %3894 = vmatpush1.msra.mxu0 0.0
  %3895 = vmatprep.subr.mxu0 0.0
  %3896 = vmatpush1.msra.mxu0 0.0
  %3897 = vmatprep.subr.mxu0 0.0
  %3898 = vmatpush1.msra.mxu0 0.0
  %3899 = vmatprep.subr.mxu0 0.0
  %3900 = vmatpush1.msra.mxu0 0.0
  %3901 = vmatprep.subr.mxu0 0.0
  %3902 = vmatpush1.msra.mxu0 0.0
  %3903 = vmatprep.subr.mxu0 0.0
  %3904 = vmatpush1.msra.mxu0 0.0
  %3905 = vmatprep.subr.mxu0 0.0
  %3906 = vmatpush1.msra.mxu0 0.0
  %3907 = vmatprep.subr.mxu0 0.0
  %3908 = vmatpush1.msra.mxu0 0.0
  %3909 = vmatprep.subr.mxu0 0.0
  %3910 = vmatpush1.msra.mxu0 0.0
  %3911 = vmatprep.subr.mxu0 0.0
  %3912 = vmatpush1.msra.mxu0 0.0
  %3913 = vmatprep.subr.mxu0 0.0
  %3914 = vmatpush1.msra.mxu0 0.0
  %3915 = vmatprep.subr.mxu0 0.0
  %3916 = vmatpush1.msra.mxu0 0.0
  %3917 = vmatprep.subr.mxu0 0.0
  %3918 = vmatpush1.msra.mxu0 0.0
  %3919 = vmatprep.subr.mxu0 0.0
  %3920 = vmatpush1.msra.mxu0 0.0
  %3921 = vmatprep.subr.mxu0 0.0
  %3922 = vmatpush1.msra.mxu0 0.0
  %3923 = vmatprep.subr.mxu0 0.0
  %3924 = vmatpush1.msra.mxu0 0.0
  %3925 = vmatprep.subr.mxu0 0.0
  %3926 = vmatpush1.msra.mxu0 0.0
  %3927 = vmatprep.subr.mxu0 0.0
  %3928 = vmatpush1.msra.mxu0 0.0
  %3929 = vmatprep.subr.mxu0 0.0
  %3930 = vmatpush1.msra.mxu0 0.0
  %3931 = vmatprep.subr.mxu0 0.0
  %3932 = vmatpush1.msra.mxu0 0.0
  %3933 = vmatprep.mubr.f32.mxu0 0.0
  %v3934 = vand.u32 %v3860, 4294901760
  %v3935 = vsub.f32 %v3860, %v3934
  %v3936 = vand.u32 %v3935, 4294901760
  %v3937 = vsub.f32 %v3935, %v3936
  %v3938 = vand.u32 %v3937, 4294901760
  %3939 = vmatmul.mubr.f32.gmra.mrb[0].mxu0 %v3938
  %v3940 = vpop.f32.mrb[0].mxu0
  %v3941 = vadd.f32 0.0, %v3940
  %v3942 = vpop.f32.mrb[0].mxu0
  %3943 = vmatprep.mubr.f32.mxu0 0.0
  %v3944 = vand.u32 %v3863, 4294901760
  %v3945 = vsub.f32 %v3863, %v3944
  %v3946 = vand.u32 %v3945, 4294901760
  %v3947 = vsub.f32 %v3945, %v3946
  %v3948 = vand.u32 %v3947, 4294901760
  %3949 = vmatmul.mubr.f32.gmra.mrb[0].mxu0 %v3948
  %v3950 = vpop.f32.mrb[0].mxu0
  %v3951 = vadd.f32 0.0, %v3950
  %v3952 = vpop.f32.mrb[0].mxu0
  %3953 = vdwg.mxu0
  %3954 = vmatprep.subr.mxu0 0.0
  %v3955 = vand.u32 %v3853, 4294901760
  %v3956 = vsub.f32 %v3853, %v3955
  %v3957 = vand.u32 %v3956, 4294901760
  %v3958 = vsub.f32 %v3956, %v3957
  %v3959 = vand.u32 %v3958, 4294901760
  %3960 = vmatpush1.msra.mxu0 %v3959
  %3961 = vmatprep.subr.mxu0 0.0
  %v3962 = vand.u32 %v3854, 4294901760
  %v3963 = vsub.f32 %v3854, %v3962
  %v3964 = vand.u32 %v3963, 4294901760
  %v3965 = vsub.f32 %v3963, %v3964
  %v3966 = vand.u32 %v3965, 4294901760
  %3967 = vmatpush1.msra.mxu0 %v3966
  %3968 = vmatprep.subr.mxu0 0.0
  %v3969 = vand.u32 %v3855, 4294901760
  %v3970 = vsub.f32 %v3855, %v3969
  %v3971 = vand.u32 %v3970, 4294901760
  %v3972 = vsub.f32 %v3970, %v3971
  %v3973 = vand.u32 %v3972, 4294901760
  %3974 = vmatpush1.msra.mxu0 %v3973
  %3975 = vmatprep.subr.mxu0 0.0
  %v3976 = vand.u32 %v3856, 4294901760
  %v3977 = vsub.f32 %v3856, %v3976
  %v3978 = vand.u32 %v3977, 4294901760
  %v3979 = vsub.f32 %v3977, %v3978
  %v3980 = vand.u32 %v3979, 4294901760
  %3981 = vmatpush1.msra.mxu0 %v3980
  %3982 = vmatprep.subr.mxu0 0.0
  %3983 = vmatpush1.msra.mxu0 0.0
  %3984 = vmatprep.subr.mxu0 0.0
  %3985 = vmatpush1.msra.mxu0 0.0
  %3986 = vmatprep.subr.mxu0 0.0
  %3987 = vmatpush1.msra.mxu0 0.0
  %3988 = vmatprep.subr.mxu0 0.0
  %3989 = vmatpush1.msra.mxu0 0.0
  %3990 = vmatprep.subr.mxu0 0.0
  %3991 = vmatpush1.msra.mxu0 0.0
  %3992 = vmatprep.subr.mxu0 0.0
  %3993 = vmatpush1.msra.mxu0 0.0
  %3994 = vmatprep.subr.mxu0 0.0
  %3995 = vmatpush1.msra.mxu0 0.0
  %3996 = vmatprep.subr.mxu0 0.0
  %3997 = vmatpush1.msra.mxu0 0.0
  %3998 = vmatprep.subr.mxu0 0.0
  %3999 = vmatpush1.msra.mxu0 0.0
  %4000 = vmatprep.subr.mxu0 0.0
  %4001 = vmatpush1.msra.mxu0 0.0
  %4002 = vmatprep.subr.mxu0 0.0
  %4003 = vmatpush1.msra.mxu0 0.0
  %4004 = vmatprep.subr.mxu0 0.0
  %4005 = vmatpush1.msra.mxu0 0.0
  %4006 = vmatprep.subr.mxu0 0.0
  %4007 = vmatpush1.msra.mxu0 0.0
  %4008 = vmatprep.subr.mxu0 0.0
  %4009 = vmatpush1.msra.mxu0 0.0
  %4010 = vmatprep.subr.mxu0 0.0
  %4011 = vmatpush1.msra.mxu0 0.0
  %4012 = vmatprep.subr.mxu0 0.0
  %4013 = vmatpush1.msra.mxu0 0.0
  %4014 = vmatprep.subr.mxu0 0.0
  %4015 = vmatpush1.msra.mxu0 0.0
  %4016 = vmatprep.subr.mxu0 0.0
  %4017 = vmatpush1.msra.mxu0 0.0
  %4018 = vmatprep.subr.mxu0 0.0
  %4019 = vmatpush1.msra.mxu0 0.0
  %4020 = vmatprep.subr.mxu0 0.0
  %4021 = vmatpush1.msra.mxu0 0.0
  %4022 = vmatprep.subr.mxu0 0.0
  %4023 = vmatpush1.msra.mxu0 0.0
  %4024 = vmatprep.subr.mxu0 0.0
  %4025 = vmatpush1.msra.mxu0 0.0
  %4026 = vmatprep.subr.mxu0 0.0
  %4027 = vmatpush1.msra.mxu0 0.0
  %4028 = vmatprep.subr.mxu0 0.0
  %4029 = vmatpush1.msra.mxu0 0.0
  %4030 = vmatprep.subr.mxu0 0.0
  %4031 = vmatpush1.msra.mxu0 0.0
  %4032 = vmatprep.subr.mxu0 0.0
  %4033 = vmatpush1.msra.mxu0 0.0
  %4034 = vmatprep.subr.mxu0 0.0
  %4035 = vmatpush1.msra.mxu0 0.0
  %4036 = vmatprep.subr.mxu0 0.0
  %4037 = vmatpush1.msra.mxu0 0.0
  %4038 = vmatprep.mubr.f32.mxu0 0.0
  %v4039 = vand.u32 %v3860, 4294901760
  %4040 = vmatmul.mubr.f32.gmra.mrb[0].mxu0 %v4039
  %v4041 = vpop.f32.mrb[0].mxu0
  %v4042 = vadd.f32 %v3941, %v4041
  %v4043 = vpop.f32.mrb[0].mxu0
  %4044 = vmatprep.mubr.f32.mxu0 0.0
  %v4045 = vand.u32 %v3863, 4294901760
  %4046 = vmatmul.mubr.f32.gmra.mrb[0].mxu0 %v4045
  %v4047 = vpop.f32.mrb[0].mxu0
  %v4048 = vadd.f32 %v3951, %v4047
  %v4049 = vpop.f32.mrb[0].mxu0
  %4050 = vdwg.mxu0
  %4051 = vmatprep.subr.mxu0 0.0
  %v4052 = vand.u32 %v3853, 4294901760
  %v4053 = vsub.f32 %v3853, %v4052
  %4054 = vmatpush1.msra.mxu0 %v4053
  %4055 = vmatprep.subr.mxu0 0.0
  %v4056 = vand.u32 %v3854, 4294901760
  %v4057 = vsub.f32 %v3854, %v4056
  %4058 = vmatpush1.msra.mxu0 %v4057
  %4059 = vmatprep.subr.mxu0 0.0
  %v4060 = vand.u32 %v3855, 4294901760
  %v4061 = vsub.f32 %v3855, %v4060
  %4062 = vmatpush1.msra.mxu0 %v4061
  %4063 = vmatprep.subr.mxu0 0.0
  %v4064 = vand.u32 %v3856, 4294901760
  %v4065 = vsub.f32 %v3856, %v4064
  %4066 = vmatpush1.msra.mxu0 %v4065
  %4067 = vmatprep.subr.mxu0 0.0
  %4068 = vmatpush1.msra.mxu0 0.0
  %4069 = vmatprep.subr.mxu0 0.0
  %4070 = vmatpush1.msra.mxu0 0.0
  %4071 = vmatprep.subr.mxu0 0.0
  %4072 = vmatpush1.msra.mxu0 0.0
  %4073 = vmatprep.subr.mxu0 0.0
  %4074 = vmatpush1.msra.mxu0 0.0
  %4075 = vmatprep.subr.mxu0 0.0
  %4076 = vmatpush1.msra.mxu0 0.0
  %4077 = vmatprep.subr.mxu0 0.0
  %4078 = vmatpush1.msra.mxu0 0.0
  %4079 = vmatprep.subr.mxu0 0.0
  %4080 = vmatpush1.msra.mxu0 0.0
  %4081 = vmatprep.subr.mxu0 0.0
  %4082 = vmatpush1.msra.mxu0 0.0
  %4083 = vmatprep.subr.mxu0 0.0
  %4084 = vmatpush1.msra.mxu0 0.0
  %4085 = vmatprep.subr.mxu0 0.0
  %4086 = vmatpush1.msra.mxu0 0.0
  %4087 = vmatprep.subr.mxu0 0.0
  %4088 = vmatpush1.msra.mxu0 0.0
  %4089 = vmatprep.subr.mxu0 0.0
  %4090 = vmatpush1.msra.mxu0 0.0
  %4091 = vmatprep.subr.mxu0 0.0
  %4092 = vmatpush1.msra.mxu0 0.0
  %4093 = vmatprep.subr.mxu0 0.0
  %4094 = vmatpush1.msra.mxu0 0.0
  %4095 = vmatprep.subr.mxu0 0.0
  %4096 = vmatpush1.msra.mxu0 0.0
  %4097 = vmatprep.subr.mxu0 0.0
  %4098 = vmatpush1.msra.mxu0 0.0
  %4099 = vmatprep.subr.mxu0 0.0
  %4100 = vmatpush1.msra.mxu0 0.0
  %4101 = vmatprep.subr.mxu0 0.0
  %4102 = vmatpush1.msra.mxu0 0.0
  %4103 = vmatprep.subr.mxu0 0.0
  %4104 = vmatpush1.msra.mxu0 0.0
  %4105 = vmatprep.subr.mxu0 0.0
  %4106 = vmatpush1.msra.mxu0 0.0
  %4107 = vmatprep.subr.mxu0 0.0
  %4108 = vmatpush1.msra.mxu0 0.0
  %4109 = vmatprep.subr.mxu0 0.0
  %4110 = vmatpush1.msra.mxu0 0.0
  %4111 = vmatprep.subr.mxu0 0.0
  %4112 = vmatpush1.msra.mxu0 0.0
  %4113 = vmatprep.subr.mxu0 0.0
  %4114 = vmatpush1.msra.mxu0 0.0
  %4115 = vmatprep.subr.mxu0 0.0
  %4116 = vmatpush1.msra.mxu0 0.0
  %4117 = vmatprep.subr.mxu0 0.0
  %4118 = vmatpush1.msra.mxu0 0.0
  %4119 = vmatprep.subr.mxu0 0.0
  %4120 = vmatpush1.msra.mxu0 0.0
  %4121 = vmatprep.subr.mxu0 0.0
  %4122 = vmatpush1.msra.mxu0 0.0
  %4123 = vmatprep.mubr.f32.mxu0 0.0
  %v4124 = vand.u32 %v3860, 4294901760
  %v4125 = vsub.f32 %v3860, %v4124
  %4126 = vmatmul.mubr.f32.gmra.mrb[0].mxu0 %v4125
  %v4127 = vpop.f32.mrb[0].mxu0
  %v4128 = vadd.f32 %v4042, %v4127
  %v4129 = vpop.f32.mrb[0].mxu0
  %4130 = vmatprep.mubr.f32.mxu0 0.0
  %v4131 = vand.u32 %v3863, 4294901760
  %v4132 = vsub.f32 %v3863, %v4131
  %4133 = vmatmul.mubr.f32.gmra.mrb[0].mxu0 %v4132
  %v4134 = vpop.f32.mrb[0].mxu0
  %v4135 = vadd.f32 %v4048, %v4134
  %v4136 = vpop.f32.mrb[0].mxu0
  %4137 = vdwg.mxu0
  %4138 = vmatprep.subr.mxu0 0.0
  %v4139 = vand.u32 %v3853, 4294901760
  %4140 = vmatpush1.msra.mxu0 %v4139
  %4141 = vmatprep.subr.mxu0 0.0
  %v4142 = vand.u32 %v3854, 4294901760
  %4143 = vmatpush1.msra.mxu0 %v4142
  %4144 = vmatprep.subr.mxu0 0.0
  %v4145 = vand.u32 %v3855, 4294901760
  %4146 = vmatpush1.msra.mxu0 %v4145
  %4147 = vmatprep.subr.mxu0 0.0
  %v4148 = vand.u32 %v3856, 4294901760
  %4149 = vmatpush1.msra.mxu0 %v4148
  %4150 = vmatprep.subr.mxu0 0.0
  %4151 = vmatpush1.msra.mxu0 0.0
  %4152 = vmatprep.subr.mxu0 0.0
  %4153 = vmatpush1.msra.mxu0 0.0
  %4154 = vmatprep.subr.mxu0 0.0
  %4155 = vmatpush1.msra.mxu0 0.0
  %4156 = vmatprep.subr.mxu0 0.0
  %4157 = vmatpush1.msra.mxu0 0.0
  %4158 = vmatprep.subr.mxu0 0.0
  %4159 = vmatpush1.msra.mxu0 0.0
  %4160 = vmatprep.subr.mxu0 0.0
  %4161 = vmatpush1.msra.mxu0 0.0
  %4162 = vmatprep.subr.mxu0 0.0
  %4163 = vmatpush1.msra.mxu0 0.0
  %4164 = vmatprep.subr.mxu0 0.0
  %4165 = vmatpush1.msra.mxu0 0.0
  %4166 = vmatprep.subr.mxu0 0.0
  %4167 = vmatpush1.msra.mxu0 0.0
  %4168 = vmatprep.subr.mxu0 0.0
  %4169 = vmatpush1.msra.mxu0 0.0
  %4170 = vmatprep.subr.mxu0 0.0
  %4171 = vmatpush1.msra.mxu0 0.0
  %4172 = vmatprep.subr.mxu0 0.0
  %4173 = vmatpush1.msra.mxu0 0.0
  %4174 = vmatprep.subr.mxu0 0.0
  %4175 = vmatpush1.msra.mxu0 0.0
  %4176 = vmatprep.subr.mxu0 0.0
  %4177 = vmatpush1.msra.mxu0 0.0
  %4178 = vmatprep.subr.mxu0 0.0
  %4179 = vmatpush1.msra.mxu0 0.0
  %4180 = vmatprep.subr.mxu0 0.0
  %4181 = vmatpush1.msra.mxu0 0.0
  %4182 = vmatprep.subr.mxu0 0.0
  %4183 = vmatpush1.msra.mxu0 0.0
  %4184 = vmatprep.subr.mxu0 0.0
  %4185 = vmatpush1.msra.mxu0 0.0
  %4186 = vmatprep.subr.mxu0 0.0
  %4187 = vmatpush1.msra.mxu0 0.0
  %4188 = vmatprep.subr.mxu0 0.0
  %4189 = vmatpush1.msra.mxu0 0.0
  %4190 = vmatprep.subr.mxu0 0.0
  %4191 = vmatpush1.msra.mxu0 0.0
  %4192 = vmatprep.subr.mxu0 0.0
  %4193 = vmatpush1.msra.mxu0 0.0
  %4194 = vmatprep.subr.mxu0 0.0
  %4195 = vmatpush1.msra.mxu0 0.0
  %4196 = vmatprep.subr.mxu0 0.0
  %4197 = vmatpush1.msra.mxu0 0.0
  %4198 = vmatprep.subr.mxu0 0.0
  %4199 = vmatpush1.msra.mxu0 0.0
  %4200 = vmatprep.subr.mxu0 0.0
  %4201 = vmatpush1.msra.mxu0 0.0
  %4202 = vmatprep.subr.mxu0 0.0
  %4203 = vmatpush1.msra.mxu0 0.0
  %4204 = vmatprep.subr.mxu0 0.0
  %4205 = vmatpush1.msra.mxu0 0.0
  %4206 = vmatprep.mubr.f32.mxu0 0.0
  %v4207 = vand.u32 %v3860, 4294901760
  %v4208 = vsub.f32 %v3860, %v4207
  %v4209 = vand.u32 %v4208, 4294901760
  %4210 = vmatmul.mubr.f32.gmra.mrb[0].mxu0 %v4209
  %v4211 = vpop.f32.mrb[0].mxu0
  %v4212 = vadd.f32 %v4128, %v4211
  %v4213 = vpop.f32.mrb[0].mxu0
  %4214 = vmatprep.mubr.f32.mxu0 0.0
  %v4215 = vand.u32 %v3863, 4294901760
  %v4216 = vsub.f32 %v3863, %v4215
  %v4217 = vand.u32 %v4216, 4294901760
  %4218 = vmatmul.mubr.f32.gmra.mrb[0].mxu0 %v4217
  %v4219 = vpop.f32.mrb[0].mxu0
  %v4220 = vadd.f32 %v4135, %v4219
  %v4221 = vpop.f32.mrb[0].mxu0
  %4222 = vdwg.mxu0
  %4223 = vmatprep.subr.mxu0 0.0
  %v4224 = vand.u32 %v3853, 4294901760
  %v4225 = vsub.f32 %v3853, %v4224
  %v4226 = vand.u32 %v4225, 4294901760
  %4227 = vmatpush1.msra.mxu0 %v4226
  %4228 = vmatprep.subr.mxu0 0.0
  %v4229 = vand.u32 %v3854, 4294901760
  %v4230 = vsub.f32 %v3854, %v4229
  %v4231 = vand.u32 %v4230, 4294901760
  %4232 = vmatpush1.msra.mxu0 %v4231
  %4233 = vmatprep.subr.mxu0 0.0
  %v4234 = vand.u32 %v3855, 4294901760
  %v4235 = vsub.f32 %v3855, %v4234
  %v4236 = vand.u32 %v4235, 4294901760
  %4237 = vmatpush1.msra.mxu0 %v4236
  %4238 = vmatprep.subr.mxu0 0.0
  %v4239 = vand.u32 %v3856, 4294901760
  %v4240 = vsub.f32 %v3856, %v4239
  %v4241 = vand.u32 %v4240, 4294901760
  %4242 = vmatpush1.msra.mxu0 %v4241
  %4243 = vmatprep.subr.mxu0 0.0
  %4244 = vmatpush1.msra.mxu0 0.0
  %4245 = vmatprep.subr.mxu0 0.0
  %4246 = vmatpush1.msra.mxu0 0.0
  %4247 = vmatprep.subr.mxu0 0.0
  %4248 = vmatpush1.msra.mxu0 0.0
  %4249 = vmatprep.subr.mxu0 0.0
  %4250 = vmatpush1.msra.mxu0 0.0
  %4251 = vmatprep.subr.mxu0 0.0
  %4252 = vmatpush1.msra.mxu0 0.0
  %4253 = vmatprep.subr.mxu0 0.0
  %4254 = vmatpush1.msra.mxu0 0.0
  %4255 = vmatprep.subr.mxu0 0.0
  %4256 = vmatpush1.msra.mxu0 0.0
  %4257 = vmatprep.subr.mxu0 0.0
  %4258 = vmatpush1.msra.mxu0 0.0
  %4259 = vmatprep.subr.mxu0 0.0
  %4260 = vmatpush1.msra.mxu0 0.0
  %4261 = vmatprep.subr.mxu0 0.0
  %4262 = vmatpush1.msra.mxu0 0.0
  %4263 = vmatprep.subr.mxu0 0.0
  %4264 = vmatpush1.msra.mxu0 0.0
  %4265 = vmatprep.subr.mxu0 0.0
  %4266 = vmatpush1.msra.mxu0 0.0
  %4267 = vmatprep.subr.mxu0 0.0
  %4268 = vmatpush1.msra.mxu0 0.0
  %4269 = vmatprep.subr.mxu0 0.0
  %4270 = vmatpush1.msra.mxu0 0.0
  %4271 = vmatprep.subr.mxu0 0.0
  %4272 = vmatpush1.msra.mxu0 0.0
  %4273 = vmatprep.subr.mxu0 0.0
  %4274 = vmatpush1.msra.mxu0 0.0
  %4275 = vmatprep.subr.mxu0 0.0
  %4276 = vmatpush1.msra.mxu0 0.0
  %4277 = vmatprep.subr.mxu0 0.0
  %4278 = vmatpush1.msra.mxu0 0.0
  %4279 = vmatprep.subr.mxu0 0.0
  %4280 = vmatpush1.msra.mxu0 0.0
  %4281 = vmatprep.subr.mxu0 0.0
  %4282 = vmatpush1.msra.mxu0 0.0
  %4283 = vmatprep.subr.mxu0 0.0
  %4284 = vmatpush1.msra.mxu0 0.0
  %4285 = vmatprep.subr.mxu0 0.0
  %4286 = vmatpush1.msra.mxu0 0.0
  %4287 = vmatprep.subr.mxu0 0.0
  %4288 = vmatpush1.msra.mxu0 0.0
  %4289 = vmatprep.subr.mxu0 0.0
  %4290 = vmatpush1.msra.mxu0 0.0
  %4291 = vmatprep.subr.mxu0 0.0
  %4292 = vmatpush1.msra.mxu0 0.0
  %4293 = vmatprep.subr.mxu0 0.0
  %4294 = vmatpush1.msra.mxu0 0.0
  %4295 = vmatprep.subr.mxu0 0.0
  %4296 = vmatpush1.msra.mxu0 0.0
  %4297 = vmatprep.subr.mxu0 0.0
  %4298 = vmatpush1.msra.mxu0 0.0
  %4299 = vmatprep.mubr.f32.mxu0 0.0
  %v4300 = vand.u32 %v3860, 4294901760
  %4301 = vmatmul.mubr.f32.gmra.mrb[0].mxu0 %v4300
  %v4302 = vpop.f32.mrb[0].mxu0
  %v4303 = vadd.f32 %v4212, %v4302
  %v4304 = vpop.f32.mrb[0].mxu0
  %4305 = vmatprep.mubr.f32.mxu0 0.0
  %v4306 = vand.u32 %v3863, 4294901760
  %4307 = vmatmul.mubr.f32.gmra.mrb[0].mxu0 %v4306
  %v4308 = vpop.f32.mrb[0].mxu0
  %v4309 = vadd.f32 %v4220, %v4308
  %v4310 = vpop.f32.mrb[0].mxu0
  %4311 = vdwg.mxu0
  %4312 = vmatprep.subr.mxu0 0.0
  %v4313 = vand.u32 %v3853, 4294901760
  %4314 = vmatpush1.msra.mxu0 %v4313
  %4315 = vmatprep.subr.mxu0 0.0
  %v4316 = vand.u32 %v3854, 4294901760
  %4317 = vmatpush1.msra.mxu0 %v4316
  %4318 = vmatprep.subr.mxu0 0.0
  %v4319 = vand.u32 %v3855, 4294901760
  %4320 = vmatpush1.msra.mxu0 %v4319
  %4321 = vmatprep.subr.mxu0 0.0
  %v4322 = vand.u32 %v3856, 4294901760
  %4323 = vmatpush1.msra.mxu0 %v4322
  %4324 = vmatprep.subr.mxu0 0.0
  %4325 = vmatpush1.msra.mxu0 0.0
  %4326 = vmatprep.subr.mxu0 0.0
  %4327 = vmatpush1.msra.mxu0 0.0
  %4328 = vmatprep.subr.mxu0 0.0
  %4329 = vmatpush1.msra.mxu0 0.0
  %4330 = vmatprep.subr.mxu0 0.0
  %4331 = vmatpush1.msra.mxu0 0.0
  %4332 = vmatprep.subr.mxu0 0.0
  %4333 = vmatpush1.msra.mxu0 0.0
  %4334 = vmatprep.subr.mxu0 0.0
  %4335 = vmatpush1.msra.mxu0 0.0
  %4336 = vmatprep.subr.mxu0 0.0
  %4337 = vmatpush1.msra.mxu0 0.0
  %4338 = vmatprep.subr.mxu0 0.0
  %4339 = vmatpush1.msra.mxu0 0.0
  %4340 = vmatprep.subr.mxu0 0.0
  %4341 = vmatpush1.msra.mxu0 0.0
  %4342 = vmatprep.subr.mxu0 0.0
  %4343 = vmatpush1.msra.mxu0 0.0
  %4344 = vmatprep.subr.mxu0 0.0
  %4345 = vmatpush1.msra.mxu0 0.0
  %4346 = vmatprep.subr.mxu0 0.0
  %4347 = vmatpush1.msra.mxu0 0.0
  %4348 = vmatprep.subr.mxu0 0.0
  %4349 = vmatpush1.msra.mxu0 0.0
  %4350 = vmatprep.subr.mxu0 0.0
  %4351 = vmatpush1.msra.mxu0 0.0
  %4352 = vmatprep.subr.mxu0 0.0
  %4353 = vmatpush1.msra.mxu0 0.0
  %4354 = vmatprep.subr.mxu0 0.0
  %4355 = vmatpush1.msra.mxu0 0.0
  %4356 = vmatprep.subr.mxu0 0.0
  %4357 = vmatpush1.msra.mxu0 0.0
  %4358 = vmatprep.subr.mxu0 0.0
  %4359 = vmatpush1.msra.mxu0 0.0
  %4360 = vmatprep.subr.mxu0 0.0
  %4361 = vmatpush1.msra.mxu0 0.0
  %4362 = vmatprep.subr.mxu0 0.0
  %4363 = vmatpush1.msra.mxu0 0.0
  %4364 = vmatprep.subr.mxu0 0.0
  %4365 = vmatpush1.msra.mxu0 0.0
  %4366 = vmatprep.subr.mxu0 0.0
  %4367 = vmatpush1.msra.mxu0 0.0
  %4368 = vmatprep.subr.mxu0 0.0
  %4369 = vmatpush1.msra.mxu0 0.0
  %4370 = vmatprep.subr.mxu0 0.0
  %4371 = vmatpush1.msra.mxu0 0.0
  %4372 = vmatprep.subr.mxu0 0.0
  %4373 = vmatpush1.msra.mxu0 0.0
  %4374 = vmatprep.subr.mxu0 0.0
  %4375 = vmatpush1.msra.mxu0 0.0
  %4376 = vmatprep.subr.mxu0 0.0
  %4377 = vmatpush1.msra.mxu0 0.0
  %4378 = vmatprep.subr.mxu0 0.0
  %4379 = vmatpush1.msra.mxu0 0.0
  %4380 = vmatprep.mubr.f32.mxu0 0.0
  %v4381 = vand.u32 %v3860, 4294901760
  %4382 = vmatmul.mubr.f32.gmra.mrb[0].mxu0 %v4381
  %v4383 = vpop.f32.mrb[0].mxu0
  %v4384 = vadd.f32 %v4303, %v4383
  %v4385 = vpop.f32.mrb[0].mxu0
  %4386 = vmatprep.mubr.f32.mxu0 0.0
  %v4387 = vand.u32 %v3863, 4294901760
  %4388 = vmatmul.mubr.f32.gmra.mrb[0].mxu0 %v4387
  %v4389 = vpop.f32.mrb[0].mxu0
  %v4390 = vadd.f32 %v4309, %v4389
  %v4391 = vpop.f32.mrb[0].mxu0
  %4392 = vdwg.mxu0
  %v4393 = vld [vmem:[%s8] sm:$0xff]
  %v4394 = vld [vmem:[%s8 + $0x8] sm:$0xff]
  %v4396 = vsel %vm94, %v4393, 0
  %v4399 = vsel %vm94, %v4394, 0
  %4401 = vmatprep.subr.mxu0 0.0
  %v4402 = vand.u32 %v3853, 4294901760
  %4403 = vmatpush1.msra.mxu0 %v4402
  %4404 = vmatprep.subr.mxu0 0.0
  %v4405 = vand.u32 %v3854, 4294901760
  %4406 = vmatpush1.msra.mxu0 %v4405
  %4407 = vmatprep.subr.mxu0 0.0
  %v4408 = vand.u32 %v3855, 4294901760
  %4409 = vmatpush1.msra.mxu0 %v4408
  %4410 = vmatprep.subr.mxu0 0.0
  %v4411 = vand.u32 %v3856, 4294901760
  %4412 = vmatpush1.msra.mxu0 %v4411
  %4413 = vmatprep.subr.mxu0 0.0
  %4414 = vmatpush1.msra.mxu0 0.0
  %4415 = vmatprep.subr.mxu0 0.0
  %4416 = vmatpush1.msra.mxu0 0.0
  %4417 = vmatprep.subr.mxu0 0.0
  %4418 = vmatpush1.msra.mxu0 0.0
  %4419 = vmatprep.subr.mxu0 0.0
  %4420 = vmatpush1.msra.mxu0 0.0
  %4421 = vmatprep.subr.mxu0 0.0
  %4422 = vmatpush1.msra.mxu0 0.0
  %4423 = vmatprep.subr.mxu0 0.0
  %4424 = vmatpush1.msra.mxu0 0.0
  %4425 = vmatprep.subr.mxu0 0.0
  %4426 = vmatpush1.msra.mxu0 0.0
  %4427 = vmatprep.subr.mxu0 0.0
  %4428 = vmatpush1.msra.mxu0 0.0
  %4429 = vmatprep.subr.mxu0 0.0
  %4430 = vmatpush1.msra.mxu0 0.0
  %4431 = vmatprep.subr.mxu0 0.0
  %4432 = vmatpush1.msra.mxu0 0.0
  %4433 = vmatprep.subr.mxu0 0.0
  %4434 = vmatpush1.msra.mxu0 0.0
  %4435 = vmatprep.subr.mxu0 0.0
  %4436 = vmatpush1.msra.mxu0 0.0
  %4437 = vmatprep.subr.mxu0 0.0
  %4438 = vmatpush1.msra.mxu0 0.0
  %4439 = vmatprep.subr.mxu0 0.0
  %4440 = vmatpush1.msra.mxu0 0.0
  %4441 = vmatprep.subr.mxu0 0.0
  %4442 = vmatpush1.msra.mxu0 0.0
  %4443 = vmatprep.subr.mxu0 0.0
  %4444 = vmatpush1.msra.mxu0 0.0
  %4445 = vmatprep.subr.mxu0 0.0
  %4446 = vmatpush1.msra.mxu0 0.0
  %4447 = vmatprep.subr.mxu0 0.0
  %4448 = vmatpush1.msra.mxu0 0.0
  %4449 = vmatprep.subr.mxu0 0.0
  %4450 = vmatpush1.msra.mxu0 0.0
  %4451 = vmatprep.subr.mxu0 0.0
  %4452 = vmatpush1.msra.mxu0 0.0
  %4453 = vmatprep.subr.mxu0 0.0
  %4454 = vmatpush1.msra.mxu0 0.0
  %4455 = vmatprep.subr.mxu0 0.0
  %4456 = vmatpush1.msra.mxu0 0.0
  %4457 = vmatprep.subr.mxu0 0.0
  %4458 = vmatpush1.msra.mxu0 0.0
  %4459 = vmatprep.subr.mxu0 0.0
  %4460 = vmatpush1.msra.mxu0 0.0
  %4461 = vmatprep.subr.mxu0 0.0
  %4462 = vmatpush1.msra.mxu0 0.0
  %4463 = vmatprep.subr.mxu0 0.0
  %4464 = vmatpush1.msra.mxu0 0.0
  %4465 = vmatprep.subr.mxu0 0.0
  %4466 = vmatpush1.msra.mxu0 0.0
  %4467 = vmatprep.subr.mxu0 0.0
  %4468 = vmatpush1.msra.mxu0 0.0
  %4469 = vmatprep.mubr.f32.mxu0 0.0
  %v4470 = vand.u32 %v4396, 4294901760
  %v4471 = vsub.f32 %v4396, %v4470
  %v4472 = vand.u32 %v4471, 4294901760
  %v4473 = vsub.f32 %v4471, %v4472
  %v4474 = vand.u32 %v4473, 4294901760
  %4475 = vmatmul.mubr.f32.gmra.mrb[0].mxu0 %v4474
  %v4476 = vpop.f32.mrb[0].mxu0
  %v4477 = vadd.f32 0.0, %v4476
  %v4478 = vpop.f32.mrb[0].mxu0
  %4479 = vmatprep.mubr.f32.mxu0 0.0
  %v4480 = vand.u32 %v4399, 4294901760
  %v4481 = vsub.f32 %v4399, %v4480
  %v4482 = vand.u32 %v4481, 4294901760
  %v4483 = vsub.f32 %v4481, %v4482
  %v4484 = vand.u32 %v4483, 4294901760
  %4485 = vmatmul.mubr.f32.gmra.mrb[0].mxu0 %v4484
  %v4486 = vpop.f32.mrb[0].mxu0
  %v4487 = vadd.f32 0.0, %v4486
  %v4488 = vpop.f32.mrb[0].mxu0
  %4489 = vdwg.mxu0
  %4490 = vmatprep.subr.mxu0 0.0
  %v4491 = vand.u32 %v3853, 4294901760
  %v4492 = vsub.f32 %v3853, %v4491
  %v4493 = vand.u32 %v4492, 4294901760
  %v4494 = vsub.f32 %v4492, %v4493
  %v4495 = vand.u32 %v4494, 4294901760
  %4496 = vmatpush1.msra.mxu0 %v4495
  %4497 = vmatprep.subr.mxu0 0.0
  %v4498 = vand.u32 %v3854, 4294901760
  %v4499 = vsub.f32 %v3854, %v4498
  %v4500 = vand.u32 %v4499, 4294901760
  %v4501 = vsub.f32 %v4499, %v4500
  %v4502 = vand.u32 %v4501, 4294901760
  %4503 = vmatpush1.msra.mxu0 %v4502
  %4504 = vmatprep.subr.mxu0 0.0
  %v4505 = vand.u32 %v3855, 4294901760
  %v4506 = vsub.f32 %v3855, %v4505
  %v4507 = vand.u32 %v4506, 4294901760
  %v4508 = vsub.f32 %v4506, %v4507
  %v4509 = vand.u32 %v4508, 4294901760
  %4510 = vmatpush1.msra.mxu0 %v4509
  %4511 = vmatprep.subr.mxu0 0.0
  %v4512 = vand.u32 %v3856, 4294901760
  %v4513 = vsub.f32 %v3856, %v4512
  %v4514 = vand.u32 %v4513, 4294901760
  %v4515 = vsub.f32 %v4513, %v4514
  %v4516 = vand.u32 %v4515, 4294901760
  %4517 = vmatpush1.msra.mxu0 %v4516
  %4518 = vmatprep.subr.mxu0 0.0
  %4519 = vmatpush1.msra.mxu0 0.0
  %4520 = vmatprep.subr.mxu0 0.0
  %4521 = vmatpush1.msra.mxu0 0.0
  %4522 = vmatprep.subr.mxu0 0.0
  %4523 = vmatpush1.msra.mxu0 0.0
  %4524 = vmatprep.subr.mxu0 0.0
  %4525 = vmatpush1.msra.mxu0 0.0
  %4526 = vmatprep.subr.mxu0 0.0
  %4527 = vmatpush1.msra.mxu0 0.0
  %4528 = vmatprep.subr.mxu0 0.0
  %4529 = vmatpush1.msra.mxu0 0.0
  %4530 = vmatprep.subr.mxu0 0.0
  %4531 = vmatpush1.msra.mxu0 0.0
  %4532 = vmatprep.subr.mxu0 0.0
  %4533 = vmatpush1.msra.mxu0 0.0
  %4534 = vmatprep.subr.mxu0 0.0
  %4535 = vmatpush1.msra.mxu0 0.0
  %4536 = vmatprep.subr.mxu0 0.0
  %4537 = vmatpush1.msra.mxu0 0.0
  %4538 = vmatprep.subr.mxu0 0.0
  %4539 = vmatpush1.msra.mxu0 0.0
  %4540 = vmatprep.subr.mxu0 0.0
  %4541 = vmatpush1.msra.mxu0 0.0
  %4542 = vmatprep.subr.mxu0 0.0
  %4543 = vmatpush1.msra.mxu0 0.0
  %4544 = vmatprep.subr.mxu0 0.0
  %4545 = vmatpush1.msra.mxu0 0.0
  %4546 = vmatprep.subr.mxu0 0.0
  %4547 = vmatpush1.msra.mxu0 0.0
  %4548 = vmatprep.subr.mxu0 0.0
  %4549 = vmatpush1.msra.mxu0 0.0
  %4550 = vmatprep.subr.mxu0 0.0
  %4551 = vmatpush1.msra.mxu0 0.0
  %4552 = vmatprep.subr.mxu0 0.0
  %4553 = vmatpush1.msra.mxu0 0.0
  %4554 = vmatprep.subr.mxu0 0.0
  %4555 = vmatpush1.msra.mxu0 0.0
  %4556 = vmatprep.subr.mxu0 0.0
  %4557 = vmatpush1.msra.mxu0 0.0
  %4558 = vmatprep.subr.mxu0 0.0
  %4559 = vmatpush1.msra.mxu0 0.0
  %4560 = vmatprep.subr.mxu0 0.0
  %4561 = vmatpush1.msra.mxu0 0.0
  %4562 = vmatprep.subr.mxu0 0.0
  %4563 = vmatpush1.msra.mxu0 0.0
  %4564 = vmatprep.subr.mxu0 0.0
  %4565 = vmatpush1.msra.mxu0 0.0
  %4566 = vmatprep.subr.mxu0 0.0
  %4567 = vmatpush1.msra.mxu0 0.0
  %4568 = vmatprep.subr.mxu0 0.0
  %4569 = vmatpush1.msra.mxu0 0.0
  %4570 = vmatprep.subr.mxu0 0.0
  %4571 = vmatpush1.msra.mxu0 0.0
  %4572 = vmatprep.subr.mxu0 0.0
  %4573 = vmatpush1.msra.mxu0 0.0
  %4574 = vmatprep.mubr.f32.mxu0 0.0
  %v4575 = vand.u32 %v4396, 4294901760
  %4576 = vmatmul.mubr.f32.gmra.mrb[0].mxu0 %v4575
  %v4577 = vpop.f32.mrb[0].mxu0
  %v4578 = vadd.f32 %v4477, %v4577
  %v4579 = vpop.f32.mrb[0].mxu0
  %4580 = vmatprep.mubr.f32.mxu0 0.0
  %v4581 = vand.u32 %v4399, 4294901760
  %4582 = vmatmul.mubr.f32.gmra.mrb[0].mxu0 %v4581
  %v4583 = vpop.f32.mrb[0].mxu0
  %v4584 = vadd.f32 %v4487, %v4583
  %v4585 = vpop.f32.mrb[0].mxu0
  %4586 = vdwg.mxu0
  %4587 = vmatprep.subr.mxu0 0.0
  %v4588 = vand.u32 %v3853, 4294901760
  %v4589 = vsub.f32 %v3853, %v4588
  %4590 = vmatpush1.msra.mxu0 %v4589
  %4591 = vmatprep.subr.mxu0 0.0
  %v4592 = vand.u32 %v3854, 4294901760
  %v4593 = vsub.f32 %v3854, %v4592
  %4594 = vmatpush1.msra.mxu0 %v4593
  %4595 = vmatprep.subr.mxu0 0.0
  %v4596 = vand.u32 %v3855, 4294901760
  %v4597 = vsub.f32 %v3855, %v4596
  %4598 = vmatpush1.msra.mxu0 %v4597
  %4599 = vmatprep.subr.mxu0 0.0
  %v4600 = vand.u32 %v3856, 4294901760
  %v4601 = vsub.f32 %v3856, %v4600
  %4602 = vmatpush1.msra.mxu0 %v4601
  %4603 = vmatprep.subr.mxu0 0.0
  %4604 = vmatpush1.msra.mxu0 0.0
  %4605 = vmatprep.subr.mxu0 0.0
  %4606 = vmatpush1.msra.mxu0 0.0
  %4607 = vmatprep.subr.mxu0 0.0
  %4608 = vmatpush1.msra.mxu0 0.0
  %4609 = vmatprep.subr.mxu0 0.0
  %4610 = vmatpush1.msra.mxu0 0.0
  %4611 = vmatprep.subr.mxu0 0.0
  %4612 = vmatpush1.msra.mxu0 0.0
  %4613 = vmatprep.subr.mxu0 0.0
  %4614 = vmatpush1.msra.mxu0 0.0
  %4615 = vmatprep.subr.mxu0 0.0
  %4616 = vmatpush1.msra.mxu0 0.0
  %4617 = vmatprep.subr.mxu0 0.0
  %4618 = vmatpush1.msra.mxu0 0.0
  %4619 = vmatprep.subr.mxu0 0.0
  %4620 = vmatpush1.msra.mxu0 0.0
  %4621 = vmatprep.subr.mxu0 0.0
  %4622 = vmatpush1.msra.mxu0 0.0
  %4623 = vmatprep.subr.mxu0 0.0
  %4624 = vmatpush1.msra.mxu0 0.0
  %4625 = vmatprep.subr.mxu0 0.0
  %4626 = vmatpush1.msra.mxu0 0.0
  %4627 = vmatprep.subr.mxu0 0.0
  %4628 = vmatpush1.msra.mxu0 0.0
  %4629 = vmatprep.subr.mxu0 0.0
  %4630 = vmatpush1.msra.mxu0 0.0
  %4631 = vmatprep.subr.mxu0 0.0
  %4632 = vmatpush1.msra.mxu0 0.0
  %4633 = vmatprep.subr.mxu0 0.0
  %4634 = vmatpush1.msra.mxu0 0.0
  %4635 = vmatprep.subr.mxu0 0.0
  %4636 = vmatpush1.msra.mxu0 0.0
  %4637 = vmatprep.subr.mxu0 0.0
  %4638 = vmatpush1.msra.mxu0 0.0
  %4639 = vmatprep.subr.mxu0 0.0
  %4640 = vmatpush1.msra.mxu0 0.0
  %4641 = vmatprep.subr.mxu0 0.0
  %4642 = vmatpush1.msra.mxu0 0.0
  %4643 = vmatprep.subr.mxu0 0.0
  %4644 = vmatpush1.msra.mxu0 0.0
  %4645 = vmatprep.subr.mxu0 0.0
  %4646 = vmatpush1.msra.mxu0 0.0
  %4647 = vmatprep.subr.mxu0 0.0
  %4648 = vmatpush1.msra.mxu0 0.0
  %4649 = vmatprep.subr.mxu0 0.0
  %4650 = vmatpush1.msra.mxu0 0.0
  %4651 = vmatprep.subr.mxu0 0.0
  %4652 = vmatpush1.msra.mxu0 0.0
  %4653 = vmatprep.subr.mxu0 0.0
  %4654 = vmatpush1.msra.mxu0 0.0
  %4655 = vmatprep.subr.mxu0 0.0
  %4656 = vmatpush1.msra.mxu0 0.0
  %4657 = vmatprep.subr.mxu0 0.0
  %4658 = vmatpush1.msra.mxu0 0.0
  %4659 = vmatprep.mubr.f32.mxu0 0.0
  %v4660 = vand.u32 %v4396, 4294901760
  %v4661 = vsub.f32 %v4396, %v4660
  %4662 = vmatmul.mubr.f32.gmra.mrb[0].mxu0 %v4661
  %v4663 = vpop.f32.mrb[0].mxu0
  %v4664 = vadd.f32 %v4578, %v4663
  %v4665 = vpop.f32.mrb[0].mxu0
  %4666 = vmatprep.mubr.f32.mxu0 0.0
  %v4667 = vand.u32 %v4399, 4294901760
  %v4668 = vsub.f32 %v4399, %v4667
  %4669 = vmatmul.mubr.f32.gmra.mrb[0].mxu0 %v4668
  %v4670 = vpop.f32.mrb[0].mxu0
  %v4671 = vadd.f32 %v4584, %v4670
  %v4672 = vpop.f32.mrb[0].mxu0
  %4673 = vdwg.mxu0
  %4674 = vmatprep.subr.mxu0 0.0
  %v4675 = vand.u32 %v3853, 4294901760
  %4676 = vmatpush1.msra.mxu0 %v4675
  %4677 = vmatprep.subr.mxu0 0.0
  %v4678 = vand.u32 %v3854, 4294901760
  %4679 = vmatpush1.msra.mxu0 %v4678
  %4680 = vmatprep.subr.mxu0 0.0
  %v4681 = vand.u32 %v3855, 4294901760
  %4682 = vmatpush1.msra.mxu0 %v4681
  %4683 = vmatprep.subr.mxu0 0.0
  %v4684 = vand.u32 %v3856, 4294901760
  %4685 = vmatpush1.msra.mxu0 %v4684
  %4686 = vmatprep.subr.mxu0 0.0
  %4687 = vmatpush1.msra.mxu0 0.0
  %4688 = vmatprep.subr.mxu0 0.0
  %4689 = vmatpush1.msra.mxu0 0.0
  %4690 = vmatprep.subr.mxu0 0.0
  %4691 = vmatpush1.msra.mxu0 0.0
  %4692 = vmatprep.subr.mxu0 0.0
  %4693 = vmatpush1.msra.mxu0 0.0
  %4694 = vmatprep.subr.mxu0 0.0
  %4695 = vmatpush1.msra.mxu0 0.0
  %4696 = vmatprep.subr.mxu0 0.0
  %4697 = vmatpush1.msra.mxu0 0.0
  %4698 = vmatprep.subr.mxu0 0.0
  %4699 = vmatpush1.msra.mxu0 0.0
  %4700 = vmatprep.subr.mxu0 0.0
  %4701 = vmatpush1.msra.mxu0 0.0
  %4702 = vmatprep.subr.mxu0 0.0
  %4703 = vmatpush1.msra.mxu0 0.0
  %4704 = vmatprep.subr.mxu0 0.0
  %4705 = vmatpush1.msra.mxu0 0.0
  %4706 = vmatprep.subr.mxu0 0.0
  %4707 = vmatpush1.msra.mxu0 0.0
  %4708 = vmatprep.subr.mxu0 0.0
  %4709 = vmatpush1.msra.mxu0 0.0
  %4710 = vmatprep.subr.mxu0 0.0
  %4711 = vmatpush1.msra.mxu0 0.0
  %4712 = vmatprep.subr.mxu0 0.0
  %4713 = vmatpush1.msra.mxu0 0.0
  %4714 = vmatprep.subr.mxu0 0.0
  %4715 = vmatpush1.msra.mxu0 0.0
  %4716 = vmatprep.subr.mxu0 0.0
  %4717 = vmatpush1.msra.mxu0 0.0
  %4718 = vmatprep.subr.mxu0 0.0
  %4719 = vmatpush1.msra.mxu0 0.0
  %4720 = vmatprep.subr.mxu0 0.0
  %4721 = vmatpush1.msra.mxu0 0.0
  %4722 = vmatprep.subr.mxu0 0.0
  %4723 = vmatpush1.msra.mxu0 0.0
  %4724 = vmatprep.subr.mxu0 0.0
  %4725 = vmatpush1.msra.mxu0 0.0
  %4726 = vmatprep.subr.mxu0 0.0
  %4727 = vmatpush1.msra.mxu0 0.0
  %4728 = vmatprep.subr.mxu0 0.0
  %4729 = vmatpush1.msra.mxu0 0.0
  %4730 = vmatprep.subr.mxu0 0.0
  %4731 = vmatpush1.msra.mxu0 0.0
  %4732 = vmatprep.subr.mxu0 0.0
  %4733 = vmatpush1.msra.mxu0 0.0
  %4734 = vmatprep.subr.mxu0 0.0
  %4735 = vmatpush1.msra.mxu0 0.0
  %4736 = vmatprep.subr.mxu0 0.0
  %4737 = vmatpush1.msra.mxu0 0.0
  %4738 = vmatprep.subr.mxu0 0.0
  %4739 = vmatpush1.msra.mxu0 0.0
  %4740 = vmatprep.subr.mxu0 0.0
  %4741 = vmatpush1.msra.mxu0 0.0
  %4742 = vmatprep.mubr.f32.mxu0 0.0
  %v4743 = vand.u32 %v4396, 4294901760
  %v4744 = vsub.f32 %v4396, %v4743
  %v4745 = vand.u32 %v4744, 4294901760
  %4746 = vmatmul.mubr.f32.gmra.mrb[0].mxu0 %v4745
  %v4747 = vpop.f32.mrb[0].mxu0
  %v4748 = vadd.f32 %v4664, %v4747
  %v4749 = vpop.f32.mrb[0].mxu0
  %4750 = vmatprep.mubr.f32.mxu0 0.0
  %v4751 = vand.u32 %v4399, 4294901760
  %v4752 = vsub.f32 %v4399, %v4751
  %v4753 = vand.u32 %v4752, 4294901760
  %4754 = vmatmul.mubr.f32.gmra.mrb[0].mxu0 %v4753
  %v4755 = vpop.f32.mrb[0].mxu0
  %v4756 = vadd.f32 %v4671, %v4755
  %v4757 = vpop.f32.mrb[0].mxu0
  %4758 = vdwg.mxu0
  %4759 = vmatprep.subr.mxu0 0.0
  %v4760 = vand.u32 %v3853, 4294901760
  %v4761 = vsub.f32 %v3853, %v4760
  %v4762 = vand.u32 %v4761, 4294901760
  %4763 = vmatpush1.msra.mxu0 %v4762
  %4764 = vmatprep.subr.mxu0 0.0
  %v4765 = vand.u32 %v3854, 4294901760
  %v4766 = vsub.f32 %v3854, %v4765
  %v4767 = vand.u32 %v4766, 4294901760
  %4768 = vmatpush1.msra.mxu0 %v4767
  %4769 = vmatprep.subr.mxu0 0.0
  %v4770 = vand.u32 %v3855, 4294901760
  %v4771 = vsub.f32 %v3855, %v4770
  %v4772 = vand.u32 %v4771, 4294901760
  %4773 = vmatpush1.msra.mxu0 %v4772
  %4774 = vmatprep.subr.mxu0 0.0
  %v4775 = vand.u32 %v3856, 4294901760
  %v4776 = vsub.f32 %v3856, %v4775
  %v4777 = vand.u32 %v4776, 4294901760
  %4778 = vmatpush1.msra.mxu0 %v4777
  %4779 = vmatprep.subr.mxu0 0.0
  %4780 = vmatpush1.msra.mxu0 0.0
  %4781 = vmatprep.subr.mxu0 0.0
  %4782 = vmatpush1.msra.mxu0 0.0
  %4783 = vmatprep.subr.mxu0 0.0
  %4784 = vmatpush1.msra.mxu0 0.0
  %4785 = vmatprep.subr.mxu0 0.0
  %4786 = vmatpush1.msra.mxu0 0.0
  %4787 = vmatprep.subr.mxu0 0.0
  %4788 = vmatpush1.msra.mxu0 0.0
  %4789 = vmatprep.subr.mxu0 0.0
  %4790 = vmatpush1.msra.mxu0 0.0
  %4791 = vmatprep.subr.mxu0 0.0
  %4792 = vmatpush1.msra.mxu0 0.0
  %4793 = vmatprep.subr.mxu0 0.0
  %4794 = vmatpush1.msra.mxu0 0.0
  %4795 = vmatprep.subr.mxu0 0.0
  %4796 = vmatpush1.msra.mxu0 0.0
  %4797 = vmatprep.subr.mxu0 0.0
  %4798 = vmatpush1.msra.mxu0 0.0
  %4799 = vmatprep.subr.mxu0 0.0
  %4800 = vmatpush1.msra.mxu0 0.0
  %4801 = vmatprep.subr.mxu0 0.0
  %4802 = vmatpush1.msra.mxu0 0.0
  %4803 = vmatprep.subr.mxu0 0.0
  %4804 = vmatpush1.msra.mxu0 0.0
  %4805 = vmatprep.subr.mxu0 0.0
  %4806 = vmatpush1.msra.mxu0 0.0
  %4807 = vmatprep.subr.mxu0 0.0
  %4808 = vmatpush1.msra.mxu0 0.0
  %4809 = vmatprep.subr.mxu0 0.0
  %4810 = vmatpush1.msra.mxu0 0.0
  %4811 = vmatprep.subr.mxu0 0.0
  %4812 = vmatpush1.msra.mxu0 0.0
  %4813 = vmatprep.subr.mxu0 0.0
  %4814 = vmatpush1.msra.mxu0 0.0
  %4815 = vmatprep.subr.mxu0 0.0
  %4816 = vmatpush1.msra.mxu0 0.0
  %4817 = vmatprep.subr.mxu0 0.0
  %4818 = vmatpush1.msra.mxu0 0.0
  %4819 = vmatprep.subr.mxu0 0.0
  %4820 = vmatpush1.msra.mxu0 0.0
  %4821 = vmatprep.subr.mxu0 0.0
  %4822 = vmatpush1.msra.mxu0 0.0
  %4823 = vmatprep.subr.mxu0 0.0
  %4824 = vmatpush1.msra.mxu0 0.0
  %4825 = vmatprep.subr.mxu0 0.0
  %4826 = vmatpush1.msra.mxu0 0.0
  %4827 = vmatprep.subr.mxu0 0.0
  %4828 = vmatpush1.msra.mxu0 0.0
  %4829 = vmatprep.subr.mxu0 0.0
  %4830 = vmatpush1.msra.mxu0 0.0
  %4831 = vmatprep.subr.mxu0 0.0
  %4832 = vmatpush1.msra.mxu0 0.0
  %4833 = vmatprep.subr.mxu0 0.0
  %4834 = vmatpush1.msra.mxu0 0.0
  %4835 = vmatprep.mubr.f32.mxu0 0.0
  %v4836 = vand.u32 %v4396, 4294901760
  %4837 = vmatmul.mubr.f32.gmra.mrb[0].mxu0 %v4836
  %v4838 = vpop.f32.mrb[0].mxu0
  %v4839 = vadd.f32 %v4748, %v4838
  %v4840 = vpop.f32.mrb[0].mxu0
  %4841 = vmatprep.mubr.f32.mxu0 0.0
  %v4842 = vand.u32 %v4399, 4294901760
  %4843 = vmatmul.mubr.f32.gmra.mrb[0].mxu0 %v4842
  %v4844 = vpop.f32.mrb[0].mxu0
  %v4845 = vadd.f32 %v4756, %v4844
  %v4846 = vpop.f32.mrb[0].mxu0
  %4847 = vdwg.mxu0
  %4848 = vmatprep.subr.mxu0 0.0
  %v4849 = vand.u32 %v3853, 4294901760
  %4850 = vmatpush1.msra.mxu0 %v4849
  %4851 = vmatprep.subr.mxu0 0.0
  %v4852 = vand.u32 %v3854, 4294901760
  %4853 = vmatpush1.msra.mxu0 %v4852
  %4854 = vmatprep.subr.mxu0 0.0
  %v4855 = vand.u32 %v3855, 4294901760
  %4856 = vmatpush1.msra.mxu0 %v4855
  %4857 = vmatprep.subr.mxu0 0.0
  %v4858 = vand.u32 %v3856, 4294901760
  %4859 = vmatpush1.msra.mxu0 %v4858
  %4860 = vmatprep.subr.mxu0 0.0
  %4861 = vmatpush1.msra.mxu0 0.0
  %4862 = vmatprep.subr.mxu0 0.0
  %4863 = vmatpush1.msra.mxu0 0.0
  %4864 = vmatprep.subr.mxu0 0.0
  %4865 = vmatpush1.msra.mxu0 0.0
  %4866 = vmatprep.subr.mxu0 0.0
  %4867 = vmatpush1.msra.mxu0 0.0
  %4868 = vmatprep.subr.mxu0 0.0
  %4869 = vmatpush1.msra.mxu0 0.0
  %4870 = vmatprep.subr.mxu0 0.0
  %4871 = vmatpush1.msra.mxu0 0.0
  %4872 = vmatprep.subr.mxu0 0.0
  %4873 = vmatpush1.msra.mxu0 0.0
  %4874 = vmatprep.subr.mxu0 0.0
  %4875 = vmatpush1.msra.mxu0 0.0
  %4876 = vmatprep.subr.mxu0 0.0
  %4877 = vmatpush1.msra.mxu0 0.0
  %4878 = vmatprep.subr.mxu0 0.0
  %4879 = vmatpush1.msra.mxu0 0.0
  %4880 = vmatprep.subr.mxu0 0.0
  %4881 = vmatpush1.msra.mxu0 0.0
  %4882 = vmatprep.subr.mxu0 0.0
  %4883 = vmatpush1.msra.mxu0 0.0
  %4884 = vmatprep.subr.mxu0 0.0
  %4885 = vmatpush1.msra.mxu0 0.0
  %4886 = vmatprep.subr.mxu0 0.0
  %4887 = vmatpush1.msra.mxu0 0.0
  %4888 = vmatprep.subr.mxu0 0.0
  %4889 = vmatpush1.msra.mxu0 0.0
  %4890 = vmatprep.subr.mxu0 0.0
  %4891 = vmatpush1.msra.mxu0 0.0
  %4892 = vmatprep.subr.mxu0 0.0
  %4893 = vmatpush1.msra.mxu0 0.0
  %4894 = vmatprep.subr.mxu0 0.0
  %4895 = vmatpush1.msra.mxu0 0.0
  %4896 = vmatprep.subr.mxu0 0.0
  %4897 = vmatpush1.msra.mxu0 0.0
  %4898 = vmatprep.subr.mxu0 0.0
  %4899 = vmatpush1.msra.mxu0 0.0
  %4900 = vmatprep.subr.mxu0 0.0
  %4901 = vmatpush1.msra.mxu0 0.0
  %4902 = vmatprep.subr.mxu0 0.0
  %4903 = vmatpush1.msra.mxu0 0.0
  %4904 = vmatprep.subr.mxu0 0.0
  %4905 = vmatpush1.msra.mxu0 0.0
  %4906 = vmatprep.subr.mxu0 0.0
  %4907 = vmatpush1.msra.mxu0 0.0
  %4908 = vmatprep.subr.mxu0 0.0
  %4909 = vmatpush1.msra.mxu0 0.0
  %4910 = vmatprep.subr.mxu0 0.0
  %4911 = vmatpush1.msra.mxu0 0.0
  %4912 = vmatprep.subr.mxu0 0.0
  %4913 = vmatpush1.msra.mxu0 0.0
  %4914 = vmatprep.subr.mxu0 0.0
  %4915 = vmatpush1.msra.mxu0 0.0
  %4916 = vmatprep.mubr.f32.mxu0 0.0
  %v4917 = vand.u32 %v4396, 4294901760
  %4918 = vmatmul.mubr.f32.gmra.mrb[0].mxu0 %v4917
  %v4919 = vpop.f32.mrb[0].mxu0
  %v4920 = vadd.f32 %v4839, %v4919
  %v4921 = vpop.f32.mrb[0].mxu0
  %4922 = vmatprep.mubr.f32.mxu0 0.0
  %v4923 = vand.u32 %v4399, 4294901760
  %4924 = vmatmul.mubr.f32.gmra.mrb[0].mxu0 %v4923
  %v4925 = vpop.f32.mrb[0].mxu0
  %v4926 = vadd.f32 %v4845, %v4925
  %v4927 = vpop.f32.mrb[0].mxu0
  %4928 = vdwg.mxu0
  %v4929 = vmax.f32 %v4384, %v4920
  %v4930 = vmax.f32 %v4390, %v4926
  %v4931 = vld [vmem:[%s11] sm:$0xff]
  %v4932 = vld [vmem:[%s11 + $0x8] sm:$0xff]
  %vm4933 = vcmask 130048
  %v4935 = vsel %vm4933, %v4931, 0
  %v4938 = vsel %vm4933, %v4932, 0
  %4940 = vmatprep.subr.mxu0 0.0
  %v4941 = vand.u32 %v4929, 4294901760
  %4942 = vmatpush1.msra.mxu0 %v4941
  %4943 = vmatprep.subr.mxu0 0.0
  %v4944 = vand.u32 %v4930, 4294901760
  %4945 = vmatpush1.msra.mxu0 %v4944
  %4946 = vmatprep.subr.mxu0 0.0
  %4947 = vmatpush1.msra.mxu0 0.0
  %4948 = vmatprep.subr.mxu0 0.0
  %4949 = vmatpush1.msra.mxu0 0.0
  %4950 = vmatprep.subr.mxu0 0.0
  %4951 = vmatpush1.msra.mxu0 0.0
  %4952 = vmatprep.subr.mxu0 0.0
  %4953 = vmatpush1.msra.mxu0 0.0
  %4954 = vmatprep.subr.mxu0 0.0
  %4955 = vmatpush1.msra.mxu0 0.0
  %4956 = vmatprep.subr.mxu0 0.0
  %4957 = vmatpush1.msra.mxu0 0.0
  %4958 = vmatprep.subr.mxu0 0.0
  %4959 = vmatpush1.msra.mxu0 0.0
  %4960 = vmatprep.subr.mxu0 0.0
  %4961 = vmatpush1.msra.mxu0 0.0
  %4962 = vmatprep.subr.mxu0 0.0
  %4963 = vmatpush1.msra.mxu0 0.0
  %4964 = vmatprep.subr.mxu0 0.0
  %4965 = vmatpush1.msra.mxu0 0.0
  %4966 = vmatprep.subr.mxu0 0.0
  %4967 = vmatpush1.msra.mxu0 0.0
  %4968 = vmatprep.subr.mxu0 0.0
  %4969 = vmatpush1.msra.mxu0 0.0
  %4970 = vmatprep.subr.mxu0 0.0
  %4971 = vmatpush1.msra.mxu0 0.0
  %4972 = vmatprep.subr.mxu0 0.0
  %4973 = vmatpush1.msra.mxu0 0.0
  %4974 = vmatprep.subr.mxu0 0.0
  %4975 = vmatpush1.msra.mxu0 0.0
  %4976 = vmatprep.subr.mxu0 0.0
  %4977 = vmatpush1.msra.mxu0 0.0
  %4978 = vmatprep.subr.mxu0 0.0
  %4979 = vmatpush1.msra.mxu0 0.0
  %4980 = vmatprep.subr.mxu0 0.0
  %4981 = vmatpush1.msra.mxu0 0.0
  %4982 = vmatprep.subr.mxu0 0.0
  %4983 = vmatpush1.msra.mxu0 0.0
  %4984 = vmatprep.subr.mxu0 0.0
  %4985 = vmatpush1.msra.mxu0 0.0
  %4986 = vmatprep.subr.mxu0 0.0
  %4987 = vmatpush1.msra.mxu0 0.0
  %4988 = vmatprep.subr.mxu0 0.0
  %4989 = vmatpush1.msra.mxu0 0.0
  %4990 = vmatprep.subr.mxu0 0.0
  %4991 = vmatpush1.msra.mxu0 0.0
  %4992 = vmatprep.subr.mxu0 0.0
  %4993 = vmatpush1.msra.mxu0 0.0
  %4994 = vmatprep.subr.mxu0 0.0
  %4995 = vmatpush1.msra.mxu0 0.0
  %4996 = vmatprep.subr.mxu0 0.0
  %4997 = vmatpush1.msra.mxu0 0.0
  %4998 = vmatprep.subr.mxu0 0.0
  %4999 = vmatpush1.msra.mxu0 0.0
  %5000 = vmatprep.subr.mxu0 0.0
  %5001 = vmatpush1.msra.mxu0 0.0
  %5002 = vmatprep.subr.mxu0 0.0
  %5003 = vmatpush1.msra.mxu0 0.0
  %5004 = vmatprep.subr.mxu0 0.0
  %5005 = vmatpush1.msra.mxu0 0.0
  %5006 = vmatprep.mubr.f32.mxu0 0.0
  %v5007 = vand.u32 %v4935, 4294901760
  %v5008 = vsub.f32 %v4935, %v5007
  %v5009 = vand.u32 %v5008, 4294901760
  %v5010 = vsub.f32 %v5008, %v5009
  %v5011 = vand.u32 %v5010, 4294901760
  %5012 = vmatmul.mubr.f32.gmra.mrb[0].mxu0 %v5011
  %v5013 = vpop.f32.mrb[0].mxu0
  %v5014 = vadd.f32 0.0, %v5013
  %v5015 = vpop.f32.mrb[0].mxu0
  %5016 = vmatprep.mubr.f32.mxu0 0.0
  %v5017 = vand.u32 %v4938, 4294901760
  %v5018 = vsub.f32 %v4938, %v5017
  %v5019 = vand.u32 %v5018, 4294901760
  %v5020 = vsub.f32 %v5018, %v5019
  %v5021 = vand.u32 %v5020, 4294901760
  %5022 = vmatmul.mubr.f32.gmra.mrb[0].mxu0 %v5021
  %v5023 = vpop.f32.mrb[0].mxu0
  %v5024 = vadd.f32 0.0, %v5023
  %v5025 = vpop.f32.mrb[0].mxu0
  %5026 = vdwg.mxu0
  %5027 = vmatprep.subr.mxu0 0.0
  %v5028 = vand.u32 %v4929, 4294901760
  %v5029 = vsub.f32 %v4929, %v5028
  %v5030 = vand.u32 %v5029, 4294901760
  %v5031 = vsub.f32 %v5029, %v5030
  %v5032 = vand.u32 %v5031, 4294901760
  %5033 = vmatpush1.msra.mxu0 %v5032
  %5034 = vmatprep.subr.mxu0 0.0
  %v5035 = vand.u32 %v4930, 4294901760
  %v5036 = vsub.f32 %v4930, %v5035
  %v5037 = vand.u32 %v5036, 4294901760
  %v5038 = vsub.f32 %v5036, %v5037
  %v5039 = vand.u32 %v5038, 4294901760
  %5040 = vmatpush1.msra.mxu0 %v5039
  %5041 = vmatprep.subr.mxu0 0.0
  %5042 = vmatpush1.msra.mxu0 0.0
  %5043 = vmatprep.subr.mxu0 0.0
  %5044 = vmatpush1.msra.mxu0 0.0
  %5045 = vmatprep.subr.mxu0 0.0
  %5046 = vmatpush1.msra.mxu0 0.0
  %5047 = vmatprep.subr.mxu0 0.0
  %5048 = vmatpush1.msra.mxu0 0.0
  %5049 = vmatprep.subr.mxu0 0.0
  %5050 = vmatpush1.msra.mxu0 0.0
  %5051 = vmatprep.subr.mxu0 0.0
  %5052 = vmatpush1.msra.mxu0 0.0
  %5053 = vmatprep.subr.mxu0 0.0
  %5054 = vmatpush1.msra.mxu0 0.0
  %5055 = vmatprep.subr.mxu0 0.0
  %5056 = vmatpush1.msra.mxu0 0.0
  %5057 = vmatprep.subr.mxu0 0.0
  %5058 = vmatpush1.msra.mxu0 0.0
  %5059 = vmatprep.subr.mxu0 0.0
  %5060 = vmatpush1.msra.mxu0 0.0
  %5061 = vmatprep.subr.mxu0 0.0
  %5062 = vmatpush1.msra.mxu0 0.0
  %5063 = vmatprep.subr.mxu0 0.0
  %5064 = vmatpush1.msra.mxu0 0.0
  %5065 = vmatprep.subr.mxu0 0.0
  %5066 = vmatpush1.msra.mxu0 0.0
  %5067 = vmatprep.subr.mxu0 0.0
  %5068 = vmatpush1.msra.mxu0 0.0
  %5069 = vmatprep.subr.mxu0 0.0
  %5070 = vmatpush1.msra.mxu0 0.0
  %5071 = vmatprep.subr.mxu0 0.0
  %5072 = vmatpush1.msra.mxu0 0.0
  %5073 = vmatprep.subr.mxu0 0.0
  %5074 = vmatpush1.msra.mxu0 0.0
  %5075 = vmatprep.subr.mxu0 0.0
  %5076 = vmatpush1.msra.mxu0 0.0
  %5077 = vmatprep.subr.mxu0 0.0
  %5078 = vmatpush1.msra.mxu0 0.0
  %5079 = vmatprep.subr.mxu0 0.0
  %5080 = vmatpush1.msra.mxu0 0.0
  %5081 = vmatprep.subr.mxu0 0.0
  %5082 = vmatpush1.msra.mxu0 0.0
  %5083 = vmatprep.subr.mxu0 0.0
  %5084 = vmatpush1.msra.mxu0 0.0
  %5085 = vmatprep.subr.mxu0 0.0
  %5086 = vmatpush1.msra.mxu0 0.0
  %5087 = vmatprep.subr.mxu0 0.0
  %5088 = vmatpush1.msra.mxu0 0.0
  %5089 = vmatprep.subr.mxu0 0.0
  %5090 = vmatpush1.msra.mxu0 0.0
  %5091 = vmatprep.subr.mxu0 0.0
  %5092 = vmatpush1.msra.mxu0 0.0
  %5093 = vmatprep.subr.mxu0 0.0
  %5094 = vmatpush1.msra.mxu0 0.0
  %5095 = vmatprep.subr.mxu0 0.0
  %5096 = vmatpush1.msra.mxu0 0.0
  %5097 = vmatprep.subr.mxu0 0.0
  %5098 = vmatpush1.msra.mxu0 0.0
  %5099 = vmatprep.subr.mxu0 0.0
  %5100 = vmatpush1.msra.mxu0 0.0
  %5101 = vmatprep.mubr.f32.mxu0 0.0
  %v5102 = vand.u32 %v4935, 4294901760
  %5103 = vmatmul.mubr.f32.gmra.mrb[0].mxu0 %v5102
  %v5104 = vpop.f32.mrb[0].mxu0
  %v5105 = vadd.f32 %v5014, %v5104
  %v5106 = vpop.f32.mrb[0].mxu0
  %5107 = vmatprep.mubr.f32.mxu0 0.0
  %v5108 = vand.u32 %v4938, 4294901760
  %5109 = vmatmul.mubr.f32.gmra.mrb[0].mxu0 %v5108
  %v5110 = vpop.f32.mrb[0].mxu0
  %v5111 = vadd.f32 %v5024, %v5110
  %v5112 = vpop.f32.mrb[0].mxu0
  %5113 = vdwg.mxu0
  %5114 = vmatprep.subr.mxu0 0.0
  %v5115 = vand.u32 %v4929, 4294901760
  %v5116 = vsub.f32 %v4929, %v5115
  %5117 = vmatpush1.msra.mxu0 %v5116
  %5118 = vmatprep.subr.mxu0 0.0
  %v5119 = vand.u32 %v4930, 4294901760
  %v5120 = vsub.f32 %v4930, %v5119
  %5121 = vmatpush1.msra.mxu0 %v5120
  %5122 = vmatprep.subr.mxu0 0.0
  %5123 = vmatpush1.msra.mxu0 0.0
  %5124 = vmatprep.subr.mxu0 0.0
  %5125 = vmatpush1.msra.mxu0 0.0
  %5126 = vmatprep.subr.mxu0 0.0
  %5127 = vmatpush1.msra.mxu0 0.0
  %5128 = vmatprep.subr.mxu0 0.0
  %5129 = vmatpush1.msra.mxu0 0.0
  %5130 = vmatprep.subr.mxu0 0.0
  %5131 = vmatpush1.msra.mxu0 0.0
  %5132 = vmatprep.subr.mxu0 0.0
  %5133 = vmatpush1.msra.mxu0 0.0
  %5134 = vmatprep.subr.mxu0 0.0
  %5135 = vmatpush1.msra.mxu0 0.0
  %5136 = vmatprep.subr.mxu0 0.0
  %5137 = vmatpush1.msra.mxu0 0.0
  %5138 = vmatprep.subr.mxu0 0.0
  %5139 = vmatpush1.msra.mxu0 0.0
  %5140 = vmatprep.subr.mxu0 0.0
  %5141 = vmatpush1.msra.mxu0 0.0
  %5142 = vmatprep.subr.mxu0 0.0
  %5143 = vmatpush1.msra.mxu0 0.0
  %5144 = vmatprep.subr.mxu0 0.0
  %5145 = vmatpush1.msra.mxu0 0.0
  %5146 = vmatprep.subr.mxu0 0.0
  %5147 = vmatpush1.msra.mxu0 0.0
  %5148 = vmatprep.subr.mxu0 0.0
  %5149 = vmatpush1.msra.mxu0 0.0
  %5150 = vmatprep.subr.mxu0 0.0
  %5151 = vmatpush1.msra.mxu0 0.0
  %5152 = vmatprep.subr.mxu0 0.0
  %5153 = vmatpush1.msra.mxu0 0.0
  %5154 = vmatprep.subr.mxu0 0.0
  %5155 = vmatpush1.msra.mxu0 0.0
  %5156 = vmatprep.subr.mxu0 0.0
  %5157 = vmatpush1.msra.mxu0 0.0
  %5158 = vmatprep.subr.mxu0 0.0
  %5159 = vmatpush1.msra.mxu0 0.0
  %5160 = vmatprep.subr.mxu0 0.0
  %5161 = vmatpush1.msra.mxu0 0.0
  %5162 = vmatprep.subr.mxu0 0.0
  %5163 = vmatpush1.msra.mxu0 0.0
  %5164 = vmatprep.subr.mxu0 0.0
  %5165 = vmatpush1.msra.mxu0 0.0
  %5166 = vmatprep.subr.mxu0 0.0
  %5167 = vmatpush1.msra.mxu0 0.0
  %5168 = vmatprep.subr.mxu0 0.0
  %5169 = vmatpush1.msra.mxu0 0.0
  %5170 = vmatprep.subr.mxu0 0.0
  %5171 = vmatpush1.msra.mxu0 0.0
  %5172 = vmatprep.subr.mxu0 0.0
  %5173 = vmatpush1.msra.mxu0 0.0
  %5174 = vmatprep.subr.mxu0 0.0
  %5175 = vmatpush1.msra.mxu0 0.0
  %5176 = vmatprep.subr.mxu0 0.0
  %5177 = vmatpush1.msra.mxu0 0.0
  %5178 = vmatprep.subr.mxu0 0.0
  %5179 = vmatpush1.msra.mxu0 0.0
  %5180 = vmatprep.subr.mxu0 0.0
  %5181 = vmatpush1.msra.mxu0 0.0
  %5182 = vmatprep.mubr.f32.mxu0 0.0
  %v5183 = vand.u32 %v4935, 4294901760
  %v5184 = vsub.f32 %v4935, %v5183
  %5185 = vmatmul.mubr.f32.gmra.mrb[0].mxu0 %v5184
  %v5186 = vpop.f32.mrb[0].mxu0
  %v5187 = vadd.f32 %v5105, %v5186
  %v5188 = vpop.f32.mrb[0].mxu0
  %5189 = vmatprep.mubr.f32.mxu0 0.0
  %v5190 = vand.u32 %v4938, 4294901760
  %v5191 = vsub.f32 %v4938, %v5190
  %5192 = vmatmul.mubr.f32.gmra.mrb[0].mxu0 %v5191
  %v5193 = vpop.f32.mrb[0].mxu0
  %v5194 = vadd.f32 %v5111, %v5193
  %v5195 = vpop.f32.mrb[0].mxu0
  %5196 = vdwg.mxu0
  %5197 = vmatprep.subr.mxu0 0.0
  %v5198 = vand.u32 %v4929, 4294901760
  %5199 = vmatpush1.msra.mxu0 %v5198
  %5200 = vmatprep.subr.mxu0 0.0
  %v5201 = vand.u32 %v4930, 4294901760
  %5202 = vmatpush1.msra.mxu0 %v5201
  %5203 = vmatprep.subr.mxu0 0.0
  %5204 = vmatpush1.msra.mxu0 0.0
  %5205 = vmatprep.subr.mxu0 0.0
  %5206 = vmatpush1.msra.mxu0 0.0
  %5207 = vmatprep.subr.mxu0 0.0
  %5208 = vmatpush1.msra.mxu0 0.0
  %5209 = vmatprep.subr.mxu0 0.0
  %5210 = vmatpush1.msra.mxu0 0.0
  %5211 = vmatprep.subr.mxu0 0.0
  %5212 = vmatpush1.msra.mxu0 0.0
  %5213 = vmatprep.subr.mxu0 0.0
  %5214 = vmatpush1.msra.mxu0 0.0
  %5215 = vmatprep.subr.mxu0 0.0
  %5216 = vmatpush1.msra.mxu0 0.0
  %5217 = vmatprep.subr.mxu0 0.0
  %5218 = vmatpush1.msra.mxu0 0.0
  %5219 = vmatprep.subr.mxu0 0.0
  %5220 = vmatpush1.msra.mxu0 0.0
  %5221 = vmatprep.subr.mxu0 0.0
  %5222 = vmatpush1.msra.mxu0 0.0
  %5223 = vmatprep.subr.mxu0 0.0
  %5224 = vmatpush1.msra.mxu0 0.0
  %5225 = vmatprep.subr.mxu0 0.0
  %5226 = vmatpush1.msra.mxu0 0.0
  %5227 = vmatprep.subr.mxu0 0.0
  %5228 = vmatpush1.msra.mxu0 0.0
  %5229 = vmatprep.subr.mxu0 0.0
  %5230 = vmatpush1.msra.mxu0 0.0
  %5231 = vmatprep.subr.mxu0 0.0
  %5232 = vmatpush1.msra.mxu0 0.0
  %5233 = vmatprep.subr.mxu0 0.0
  %5234 = vmatpush1.msra.mxu0 0.0
  %5235 = vmatprep.subr.mxu0 0.0
  %5236 = vmatpush1.msra.mxu0 0.0
  %5237 = vmatprep.subr.mxu0 0.0
  %5238 = vmatpush1.msra.mxu0 0.0
  %5239 = vmatprep.subr.mxu0 0.0
  %5240 = vmatpush1.msra.mxu0 0.0
  %5241 = vmatprep.subr.mxu0 0.0
  %5242 = vmatpush1.msra.mxu0 0.0
  %5243 = vmatprep.subr.mxu0 0.0
  %5244 = vmatpush1.msra.mxu0 0.0
  %5245 = vmatprep.subr.mxu0 0.0
  %5246 = vmatpush1.msra.mxu0 0.0
  %5247 = vmatprep.subr.mxu0 0.0
  %5248 = vmatpush1.msra.mxu0 0.0
  %5249 = vmatprep.subr.mxu0 0.0
  %5250 = vmatpush1.msra.mxu0 0.0
  %5251 = vmatprep.subr.mxu0 0.0
  %5252 = vmatpush1.msra.mxu0 0.0
  %5253 = vmatprep.subr.mxu0 0.0
  %5254 = vmatpush1.msra.mxu0 0.0
  %5255 = vmatprep.subr.mxu0 0.0
  %5256 = vmatpush1.msra.mxu0 0.0
  %5257 = vmatprep.subr.mxu0 0.0
  %5258 = vmatpush1.msra.mxu0 0.0
  %5259 = vmatprep.subr.mxu0 0.0
  %5260 = vmatpush1.msra.mxu0 0.0
  %5261 = vmatprep.subr.mxu0 0.0
  %5262 = vmatpush1.msra.mxu0 0.0
  %5263 = vmatprep.mubr.f32.mxu0 0.0
  %v5264 = vand.u32 %v4935, 4294901760
  %v5265 = vsub.f32 %v4935, %v5264
  %v5266 = vand.u32 %v5265, 4294901760
  %5267 = vmatmul.mubr.f32.gmra.mrb[0].mxu0 %v5266
  %v5268 = vpop.f32.mrb[0].mxu0
  %v5269 = vadd.f32 %v5187, %v5268
  %v5270 = vpop.f32.mrb[0].mxu0
  %5271 = vmatprep.mubr.f32.mxu0 0.0
  %v5272 = vand.u32 %v4938, 4294901760
  %v5273 = vsub.f32 %v4938, %v5272
  %v5274 = vand.u32 %v5273, 4294901760
  %5275 = vmatmul.mubr.f32.gmra.mrb[0].mxu0 %v5274
  %v5276 = vpop.f32.mrb[0].mxu0
  %v5277 = vadd.f32 %v5194, %v5276
  %v5278 = vpop.f32.mrb[0].mxu0
  %5279 = vdwg.mxu0
  %5280 = vmatprep.subr.mxu0 0.0
  %v5281 = vand.u32 %v4929, 4294901760
  %v5282 = vsub.f32 %v4929, %v5281
  %v5283 = vand.u32 %v5282, 4294901760
  %5284 = vmatpush1.msra.mxu0 %v5283
  %5285 = vmatprep.subr.mxu0 0.0
  %v5286 = vand.u32 %v4930, 4294901760
  %v5287 = vsub.f32 %v4930, %v5286
  %v5288 = vand.u32 %v5287, 4294901760
  %5289 = vmatpush1.msra.mxu0 %v5288
  %5290 = vmatprep.subr.mxu0 0.0
  %5291 = vmatpush1.msra.mxu0 0.0
  %5292 = vmatprep.subr.mxu0 0.0
  %5293 = vmatpush1.msra.mxu0 0.0
  %5294 = vmatprep.subr.mxu0 0.0
  %5295 = vmatpush1.msra.mxu0 0.0
  %5296 = vmatprep.subr.mxu0 0.0
  %5297 = vmatpush1.msra.mxu0 0.0
  %5298 = vmatprep.subr.mxu0 0.0
  %5299 = vmatpush1.msra.mxu0 0.0
  %5300 = vmatprep.subr.mxu0 0.0
  %5301 = vmatpush1.msra.mxu0 0.0
  %5302 = vmatprep.subr.mxu0 0.0
  %5303 = vmatpush1.msra.mxu0 0.0
  %5304 = vmatprep.subr.mxu0 0.0
  %5305 = vmatpush1.msra.mxu0 0.0
  %5306 = vmatprep.subr.mxu0 0.0
  %5307 = vmatpush1.msra.mxu0 0.0
  %5308 = vmatprep.subr.mxu0 0.0
  %5309 = vmatpush1.msra.mxu0 0.0
  %5310 = vmatprep.subr.mxu0 0.0
  %5311 = vmatpush1.msra.mxu0 0.0
  %5312 = vmatprep.subr.mxu0 0.0
  %5313 = vmatpush1.msra.mxu0 0.0
  %5314 = vmatprep.subr.mxu0 0.0
  %5315 = vmatpush1.msra.mxu0 0.0
  %5316 = vmatprep.subr.mxu0 0.0
  %5317 = vmatpush1.msra.mxu0 0.0
  %5318 = vmatprep.subr.mxu0 0.0
  %5319 = vmatpush1.msra.mxu0 0.0
  %5320 = vmatprep.subr.mxu0 0.0
  %5321 = vmatpush1.msra.mxu0 0.0
  %5322 = vmatprep.subr.mxu0 0.0
  %5323 = vmatpush1.msra.mxu0 0.0
  %5324 = vmatprep.subr.mxu0 0.0
  %5325 = vmatpush1.msra.mxu0 0.0
  %5326 = vmatprep.subr.mxu0 0.0
  %5327 = vmatpush1.msra.mxu0 0.0
  %5328 = vmatprep.subr.mxu0 0.0
  %5329 = vmatpush1.msra.mxu0 0.0
  %5330 = vmatprep.subr.mxu0 0.0
  %5331 = vmatpush1.msra.mxu0 0.0
  %5332 = vmatprep.subr.mxu0 0.0
  %5333 = vmatpush1.msra.mxu0 0.0
  %5334 = vmatprep.subr.mxu0 0.0
  %5335 = vmatpush1.msra.mxu0 0.0
  %5336 = vmatprep.subr.mxu0 0.0
  %5337 = vmatpush1.msra.mxu0 0.0
  %5338 = vmatprep.subr.mxu0 0.0
  %5339 = vmatpush1.msra.mxu0 0.0
  %5340 = vmatprep.subr.mxu0 0.0
  %5341 = vmatpush1.msra.mxu0 0.0
  %5342 = vmatprep.subr.mxu0 0.0
  %5343 = vmatpush1.msra.mxu0 0.0
  %5344 = vmatprep.subr.mxu0 0.0
  %5345 = vmatpush1.msra.mxu0 0.0
  %5346 = vmatprep.subr.mxu0 0.0
  %5347 = vmatpush1.msra.mxu0 0.0
  %5348 = vmatprep.subr.mxu0 0.0
  %5349 = vmatpush1.msra.mxu0 0.0
  %5350 = vmatprep.mubr.f32.mxu0 0.0
  %v5351 = vand.u32 %v4935, 4294901760
  %5352 = vmatmul.mubr.f32.gmra.mrb[0].mxu0 %v5351
  %v5353 = vpop.f32.mrb[0].mxu0
  %v5354 = vadd.f32 %v5269, %v5353
  %v5355 = vpop.f32.mrb[0].mxu0
  %5356 = vmatprep.mubr.f32.mxu0 0.0
  %v5357 = vand.u32 %v4938, 4294901760
  %5358 = vmatmul.mubr.f32.gmra.mrb[0].mxu0 %v5357
  %v5359 = vpop.f32.mrb[0].mxu0
  %v5360 = vadd.f32 %v5277, %v5359
  %v5361 = vpop.f32.mrb[0].mxu0
  %5362 = vdwg.mxu0
  %5363 = vmatprep.subr.mxu0 0.0
  %v5364 = vand.u32 %v4929, 4294901760
  %5365 = vmatpush1.msra.mxu0 %v5364
  %5366 = vmatprep.subr.mxu0 0.0
  %v5367 = vand.u32 %v4930, 4294901760
  %5368 = vmatpush1.msra.mxu0 %v5367
  %5369 = vmatprep.subr.mxu0 0.0
  %5370 = vmatpush1.msra.mxu0 0.0
  %5371 = vmatprep.subr.mxu0 0.0
  %5372 = vmatpush1.msra.mxu0 0.0
  %5373 = vmatprep.subr.mxu0 0.0
  %5374 = vmatpush1.msra.mxu0 0.0
  %5375 = vmatprep.subr.mxu0 0.0
  %5376 = vmatpush1.msra.mxu0 0.0
  %5377 = vmatprep.subr.mxu0 0.0
  %5378 = vmatpush1.msra.mxu0 0.0
  %5379 = vmatprep.subr.mxu0 0.0
  %5380 = vmatpush1.msra.mxu0 0.0
  %5381 = vmatprep.subr.mxu0 0.0
  %5382 = vmatpush1.msra.mxu0 0.0
  %5383 = vmatprep.subr.mxu0 0.0
  %5384 = vmatpush1.msra.mxu0 0.0
  %5385 = vmatprep.subr.mxu0 0.0
  %5386 = vmatpush1.msra.mxu0 0.0
  %5387 = vmatprep.subr.mxu0 0.0
  %5388 = vmatpush1.msra.mxu0 0.0
  %5389 = vmatprep.subr.mxu0 0.0
  %5390 = vmatpush1.msra.mxu0 0.0
  %5391 = vmatprep.subr.mxu0 0.0
  %5392 = vmatpush1.msra.mxu0 0.0
  %5393 = vmatprep.subr.mxu0 0.0
  %5394 = vmatpush1.msra.mxu0 0.0
  %5395 = vmatprep.subr.mxu0 0.0
  %5396 = vmatpush1.msra.mxu0 0.0
  %5397 = vmatprep.subr.mxu0 0.0
  %5398 = vmatpush1.msra.mxu0 0.0
  %5399 = vmatprep.subr.mxu0 0.0
  %5400 = vmatpush1.msra.mxu0 0.0
  %5401 = vmatprep.subr.mxu0 0.0
  %5402 = vmatpush1.msra.mxu0 0.0
  %5403 = vmatprep.subr.mxu0 0.0
  %5404 = vmatpush1.msra.mxu0 0.0
  %5405 = vmatprep.subr.mxu0 0.0
  %5406 = vmatpush1.msra.mxu0 0.0
  %5407 = vmatprep.subr.mxu0 0.0
  %5408 = vmatpush1.msra.mxu0 0.0
  %5409 = vmatprep.subr.mxu0 0.0
  %5410 = vmatpush1.msra.mxu0 0.0
  %5411 = vmatprep.subr.mxu0 0.0
  %5412 = vmatpush1.msra.mxu0 0.0
  %5413 = vmatprep.subr.mxu0 0.0
  %5414 = vmatpush1.msra.mxu0 0.0
  %5415 = vmatprep.subr.mxu0 0.0
  %5416 = vmatpush1.msra.mxu0 0.0
  %5417 = vmatprep.subr.mxu0 0.0
  %5418 = vmatpush1.msra.mxu0 0.0
  %5419 = vmatprep.subr.mxu0 0.0
  %5420 = vmatpush1.msra.mxu0 0.0
  %5421 = vmatprep.subr.mxu0 0.0
  %5422 = vmatpush1.msra.mxu0 0.0
  %5423 = vmatprep.subr.mxu0 0.0
  %5424 = vmatpush1.msra.mxu0 0.0
  %5425 = vmatprep.subr.mxu0 0.0
  %5426 = vmatpush1.msra.mxu0 0.0
  %5427 = vmatprep.subr.mxu0 0.0
  %5428 = vmatpush1.msra.mxu0 0.0
  %5429 = vmatprep.mubr.f32.mxu0 0.0
  %v5430 = vand.u32 %v4935, 4294901760
  %5431 = vmatmul.mubr.f32.gmra.mrb[0].mxu0 %v5430
  %v5432 = vpop.f32.mrb[0].mxu0
  %v5433 = vadd.f32 %v5354, %v5432
  %v5434 = vpop.f32.mrb[0].mxu0
  %5435 = vmatprep.mubr.f32.mxu0 0.0
  %v5436 = vand.u32 %v4938, 4294901760
  %5437 = vmatmul.mubr.f32.gmra.mrb[0].mxu0 %v5436
  %v5438 = vpop.f32.mrb[0].mxu0
  %v5439 = vadd.f32 %v5360, %v5438
  %v5440 = vpop.f32.mrb[0].mxu0
  %5441 = vdwg.mxu0
  %v5442 = vld [vmem:[%s12] sm:$0xff]
  %v5443 = vld [vmem:[%s12 + $0x8] sm:$0xff]
  %v5445 = vsel %vm4933, %v5442, 0
  %v5448 = vsel %vm4933, %v5443, 0
  %5450 = vmatprep.subr.mxu0 0.0
  %v5451 = vand.u32 %v4929, 4294901760
  %5452 = vmatpush1.msra.mxu0 %v5451
  %5453 = vmatprep.subr.mxu0 0.0
  %v5454 = vand.u32 %v4930, 4294901760
  %5455 = vmatpush1.msra.mxu0 %v5454
  %5456 = vmatprep.subr.mxu0 0.0
  %5457 = vmatpush1.msra.mxu0 0.0
  %5458 = vmatprep.subr.mxu0 0.0
  %5459 = vmatpush1.msra.mxu0 0.0
  %5460 = vmatprep.subr.mxu0 0.0
  %5461 = vmatpush1.msra.mxu0 0.0
  %5462 = vmatprep.subr.mxu0 0.0
  %5463 = vmatpush1.msra.mxu0 0.0
  %5464 = vmatprep.subr.mxu0 0.0
  %5465 = vmatpush1.msra.mxu0 0.0
  %5466 = vmatprep.subr.mxu0 0.0
  %5467 = vmatpush1.msra.mxu0 0.0
  %5468 = vmatprep.subr.mxu0 0.0
  %5469 = vmatpush1.msra.mxu0 0.0
  %5470 = vmatprep.subr.mxu0 0.0
  %5471 = vmatpush1.msra.mxu0 0.0
  %5472 = vmatprep.subr.mxu0 0.0
  %5473 = vmatpush1.msra.mxu0 0.0
  %5474 = vmatprep.subr.mxu0 0.0
  %5475 = vmatpush1.msra.mxu0 0.0
  %5476 = vmatprep.subr.mxu0 0.0
  %5477 = vmatpush1.msra.mxu0 0.0
  %5478 = vmatprep.subr.mxu0 0.0
  %5479 = vmatpush1.msra.mxu0 0.0
  %5480 = vmatprep.subr.mxu0 0.0
  %5481 = vmatpush1.msra.mxu0 0.0
  %5482 = vmatprep.subr.mxu0 0.0
  %5483 = vmatpush1.msra.mxu0 0.0
  %5484 = vmatprep.subr.mxu0 0.0
  %5485 = vmatpush1.msra.mxu0 0.0
  %5486 = vmatprep.subr.mxu0 0.0
  %5487 = vmatpush1.msra.mxu0 0.0
  %5488 = vmatprep.subr.mxu0 0.0
  %5489 = vmatpush1.msra.mxu0 0.0
  %5490 = vmatprep.subr.mxu0 0.0
  %5491 = vmatpush1.msra.mxu0 0.0
  %5492 = vmatprep.subr.mxu0 0.0
  %5493 = vmatpush1.msra.mxu0 0.0
  %5494 = vmatprep.subr.mxu0 0.0
  %5495 = vmatpush1.msra.mxu0 0.0
  %5496 = vmatprep.subr.mxu0 0.0
  %5497 = vmatpush1.msra.mxu0 0.0
  %5498 = vmatprep.subr.mxu0 0.0
  %5499 = vmatpush1.msra.mxu0 0.0
  %5500 = vmatprep.subr.mxu0 0.0
  %5501 = vmatpush1.msra.mxu0 0.0
  %5502 = vmatprep.subr.mxu0 0.0
  %5503 = vmatpush1.msra.mxu0 0.0
  %5504 = vmatprep.subr.mxu0 0.0
  %5505 = vmatpush1.msra.mxu0 0.0
  %5506 = vmatprep.subr.mxu0 0.0
  %5507 = vmatpush1.msra.mxu0 0.0
  %5508 = vmatprep.subr.mxu0 0.0
  %5509 = vmatpush1.msra.mxu0 0.0
  %5510 = vmatprep.subr.mxu0 0.0
  %5511 = vmatpush1.msra.mxu0 0.0
  %5512 = vmatprep.subr.mxu0 0.0
  %5513 = vmatpush1.msra.mxu0 0.0
  %5514 = vmatprep.subr.mxu0 0.0
  %5515 = vmatpush1.msra.mxu0 0.0
  %5516 = vmatprep.mubr.f32.mxu0 0.0
  %v5517 = vand.u32 %v5445, 4294901760
  %v5518 = vsub.f32 %v5445, %v5517
  %v5519 = vand.u32 %v5518, 4294901760
  %v5520 = vsub.f32 %v5518, %v5519
  %v5521 = vand.u32 %v5520, 4294901760
  %5522 = vmatmul.mubr.f32.gmra.mrb[0].mxu0 %v5521
  %v5523 = vpop.f32.mrb[0].mxu0
  %v5524 = vadd.f32 0.0, %v5523
  %v5525 = vpop.f32.mrb[0].mxu0
  %5526 = vmatprep.mubr.f32.mxu0 0.0
  %v5527 = vand.u32 %v5448, 4294901760
  %v5528 = vsub.f32 %v5448, %v5527
  %v5529 = vand.u32 %v5528, 4294901760
  %v5530 = vsub.f32 %v5528, %v5529
  %v5531 = vand.u32 %v5530, 4294901760
  %5532 = vmatmul.mubr.f32.gmra.mrb[0].mxu0 %v5531
  %v5533 = vpop.f32.mrb[0].mxu0
  %v5534 = vadd.f32 0.0, %v5533
  %v5535 = vpop.f32.mrb[0].mxu0
  %5536 = vdwg.mxu0
  %5537 = vmatprep.subr.mxu0 0.0
  %v5538 = vand.u32 %v4929, 4294901760
  %v5539 = vsub.f32 %v4929, %v5538
  %v5540 = vand.u32 %v5539, 4294901760
  %v5541 = vsub.f32 %v5539, %v5540
  %v5542 = vand.u32 %v5541, 4294901760
  %5543 = vmatpush1.msra.mxu0 %v5542
  %5544 = vmatprep.subr.mxu0 0.0
  %v5545 = vand.u32 %v4930, 4294901760
  %v5546 = vsub.f32 %v4930, %v5545
  %v5547 = vand.u32 %v5546, 4294901760
  %v5548 = vsub.f32 %v5546, %v5547
  %v5549 = vand.u32 %v5548, 4294901760
  %5550 = vmatpush1.msra.mxu0 %v5549
  %5551 = vmatprep.subr.mxu0 0.0
  %5552 = vmatpush1.msra.mxu0 0.0
  %5553 = vmatprep.subr.mxu0 0.0
  %5554 = vmatpush1.msra.mxu0 0.0
  %5555 = vmatprep.subr.mxu0 0.0
  %5556 = vmatpush1.msra.mxu0 0.0
  %5557 = vmatprep.subr.mxu0 0.0
  %5558 = vmatpush1.msra.mxu0 0.0
  %5559 = vmatprep.subr.mxu0 0.0
  %5560 = vmatpush1.msra.mxu0 0.0
  %5561 = vmatprep.subr.mxu0 0.0
  %5562 = vmatpush1.msra.mxu0 0.0
  %5563 = vmatprep.subr.mxu0 0.0
  %5564 = vmatpush1.msra.mxu0 0.0
  %5565 = vmatprep.subr.mxu0 0.0
  %5566 = vmatpush1.msra.mxu0 0.0
  %5567 = vmatprep.subr.mxu0 0.0
  %5568 = vmatpush1.msra.mxu0 0.0
  %5569 = vmatprep.subr.mxu0 0.0
  %5570 = vmatpush1.msra.mxu0 0.0
  %5571 = vmatprep.subr.mxu0 0.0
  %5572 = vmatpush1.msra.mxu0 0.0
  %5573 = vmatprep.subr.mxu0 0.0
  %5574 = vmatpush1.msra.mxu0 0.0
  %5575 = vmatprep.subr.mxu0 0.0
  %5576 = vmatpush1.msra.mxu0 0.0
  %5577 = vmatprep.subr.mxu0 0.0
  %5578 = vmatpush1.msra.mxu0 0.0
  %5579 = vmatprep.subr.mxu0 0.0
  %5580 = vmatpush1.msra.mxu0 0.0
  %5581 = vmatprep.subr.mxu0 0.0
  %5582 = vmatpush1.msra.mxu0 0.0
  %5583 = vmatprep.subr.mxu0 0.0
  %5584 = vmatpush1.msra.mxu0 0.0
  %5585 = vmatprep.subr.mxu0 0.0
  %5586 = vmatpush1.msra.mxu0 0.0
  %5587 = vmatprep.subr.mxu0 0.0
  %5588 = vmatpush1.msra.mxu0 0.0
  %5589 = vmatprep.subr.mxu0 0.0
  %5590 = vmatpush1.msra.mxu0 0.0
  %5591 = vmatprep.subr.mxu0 0.0
  %5592 = vmatpush1.msra.mxu0 0.0
  %5593 = vmatprep.subr.mxu0 0.0
  %5594 = vmatpush1.msra.mxu0 0.0
  %5595 = vmatprep.subr.mxu0 0.0
  %5596 = vmatpush1.msra.mxu0 0.0
  %5597 = vmatprep.subr.mxu0 0.0
  %5598 = vmatpush1.msra.mxu0 0.0
  %5599 = vmatprep.subr.mxu0 0.0
  %5600 = vmatpush1.msra.mxu0 0.0
  %5601 = vmatprep.subr.mxu0 0.0
  %5602 = vmatpush1.msra.mxu0 0.0
  %5603 = vmatprep.subr.mxu0 0.0
  %5604 = vmatpush1.msra.mxu0 0.0
  %5605 = vmatprep.subr.mxu0 0.0
  %5606 = vmatpush1.msra.mxu0 0.0
  %5607 = vmatprep.subr.mxu0 0.0
  %5608 = vmatpush1.msra.mxu0 0.0
  %5609 = vmatprep.subr.mxu0 0.0
  %5610 = vmatpush1.msra.mxu0 0.0
  %5611 = vmatprep.mubr.f32.mxu0 0.0
  %v5612 = vand.u32 %v5445, 4294901760
  %5613 = vmatmul.mubr.f32.gmra.mrb[0].mxu0 %v5612
  %v5614 = vpop.f32.mrb[0].mxu0
  %v5615 = vadd.f32 %v5524, %v5614
  %v5616 = vpop.f32.mrb[0].mxu0
  %5617 = vmatprep.mubr.f32.mxu0 0.0
  %v5618 = vand.u32 %v5448, 4294901760
  %5619 = vmatmul.mubr.f32.gmra.mrb[0].mxu0 %v5618
  %v5620 = vpop.f32.mrb[0].mxu0
  %v5621 = vadd.f32 %v5534, %v5620
  %v5622 = vpop.f32.mrb[0].mxu0
  %5623 = vdwg.mxu0
  %5624 = vmatprep.subr.mxu0 0.0
  %v5625 = vand.u32 %v4929, 4294901760
  %v5626 = vsub.f32 %v4929, %v5625
  %5627 = vmatpush1.msra.mxu0 %v5626
  %5628 = vmatprep.subr.mxu0 0.0
  %v5629 = vand.u32 %v4930, 4294901760
  %v5630 = vsub.f32 %v4930, %v5629
  %5631 = vmatpush1.msra.mxu0 %v5630
  %5632 = vmatprep.subr.mxu0 0.0
  %5633 = vmatpush1.msra.mxu0 0.0
  %5634 = vmatprep.subr.mxu0 0.0
  %5635 = vmatpush1.msra.mxu0 0.0
  %5636 = vmatprep.subr.mxu0 0.0
  %5637 = vmatpush1.msra.mxu0 0.0
  %5638 = vmatprep.subr.mxu0 0.0
  %5639 = vmatpush1.msra.mxu0 0.0
  %5640 = vmatprep.subr.mxu0 0.0
  %5641 = vmatpush1.msra.mxu0 0.0
  %5642 = vmatprep.subr.mxu0 0.0
  %5643 = vmatpush1.msra.mxu0 0.0
  %5644 = vmatprep.subr.mxu0 0.0
  %5645 = vmatpush1.msra.mxu0 0.0
  %5646 = vmatprep.subr.mxu0 0.0
  %5647 = vmatpush1.msra.mxu0 0.0
  %5648 = vmatprep.subr.mxu0 0.0
  %5649 = vmatpush1.msra.mxu0 0.0
  %5650 = vmatprep.subr.mxu0 0.0
  %5651 = vmatpush1.msra.mxu0 0.0
  %5652 = vmatprep.subr.mxu0 0.0
  %5653 = vmatpush1.msra.mxu0 0.0
  %5654 = vmatprep.subr.mxu0 0.0
  %5655 = vmatpush1.msra.mxu0 0.0
  %5656 = vmatprep.subr.mxu0 0.0
  %5657 = vmatpush1.msra.mxu0 0.0
  %5658 = vmatprep.subr.mxu0 0.0
  %5659 = vmatpush1.msra.mxu0 0.0
  %5660 = vmatprep.subr.mxu0 0.0
  %5661 = vmatpush1.msra.mxu0 0.0
  %5662 = vmatprep.subr.mxu0 0.0
  %5663 = vmatpush1.msra.mxu0 0.0
  %5664 = vmatprep.subr.mxu0 0.0
  %5665 = vmatpush1.msra.mxu0 0.0
  %5666 = vmatprep.subr.mxu0 0.0
  %5667 = vmatpush1.msra.mxu0 0.0
  %5668 = vmatprep.subr.mxu0 0.0
  %5669 = vmatpush1.msra.mxu0 0.0
  %5670 = vmatprep.subr.mxu0 0.0
  %5671 = vmatpush1.msra.mxu0 0.0
  %5672 = vmatprep.subr.mxu0 0.0
  %5673 = vmatpush1.msra.mxu0 0.0
  %5674 = vmatprep.subr.mxu0 0.0
  %5675 = vmatpush1.msra.mxu0 0.0
  %5676 = vmatprep.subr.mxu0 0.0
  %5677 = vmatpush1.msra.mxu0 0.0
  %5678 = vmatprep.subr.mxu0 0.0
  %5679 = vmatpush1.msra.mxu0 0.0
  %5680 = vmatprep.subr.mxu0 0.0
  %5681 = vmatpush1.msra.mxu0 0.0
  %5682 = vmatprep.subr.mxu0 0.0
  %5683 = vmatpush1.msra.mxu0 0.0
  %5684 = vmatprep.subr.mxu0 0.0
  %5685 = vmatpush1.msra.mxu0 0.0
  %5686 = vmatprep.subr.mxu0 0.0
  %5687 = vmatpush1.msra.mxu0 0.0
  %5688 = vmatprep.subr.mxu0 0.0
  %5689 = vmatpush1.msra.mxu0 0.0
  %5690 = vmatprep.subr.mxu0 0.0
  %5691 = vmatpush1.msra.mxu0 0.0
  %5692 = vmatprep.mubr.f32.mxu0 0.0
  %v5693 = vand.u32 %v5445, 4294901760
  %v5694 = vsub.f32 %v5445, %v5693
  %5695 = vmatmul.mubr.f32.gmra.mrb[0].mxu0 %v5694
  %v5696 = vpop.f32.mrb[0].mxu0
  %v5697 = vadd.f32 %v5615, %v5696
  %v5698 = vpop.f32.mrb[0].mxu0
  %5699 = vmatprep.mubr.f32.mxu0 0.0
  %v5700 = vand.u32 %v5448, 4294901760
  %v5701 = vsub.f32 %v5448, %v5700
  %5702 = vmatmul.mubr.f32.gmra.mrb[0].mxu0 %v5701
  %v5703 = vpop.f32.mrb[0].mxu0
  %v5704 = vadd.f32 %v5621, %v5703
  %v5705 = vpop.f32.mrb[0].mxu0
  %5706 = vdwg.mxu0
  %5707 = vmatprep.subr.mxu0 0.0
  %v5708 = vand.u32 %v4929, 4294901760
  %5709 = vmatpush1.msra.mxu0 %v5708
  %5710 = vmatprep.subr.mxu0 0.0
  %v5711 = vand.u32 %v4930, 4294901760
  %5712 = vmatpush1.msra.mxu0 %v5711
  %5713 = vmatprep.subr.mxu0 0.0
  %5714 = vmatpush1.msra.mxu0 0.0
  %5715 = vmatprep.subr.mxu0 0.0
  %5716 = vmatpush1.msra.mxu0 0.0
  %5717 = vmatprep.subr.mxu0 0.0
  %5718 = vmatpush1.msra.mxu0 0.0
  %5719 = vmatprep.subr.mxu0 0.0
  %5720 = vmatpush1.msra.mxu0 0.0
  %5721 = vmatprep.subr.mxu0 0.0
  %5722 = vmatpush1.msra.mxu0 0.0
  %5723 = vmatprep.subr.mxu0 0.0
  %5724 = vmatpush1.msra.mxu0 0.0
  %5725 = vmatprep.subr.mxu0 0.0
  %5726 = vmatpush1.msra.mxu0 0.0
  %5727 = vmatprep.subr.mxu0 0.0
  %5728 = vmatpush1.msra.mxu0 0.0
  %5729 = vmatprep.subr.mxu0 0.0
  %5730 = vmatpush1.msra.mxu0 0.0
  %5731 = vmatprep.subr.mxu0 0.0
  %5732 = vmatpush1.msra.mxu0 0.0
  %5733 = vmatprep.subr.mxu0 0.0
  %5734 = vmatpush1.msra.mxu0 0.0
  %5735 = vmatprep.subr.mxu0 0.0
  %5736 = vmatpush1.msra.mxu0 0.0
  %5737 = vmatprep.subr.mxu0 0.0
  %5738 = vmatpush1.msra.mxu0 0.0
  %5739 = vmatprep.subr.mxu0 0.0
  %5740 = vmatpush1.msra.mxu0 0.0
  %5741 = vmatprep.subr.mxu0 0.0
  %5742 = vmatpush1.msra.mxu0 0.0
  %5743 = vmatprep.subr.mxu0 0.0
  %5744 = vmatpush1.msra.mxu0 0.0
  %5745 = vmatprep.subr.mxu0 0.0
  %5746 = vmatpush1.msra.mxu0 0.0
  %5747 = vmatprep.subr.mxu0 0.0
  %5748 = vmatpush1.msra.mxu0 0.0
  %5749 = vmatprep.subr.mxu0 0.0
  %5750 = vmatpush1.msra.mxu0 0.0
  %5751 = vmatprep.subr.mxu0 0.0
  %5752 = vmatpush1.msra.mxu0 0.0
  %5753 = vmatprep.subr.mxu0 0.0
  %5754 = vmatpush1.msra.mxu0 0.0
  %5755 = vmatprep.subr.mxu0 0.0
  %5756 = vmatpush1.msra.mxu0 0.0
  %5757 = vmatprep.subr.mxu0 0.0
  %5758 = vmatpush1.msra.mxu0 0.0
  %5759 = vmatprep.subr.mxu0 0.0
  %5760 = vmatpush1.msra.mxu0 0.0
  %5761 = vmatprep.subr.mxu0 0.0
  %5762 = vmatpush1.msra.mxu0 0.0
  %5763 = vmatprep.subr.mxu0 0.0
  %5764 = vmatpush1.msra.mxu0 0.0
  %5765 = vmatprep.subr.mxu0 0.0
  %5766 = vmatpush1.msra.mxu0 0.0
  %5767 = vmatprep.subr.mxu0 0.0
  %5768 = vmatpush1.msra.mxu0 0.0
  %5769 = vmatprep.subr.mxu0 0.0
  %5770 = vmatpush1.msra.mxu0 0.0
  %5771 = vmatprep.subr.mxu0 0.0
  %5772 = vmatpush1.msra.mxu0 0.0
  %5773 = vmatprep.mubr.f32.mxu0 0.0
  %v5774 = vand.u32 %v5445, 4294901760
  %v5775 = vsub.f32 %v5445, %v5774
  %v5776 = vand.u32 %v5775, 4294901760
  %5777 = vmatmul.mubr.f32.gmra.mrb[0].mxu0 %v5776
  %v5778 = vpop.f32.mrb[0].mxu0
  %v5779 = vadd.f32 %v5697, %v5778
  %v5780 = vpop.f32.mrb[0].mxu0
  %5781 = vmatprep.mubr.f32.mxu0 0.0
  %v5782 = vand.u32 %v5448, 4294901760
  %v5783 = vsub.f32 %v5448, %v5782
  %v5784 = vand.u32 %v5783, 4294901760
  %5785 = vmatmul.mubr.f32.gmra.mrb[0].mxu0 %v5784
  %v5786 = vpop.f32.mrb[0].mxu0
  %v5787 = vadd.f32 %v5704, %v5786
  %v5788 = vpop.f32.mrb[0].mxu0
  %5789 = vdwg.mxu0
  %5790 = vmatprep.subr.mxu0 0.0
  %v5791 = vand.u32 %v4929, 4294901760
  %v5792 = vsub.f32 %v4929, %v5791
  %v5793 = vand.u32 %v5792, 4294901760
  %5794 = vmatpush1.msra.mxu0 %v5793
  %5795 = vmatprep.subr.mxu0 0.0
  %v5796 = vand.u32 %v4930, 4294901760
  %v5797 = vsub.f32 %v4930, %v5796
  %v5798 = vand.u32 %v5797, 4294901760
  %5799 = vmatpush1.msra.mxu0 %v5798
  %5800 = vmatprep.subr.mxu0 0.0
  %5801 = vmatpush1.msra.mxu0 0.0
  %5802 = vmatprep.subr.mxu0 0.0
  %5803 = vmatpush1.msra.mxu0 0.0
  %5804 = vmatprep.subr.mxu0 0.0
  %5805 = vmatpush1.msra.mxu0 0.0
  %5806 = vmatprep.subr.mxu0 0.0
  %5807 = vmatpush1.msra.mxu0 0.0
  %5808 = vmatprep.subr.mxu0 0.0
  %5809 = vmatpush1.msra.mxu0 0.0
  %5810 = vmatprep.subr.mxu0 0.0
  %5811 = vmatpush1.msra.mxu0 0.0
  %5812 = vmatprep.subr.mxu0 0.0
  %5813 = vmatpush1.msra.mxu0 0.0
  %5814 = vmatprep.subr.mxu0 0.0
  %5815 = vmatpush1.msra.mxu0 0.0
  %5816 = vmatprep.subr.mxu0 0.0
  %5817 = vmatpush1.msra.mxu0 0.0
  %5818 = vmatprep.subr.mxu0 0.0
  %5819 = vmatpush1.msra.mxu0 0.0
  %5820 = vmatprep.subr.mxu0 0.0
  %5821 = vmatpush1.msra.mxu0 0.0
  %5822 = vmatprep.subr.mxu0 0.0
  %5823 = vmatpush1.msra.mxu0 0.0
  %5824 = vmatprep.subr.mxu0 0.0
  %5825 = vmatpush1.msra.mxu0 0.0
  %5826 = vmatprep.subr.mxu0 0.0
  %5827 = vmatpush1.msra.mxu0 0.0
  %5828 = vmatprep.subr.mxu0 0.0
  %5829 = vmatpush1.msra.mxu0 0.0
  %5830 = vmatprep.subr.mxu0 0.0
  %5831 = vmatpush1.msra.mxu0 0.0
  %5832 = vmatprep.subr.mxu0 0.0
  %5833 = vmatpush1.msra.mxu0 0.0
  %5834 = vmatprep.subr.mxu0 0.0
  %5835 = vmatpush1.msra.mxu0 0.0
  %5836 = vmatprep.subr.mxu0 0.0
  %5837 = vmatpush1.msra.mxu0 0.0
  %5838 = vmatprep.subr.mxu0 0.0
  %5839 = vmatpush1.msra.mxu0 0.0
  %5840 = vmatprep.subr.mxu0 0.0
  %5841 = vmatpush1.msra.mxu0 0.0
  %5842 = vmatprep.subr.mxu0 0.0
  %5843 = vmatpush1.msra.mxu0 0.0
  %5844 = vmatprep.subr.mxu0 0.0
  %5845 = vmatpush1.msra.mxu0 0.0
  %5846 = vmatprep.subr.mxu0 0.0
  %5847 = vmatpush1.msra.mxu0 0.0
  %5848 = vmatprep.subr.mxu0 0.0
  %5849 = vmatpush1.msra.mxu0 0.0
  %5850 = vmatprep.subr.mxu0 0.0
  %5851 = vmatpush1.msra.mxu0 0.0
  %5852 = vmatprep.subr.mxu0 0.0
  %5853 = vmatpush1.msra.mxu0 0.0
  %5854 = vmatprep.subr.mxu0 0.0
  %5855 = vmatpush1.msra.mxu0 0.0
  %5856 = vmatprep.subr.mxu0 0.0
  %5857 = vmatpush1.msra.mxu0 0.0
  %5858 = vmatprep.subr.mxu0 0.0
  %5859 = vmatpush1.msra.mxu0 0.0
  %5860 = vmatprep.mubr.f32.mxu0 0.0
  %v5861 = vand.u32 %v5445, 4294901760
  %5862 = vmatmul.mubr.f32.gmra.mrb[0].mxu0 %v5861
  %v5863 = vpop.f32.mrb[0].mxu0
  %v5864 = vadd.f32 %v5779, %v5863
  %v5865 = vpop.f32.mrb[0].mxu0
  %5866 = vmatprep.mubr.f32.mxu0 0.0
  %v5867 = vand.u32 %v5448, 4294901760
  %5868 = vmatmul.mubr.f32.gmra.mrb[0].mxu0 %v5867
  %v5869 = vpop.f32.mrb[0].mxu0
  %v5870 = vadd.f32 %v5787, %v5869
  %v5871 = vpop.f32.mrb[0].mxu0
  %5872 = vdwg.mxu0
  %5873 = vmatprep.subr.mxu0 0.0
  %v5874 = vand.u32 %v4929, 4294901760
  %5875 = vmatpush1.msra.mxu0 %v5874
  %5876 = vmatprep.subr.mxu0 0.0
  %v5877 = vand.u32 %v4930, 4294901760
  %5878 = vmatpush1.msra.mxu0 %v5877
  %5879 = vmatprep.subr.mxu0 0.0
  %5880 = vmatpush1.msra.mxu0 0.0
  %5881 = vmatprep.subr.mxu0 0.0
  %5882 = vmatpush1.msra.mxu0 0.0
  %5883 = vmatprep.subr.mxu0 0.0
  %5884 = vmatpush1.msra.mxu0 0.0
  %5885 = vmatprep.subr.mxu0 0.0
  %5886 = vmatpush1.msra.mxu0 0.0
  %5887 = vmatprep.subr.mxu0 0.0
  %5888 = vmatpush1.msra.mxu0 0.0
  %5889 = vmatprep.subr.mxu0 0.0
  %5890 = vmatpush1.msra.mxu0 0.0
  %5891 = vmatprep.subr.mxu0 0.0
  %5892 = vmatpush1.msra.mxu0 0.0
  %5893 = vmatprep.subr.mxu0 0.0
  %5894 = vmatpush1.msra.mxu0 0.0
  %5895 = vmatprep.subr.mxu0 0.0
  %5896 = vmatpush1.msra.mxu0 0.0
  %5897 = vmatprep.subr.mxu0 0.0
  %5898 = vmatpush1.msra.mxu0 0.0
  %5899 = vmatprep.subr.mxu0 0.0
  %5900 = vmatpush1.msra.mxu0 0.0
  %5901 = vmatprep.subr.mxu0 0.0
  %5902 = vmatpush1.msra.mxu0 0.0
  %5903 = vmatprep.subr.mxu0 0.0
  %5904 = vmatpush1.msra.mxu0 0.0
  %5905 = vmatprep.subr.mxu0 0.0
  %5906 = vmatpush1.msra.mxu0 0.0
  %5907 = vmatprep.subr.mxu0 0.0
  %5908 = vmatpush1.msra.mxu0 0.0
  %5909 = vmatprep.subr.mxu0 0.0
  %5910 = vmatpush1.msra.mxu0 0.0
  %5911 = vmatprep.subr.mxu0 0.0
  %5912 = vmatpush1.msra.mxu0 0.0
  %5913 = vmatprep.subr.mxu0 0.0
  %5914 = vmatpush1.msra.mxu0 0.0
  %5915 = vmatprep.subr.mxu0 0.0
  %5916 = vmatpush1.msra.mxu0 0.0
  %5917 = vmatprep.subr.mxu0 0.0
  %5918 = vmatpush1.msra.mxu0 0.0
  %5919 = vmatprep.subr.mxu0 0.0
  %5920 = vmatpush1.msra.mxu0 0.0
  %5921 = vmatprep.subr.mxu0 0.0
  %5922 = vmatpush1.msra.mxu0 0.0
  %5923 = vmatprep.subr.mxu0 0.0
  %5924 = vmatpush1.msra.mxu0 0.0
  %5925 = vmatprep.subr.mxu0 0.0
  %5926 = vmatpush1.msra.mxu0 0.0
  %5927 = vmatprep.subr.mxu0 0.0
  %5928 = vmatpush1.msra.mxu0 0.0
  %5929 = vmatprep.subr.mxu0 0.0
  %5930 = vmatpush1.msra.mxu0 0.0
  %5931 = vmatprep.subr.mxu0 0.0
  %5932 = vmatpush1.msra.mxu0 0.0
  %5933 = vmatprep.subr.mxu0 0.0
  %5934 = vmatpush1.msra.mxu0 0.0
  %5935 = vmatprep.subr.mxu0 0.0
  %5936 = vmatpush1.msra.mxu0 0.0
  %5937 = vmatprep.subr.mxu0 0.0
  %5938 = vmatpush1.msra.mxu0 0.0
  %5939 = vmatprep.mubr.f32.mxu0 0.0
  %v5940 = vand.u32 %v5445, 4294901760
  %5941 = vmatmul.mubr.f32.gmra.mrb[0].mxu0 %v5940
  %v5942 = vpop.f32.mrb[0].mxu0
  %v5943 = vadd.f32 %v5864, %v5942
  %v5944 = vpop.f32.mrb[0].mxu0
  %5945 = vmatprep.mubr.f32.mxu0 0.0
  %v5946 = vand.u32 %v5448, 4294901760
  %5947 = vmatmul.mubr.f32.gmra.mrb[0].mxu0 %v5946
  %v5948 = vpop.f32.mrb[0].mxu0
  %v5949 = vadd.f32 %v5870, %v5948
  %v5950 = vpop.f32.mrb[0].mxu0
  %5951 = vdwg.mxu0
  %v5952 = vld [vmem:[%s9] sm:$0xff]
  %v5953 = vld [vmem:[%s9 + $0x8] sm:$0xff]
  %v5954 = vld [vmem:[%s9 + $0x10] sm:$0xff]
  %v5955 = vld [vmem:[%s9 + $0x18] sm:$0xff]
  %v5956 = vld [vmem:[%s9 + $0x20] sm:$0xff]
  %v5957 = vld [vmem:[%s9 + $0x28] sm:$0xff]
  %v5958 = vld [vmem:[%s9 + $0x30] sm:$0xff]
  %v5959 = vld [vmem:[%s9 + $0x38] sm:$0xff]
  %v5960 = vld [vmem:[%s9 + $0x40] sm:$0xff]
  %v5961 = vld [vmem:[%s9 + $0x48] sm:$0xff]
  %v5962 = vld [vmem:[%s9 + $0x50] sm:$0xff]
  %v5963 = vld [vmem:[%s9 + $0x58] sm:$0xff]
  %v5964 = vld [vmem:[%s9 + $0x60] sm:$0xff]
  %v5965 = vld [vmem:[%s9 + $0x68] sm:$0xff]
  %v5966 = vld [vmem:[%s9 + $0x70] sm:$0xff]
  %v5967 = vld [vmem:[%s9 + $0x78] sm:$0xff]
  %s5968 = scalar_lea.vmem %s9, 128
  %v5969 = vld [vmem:[%s5968] sm:$0xff]
  %v5970 = vld [vmem:[%s5968 + $0x8] sm:$0xff]
  %v5971 = vld [vmem:[%s5968 + $0x10] sm:$0xff]
  %v5972 = vld [vmem:[%s5968 + $0x18] sm:$0xff]
  %v5973 = vld [vmem:[%s5968 + $0x20] sm:$0xff]
  %v5974 = vld [vmem:[%s5968 + $0x28] sm:$0xff]
  %v5975 = vld [vmem:[%s5968 + $0x30] sm:$0xff]
  %v5976 = vld [vmem:[%s5968 + $0x38] sm:$0xff]
  %v5977 = vld [vmem:[%s5968 + $0x40] sm:$0xff]
  %v5978 = vld [vmem:[%s5968 + $0x48] sm:$0xff]
  %v5979 = vld [vmem:[%s5968 + $0x50] sm:$0xff]
  %v5980 = vld [vmem:[%s5968 + $0x58] sm:$0xff]
  %v5981 = vld [vmem:[%s5968 + $0x60] sm:$0xff]
  %v5982 = vld [vmem:[%s5968 + $0x68] sm:$0xff]
  %v5983 = vld [vmem:[%s5968 + $0x70] sm:$0xff]
  %v5984 = vld [vmem:[%s5968 + $0x78] sm:$0xff]
  %5985 = vmatprep.subr.mxu0 0.0
  %5986 = vmatpush1.msra.mxu0 %v5969
  %5987 = vmatprep.subr.mxu0 0.0
  %5988 = vmatpush1.msra.mxu0 %v5970
  %5989 = vmatprep.subr.mxu0 0.0
  %5990 = vmatpush1.msra.mxu0 %v5971
  %5991 = vmatprep.subr.mxu0 0.0
  %5992 = vmatpush1.msra.mxu0 %v5972
  %5993 = vmatprep.subr.mxu0 0.0
  %5994 = vmatpush1.msra.mxu0 %v5973
  %5995 = vmatprep.subr.mxu0 0.0
  %5996 = vmatpush1.msra.mxu0 %v5974
  %5997 = vmatprep.subr.mxu0 0.0
  %5998 = vmatpush1.msra.mxu0 %v5975
  %5999 = vmatprep.subr.mxu0 0.0
  %6000 = vmatpush1.msra.mxu0 %v5976
  %6001 = vmatprep.subr.mxu0 0.0
  %6002 = vmatpush1.msra.mxu0 %v5977
  %6003 = vmatprep.subr.mxu0 0.0
  %6004 = vmatpush1.msra.mxu0 %v5978
  %6005 = vmatprep.subr.mxu0 0.0
  %6006 = vmatpush1.msra.mxu0 %v5979
  %6007 = vmatprep.subr.mxu0 0.0
  %6008 = vmatpush1.msra.mxu0 %v5980
  %6009 = vmatprep.subr.mxu0 0.0
  %6010 = vmatpush1.msra.mxu0 %v5981
  %6011 = vmatprep.subr.mxu0 0.0
  %6012 = vmatpush1.msra.mxu0 %v5982
  %6013 = vmatprep.subr.mxu0 0.0
  %6014 = vmatpush1.msra.mxu0 %v5983
  %6015 = vmatprep.subr.mxu0 0.0
  %6016 = vmatpush1.msra.mxu0 %v5984
  %6017 = vmatprep.subr.mxu0 0.0
  %6018 = vmatpush1.msra.mxu0 0.0
  %6019 = vmatprep.subr.mxu0 0.0
  %6020 = vmatpush1.msra.mxu0 0.0
  %6021 = vmatprep.subr.mxu0 0.0
  %6022 = vmatpush1.msra.mxu0 0.0
  %6023 = vmatprep.subr.mxu0 0.0
  %6024 = vmatpush1.msra.mxu0 0.0
  %6025 = vmatprep.subr.mxu0 0.0
  %6026 = vmatpush1.msra.mxu0 0.0
  %6027 = vmatprep.subr.mxu0 0.0
  %6028 = vmatpush1.msra.mxu0 0.0
  %6029 = vmatprep.subr.mxu0 0.0
  %6030 = vmatpush1.msra.mxu0 0.0
  %6031 = vmatprep.subr.mxu0 0.0
  %6032 = vmatpush1.msra.mxu0 0.0
  %6033 = vmatprep.subr.mxu0 0.0
  %6034 = vmatpush1.msra.mxu0 0.0
  %6035 = vmatprep.subr.mxu0 0.0
  %6036 = vmatpush1.msra.mxu0 0.0
  %6037 = vmatprep.subr.mxu0 0.0
  %6038 = vmatpush1.msra.mxu0 0.0
  %6039 = vmatprep.subr.mxu0 0.0
  %6040 = vmatpush1.msra.mxu0 0.0
  %6041 = vmatprep.subr.mxu0 0.0
  %6042 = vmatpush1.msra.mxu0 0.0
  %6043 = vmatprep.subr.mxu0 0.0
  %6044 = vmatpush1.msra.mxu0 0.0
  %6045 = vmatprep.subr.mxu0 0.0
  %6046 = vmatpush1.msra.mxu0 0.0
  %6047 = vmatprep.subr.mxu0 0.0
  %6048 = vmatpush1.msra.mxu0 0.0
  %6049 = vmatprep.mubr.f32.mxu0 0.0
  %6050 = vmatmul.mubr.f32.gmra.mrb[0].mxu0 %v4929
  %v6051 = vpop.f32.mrb[0].mxu0
  %v6052 = vadd.f32 0.0, %v6051
  %v6053 = vpop.f32.mrb[0].mxu0
  %6054 = vmatprep.mubr.f32.mxu0 0.0
  %6055 = vmatmul.mubr.f32.gmra.mrb[0].mxu0 %v4930
  %v6056 = vpop.f32.mrb[0].mxu0
  %v6057 = vadd.f32 0.0, %v6056
  %v6058 = vpop.f32.mrb[0].mxu0
  %6059 = vdwg.mxu0
  %6060 = vmatprep.subr.mxu0 0.0
  %6061 = vmatpush1.msra.mxu0 %v5952
  %6062 = vmatprep.subr.mxu0 0.0
  %6063 = vmatpush1.msra.mxu0 %v5953
  %6064 = vmatprep.subr.mxu0 0.0
  %6065 = vmatpush1.msra.mxu0 %v5954
  %6066 = vmatprep.subr.mxu0 0.0
  %6067 = vmatpush1.msra.mxu0 %v5955
  %6068 = vmatprep.subr.mxu0 0.0
  %6069 = vmatpush1.msra.mxu0 %v5956
  %6070 = vmatprep.subr.mxu0 0.0
  %6071 = vmatpush1.msra.mxu0 %v5957
  %6072 = vmatprep.subr.mxu0 0.0
  %6073 = vmatpush1.msra.mxu0 %v5958
  %6074 = vmatprep.subr.mxu0 0.0
  %6075 = vmatpush1.msra.mxu0 %v5959
  %6076 = vmatprep.subr.mxu0 0.0
  %6077 = vmatpush1.msra.mxu0 %v5960
  %6078 = vmatprep.subr.mxu0 0.0
  %6079 = vmatpush1.msra.mxu0 %v5961
  %6080 = vmatprep.subr.mxu0 0.0
  %6081 = vmatpush1.msra.mxu0 %v5962
  %6082 = vmatprep.subr.mxu0 0.0
  %6083 = vmatpush1.msra.mxu0 %v5963
  %6084 = vmatprep.subr.mxu0 0.0
  %6085 = vmatpush1.msra.mxu0 %v5964
  %6086 = vmatprep.subr.mxu0 0.0
  %6087 = vmatpush1.msra.mxu0 %v5965
  %6088 = vmatprep.subr.mxu0 0.0
  %6089 = vmatpush1.msra.mxu0 %v5966
  %6090 = vmatprep.subr.mxu0 0.0
  %6091 = vmatpush1.msra.mxu0 %v5967
  %6092 = vmatprep.subr.mxu0 0.0
  %6093 = vmatpush1.msra.mxu0 0.0
  %6094 = vmatprep.subr.mxu0 0.0
  %6095 = vmatpush1.msra.mxu0 0.0
  %6096 = vmatprep.subr.mxu0 0.0
  %6097 = vmatpush1.msra.mxu0 0.0
  %6098 = vmatprep.subr.mxu0 0.0
  %6099 = vmatpush1.msra.mxu0 0.0
  %6100 = vmatprep.subr.mxu0 0.0
  %6101 = vmatpush1.msra.mxu0 0.0
  %6102 = vmatprep.subr.mxu0 0.0
  %6103 = vmatpush1.msra.mxu0 0.0
  %6104 = vmatprep.subr.mxu0 0.0
  %6105 = vmatpush1.msra.mxu0 0.0
  %6106 = vmatprep.subr.mxu0 0.0
  %6107 = vmatpush1.msra.mxu0 0.0
  %6108 = vmatprep.subr.mxu0 0.0
  %6109 = vmatpush1.msra.mxu0 0.0
  %6110 = vmatprep.subr.mxu0 0.0
  %6111 = vmatpush1.msra.mxu0 0.0
  %6112 = vmatprep.subr.mxu0 0.0
  %6113 = vmatpush1.msra.mxu0 0.0
  %6114 = vmatprep.subr.mxu0 0.0
  %6115 = vmatpush1.msra.mxu0 0.0
  %6116 = vmatprep.subr.mxu0 0.0
  %6117 = vmatpush1.msra.mxu0 0.0
  %6118 = vmatprep.subr.mxu0 0.0
  %6119 = vmatpush1.msra.mxu0 0.0
  %6120 = vmatprep.subr.mxu0 0.0
  %6121 = vmatpush1.msra.mxu0 0.0
  %6122 = vmatprep.subr.mxu0 0.0
  %6123 = vmatpush1.msra.mxu0 0.0
  %6124 = vmatprep.mubr.f32.mxu0 0.0
  %6125 = vmatmul.mubr.f32.gmra.mrb[0].mxu0 %v5433
  %v6126 = vpop.f32.mrb[0].mxu0
  %v6127 = vadd.f32 %v6052, %v6126
  %v6128 = vpop.f32.mrb[0].mxu0
  %6129 = vmatprep.mubr.f32.mxu0 0.0
  %6130 = vmatmul.mubr.f32.gmra.mrb[0].mxu0 %v5439
  %v6131 = vpop.f32.mrb[0].mxu0
  %v6132 = vadd.f32 %v6057, %v6131
  %v6133 = vpop.f32.mrb[0].mxu0
  %6134 = vdwg.mxu0
  %s6135 = scalar_lea.vmem %s9, 256
  %v6136 = vld [vmem:[%s6135] sm:$0xff]
  %v6137 = vld [vmem:[%s6135 + $0x8] sm:$0xff]
  %v6138 = vld [vmem:[%s6135 + $0x10] sm:$0xff]
  %v6139 = vld [vmem:[%s6135 + $0x18] sm:$0xff]
  %v6140 = vld [vmem:[%s6135 + $0x20] sm:$0xff]
  %v6141 = vld [vmem:[%s6135 + $0x28] sm:$0xff]
  %v6142 = vld [vmem:[%s6135 + $0x30] sm:$0xff]
  %v6143 = vld [vmem:[%s6135 + $0x38] sm:$0xff]
  %v6144 = vld [vmem:[%s6135 + $0x40] sm:$0xff]
  %v6145 = vld [vmem:[%s6135 + $0x48] sm:$0xff]
  %v6146 = vld [vmem:[%s6135 + $0x50] sm:$0xff]
  %v6147 = vld [vmem:[%s6135 + $0x58] sm:$0xff]
  %v6148 = vld [vmem:[%s6135 + $0x60] sm:$0xff]
  %v6149 = vld [vmem:[%s6135 + $0x68] sm:$0xff]
  %v6150 = vld [vmem:[%s6135 + $0x70] sm:$0xff]
  %v6151 = vld [vmem:[%s6135 + $0x78] sm:$0xff]
  %6152 = vmatprep.subr.mxu0 0.0
  %6153 = vmatpush1.msra.mxu0 %v6136
  %6154 = vmatprep.subr.mxu0 0.0
  %6155 = vmatpush1.msra.mxu0 %v6137
  %6156 = vmatprep.subr.mxu0 0.0
  %6157 = vmatpush1.msra.mxu0 %v6138
  %6158 = vmatprep.subr.mxu0 0.0
  %6159 = vmatpush1.msra.mxu0 %v6139
  %6160 = vmatprep.subr.mxu0 0.0
  %6161 = vmatpush1.msra.mxu0 %v6140
  %6162 = vmatprep.subr.mxu0 0.0
  %6163 = vmatpush1.msra.mxu0 %v6141
  %6164 = vmatprep.subr.mxu0 0.0
  %6165 = vmatpush1.msra.mxu0 %v6142
  %6166 = vmatprep.subr.mxu0 0.0
  %6167 = vmatpush1.msra.mxu0 %v6143
  %6168 = vmatprep.subr.mxu0 0.0
  %6169 = vmatpush1.msra.mxu0 %v6144
  %6170 = vmatprep.subr.mxu0 0.0
  %6171 = vmatpush1.msra.mxu0 %v6145
  %6172 = vmatprep.subr.mxu0 0.0
  %6173 = vmatpush1.msra.mxu0 %v6146
  %6174 = vmatprep.subr.mxu0 0.0
  %6175 = vmatpush1.msra.mxu0 %v6147
  %6176 = vmatprep.subr.mxu0 0.0
  %6177 = vmatpush1.msra.mxu0 %v6148
  %6178 = vmatprep.subr.mxu0 0.0
  %6179 = vmatpush1.msra.mxu0 %v6149
  %6180 = vmatprep.subr.mxu0 0.0
  %6181 = vmatpush1.msra.mxu0 %v6150
  %6182 = vmatprep.subr.mxu0 0.0
  %6183 = vmatpush1.msra.mxu0 %v6151
  %6184 = vmatprep.subr.mxu0 0.0
  %6185 = vmatpush1.msra.mxu0 0.0
  %6186 = vmatprep.subr.mxu0 0.0
  %6187 = vmatpush1.msra.mxu0 0.0
  %6188 = vmatprep.subr.mxu0 0.0
  %6189 = vmatpush1.msra.mxu0 0.0
  %6190 = vmatprep.subr.mxu0 0.0
  %6191 = vmatpush1.msra.mxu0 0.0
  %6192 = vmatprep.subr.mxu0 0.0
  %6193 = vmatpush1.msra.mxu0 0.0
  %6194 = vmatprep.subr.mxu0 0.0
  %6195 = vmatpush1.msra.mxu0 0.0
  %6196 = vmatprep.subr.mxu0 0.0
  %6197 = vmatpush1.msra.mxu0 0.0
  %6198 = vmatprep.subr.mxu0 0.0
  %6199 = vmatpush1.msra.mxu0 0.0
  %6200 = vmatprep.subr.mxu0 0.0
  %6201 = vmatpush1.msra.mxu0 0.0
  %6202 = vmatprep.subr.mxu0 0.0
  %6203 = vmatpush1.msra.mxu0 0.0
  %6204 = vmatprep.subr.mxu0 0.0
  %6205 = vmatpush1.msra.mxu0 0.0
  %6206 = vmatprep.subr.mxu0 0.0
  %6207 = vmatpush1.msra.mxu0 0.0
  %6208 = vmatprep.subr.mxu0 0.0
  %6209 = vmatpush1.msra.mxu0 0.0
  %6210 = vmatprep.subr.mxu0 0.0
  %6211 = vmatpush1.msra.mxu0 0.0
  %6212 = vmatprep.subr.mxu0 0.0
  %6213 = vmatpush1.msra.mxu0 0.0
  %6214 = vmatprep.subr.mxu0 0.0
  %6215 = vmatpush1.msra.mxu0 0.0
  %6216 = vmatprep.mubr.f32.mxu0 0.0
  %6217 = vmatmul.mubr.f32.gmra.mrb[0].mxu0 %v5943
  %v6218 = vpop.f32.mrb[0].mxu0
  %v6219 = vadd.f32 0.0, %v6218
  %v6220 = vpop.f32.mrb[0].mxu0
  %6221 = vmatprep.mubr.f32.mxu0 0.0
  %6222 = vmatmul.mubr.f32.gmra.mrb[0].mxu0 %v5949
  %v6223 = vpop.f32.mrb[0].mxu0
  %v6224 = vadd.f32 0.0, %v6223
  %v6225 = vpop.f32.mrb[0].mxu0
  %6226 = vdwg.mxu0
  %v6227 = vadd.f32 %v6127, %v6219
  %v6228 = vadd.f32 %v6132, %v6224
  %v6229 = vld [vmem:[%s10] sm:$0x1]
  %v6231 = vlaneseq
  %v6232 = vshrl.u32 %v6231, 7
  %v6233 = vsub.s32 0, %v6232
  %v6234 = vrot.slane %v6229, %v6233
  %v6236 = vadd.f32 %v6227, %v6234
  %v6237 = vadd.f32 %v6228, %v6234
  %v6238 = vmax.f32 %v6236, 0.0
  %v6239 = vmax.f32 %v6237, 0.0
  %v6240 = vld [vmem:[%s13] sm:$0xff]
  %v6241 = vld [vmem:[%s13 + $0x8] sm:$0xff]
  %v6242 = vld [vmem:[%s13 + $0x10] sm:$0xff]
  %v6243 = vld [vmem:[%s13 + $0x18] sm:$0xff]
  %v6244 = vld [vmem:[%s13 + $0x20] sm:$0xff]
  %v6245 = vld [vmem:[%s13 + $0x28] sm:$0xff]
  %v6246 = vld [vmem:[%s13 + $0x30] sm:$0xff]
  %v6247 = vld [vmem:[%s13 + $0x38] sm:$0xff]
  %vm6248 = vcmask 523264
  %v6250 = vsel %vm6248, %v6238, 0
  %v6253 = vsel %vm6248, %v6239, 0
  %6255 = vmatprep.subr.mxu0 0.0
  %v6256 = vand.u32 %v6240, 4294901760
  %6257 = vmatpush1.msra.mxu0 %v6256
  %6258 = vmatprep.subr.mxu0 0.0
  %v6259 = vand.u32 %v6241, 4294901760
  %6260 = vmatpush1.msra.mxu0 %v6259
  %6261 = vmatprep.subr.mxu0 0.0
  %v6262 = vand.u32 %v6242, 4294901760
  %6263 = vmatpush1.msra.mxu0 %v6262
  %6264 = vmatprep.subr.mxu0 0.0
  %v6265 = vand.u32 %v6243, 4294901760
  %6266 = vmatpush1.msra.mxu0 %v6265
  %6267 = vmatprep.subr.mxu0 0.0
  %v6268 = vand.u32 %v6244, 4294901760
  %6269 = vmatpush1.msra.mxu0 %v6268
  %6270 = vmatprep.subr.mxu0 0.0
  %v6271 = vand.u32 %v6245, 4294901760
  %6272 = vmatpush1.msra.mxu0 %v6271
  %6273 = vmatprep.subr.mxu0 0.0
  %v6274 = vand.u32 %v6246, 4294901760
  %6275 = vmatpush1.msra.mxu0 %v6274
  %6276 = vmatprep.subr.mxu0 0.0
  %v6277 = vand.u32 %v6247, 4294901760
  %6278 = vmatpush1.msra.mxu0 %v6277
  %6279 = vmatprep.subr.mxu0 0.0
  %6280 = vmatpush1.msra.mxu0 0.0
  %6281 = vmatprep.subr.mxu0 0.0
  %6282 = vmatpush1.msra.mxu0 0.0
  %6283 = vmatprep.subr.mxu0 0.0
  %6284 = vmatpush1.msra.mxu0 0.0
  %6285 = vmatprep.subr.mxu0 0.0
  %6286 = vmatpush1.msra.mxu0 0.0
  %6287 = vmatprep.subr.mxu0 0.0
  %6288 = vmatpush1.msra.mxu0 0.0
  %6289 = vmatprep.subr.mxu0 0.0
  %6290 = vmatpush1.msra.mxu0 0.0
  %6291 = vmatprep.subr.mxu0 0.0
  %6292 = vmatpush1.msra.mxu0 0.0
  %6293 = vmatprep.subr.mxu0 0.0
  %6294 = vmatpush1.msra.mxu0 0.0
  %6295 = vmatprep.subr.mxu0 0.0
  %6296 = vmatpush1.msra.mxu0 0.0
  %6297 = vmatprep.subr.mxu0 0.0
  %6298 = vmatpush1.msra.mxu0 0.0
  %6299 = vmatprep.subr.mxu0 0.0
  %6300 = vmatpush1.msra.mxu0 0.0
  %6301 = vmatprep.subr.mxu0 0.0
  %6302 = vmatpush1.msra.mxu0 0.0
  %6303 = vmatprep.subr.mxu0 0.0
  %6304 = vmatpush1.msra.mxu0 0.0
  %6305 = vmatprep.subr.mxu0 0.0
  %6306 = vmatpush1.msra.mxu0 0.0
  %6307 = vmatprep.subr.mxu0 0.0
  %6308 = vmatpush1.msra.mxu0 0.0
  %6309 = vmatprep.subr.mxu0 0.0
  %6310 = vmatpush1.msra.mxu0 0.0
  %6311 = vmatprep.subr.mxu0 0.0
  %6312 = vmatpush1.msra.mxu0 0.0
  %6313 = vmatprep.subr.mxu0 0.0
  %6314 = vmatpush1.msra.mxu0 0.0
  %6315 = vmatprep.subr.mxu0 0.0
  %6316 = vmatpush1.msra.mxu0 0.0
  %6317 = vmatprep.subr.mxu0 0.0
  %6318 = vmatpush1.msra.mxu0 0.0
  %6319 = vmatprep.subr.mxu0 0.0
  %6320 = vmatpush1.msra.mxu0 0.0
  %6321 = vmatprep.subr.mxu0 0.0
  %6322 = vmatpush1.msra.mxu0 0.0
  %6323 = vmatprep.subr.mxu0 0.0
  %6324 = vmatpush1.msra.mxu0 0.0
  %6325 = vmatprep.subr.mxu0 0.0
  %6326 = vmatpush1.msra.mxu0 0.0
  %6327 = vmatprep.mubr.f32.mxu0 0.0
  %v6328 = vand.u32 %v6250, 4294901760
  %v6329 = vsub.f32 %v6250, %v6328
  %v6330 = vand.u32 %v6329, 4294901760
  %v6331 = vsub.f32 %v6329, %v6330
  %v6332 = vand.u32 %v6331, 4294901760
  %6333 = vmatmul.mubr.f32.gmra.mrb[0].mxu0 %v6332
  %v6334 = vpop.f32.mrb[0].mxu0
  %v6335 = vadd.f32 0.0, %v6334
  %v6336 = vpop.f32.mrb[0].mxu0
  %6337 = vmatprep.mubr.f32.mxu0 0.0
  %v6338 = vand.u32 %v6253, 4294901760
  %v6339 = vsub.f32 %v6253, %v6338
  %v6340 = vand.u32 %v6339, 4294901760
  %v6341 = vsub.f32 %v6339, %v6340
  %v6342 = vand.u32 %v6341, 4294901760
  %6343 = vmatmul.mubr.f32.gmra.mrb[0].mxu0 %v6342
  %v6344 = vpop.f32.mrb[0].mxu0
  %v6345 = vadd.f32 0.0, %v6344
  %v6346 = vpop.f32.mrb[0].mxu0
  %6347 = vdwg.mxu0
  %6348 = vmatprep.subr.mxu0 0.0
  %v6349 = vand.u32 %v6240, 4294901760
  %v6350 = vsub.f32 %v6240, %v6349
  %v6351 = vand.u32 %v6350, 4294901760
  %v6352 = vsub.f32 %v6350, %v6351
  %v6353 = vand.u32 %v6352, 4294901760
  %6354 = vmatpush1.msra.mxu0 %v6353
  %6355 = vmatprep.subr.mxu0 0.0
  %v6356 = vand.u32 %v6241, 4294901760
  %v6357 = vsub.f32 %v6241, %v6356
  %v6358 = vand.u32 %v6357, 4294901760
  %v6359 = vsub.f32 %v6357, %v6358
  %v6360 = vand.u32 %v6359, 4294901760
  %6361 = vmatpush1.msra.mxu0 %v6360
  %6362 = vmatprep.subr.mxu0 0.0
  %v6363 = vand.u32 %v6242, 4294901760
  %v6364 = vsub.f32 %v6242, %v6363
  %v6365 = vand.u32 %v6364, 4294901760
  %v6366 = vsub.f32 %v6364, %v6365
  %v6367 = vand.u32 %v6366, 4294901760
  %6368 = vmatpush1.msra.mxu0 %v6367
  %6369 = vmatprep.subr.mxu0 0.0
  %v6370 = vand.u32 %v6243, 4294901760
  %v6371 = vsub.f32 %v6243, %v6370
  %v6372 = vand.u32 %v6371, 4294901760
  %v6373 = vsub.f32 %v6371, %v6372
  %v6374 = vand.u32 %v6373, 4294901760
  %6375 = vmatpush1.msra.mxu0 %v6374
  %6376 = vmatprep.subr.mxu0 0.0
  %v6377 = vand.u32 %v6244, 4294901760
  %v6378 = vsub.f32 %v6244, %v6377
  %v6379 = vand.u32 %v6378, 4294901760
  %v6380 = vsub.f32 %v6378, %v6379
  %v6381 = vand.u32 %v6380, 4294901760
  %6382 = vmatpush1.msra.mxu0 %v6381
  %6383 = vmatprep.subr.mxu0 0.0
  %v6384 = vand.u32 %v6245, 4294901760
  %v6385 = vsub.f32 %v6245, %v6384
  %v6386 = vand.u32 %v6385, 4294901760
  %v6387 = vsub.f32 %v6385, %v6386
  %v6388 = vand.u32 %v6387, 4294901760
  %6389 = vmatpush1.msra.mxu0 %v6388
  %6390 = vmatprep.subr.mxu0 0.0
  %v6391 = vand.u32 %v6246, 4294901760
  %v6392 = vsub.f32 %v6246, %v6391
  %v6393 = vand.u32 %v6392, 4294901760
  %v6394 = vsub.f32 %v6392, %v6393
  %v6395 = vand.u32 %v6394, 4294901760
  %6396 = vmatpush1.msra.mxu0 %v6395
  %6397 = vmatprep.subr.mxu0 0.0
  %v6398 = vand.u32 %v6247, 4294901760
  %v6399 = vsub.f32 %v6247, %v6398
  %v6400 = vand.u32 %v6399, 4294901760
  %v6401 = vsub.f32 %v6399, %v6400
  %v6402 = vand.u32 %v6401, 4294901760
  %6403 = vmatpush1.msra.mxu0 %v6402
  %6404 = vmatprep.subr.mxu0 0.0
  %6405 = vmatpush1.msra.mxu0 0.0
  %6406 = vmatprep.subr.mxu0 0.0
  %6407 = vmatpush1.msra.mxu0 0.0
  %6408 = vmatprep.subr.mxu0 0.0
  %6409 = vmatpush1.msra.mxu0 0.0
  %6410 = vmatprep.subr.mxu0 0.0
  %6411 = vmatpush1.msra.mxu0 0.0
  %6412 = vmatprep.subr.mxu0 0.0
  %6413 = vmatpush1.msra.mxu0 0.0
  %6414 = vmatprep.subr.mxu0 0.0
  %6415 = vmatpush1.msra.mxu0 0.0
  %6416 = vmatprep.subr.mxu0 0.0
  %6417 = vmatpush1.msra.mxu0 0.0
  %6418 = vmatprep.subr.mxu0 0.0
  %6419 = vmatpush1.msra.mxu0 0.0
  %6420 = vmatprep.subr.mxu0 0.0
  %6421 = vmatpush1.msra.mxu0 0.0
  %6422 = vmatprep.subr.mxu0 0.0
  %6423 = vmatpush1.msra.mxu0 0.0
  %6424 = vmatprep.subr.mxu0 0.0
  %6425 = vmatpush1.msra.mxu0 0.0
  %6426 = vmatprep.subr.mxu0 0.0
  %6427 = vmatpush1.msra.mxu0 0.0
  %6428 = vmatprep.subr.mxu0 0.0
  %6429 = vmatpush1.msra.mxu0 0.0
  %6430 = vmatprep.subr.mxu0 0.0
  %6431 = vmatpush1.msra.mxu0 0.0
  %6432 = vmatprep.subr.mxu0 0.0
  %6433 = vmatpush1.msra.mxu0 0.0
  %6434 = vmatprep.subr.mxu0 0.0
  %6435 = vmatpush1.msra.mxu0 0.0
  %6436 = vmatprep.subr.mxu0 0.0
  %6437 = vmatpush1.msra.mxu0 0.0
  %6438 = vmatprep.subr.mxu0 0.0
  %6439 = vmatpush1.msra.mxu0 0.0
  %6440 = vmatprep.subr.mxu0 0.0
  %6441 = vmatpush1.msra.mxu0 0.0
  %6442 = vmatprep.subr.mxu0 0.0
  %6443 = vmatpush1.msra.mxu0 0.0
  %6444 = vmatprep.subr.mxu0 0.0
  %6445 = vmatpush1.msra.mxu0 0.0
  %6446 = vmatprep.subr.mxu0 0.0
  %6447 = vmatpush1.msra.mxu0 0.0
  %6448 = vmatprep.subr.mxu0 0.0
  %6449 = vmatpush1.msra.mxu0 0.0
  %6450 = vmatprep.subr.mxu0 0.0
  %6451 = vmatpush1.msra.mxu0 0.0
  %6452 = vmatprep.mubr.f32.mxu0 0.0
  %v6453 = vand.u32 %v6250, 4294901760
  %6454 = vmatmul.mubr.f32.gmra.mrb[0].mxu0 %v6453
  %v6455 = vpop.f32.mrb[0].mxu0
  %v6456 = vadd.f32 %v6335, %v6455
  %v6457 = vpop.f32.mrb[0].mxu0
  %6458 = vmatprep.mubr.f32.mxu0 0.0
  %v6459 = vand.u32 %v6253, 4294901760
  %6460 = vmatmul.mubr.f32.gmra.mrb[0].mxu0 %v6459
  %v6461 = vpop.f32.mrb[0].mxu0
  %v6462 = vadd.f32 %v6345, %v6461
  %v6463 = vpop.f32.mrb[0].mxu0
  %6464 = vdwg.mxu0
  %6465 = vmatprep.subr.mxu0 0.0
  %v6466 = vand.u32 %v6240, 4294901760
  %v6467 = vsub.f32 %v6240, %v6466
  %6468 = vmatpush1.msra.mxu0 %v6467
  %6469 = vmatprep.subr.mxu0 0.0
  %v6470 = vand.u32 %v6241, 4294901760
  %v6471 = vsub.f32 %v6241, %v6470
  %6472 = vmatpush1.msra.mxu0 %v6471
  %6473 = vmatprep.subr.mxu0 0.0
  %v6474 = vand.u32 %v6242, 4294901760
  %v6475 = vsub.f32 %v6242, %v6474
  %6476 = vmatpush1.msra.mxu0 %v6475
  %6477 = vmatprep.subr.mxu0 0.0
  %v6478 = vand.u32 %v6243, 4294901760
  %v6479 = vsub.f32 %v6243, %v6478
  %6480 = vmatpush1.msra.mxu0 %v6479
  %6481 = vmatprep.subr.mxu0 0.0
  %v6482 = vand.u32 %v6244, 4294901760
  %v6483 = vsub.f32 %v6244, %v6482
  %6484 = vmatpush1.msra.mxu0 %v6483
  %6485 = vmatprep.subr.mxu0 0.0
  %v6486 = vand.u32 %v6245, 4294901760
  %v6487 = vsub.f32 %v6245, %v6486
  %6488 = vmatpush1.msra.mxu0 %v6487
  %6489 = vmatprep.subr.mxu0 0.0
  %v6490 = vand.u32 %v6246, 4294901760
  %v6491 = vsub.f32 %v6246, %v6490
  %6492 = vmatpush1.msra.mxu0 %v6491
  %6493 = vmatprep.subr.mxu0 0.0
  %v6494 = vand.u32 %v6247, 4294901760
  %v6495 = vsub.f32 %v6247, %v6494
  %6496 = vmatpush1.msra.mxu0 %v6495
  %6497 = vmatprep.subr.mxu0 0.0
  %6498 = vmatpush1.msra.mxu0 0.0
  %6499 = vmatprep.subr.mxu0 0.0
  %6500 = vmatpush1.msra.mxu0 0.0
  %6501 = vmatprep.subr.mxu0 0.0
  %6502 = vmatpush1.msra.mxu0 0.0
  %6503 = vmatprep.subr.mxu0 0.0
  %6504 = vmatpush1.msra.mxu0 0.0
  %6505 = vmatprep.subr.mxu0 0.0
  %6506 = vmatpush1.msra.mxu0 0.0
  %6507 = vmatprep.subr.mxu0 0.0
  %6508 = vmatpush1.msra.mxu0 0.0
  %6509 = vmatprep.subr.mxu0 0.0
  %6510 = vmatpush1.msra.mxu0 0.0
  %6511 = vmatprep.subr.mxu0 0.0
  %6512 = vmatpush1.msra.mxu0 0.0
  %6513 = vmatprep.subr.mxu0 0.0
  %6514 = vmatpush1.msra.mxu0 0.0
  %6515 = vmatprep.subr.mxu0 0.0
  %6516 = vmatpush1.msra.mxu0 0.0
  %6517 = vmatprep.subr.mxu0 0.0
  %6518 = vmatpush1.msra.mxu0 0.0
  %6519 = vmatprep.subr.mxu0 0.0
  %6520 = vmatpush1.msra.mxu0 0.0
  %6521 = vmatprep.subr.mxu0 0.0
  %6522 = vmatpush1.msra.mxu0 0.0
  %6523 = vmatprep.subr.mxu0 0.0
  %6524 = vmatpush1.msra.mxu0 0.0
  %6525 = vmatprep.subr.mxu0 0.0
  %6526 = vmatpush1.msra.mxu0 0.0
  %6527 = vmatprep.subr.mxu0 0.0
  %6528 = vmatpush1.msra.mxu0 0.0
  %6529 = vmatprep.subr.mxu0 0.0
  %6530 = vmatpush1.msra.mxu0 0.0
  %6531 = vmatprep.subr.mxu0 0.0
  %6532 = vmatpush1.msra.mxu0 0.0
  %6533 = vmatprep.subr.mxu0 0.0
  %6534 = vmatpush1.msra.mxu0 0.0
  %6535 = vmatprep.subr.mxu0 0.0
  %6536 = vmatpush1.msra.mxu0 0.0
  %6537 = vmatprep.subr.mxu0 0.0
  %6538 = vmatpush1.msra.mxu0 0.0
  %6539 = vmatprep.subr.mxu0 0.0
  %6540 = vmatpush1.msra.mxu0 0.0
  %6541 = vmatprep.subr.mxu0 0.0
  %6542 = vmatpush1.msra.mxu0 0.0
  %6543 = vmatprep.subr.mxu0 0.0
  %6544 = vmatpush1.msra.mxu0 0.0
  %6545 = vmatprep.mubr.f32.mxu0 0.0
  %v6546 = vand.u32 %v6250, 4294901760
  %v6547 = vsub.f32 %v6250, %v6546
  %6548 = vmatmul.mubr.f32.gmra.mrb[0].mxu0 %v6547
  %v6549 = vpop.f32.mrb[0].mxu0
  %v6550 = vadd.f32 %v6456, %v6549
  %v6551 = vpop.f32.mrb[0].mxu0
  %6552 = vmatprep.mubr.f32.mxu0 0.0
  %v6553 = vand.u32 %v6253, 4294901760
  %v6554 = vsub.f32 %v6253, %v6553
  %6555 = vmatmul.mubr.f32.gmra.mrb[0].mxu0 %v6554
  %v6556 = vpop.f32.mrb[0].mxu0
  %v6557 = vadd.f32 %v6462, %v6556
  %v6558 = vpop.f32.mrb[0].mxu0
  %6559 = vdwg.mxu0
  %6560 = vmatprep.subr.mxu0 0.0
  %v6561 = vand.u32 %v6240, 4294901760
  %6562 = vmatpush1.msra.mxu0 %v6561
  %6563 = vmatprep.subr.mxu0 0.0
  %v6564 = vand.u32 %v6241, 4294901760
  %6565 = vmatpush1.msra.mxu0 %v6564
  %6566 = vmatprep.subr.mxu0 0.0
  %v6567 = vand.u32 %v6242, 4294901760
  %6568 = vmatpush1.msra.mxu0 %v6567
  %6569 = vmatprep.subr.mxu0 0.0
  %v6570 = vand.u32 %v6243, 4294901760
  %6571 = vmatpush1.msra.mxu0 %v6570
  %6572 = vmatprep.subr.mxu0 0.0
  %v6573 = vand.u32 %v6244, 4294901760
  %6574 = vmatpush1.msra.mxu0 %v6573
  %6575 = vmatprep.subr.mxu0 0.0
  %v6576 = vand.u32 %v6245, 4294901760
  %6577 = vmatpush1.msra.mxu0 %v6576
  %6578 = vmatprep.subr.mxu0 0.0
  %v6579 = vand.u32 %v6246, 4294901760
  %6580 = vmatpush1.msra.mxu0 %v6579
  %6581 = vmatprep.subr.mxu0 0.0
  %v6582 = vand.u32 %v6247, 4294901760
  %6583 = vmatpush1.msra.mxu0 %v6582
  %6584 = vmatprep.subr.mxu0 0.0
  %6585 = vmatpush1.msra.mxu0 0.0
  %6586 = vmatprep.subr.mxu0 0.0
  %6587 = vmatpush1.msra.mxu0 0.0
  %6588 = vmatprep.subr.mxu0 0.0
  %6589 = vmatpush1.msra.mxu0 0.0
  %6590 = vmatprep.subr.mxu0 0.0
  %6591 = vmatpush1.msra.mxu0 0.0
  %6592 = vmatprep.subr.mxu0 0.0
  %6593 = vmatpush1.msra.mxu0 0.0
  %6594 = vmatprep.subr.mxu0 0.0
  %6595 = vmatpush1.msra.mxu0 0.0
  %6596 = vmatprep.subr.mxu0 0.0
  %6597 = vmatpush1.msra.mxu0 0.0
  %6598 = vmatprep.subr.mxu0 0.0
  %6599 = vmatpush1.msra.mxu0 0.0
  %6600 = vmatprep.subr.mxu0 0.0
  %6601 = vmatpush1.msra.mxu0 0.0
  %6602 = vmatprep.subr.mxu0 0.0
  %6603 = vmatpush1.msra.mxu0 0.0
  %6604 = vmatprep.subr.mxu0 0.0
  %6605 = vmatpush1.msra.mxu0 0.0
  %6606 = vmatprep.subr.mxu0 0.0
  %6607 = vmatpush1.msra.mxu0 0.0
  %6608 = vmatprep.subr.mxu0 0.0
  %6609 = vmatpush1.msra.mxu0 0.0
  %6610 = vmatprep.subr.mxu0 0.0
  %6611 = vmatpush1.msra.mxu0 0.0
  %6612 = vmatprep.subr.mxu0 0.0
  %6613 = vmatpush1.msra.mxu0 0.0
  %6614 = vmatprep.subr.mxu0 0.0
  %6615 = vmatpush1.msra.mxu0 0.0
  %6616 = vmatprep.subr.mxu0 0.0
  %6617 = vmatpush1.msra.mxu0 0.0
  %6618 = vmatprep.subr.mxu0 0.0
  %6619 = vmatpush1.msra.mxu0 0.0
  %6620 = vmatprep.subr.mxu0 0.0
  %6621 = vmatpush1.msra.mxu0 0.0
  %6622 = vmatprep.subr.mxu0 0.0
  %6623 = vmatpush1.msra.mxu0 0.0
  %6624 = vmatprep.subr.mxu0 0.0
  %6625 = vmatpush1.msra.mxu0 0.0
  %6626 = vmatprep.subr.mxu0 0.0
  %6627 = vmatpush1.msra.mxu0 0.0
  %6628 = vmatprep.subr.mxu0 0.0
  %6629 = vmatpush1.msra.mxu0 0.0
  %6630 = vmatprep.subr.mxu0 0.0
  %6631 = vmatpush1.msra.mxu0 0.0
  %6632 = vmatprep.mubr.f32.mxu0 0.0
  %v6633 = vand.u32 %v6250, 4294901760
  %v6634 = vsub.f32 %v6250, %v6633
  %v6635 = vand.u32 %v6634, 4294901760
  %6636 = vmatmul.mubr.f32.gmra.mrb[0].mxu0 %v6635
  %v6637 = vpop.f32.mrb[0].mxu0
  %v6638 = vadd.f32 %v6550, %v6637
  %v6639 = vpop.f32.mrb[0].mxu0
  %6640 = vmatprep.mubr.f32.mxu0 0.0
  %v6641 = vand.u32 %v6253, 4294901760
  %v6642 = vsub.f32 %v6253, %v6641
  %v6643 = vand.u32 %v6642, 4294901760
  %6644 = vmatmul.mubr.f32.gmra.mrb[0].mxu0 %v6643
  %v6645 = vpop.f32.mrb[0].mxu0
  %v6646 = vadd.f32 %v6557, %v6645
  %v6647 = vpop.f32.mrb[0].mxu0
  %6648 = vdwg.mxu0
  %6649 = vmatprep.subr.mxu0 0.0
  %v6650 = vand.u32 %v6240, 4294901760
  %v6651 = vsub.f32 %v6240, %v6650
  %v6652 = vand.u32 %v6651, 4294901760
  %6653 = vmatpush1.msra.mxu0 %v6652
  %6654 = vmatprep.subr.mxu0 0.0
  %v6655 = vand.u32 %v6241, 4294901760
  %v6656 = vsub.f32 %v6241, %v6655
  %v6657 = vand.u32 %v6656, 4294901760
  %6658 = vmatpush1.msra.mxu0 %v6657
  %6659 = vmatprep.subr.mxu0 0.0
  %v6660 = vand.u32 %v6242, 4294901760
  %v6661 = vsub.f32 %v6242, %v6660
  %v6662 = vand.u32 %v6661, 4294901760
  %6663 = vmatpush1.msra.mxu0 %v6662
  %6664 = vmatprep.subr.mxu0 0.0
  %v6665 = vand.u32 %v6243, 4294901760
  %v6666 = vsub.f32 %v6243, %v6665
  %v6667 = vand.u32 %v6666, 4294901760
  %6668 = vmatpush1.msra.mxu0 %v6667
  %6669 = vmatprep.subr.mxu0 0.0
  %v6670 = vand.u32 %v6244, 4294901760
  %v6671 = vsub.f32 %v6244, %v6670
  %v6672 = vand.u32 %v6671, 4294901760
  %6673 = vmatpush1.msra.mxu0 %v6672
  %6674 = vmatprep.subr.mxu0 0.0
  %v6675 = vand.u32 %v6245, 4294901760
  %v6676 = vsub.f32 %v6245, %v6675
  %v6677 = vand.u32 %v6676, 4294901760
  %6678 = vmatpush1.msra.mxu0 %v6677
  %6679 = vmatprep.subr.mxu0 0.0
  %v6680 = vand.u32 %v6246, 4294901760
  %v6681 = vsub.f32 %v6246, %v6680
  %v6682 = vand.u32 %v6681, 4294901760
  %6683 = vmatpush1.msra.mxu0 %v6682
  %6684 = vmatprep.subr.mxu0 0.0
  %v6685 = vand.u32 %v6247, 4294901760
  %v6686 = vsub.f32 %v6247, %v6685
  %v6687 = vand.u32 %v6686, 4294901760
  %6688 = vmatpush1.msra.mxu0 %v6687
  %6689 = vmatprep.subr.mxu0 0.0
  %6690 = vmatpush1.msra.mxu0 0.0
  %6691 = vmatprep.subr.mxu0 0.0
  %6692 = vmatpush1.msra.mxu0 0.0
  %6693 = vmatprep.subr.mxu0 0.0
  %6694 = vmatpush1.msra.mxu0 0.0
  %6695 = vmatprep.subr.mxu0 0.0
  %6696 = vmatpush1.msra.mxu0 0.0
  %6697 = vmatprep.subr.mxu0 0.0
  %6698 = vmatpush1.msra.mxu0 0.0
  %6699 = vmatprep.subr.mxu0 0.0
  %6700 = vmatpush1.msra.mxu0 0.0
  %6701 = vmatprep.subr.mxu0 0.0
  %6702 = vmatpush1.msra.mxu0 0.0
  %6703 = vmatprep.subr.mxu0 0.0
  %6704 = vmatpush1.msra.mxu0 0.0
  %6705 = vmatprep.subr.mxu0 0.0
  %6706 = vmatpush1.msra.mxu0 0.0
  %6707 = vmatprep.subr.mxu0 0.0
  %6708 = vmatpush1.msra.mxu0 0.0
  %6709 = vmatprep.subr.mxu0 0.0
  %6710 = vmatpush1.msra.mxu0 0.0
  %6711 = vmatprep.subr.mxu0 0.0
  %6712 = vmatpush1.msra.mxu0 0.0
  %6713 = vmatprep.subr.mxu0 0.0
  %6714 = vmatpush1.msra.mxu0 0.0
  %6715 = vmatprep.subr.mxu0 0.0
  %6716 = vmatpush1.msra.mxu0 0.0
  %6717 = vmatprep.subr.mxu0 0.0
  %6718 = vmatpush1.msra.mxu0 0.0
  %6719 = vmatprep.subr.mxu0 0.0
  %6720 = vmatpush1.msra.mxu0 0.0
  %6721 = vmatprep.subr.mxu0 0.0
  %6722 = vmatpush1.msra.mxu0 0.0
  %6723 = vmatprep.subr.mxu0 0.0
  %6724 = vmatpush1.msra.mxu0 0.0
  %6725 = vmatprep.subr.mxu0 0.0
  %6726 = vmatpush1.msra.mxu0 0.0
  %6727 = vmatprep.subr.mxu0 0.0
  %6728 = vmatpush1.msra.mxu0 0.0
  %6729 = vmatprep.subr.mxu0 0.0
  %6730 = vmatpush1.msra.mxu0 0.0
  %6731 = vmatprep.subr.mxu0 0.0
  %6732 = vmatpush1.msra.mxu0 0.0
  %6733 = vmatprep.subr.mxu0 0.0
  %6734 = vmatpush1.msra.mxu0 0.0
  %6735 = vmatprep.subr.mxu0 0.0
  %6736 = vmatpush1.msra.mxu0 0.0
  %6737 = vmatprep.mubr.f32.mxu0 0.0
  %v6738 = vand.u32 %v6250, 4294901760
  %6739 = vmatmul.mubr.f32.gmra.mrb[0].mxu0 %v6738
  %v6740 = vpop.f32.mrb[0].mxu0
  %v6741 = vadd.f32 %v6638, %v6740
  %v6742 = vpop.f32.mrb[0].mxu0
  %6743 = vmatprep.mubr.f32.mxu0 0.0
  %v6744 = vand.u32 %v6253, 4294901760
  %6745 = vmatmul.mubr.f32.gmra.mrb[0].mxu0 %v6744
  %v6746 = vpop.f32.mrb[0].mxu0
  %v6747 = vadd.f32 %v6646, %v6746
  %v6748 = vpop.f32.mrb[0].mxu0
  %6749 = vdwg.mxu0
  %6750 = vmatprep.subr.mxu0 0.0
  %v6751 = vand.u32 %v6240, 4294901760
  %6752 = vmatpush1.msra.mxu0 %v6751
  %6753 = vmatprep.subr.mxu0 0.0
  %v6754 = vand.u32 %v6241, 4294901760
  %6755 = vmatpush1.msra.mxu0 %v6754
  %6756 = vmatprep.subr.mxu0 0.0
  %v6757 = vand.u32 %v6242, 4294901760
  %6758 = vmatpush1.msra.mxu0 %v6757
  %6759 = vmatprep.subr.mxu0 0.0
  %v6760 = vand.u32 %v6243, 4294901760
  %6761 = vmatpush1.msra.mxu0 %v6760
  %6762 = vmatprep.subr.mxu0 0.0
  %v6763 = vand.u32 %v6244, 4294901760
  %6764 = vmatpush1.msra.mxu0 %v6763
  %6765 = vmatprep.subr.mxu0 0.0
  %v6766 = vand.u32 %v6245, 4294901760
  %6767 = vmatpush1.msra.mxu0 %v6766
  %6768 = vmatprep.subr.mxu0 0.0
  %v6769 = vand.u32 %v6246, 4294901760
  %6770 = vmatpush1.msra.mxu0 %v6769
  %6771 = vmatprep.subr.mxu0 0.0
  %v6772 = vand.u32 %v6247, 4294901760
  %6773 = vmatpush1.msra.mxu0 %v6772
  %6774 = vmatprep.subr.mxu0 0.0
  %6775 = vmatpush1.msra.mxu0 0.0
  %6776 = vmatprep.subr.mxu0 0.0
  %6777 = vmatpush1.msra.mxu0 0.0
  %6778 = vmatprep.subr.mxu0 0.0
  %6779 = vmatpush1.msra.mxu0 0.0
  %6780 = vmatprep.subr.mxu0 0.0
  %6781 = vmatpush1.msra.mxu0 0.0
  %6782 = vmatprep.subr.mxu0 0.0
  %6783 = vmatpush1.msra.mxu0 0.0
  %6784 = vmatprep.subr.mxu0 0.0
  %6785 = vmatpush1.msra.mxu0 0.0
  %6786 = vmatprep.subr.mxu0 0.0
  %6787 = vmatpush1.msra.mxu0 0.0
  %6788 = vmatprep.subr.mxu0 0.0
  %6789 = vmatpush1.msra.mxu0 0.0
  %6790 = vmatprep.subr.mxu0 0.0
  %6791 = vmatpush1.msra.mxu0 0.0
  %6792 = vmatprep.subr.mxu0 0.0
  %6793 = vmatpush1.msra.mxu0 0.0
  %6794 = vmatprep.subr.mxu0 0.0
  %6795 = vmatpush1.msra.mxu0 0.0
  %6796 = vmatprep.subr.mxu0 0.0
  %6797 = vmatpush1.msra.mxu0 0.0
  %6798 = vmatprep.subr.mxu0 0.0
  %6799 = vmatpush1.msra.mxu0 0.0
  %6800 = vmatprep.subr.mxu0 0.0
  %6801 = vmatpush1.msra.mxu0 0.0
  %6802 = vmatprep.subr.mxu0 0.0
  %6803 = vmatpush1.msra.mxu0 0.0
  %6804 = vmatprep.subr.mxu0 0.0
  %6805 = vmatpush1.msra.mxu0 0.0
  %6806 = vmatprep.subr.mxu0 0.0
  %6807 = vmatpush1.msra.mxu0 0.0
  %6808 = vmatprep.subr.mxu0 0.0
  %6809 = vmatpush1.msra.mxu0 0.0
  %6810 = vmatprep.subr.mxu0 0.0
  %6811 = vmatpush1.msra.mxu0 0.0
  %6812 = vmatprep.subr.mxu0 0.0
  %6813 = vmatpush1.msra.mxu0 0.0
  %6814 = vmatprep.subr.mxu0 0.0
  %6815 = vmatpush1.msra.mxu0 0.0
  %6816 = vmatprep.subr.mxu0 0.0
  %6817 = vmatpush1.msra.mxu0 0.0
  %6818 = vmatprep.subr.mxu0 0.0
  %6819 = vmatpush1.msra.mxu0 0.0
  %6820 = vmatprep.subr.mxu0 0.0
  %6821 = vmatpush1.msra.mxu0 0.0
  %6822 = vmatprep.mubr.f32.mxu0 0.0
  %v6823 = vand.u32 %v6250, 4294901760
  %6824 = vmatmul.mubr.f32.gmra.mrb[0].mxu0 %v6823
  %v6825 = vpop.f32.mrb[0].mxu0
  %v6826 = vadd.f32 %v6741, %v6825
  %v6827 = vpop.f32.mrb[0].mxu0
  %6828 = vmatprep.mubr.f32.mxu0 0.0
  %v6829 = vand.u32 %v6253, 4294901760
  %6830 = vmatmul.mubr.f32.gmra.mrb[0].mxu0 %v6829
  %v6831 = vpop.f32.mrb[0].mxu0
  %v6832 = vadd.f32 %v6747, %v6831
  %v6833 = vpop.f32.mrb[0].mxu0
  %6834 = vdwg.mxu0
  %v6835 = vld [vmem:[%s14] sm:$0xff]
  %v6836 = vld [vmem:[%s14 + $0x8] sm:$0xff]
  %v6837 = vld [vmem:[%s14 + $0x10] sm:$0xff]
  %v6838 = vld [vmem:[%s14 + $0x18] sm:$0xff]
  %v6839 = vld [vmem:[%s14 + $0x20] sm:$0xff]
  %v6840 = vld [vmem:[%s14 + $0x28] sm:$0xff]
  %v6841 = vld [vmem:[%s14 + $0x30] sm:$0xff]
  %v6842 = vld [vmem:[%s14 + $0x38] sm:$0xff]
  %6843 = vmatprep.subr.mxu0 0.0
  %v6844 = vand.u32 %v6835, 4294901760
  %6845 = vmatpush1.msra.mxu0 %v6844
  %6846 = vmatprep.subr.mxu0 0.0
  %v6847 = vand.u32 %v6836, 4294901760
  %6848 = vmatpush1.msra.mxu0 %v6847
  %6849 = vmatprep.subr.mxu0 0.0
  %v6850 = vand.u32 %v6837, 4294901760
  %6851 = vmatpush1.msra.mxu0 %v6850
  %6852 = vmatprep.subr.mxu0 0.0
  %v6853 = vand.u32 %v6838, 4294901760
  %6854 = vmatpush1.msra.mxu0 %v6853
  %6855 = vmatprep.subr.mxu0 0.0
  %v6856 = vand.u32 %v6839, 4294901760
  %6857 = vmatpush1.msra.mxu0 %v6856
  %6858 = vmatprep.subr.mxu0 0.0
  %v6859 = vand.u32 %v6840, 4294901760
  %6860 = vmatpush1.msra.mxu0 %v6859
  %6861 = vmatprep.subr.mxu0 0.0
  %v6862 = vand.u32 %v6841, 4294901760
  %6863 = vmatpush1.msra.mxu0 %v6862
  %6864 = vmatprep.subr.mxu0 0.0
  %v6865 = vand.u32 %v6842, 4294901760
  %6866 = vmatpush1.msra.mxu0 %v6865
  %6867 = vmatprep.subr.mxu0 0.0
  %6868 = vmatpush1.msra.mxu0 0.0
  %6869 = vmatprep.subr.mxu0 0.0
  %6870 = vmatpush1.msra.mxu0 0.0
  %6871 = vmatprep.subr.mxu0 0.0
  %6872 = vmatpush1.msra.mxu0 0.0
  %6873 = vmatprep.subr.mxu0 0.0
  %6874 = vmatpush1.msra.mxu0 0.0
  %6875 = vmatprep.subr.mxu0 0.0
  %6876 = vmatpush1.msra.mxu0 0.0
  %6877 = vmatprep.subr.mxu0 0.0
  %6878 = vmatpush1.msra.mxu0 0.0
  %6879 = vmatprep.subr.mxu0 0.0
  %6880 = vmatpush1.msra.mxu0 0.0
  %6881 = vmatprep.subr.mxu0 0.0
  %6882 = vmatpush1.msra.mxu0 0.0
  %6883 = vmatprep.subr.mxu0 0.0
  %6884 = vmatpush1.msra.mxu0 0.0
  %6885 = vmatprep.subr.mxu0 0.0
  %6886 = vmatpush1.msra.mxu0 0.0
  %6887 = vmatprep.subr.mxu0 0.0
  %6888 = vmatpush1.msra.mxu0 0.0
  %6889 = vmatprep.subr.mxu0 0.0
  %6890 = vmatpush1.msra.mxu0 0.0
  %6891 = vmatprep.subr.mxu0 0.0
  %6892 = vmatpush1.msra.mxu0 0.0
  %6893 = vmatprep.subr.mxu0 0.0
  %6894 = vmatpush1.msra.mxu0 0.0
  %6895 = vmatprep.subr.mxu0 0.0
  %6896 = vmatpush1.msra.mxu0 0.0
  %6897 = vmatprep.subr.mxu0 0.0
  %6898 = vmatpush1.msra.mxu0 0.0
  %6899 = vmatprep.subr.mxu0 0.0
  %6900 = vmatpush1.msra.mxu0 0.0
  %6901 = vmatprep.subr.mxu0 0.0
  %6902 = vmatpush1.msra.mxu0 0.0
  %6903 = vmatprep.subr.mxu0 0.0
  %6904 = vmatpush1.msra.mxu0 0.0
  %6905 = vmatprep.subr.mxu0 0.0
  %6906 = vmatpush1.msra.mxu0 0.0
  %6907 = vmatprep.subr.mxu0 0.0
  %6908 = vmatpush1.msra.mxu0 0.0
  %6909 = vmatprep.subr.mxu0 0.0
  %6910 = vmatpush1.msra.mxu0 0.0
  %6911 = vmatprep.subr.mxu0 0.0
  %6912 = vmatpush1.msra.mxu0 0.0
  %6913 = vmatprep.subr.mxu0 0.0
  %6914 = vmatpush1.msra.mxu0 0.0
  %6915 = vmatprep.mubr.f32.mxu0 0.0
  %v6916 = vand.u32 %v6250, 4294901760
  %v6917 = vsub.f32 %v6250, %v6916
  %v6918 = vand.u32 %v6917, 4294901760
  %v6919 = vsub.f32 %v6917, %v6918
  %v6920 = vand.u32 %v6919, 4294901760
  %6921 = vmatmul.mubr.f32.gmra.mrb[0].mxu0 %v6920
  %v6922 = vpop.f32.mrb[0].mxu0
  %v6923 = vadd.f32 0.0, %v6922
  %v6924 = vpop.f32.mrb[0].mxu0
  %6925 = vmatprep.mubr.f32.mxu0 0.0
  %v6926 = vand.u32 %v6253, 4294901760
  %v6927 = vsub.f32 %v6253, %v6926
  %v6928 = vand.u32 %v6927, 4294901760
  %v6929 = vsub.f32 %v6927, %v6928
  %v6930 = vand.u32 %v6929, 4294901760
  %6931 = vmatmul.mubr.f32.gmra.mrb[0].mxu0 %v6930
  %v6932 = vpop.f32.mrb[0].mxu0
  %v6933 = vadd.f32 0.0, %v6932
  %v6934 = vpop.f32.mrb[0].mxu0
  %6935 = vdwg.mxu0
  %6936 = vmatprep.subr.mxu0 0.0
  %v6937 = vand.u32 %v6835, 4294901760
  %v6938 = vsub.f32 %v6835, %v6937
  %v6939 = vand.u32 %v6938, 4294901760
  %v6940 = vsub.f32 %v6938, %v6939
  %v6941 = vand.u32 %v6940, 4294901760
  %6942 = vmatpush1.msra.mxu0 %v6941
  %6943 = vmatprep.subr.mxu0 0.0
  %v6944 = vand.u32 %v6836, 4294901760
  %v6945 = vsub.f32 %v6836, %v6944
  %v6946 = vand.u32 %v6945, 4294901760
  %v6947 = vsub.f32 %v6945, %v6946
  %v6948 = vand.u32 %v6947, 4294901760
  %6949 = vmatpush1.msra.mxu0 %v6948
  %6950 = vmatprep.subr.mxu0 0.0
  %v6951 = vand.u32 %v6837, 4294901760
  %v6952 = vsub.f32 %v6837, %v6951
  %v6953 = vand.u32 %v6952, 4294901760
  %v6954 = vsub.f32 %v6952, %v6953
  %v6955 = vand.u32 %v6954, 4294901760
  %6956 = vmatpush1.msra.mxu0 %v6955
  %6957 = vmatprep.subr.mxu0 0.0
  %v6958 = vand.u32 %v6838, 4294901760
  %v6959 = vsub.f32 %v6838, %v6958
  %v6960 = vand.u32 %v6959, 4294901760
  %v6961 = vsub.f32 %v6959, %v6960
  %v6962 = vand.u32 %v6961, 4294901760
  %6963 = vmatpush1.msra.mxu0 %v6962
  %6964 = vmatprep.subr.mxu0 0.0
  %v6965 = vand.u32 %v6839, 4294901760
  %v6966 = vsub.f32 %v6839, %v6965
  %v6967 = vand.u32 %v6966, 4294901760
  %v6968 = vsub.f32 %v6966, %v6967
  %v6969 = vand.u32 %v6968, 4294901760
  %6970 = vmatpush1.msra.mxu0 %v6969
  %6971 = vmatprep.subr.mxu0 0.0
  %v6972 = vand.u32 %v6840, 4294901760
  %v6973 = vsub.f32 %v6840, %v6972
  %v6974 = vand.u32 %v6973, 4294901760
  %v6975 = vsub.f32 %v6973, %v6974
  %v6976 = vand.u32 %v6975, 4294901760
  %6977 = vmatpush1.msra.mxu0 %v6976
  %6978 = vmatprep.subr.mxu0 0.0
  %v6979 = vand.u32 %v6841, 4294901760
  %v6980 = vsub.f32 %v6841, %v6979
  %v6981 = vand.u32 %v6980, 4294901760
  %v6982 = vsub.f32 %v6980, %v6981
  %v6983 = vand.u32 %v6982, 4294901760
  %6984 = vmatpush1.msra.mxu0 %v6983
  %6985 = vmatprep.subr.mxu0 0.0
  %v6986 = vand.u32 %v6842, 4294901760
  %v6987 = vsub.f32 %v6842, %v6986
  %v6988 = vand.u32 %v6987, 4294901760
  %v6989 = vsub.f32 %v6987, %v6988
  %v6990 = vand.u32 %v6989, 4294901760
  %6991 = vmatpush1.msra.mxu0 %v6990
  %6992 = vmatprep.subr.mxu0 0.0
  %6993 = vmatpush1.msra.mxu0 0.0
  %6994 = vmatprep.subr.mxu0 0.0
  %6995 = vmatpush1.msra.mxu0 0.0
  %6996 = vmatprep.subr.mxu0 0.0
  %6997 = vmatpush1.msra.mxu0 0.0
  %6998 = vmatprep.subr.mxu0 0.0
  %6999 = vmatpush1.msra.mxu0 0.0
  %7000 = vmatprep.subr.mxu0 0.0
  %7001 = vmatpush1.msra.mxu0 0.0
  %7002 = vmatprep.subr.mxu0 0.0
  %7003 = vmatpush1.msra.mxu0 0.0
  %7004 = vmatprep.subr.mxu0 0.0
  %7005 = vmatpush1.msra.mxu0 0.0
  %7006 = vmatprep.subr.mxu0 0.0
  %7007 = vmatpush1.msra.mxu0 0.0
  %7008 = vmatprep.subr.mxu0 0.0
  %7009 = vmatpush1.msra.mxu0 0.0
  %7010 = vmatprep.subr.mxu0 0.0
  %7011 = vmatpush1.msra.mxu0 0.0
  %7012 = vmatprep.subr.mxu0 0.0
  %7013 = vmatpush1.msra.mxu0 0.0
  %7014 = vmatprep.subr.mxu0 0.0
  %7015 = vmatpush1.msra.mxu0 0.0
  %7016 = vmatprep.subr.mxu0 0.0
  %7017 = vmatpush1.msra.mxu0 0.0
  %7018 = vmatprep.subr.mxu0 0.0
  %7019 = vmatpush1.msra.mxu0 0.0
  %7020 = vmatprep.subr.mxu0 0.0
  %7021 = vmatpush1.msra.mxu0 0.0
  %7022 = vmatprep.subr.mxu0 0.0
  %7023 = vmatpush1.msra.mxu0 0.0
  %7024 = vmatprep.subr.mxu0 0.0
  %7025 = vmatpush1.msra.mxu0 0.0
  %7026 = vmatprep.subr.mxu0 0.0
  %7027 = vmatpush1.msra.mxu0 0.0
  %7028 = vmatprep.subr.mxu0 0.0
  %7029 = vmatpush1.msra.mxu0 0.0
  %7030 = vmatprep.subr.mxu0 0.0
  %7031 = vmatpush1.msra.mxu0 0.0
  %7032 = vmatprep.subr.mxu0 0.0
  %7033 = vmatpush1.msra.mxu0 0.0
  %7034 = vmatprep.subr.mxu0 0.0
  %7035 = vmatpush1.msra.mxu0 0.0
  %7036 = vmatprep.subr.mxu0 0.0
  %7037 = vmatpush1.msra.mxu0 0.0
  %7038 = vmatprep.subr.mxu0 0.0
  %7039 = vmatpush1.msra.mxu0 0.0
  %7040 = vmatprep.mubr.f32.mxu0 0.0
  %v7041 = vand.u32 %v6250, 4294901760
  %7042 = vmatmul.mubr.f32.gmra.mrb[0].mxu0 %v7041
  %v7043 = vpop.f32.mrb[0].mxu0
  %v7044 = vadd.f32 %v6923, %v7043
  %v7045 = vpop.f32.mrb[0].mxu0
  %7046 = vmatprep.mubr.f32.mxu0 0.0
  %v7047 = vand.u32 %v6253, 4294901760
  %7048 = vmatmul.mubr.f32.gmra.mrb[0].mxu0 %v7047
  %v7049 = vpop.f32.mrb[0].mxu0
  %v7050 = vadd.f32 %v6933, %v7049
  %v7051 = vpop.f32.mrb[0].mxu0
  %7052 = vdwg.mxu0
  %7053 = vmatprep.subr.mxu0 0.0
  %v7054 = vand.u32 %v6835, 4294901760
  %v7055 = vsub.f32 %v6835, %v7054
  %7056 = vmatpush1.msra.mxu0 %v7055
  %7057 = vmatprep.subr.mxu0 0.0
  %v7058 = vand.u32 %v6836, 4294901760
  %v7059 = vsub.f32 %v6836, %v7058
  %7060 = vmatpush1.msra.mxu0 %v7059
  %7061 = vmatprep.subr.mxu0 0.0
  %v7062 = vand.u32 %v6837, 4294901760
  %v7063 = vsub.f32 %v6837, %v7062
  %7064 = vmatpush1.msra.mxu0 %v7063
  %7065 = vmatprep.subr.mxu0 0.0
  %v7066 = vand.u32 %v6838, 4294901760
  %v7067 = vsub.f32 %v6838, %v7066
  %7068 = vmatpush1.msra.mxu0 %v7067
  %7069 = vmatprep.subr.mxu0 0.0
  %v7070 = vand.u32 %v6839, 4294901760
  %v7071 = vsub.f32 %v6839, %v7070
  %7072 = vmatpush1.msra.mxu0 %v7071
  %7073 = vmatprep.subr.mxu0 0.0
  %v7074 = vand.u32 %v6840, 4294901760
  %v7075 = vsub.f32 %v6840, %v7074
  %7076 = vmatpush1.msra.mxu0 %v7075
  %7077 = vmatprep.subr.mxu0 0.0
  %v7078 = vand.u32 %v6841, 4294901760
  %v7079 = vsub.f32 %v6841, %v7078
  %7080 = vmatpush1.msra.mxu0 %v7079
  %7081 = vmatprep.subr.mxu0 0.0
  %v7082 = vand.u32 %v6842, 4294901760
  %v7083 = vsub.f32 %v6842, %v7082
  %7084 = vmatpush1.msra.mxu0 %v7083
  %7085 = vmatprep.subr.mxu0 0.0
  %7086 = vmatpush1.msra.mxu0 0.0
  %7087 = vmatprep.subr.mxu0 0.0
  %7088 = vmatpush1.msra.mxu0 0.0
  %7089 = vmatprep.subr.mxu0 0.0
  %7090 = vmatpush1.msra.mxu0 0.0
  %7091 = vmatprep.subr.mxu0 0.0
  %7092 = vmatpush1.msra.mxu0 0.0
  %7093 = vmatprep.subr.mxu0 0.0
  %7094 = vmatpush1.msra.mxu0 0.0
  %7095 = vmatprep.subr.mxu0 0.0
  %7096 = vmatpush1.msra.mxu0 0.0
  %7097 = vmatprep.subr.mxu0 0.0
  %7098 = vmatpush1.msra.mxu0 0.0
  %7099 = vmatprep.subr.mxu0 0.0
  %7100 = vmatpush1.msra.mxu0 0.0
  %7101 = vmatprep.subr.mxu0 0.0
  %7102 = vmatpush1.msra.mxu0 0.0
  %7103 = vmatprep.subr.mxu0 0.0
  %7104 = vmatpush1.msra.mxu0 0.0
  %7105 = vmatprep.subr.mxu0 0.0
  %7106 = vmatpush1.msra.mxu0 0.0
  %7107 = vmatprep.subr.mxu0 0.0
  %7108 = vmatpush1.msra.mxu0 0.0
  %7109 = vmatprep.subr.mxu0 0.0
  %7110 = vmatpush1.msra.mxu0 0.0
  %7111 = vmatprep.subr.mxu0 0.0
  %7112 = vmatpush1.msra.mxu0 0.0
  %7113 = vmatprep.subr.mxu0 0.0
  %7114 = vmatpush1.msra.mxu0 0.0
  %7115 = vmatprep.subr.mxu0 0.0
  %7116 = vmatpush1.msra.mxu0 0.0
  %7117 = vmatprep.subr.mxu0 0.0
  %7118 = vmatpush1.msra.mxu0 0.0
  %7119 = vmatprep.subr.mxu0 0.0
  %7120 = vmatpush1.msra.mxu0 0.0
  %7121 = vmatprep.subr.mxu0 0.0
  %7122 = vmatpush1.msra.mxu0 0.0
  %7123 = vmatprep.subr.mxu0 0.0
  %7124 = vmatpush1.msra.mxu0 0.0
  %7125 = vmatprep.subr.mxu0 0.0
  %7126 = vmatpush1.msra.mxu0 0.0
  %7127 = vmatprep.subr.mxu0 0.0
  %7128 = vmatpush1.msra.mxu0 0.0
  %7129 = vmatprep.subr.mxu0 0.0
  %7130 = vmatpush1.msra.mxu0 0.0
  %7131 = vmatprep.subr.mxu0 0.0
  %7132 = vmatpush1.msra.mxu0 0.0
  %7133 = vmatprep.mubr.f32.mxu0 0.0
  %v7134 = vand.u32 %v6250, 4294901760
  %v7135 = vsub.f32 %v6250, %v7134
  %7136 = vmatmul.mubr.f32.gmra.mrb[0].mxu0 %v7135
  %v7137 = vpop.f32.mrb[0].mxu0
  %v7138 = vadd.f32 %v7044, %v7137
  %v7139 = vpop.f32.mrb[0].mxu0
  %7140 = vmatprep.mubr.f32.mxu0 0.0
  %v7141 = vand.u32 %v6253, 4294901760
  %v7142 = vsub.f32 %v6253, %v7141
  %7143 = vmatmul.mubr.f32.gmra.mrb[0].mxu0 %v7142
  %v7144 = vpop.f32.mrb[0].mxu0
  %v7145 = vadd.f32 %v7050, %v7144
  %v7146 = vpop.f32.mrb[0].mxu0
  %7147 = vdwg.mxu0
  %7148 = vmatprep.subr.mxu0 0.0
  %v7149 = vand.u32 %v6835, 4294901760
  %7150 = vmatpush1.msra.mxu0 %v7149
  %7151 = vmatprep.subr.mxu0 0.0
  %v7152 = vand.u32 %v6836, 4294901760
  %7153 = vmatpush1.msra.mxu0 %v7152
  %7154 = vmatprep.subr.mxu0 0.0
  %v7155 = vand.u32 %v6837, 4294901760
  %7156 = vmatpush1.msra.mxu0 %v7155
  %7157 = vmatprep.subr.mxu0 0.0
  %v7158 = vand.u32 %v6838, 4294901760
  %7159 = vmatpush1.msra.mxu0 %v7158
  %7160 = vmatprep.subr.mxu0 0.0
  %v7161 = vand.u32 %v6839, 4294901760
  %7162 = vmatpush1.msra.mxu0 %v7161
  %7163 = vmatprep.subr.mxu0 0.0
  %v7164 = vand.u32 %v6840, 4294901760
  %7165 = vmatpush1.msra.mxu0 %v7164
  %7166 = vmatprep.subr.mxu0 0.0
  %v7167 = vand.u32 %v6841, 4294901760
  %7168 = vmatpush1.msra.mxu0 %v7167
  %7169 = vmatprep.subr.mxu0 0.0
  %v7170 = vand.u32 %v6842, 4294901760
  %7171 = vmatpush1.msra.mxu0 %v7170
  %7172 = vmatprep.subr.mxu0 0.0
  %7173 = vmatpush1.msra.mxu0 0.0
  %7174 = vmatprep.subr.mxu0 0.0
  %7175 = vmatpush1.msra.mxu0 0.0
  %7176 = vmatprep.subr.mxu0 0.0
  %7177 = vmatpush1.msra.mxu0 0.0
  %7178 = vmatprep.subr.mxu0 0.0
  %7179 = vmatpush1.msra.mxu0 0.0
  %7180 = vmatprep.subr.mxu0 0.0
  %7181 = vmatpush1.msra.mxu0 0.0
  %7182 = vmatprep.subr.mxu0 0.0
  %7183 = vmatpush1.msra.mxu0 0.0
  %7184 = vmatprep.subr.mxu0 0.0
  %7185 = vmatpush1.msra.mxu0 0.0
  %7186 = vmatprep.subr.mxu0 0.0
  %7187 = vmatpush1.msra.mxu0 0.0
  %7188 = vmatprep.subr.mxu0 0.0
  %7189 = vmatpush1.msra.mxu0 0.0
  %7190 = vmatprep.subr.mxu0 0.0
  %7191 = vmatpush1.msra.mxu0 0.0
  %7192 = vmatprep.subr.mxu0 0.0
  %7193 = vmatpush1.msra.mxu0 0.0
  %7194 = vmatprep.subr.mxu0 0.0
  %7195 = vmatpush1.msra.mxu0 0.0
  %7196 = vmatprep.subr.mxu0 0.0
  %7197 = vmatpush1.msra.mxu0 0.0
  %7198 = vmatprep.subr.mxu0 0.0
  %7199 = vmatpush1.msra.mxu0 0.0
  %7200 = vmatprep.subr.mxu0 0.0
  %7201 = vmatpush1.msra.mxu0 0.0
  %7202 = vmatprep.subr.mxu0 0.0
  %7203 = vmatpush1.msra.mxu0 0.0
  %7204 = vmatprep.subr.mxu0 0.0
  %7205 = vmatpush1.msra.mxu0 0.0
  %7206 = vmatprep.subr.mxu0 0.0
  %7207 = vmatpush1.msra.mxu0 0.0
  %7208 = vmatprep.subr.mxu0 0.0
  %7209 = vmatpush1.msra.mxu0 0.0
  %7210 = vmatprep.subr.mxu0 0.0
  %7211 = vmatpush1.msra.mxu0 0.0
  %7212 = vmatprep.subr.mxu0 0.0
  %7213 = vmatpush1.msra.mxu0 0.0
  %7214 = vmatprep.subr.mxu0 0.0
  %7215 = vmatpush1.msra.mxu0 0.0
  %7216 = vmatprep.subr.mxu0 0.0
  %7217 = vmatpush1.msra.mxu0 0.0
  %7218 = vmatprep.subr.mxu0 0.0
  %7219 = vmatpush1.msra.mxu0 0.0
  %7220 = vmatprep.mubr.f32.mxu0 0.0
  %v7221 = vand.u32 %v6250, 4294901760
  %v7222 = vsub.f32 %v6250, %v7221
  %v7223 = vand.u32 %v7222, 4294901760
  %7224 = vmatmul.mubr.f32.gmra.mrb[0].mxu0 %v7223
  %v7225 = vpop.f32.mrb[0].mxu0
  %v7226 = vadd.f32 %v7138, %v7225
  %v7227 = vpop.f32.mrb[0].mxu0
  %7228 = vmatprep.mubr.f32.mxu0 0.0
  %v7229 = vand.u32 %v6253, 4294901760
  %v7230 = vsub.f32 %v6253, %v7229
  %v7231 = vand.u32 %v7230, 4294901760
  %7232 = vmatmul.mubr.f32.gmra.mrb[0].mxu0 %v7231
  %v7233 = vpop.f32.mrb[0].mxu0
  %v7234 = vadd.f32 %v7145, %v7233
  %v7235 = vpop.f32.mrb[0].mxu0
  %7236 = vdwg.mxu0
  %7237 = vmatprep.subr.mxu0 0.0
  %v7238 = vand.u32 %v6835, 4294901760
  %v7239 = vsub.f32 %v6835, %v7238
  %v7240 = vand.u32 %v7239, 4294901760
  %7241 = vmatpush1.msra.mxu0 %v7240
  %7242 = vmatprep.subr.mxu0 0.0
  %v7243 = vand.u32 %v6836, 4294901760
  %v7244 = vsub.f32 %v6836, %v7243
  %v7245 = vand.u32 %v7244, 4294901760
  %7246 = vmatpush1.msra.mxu0 %v7245
  %7247 = vmatprep.subr.mxu0 0.0
  %v7248 = vand.u32 %v6837, 4294901760
  %v7249 = vsub.f32 %v6837, %v7248
  %v7250 = vand.u32 %v7249, 4294901760
  %7251 = vmatpush1.msra.mxu0 %v7250
  %7252 = vmatprep.subr.mxu0 0.0
  %v7253 = vand.u32 %v6838, 4294901760
  %v7254 = vsub.f32 %v6838, %v7253
  %v7255 = vand.u32 %v7254, 4294901760
  %7256 = vmatpush1.msra.mxu0 %v7255
  %7257 = vmatprep.subr.mxu0 0.0
  %v7258 = vand.u32 %v6839, 4294901760
  %v7259 = vsub.f32 %v6839, %v7258
  %v7260 = vand.u32 %v7259, 4294901760
  %7261 = vmatpush1.msra.mxu0 %v7260
  %7262 = vmatprep.subr.mxu0 0.0
  %v7263 = vand.u32 %v6840, 4294901760
  %v7264 = vsub.f32 %v6840, %v7263
  %v7265 = vand.u32 %v7264, 4294901760
  %7266 = vmatpush1.msra.mxu0 %v7265
  %7267 = vmatprep.subr.mxu0 0.0
  %v7268 = vand.u32 %v6841, 4294901760
  %v7269 = vsub.f32 %v6841, %v7268
  %v7270 = vand.u32 %v7269, 4294901760
  %7271 = vmatpush1.msra.mxu0 %v7270
  %7272 = vmatprep.subr.mxu0 0.0
  %v7273 = vand.u32 %v6842, 4294901760
  %v7274 = vsub.f32 %v6842, %v7273
  %v7275 = vand.u32 %v7274, 4294901760
  %7276 = vmatpush1.msra.mxu0 %v7275
  %7277 = vmatprep.subr.mxu0 0.0
  %7278 = vmatpush1.msra.mxu0 0.0
  %7279 = vmatprep.subr.mxu0 0.0
  %7280 = vmatpush1.msra.mxu0 0.0
  %7281 = vmatprep.subr.mxu0 0.0
  %7282 = vmatpush1.msra.mxu0 0.0
  %7283 = vmatprep.subr.mxu0 0.0
  %7284 = vmatpush1.msra.mxu0 0.0
  %7285 = vmatprep.subr.mxu0 0.0
  %7286 = vmatpush1.msra.mxu0 0.0
  %7287 = vmatprep.subr.mxu0 0.0
  %7288 = vmatpush1.msra.mxu0 0.0
  %7289 = vmatprep.subr.mxu0 0.0
  %7290 = vmatpush1.msra.mxu0 0.0
  %7291 = vmatprep.subr.mxu0 0.0
  %7292 = vmatpush1.msra.mxu0 0.0
  %7293 = vmatprep.subr.mxu0 0.0
  %7294 = vmatpush1.msra.mxu0 0.0
  %7295 = vmatprep.subr.mxu0 0.0
  %7296 = vmatpush1.msra.mxu0 0.0
  %7297 = vmatprep.subr.mxu0 0.0
  %7298 = vmatpush1.msra.mxu0 0.0
  %7299 = vmatprep.subr.mxu0 0.0
  %7300 = vmatpush1.msra.mxu0 0.0
  %7301 = vmatprep.subr.mxu0 0.0
  %7302 = vmatpush1.msra.mxu0 0.0
  %7303 = vmatprep.subr.mxu0 0.0
  %7304 = vmatpush1.msra.mxu0 0.0
  %7305 = vmatprep.subr.mxu0 0.0
  %7306 = vmatpush1.msra.mxu0 0.0
  %7307 = vmatprep.subr.mxu0 0.0
  %7308 = vmatpush1.msra.mxu0 0.0
  %7309 = vmatprep.subr.mxu0 0.0
  %7310 = vmatpush1.msra.mxu0 0.0
  %7311 = vmatprep.subr.mxu0 0.0
  %7312 = vmatpush1.msra.mxu0 0.0
  %7313 = vmatprep.subr.mxu0 0.0
  %7314 = vmatpush1.msra.mxu0 0.0
  %7315 = vmatprep.subr.mxu0 0.0
  %7316 = vmatpush1.msra.mxu0 0.0
  %7317 = vmatprep.subr.mxu0 0.0
  %7318 = vmatpush1.msra.mxu0 0.0
  %7319 = vmatprep.subr.mxu0 0.0
  %7320 = vmatpush1.msra.mxu0 0.0
  %7321 = vmatprep.subr.mxu0 0.0
  %7322 = vmatpush1.msra.mxu0 0.0
  %7323 = vmatprep.subr.mxu0 0.0
  %7324 = vmatpush1.msra.mxu0 0.0
  %7325 = vmatprep.mubr.f32.mxu0 0.0
  %v7326 = vand.u32 %v6250, 4294901760
  %7327 = vmatmul.mubr.f32.gmra.mrb[0].mxu0 %v7326
  %v7328 = vpop.f32.mrb[0].mxu0
  %v7329 = vadd.f32 %v7226, %v7328
  %v7330 = vpop.f32.mrb[0].mxu0
  %7331 = vmatprep.mubr.f32.mxu0 0.0
  %v7332 = vand.u32 %v6253, 4294901760
  %7333 = vmatmul.mubr.f32.gmra.mrb[0].mxu0 %v7332
  %v7334 = vpop.f32.mrb[0].mxu0
  %v7335 = vadd.f32 %v7234, %v7334
  %v7336 = vpop.f32.mrb[0].mxu0
  %7337 = vdwg.mxu0
  %7338 = vmatprep.subr.mxu0 0.0
  %v7339 = vand.u32 %v6835, 4294901760
  %7340 = vmatpush1.msra.mxu0 %v7339
  %7341 = vmatprep.subr.mxu0 0.0
  %v7342 = vand.u32 %v6836, 4294901760
  %7343 = vmatpush1.msra.mxu0 %v7342
  %7344 = vmatprep.subr.mxu0 0.0
  %v7345 = vand.u32 %v6837, 4294901760
  %7346 = vmatpush1.msra.mxu0 %v7345
  %7347 = vmatprep.subr.mxu0 0.0
  %v7348 = vand.u32 %v6838, 4294901760
  %7349 = vmatpush1.msra.mxu0 %v7348
  %7350 = vmatprep.subr.mxu0 0.0
  %v7351 = vand.u32 %v6839, 4294901760
  %7352 = vmatpush1.msra.mxu0 %v7351
  %7353 = vmatprep.subr.mxu0 0.0
  %v7354 = vand.u32 %v6840, 4294901760
  %7355 = vmatpush1.msra.mxu0 %v7354
  %7356 = vmatprep.subr.mxu0 0.0
  %v7357 = vand.u32 %v6841, 4294901760
  %7358 = vmatpush1.msra.mxu0 %v7357
  %7359 = vmatprep.subr.mxu0 0.0
  %v7360 = vand.u32 %v6842, 4294901760
  %7361 = vmatpush1.msra.mxu0 %v7360
  %7362 = vmatprep.subr.mxu0 0.0
  %7363 = vmatpush1.msra.mxu0 0.0
  %7364 = vmatprep.subr.mxu0 0.0
  %7365 = vmatpush1.msra.mxu0 0.0
  %7366 = vmatprep.subr.mxu0 0.0
  %7367 = vmatpush1.msra.mxu0 0.0
  %7368 = vmatprep.subr.mxu0 0.0
  %7369 = vmatpush1.msra.mxu0 0.0
  %7370 = vmatprep.subr.mxu0 0.0
  %7371 = vmatpush1.msra.mxu0 0.0
  %7372 = vmatprep.subr.mxu0 0.0
  %7373 = vmatpush1.msra.mxu0 0.0
  %7374 = vmatprep.subr.mxu0 0.0
  %7375 = vmatpush1.msra.mxu0 0.0
  %7376 = vmatprep.subr.mxu0 0.0
  %7377 = vmatpush1.msra.mxu0 0.0
  %7378 = vmatprep.subr.mxu0 0.0
  %7379 = vmatpush1.msra.mxu0 0.0
  %7380 = vmatprep.subr.mxu0 0.0
  %7381 = vmatpush1.msra.mxu0 0.0
  %7382 = vmatprep.subr.mxu0 0.0
  %7383 = vmatpush1.msra.mxu0 0.0
  %7384 = vmatprep.subr.mxu0 0.0
  %7385 = vmatpush1.msra.mxu0 0.0
  %7386 = vmatprep.subr.mxu0 0.0
  %7387 = vmatpush1.msra.mxu0 0.0
  %7388 = vmatprep.subr.mxu0 0.0
  %7389 = vmatpush1.msra.mxu0 0.0
  %7390 = vmatprep.subr.mxu0 0.0
  %7391 = vmatpush1.msra.mxu0 0.0
  %7392 = vmatprep.subr.mxu0 0.0
  %7393 = vmatpush1.msra.mxu0 0.0
  %7394 = vmatprep.subr.mxu0 0.0
  %7395 = vmatpush1.msra.mxu0 0.0
  %7396 = vmatprep.subr.mxu0 0.0
  %7397 = vmatpush1.msra.mxu0 0.0
  %7398 = vmatprep.subr.mxu0 0.0
  %7399 = vmatpush1.msra.mxu0 0.0
  %7400 = vmatprep.subr.mxu0 0.0
  %7401 = vmatpush1.msra.mxu0 0.0
  %7402 = vmatprep.subr.mxu0 0.0
  %7403 = vmatpush1.msra.mxu0 0.0
  %7404 = vmatprep.subr.mxu0 0.0
  %7405 = vmatpush1.msra.mxu0 0.0
  %7406 = vmatprep.subr.mxu0 0.0
  %7407 = vmatpush1.msra.mxu0 0.0
  %7408 = vmatprep.subr.mxu0 0.0
  %7409 = vmatpush1.msra.mxu0 0.0
  %7410 = vmatprep.mubr.f32.mxu0 0.0
  %v7411 = vand.u32 %v6250, 4294901760
  %7412 = vmatmul.mubr.f32.gmra.mrb[0].mxu0 %v7411
  %v7413 = vpop.f32.mrb[0].mxu0
  %v7414 = vadd.f32 %v7329, %v7413
  %v7415 = vpop.f32.mrb[0].mxu0
  %7416 = vmatprep.mubr.f32.mxu0 0.0
  %v7417 = vand.u32 %v6253, 4294901760
  %7418 = vmatmul.mubr.f32.gmra.mrb[0].mxu0 %v7417
  %v7419 = vpop.f32.mrb[0].mxu0
  %v7420 = vadd.f32 %v7335, %v7419
  %v7421 = vpop.f32.mrb[0].mxu0
  %7422 = vdwg.mxu0
  %v7423 = vmax.f32 %v6826, %v7414
  %v7424 = vmax.f32 %v6832, %v7420
  %v7425 = vld [vmem:[%s15] sm:$0xff]
  %v7427 = vsel %vm4933, %v7425, 0
  %7429 = vmatprep.subr.mxu0 0.0
  %v7430 = vand.u32 %v7423, 4294901760
  %7431 = vmatpush1.msra.mxu0 %v7430
  %7432 = vmatprep.subr.mxu0 0.0
  %v7433 = vand.u32 %v7424, 4294901760
  %7434 = vmatpush1.msra.mxu0 %v7433
  %7435 = vmatprep.subr.mxu0 0.0
  %7436 = vmatpush1.msra.mxu0 0.0
  %7437 = vmatprep.subr.mxu0 0.0
  %7438 = vmatpush1.msra.mxu0 0.0
  %7439 = vmatprep.subr.mxu0 0.0
  %7440 = vmatpush1.msra.mxu0 0.0
  %7441 = vmatprep.subr.mxu0 0.0
  %7442 = vmatpush1.msra.mxu0 0.0
  %7443 = vmatprep.subr.mxu0 0.0
  %7444 = vmatpush1.msra.mxu0 0.0
  %7445 = vmatprep.subr.mxu0 0.0
  %7446 = vmatpush1.msra.mxu0 0.0
  %7447 = vmatprep.subr.mxu0 0.0
  %7448 = vmatpush1.msra.mxu0 0.0
  %7449 = vmatprep.subr.mxu0 0.0
  %7450 = vmatpush1.msra.mxu0 0.0
  %7451 = vmatprep.subr.mxu0 0.0
  %7452 = vmatpush1.msra.mxu0 0.0
  %7453 = vmatprep.subr.mxu0 0.0
  %7454 = vmatpush1.msra.mxu0 0.0
  %7455 = vmatprep.subr.mxu0 0.0
  %7456 = vmatpush1.msra.mxu0 0.0
  %7457 = vmatprep.subr.mxu0 0.0
  %7458 = vmatpush1.msra.mxu0 0.0
  %7459 = vmatprep.subr.mxu0 0.0
  %7460 = vmatpush1.msra.mxu0 0.0
  %7461 = vmatprep.subr.mxu0 0.0
  %7462 = vmatpush1.msra.mxu0 0.0
  %7463 = vmatprep.subr.mxu0 0.0
  %7464 = vmatpush1.msra.mxu0 0.0
  %7465 = vmatprep.subr.mxu0 0.0
  %7466 = vmatpush1.msra.mxu0 0.0
  %7467 = vmatprep.subr.mxu0 0.0
  %7468 = vmatpush1.msra.mxu0 0.0
  %7469 = vmatprep.subr.mxu0 0.0
  %7470 = vmatpush1.msra.mxu0 0.0
  %7471 = vmatprep.subr.mxu0 0.0
  %7472 = vmatpush1.msra.mxu0 0.0
  %7473 = vmatprep.subr.mxu0 0.0
  %7474 = vmatpush1.msra.mxu0 0.0
  %7475 = vmatprep.subr.mxu0 0.0
  %7476 = vmatpush1.msra.mxu0 0.0
  %7477 = vmatprep.subr.mxu0 0.0
  %7478 = vmatpush1.msra.mxu0 0.0
  %7479 = vmatprep.subr.mxu0 0.0
  %7480 = vmatpush1.msra.mxu0 0.0
  %7481 = vmatprep.subr.mxu0 0.0
  %7482 = vmatpush1.msra.mxu0 0.0
  %7483 = vmatprep.subr.mxu0 0.0
  %7484 = vmatpush1.msra.mxu0 0.0
  %7485 = vmatprep.subr.mxu0 0.0
  %7486 = vmatpush1.msra.mxu0 0.0
  %7487 = vmatprep.subr.mxu0 0.0
  %7488 = vmatpush1.msra.mxu0 0.0
  %7489 = vmatprep.subr.mxu0 0.0
  %7490 = vmatpush1.msra.mxu0 0.0
  %7491 = vmatprep.subr.mxu0 0.0
  %7492 = vmatpush1.msra.mxu0 0.0
  %7493 = vmatprep.subr.mxu0 0.0
  %7494 = vmatpush1.msra.mxu0 0.0
  %7495 = vmatprep.mubr.f32.mxu0 0.0
  %v7496 = vand.u32 %v7427, 4294901760
  %v7497 = vsub.f32 %v7427, %v7496
  %v7498 = vand.u32 %v7497, 4294901760
  %v7499 = vsub.f32 %v7497, %v7498
  %v7500 = vand.u32 %v7499, 4294901760
  %7501 = vmatmul.mubr.f32.gmra.mrb[0].mxu0 %v7500
  %v7502 = vpop.f32.mrb[0].mxu0
  %v7503 = vadd.f32 0.0, %v7502
  %v7504 = vpop.f32.mrb[0].mxu0
  %7505 = vdwg.mxu0
  %7506 = vmatprep.subr.mxu0 0.0
  %v7507 = vand.u32 %v7423, 4294901760
  %v7508 = vsub.f32 %v7423, %v7507
  %v7509 = vand.u32 %v7508, 4294901760
  %v7510 = vsub.f32 %v7508, %v7509
  %v7511 = vand.u32 %v7510, 4294901760
  %7512 = vmatpush1.msra.mxu0 %v7511
  %7513 = vmatprep.subr.mxu0 0.0
  %v7514 = vand.u32 %v7424, 4294901760
  %v7515 = vsub.f32 %v7424, %v7514
  %v7516 = vand.u32 %v7515, 4294901760
  %v7517 = vsub.f32 %v7515, %v7516
  %v7518 = vand.u32 %v7517, 4294901760
  %7519 = vmatpush1.msra.mxu0 %v7518
  %7520 = vmatprep.subr.mxu0 0.0
  %7521 = vmatpush1.msra.mxu0 0.0
  %7522 = vmatprep.subr.mxu0 0.0
  %7523 = vmatpush1.msra.mxu0 0.0
  %7524 = vmatprep.subr.mxu0 0.0
  %7525 = vmatpush1.msra.mxu0 0.0
  %7526 = vmatprep.subr.mxu0 0.0
  %7527 = vmatpush1.msra.mxu0 0.0
  %7528 = vmatprep.subr.mxu0 0.0
  %7529 = vmatpush1.msra.mxu0 0.0
  %7530 = vmatprep.subr.mxu0 0.0
  %7531 = vmatpush1.msra.mxu0 0.0
  %7532 = vmatprep.subr.mxu0 0.0
  %7533 = vmatpush1.msra.mxu0 0.0
  %7534 = vmatprep.subr.mxu0 0.0
  %7535 = vmatpush1.msra.mxu0 0.0
  %7536 = vmatprep.subr.mxu0 0.0
  %7537 = vmatpush1.msra.mxu0 0.0
  %7538 = vmatprep.subr.mxu0 0.0
  %7539 = vmatpush1.msra.mxu0 0.0
  %7540 = vmatprep.subr.mxu0 0.0
  %7541 = vmatpush1.msra.mxu0 0.0
  %7542 = vmatprep.subr.mxu0 0.0
  %7543 = vmatpush1.msra.mxu0 0.0
  %7544 = vmatprep.subr.mxu0 0.0
  %7545 = vmatpush1.msra.mxu0 0.0
  %7546 = vmatprep.subr.mxu0 0.0
  %7547 = vmatpush1.msra.mxu0 0.0
  %7548 = vmatprep.subr.mxu0 0.0
  %7549 = vmatpush1.msra.mxu0 0.0
  %7550 = vmatprep.subr.mxu0 0.0
  %7551 = vmatpush1.msra.mxu0 0.0
  %7552 = vmatprep.subr.mxu0 0.0
  %7553 = vmatpush1.msra.mxu0 0.0
  %7554 = vmatprep.subr.mxu0 0.0
  %7555 = vmatpush1.msra.mxu0 0.0
  %7556 = vmatprep.subr.mxu0 0.0
  %7557 = vmatpush1.msra.mxu0 0.0
  %7558 = vmatprep.subr.mxu0 0.0
  %7559 = vmatpush1.msra.mxu0 0.0
  %7560 = vmatprep.subr.mxu0 0.0
  %7561 = vmatpush1.msra.mxu0 0.0
  %7562 = vmatprep.subr.mxu0 0.0
  %7563 = vmatpush1.msra.mxu0 0.0
  %7564 = vmatprep.subr.mxu0 0.0
  %7565 = vmatpush1.msra.mxu0 0.0
  %7566 = vmatprep.subr.mxu0 0.0
  %7567 = vmatpush1.msra.mxu0 0.0
  %7568 = vmatprep.subr.mxu0 0.0
  %7569 = vmatpush1.msra.mxu0 0.0
  %7570 = vmatprep.subr.mxu0 0.0
  %7571 = vmatpush1.msra.mxu0 0.0
  %7572 = vmatprep.subr.mxu0 0.0
  %7573 = vmatpush1.msra.mxu0 0.0
  %7574 = vmatprep.subr.mxu0 0.0
  %7575 = vmatpush1.msra.mxu0 0.0
  %7576 = vmatprep.subr.mxu0 0.0
  %7577 = vmatpush1.msra.mxu0 0.0
  %7578 = vmatprep.subr.mxu0 0.0
  %7579 = vmatpush1.msra.mxu0 0.0
  %7580 = vmatprep.mubr.f32.mxu0 0.0
  %v7581 = vand.u32 %v7427, 4294901760
  %7582 = vmatmul.mubr.f32.gmra.mrb[0].mxu0 %v7581
  %v7583 = vpop.f32.mrb[0].mxu0
  %v7584 = vadd.f32 %v7503, %v7583
  %v7585 = vpop.f32.mrb[0].mxu0
  %7586 = vdwg.mxu0
  %7587 = vmatprep.subr.mxu0 0.0
  %v7588 = vand.u32 %v7423, 4294901760
  %v7589 = vsub.f32 %v7423, %v7588
  %7590 = vmatpush1.msra.mxu0 %v7589
  %7591 = vmatprep.subr.mxu0 0.0
  %v7592 = vand.u32 %v7424, 4294901760
  %v7593 = vsub.f32 %v7424, %v7592
  %7594 = vmatpush1.msra.mxu0 %v7593
  %7595 = vmatprep.subr.mxu0 0.0
  %7596 = vmatpush1.msra.mxu0 0.0
  %7597 = vmatprep.subr.mxu0 0.0
  %7598 = vmatpush1.msra.mxu0 0.0
  %7599 = vmatprep.subr.mxu0 0.0
  %7600 = vmatpush1.msra.mxu0 0.0
  %7601 = vmatprep.subr.mxu0 0.0
  %7602 = vmatpush1.msra.mxu0 0.0
  %7603 = vmatprep.subr.mxu0 0.0
  %7604 = vmatpush1.msra.mxu0 0.0
  %7605 = vmatprep.subr.mxu0 0.0
  %7606 = vmatpush1.msra.mxu0 0.0
  %7607 = vmatprep.subr.mxu0 0.0
  %7608 = vmatpush1.msra.mxu0 0.0
  %7609 = vmatprep.subr.mxu0 0.0
  %7610 = vmatpush1.msra.mxu0 0.0
  %7611 = vmatprep.subr.mxu0 0.0
  %7612 = vmatpush1.msra.mxu0 0.0
  %7613 = vmatprep.subr.mxu0 0.0
  %7614 = vmatpush1.msra.mxu0 0.0
  %7615 = vmatprep.subr.mxu0 0.0
  %7616 = vmatpush1.msra.mxu0 0.0
  %7617 = vmatprep.subr.mxu0 0.0
  %7618 = vmatpush1.msra.mxu0 0.0
  %7619 = vmatprep.subr.mxu0 0.0
  %7620 = vmatpush1.msra.mxu0 0.0
  %7621 = vmatprep.subr.mxu0 0.0
  %7622 = vmatpush1.msra.mxu0 0.0
  %7623 = vmatprep.subr.mxu0 0.0
  %7624 = vmatpush1.msra.mxu0 0.0
  %7625 = vmatprep.subr.mxu0 0.0
  %7626 = vmatpush1.msra.mxu0 0.0
  %7627 = vmatprep.subr.mxu0 0.0
  %7628 = vmatpush1.msra.mxu0 0.0
  %7629 = vmatprep.subr.mxu0 0.0
  %7630 = vmatpush1.msra.mxu0 0.0
  %7631 = vmatprep.subr.mxu0 0.0
  %7632 = vmatpush1.msra.mxu0 0.0
  %7633 = vmatprep.subr.mxu0 0.0
  %7634 = vmatpush1.msra.mxu0 0.0
  %7635 = vmatprep.subr.mxu0 0.0
  %7636 = vmatpush1.msra.mxu0 0.0
  %7637 = vmatprep.subr.mxu0 0.0
  %7638 = vmatpush1.msra.mxu0 0.0
  %7639 = vmatprep.subr.mxu0 0.0
  %7640 = vmatpush1.msra.mxu0 0.0
  %7641 = vmatprep.subr.mxu0 0.0
  %7642 = vmatpush1.msra.mxu0 0.0
  %7643 = vmatprep.subr.mxu0 0.0
  %7644 = vmatpush1.msra.mxu0 0.0
  %7645 = vmatprep.subr.mxu0 0.0
  %7646 = vmatpush1.msra.mxu0 0.0
  %7647 = vmatprep.subr.mxu0 0.0
  %7648 = vmatpush1.msra.mxu0 0.0
  %7649 = vmatprep.subr.mxu0 0.0
  %7650 = vmatpush1.msra.mxu0 0.0
  %7651 = vmatprep.subr.mxu0 0.0
  %7652 = vmatpush1.msra.mxu0 0.0
  %7653 = vmatprep.subr.mxu0 0.0
  %7654 = vmatpush1.msra.mxu0 0.0
  %7655 = vmatprep.mubr.f32.mxu0 0.0
  %v7656 = vand.u32 %v7427, 4294901760
  %v7657 = vsub.f32 %v7427, %v7656
  %7658 = vmatmul.mubr.f32.gmra.mrb[0].mxu0 %v7657
  %v7659 = vpop.f32.mrb[0].mxu0
  %v7660 = vadd.f32 %v7584, %v7659
  %v7661 = vpop.f32.mrb[0].mxu0
  %7662 = vdwg.mxu0
  %7663 = vmatprep.subr.mxu0 0.0
  %v7664 = vand.u32 %v7423, 4294901760
  %7665 = vmatpush1.msra.mxu0 %v7664
  %7666 = vmatprep.subr.mxu0 0.0
  %v7667 = vand.u32 %v7424, 4294901760
  %7668 = vmatpush1.msra.mxu0 %v7667
  %7669 = vmatprep.subr.mxu0 0.0
  %7670 = vmatpush1.msra.mxu0 0.0
  %7671 = vmatprep.subr.mxu0 0.0
  %7672 = vmatpush1.msra.mxu0 0.0
  %7673 = vmatprep.subr.mxu0 0.0
  %7674 = vmatpush1.msra.mxu0 0.0
  %7675 = vmatprep.subr.mxu0 0.0
  %7676 = vmatpush1.msra.mxu0 0.0
  %7677 = vmatprep.subr.mxu0 0.0
  %7678 = vmatpush1.msra.mxu0 0.0
  %7679 = vmatprep.subr.mxu0 0.0
  %7680 = vmatpush1.msra.mxu0 0.0
  %7681 = vmatprep.subr.mxu0 0.0
  %7682 = vmatpush1.msra.mxu0 0.0
  %7683 = vmatprep.subr.mxu0 0.0
  %7684 = vmatpush1.msra.mxu0 0.0
  %7685 = vmatprep.subr.mxu0 0.0
  %7686 = vmatpush1.msra.mxu0 0.0
  %7687 = vmatprep.subr.mxu0 0.0
  %7688 = vmatpush1.msra.mxu0 0.0
  %7689 = vmatprep.subr.mxu0 0.0
  %7690 = vmatpush1.msra.mxu0 0.0
  %7691 = vmatprep.subr.mxu0 0.0
  %7692 = vmatpush1.msra.mxu0 0.0
  %7693 = vmatprep.subr.mxu0 0.0
  %7694 = vmatpush1.msra.mxu0 0.0
  %7695 = vmatprep.subr.mxu0 0.0
  %7696 = vmatpush1.msra.mxu0 0.0
  %7697 = vmatprep.subr.mxu0 0.0
  %7698 = vmatpush1.msra.mxu0 0.0
  %7699 = vmatprep.subr.mxu0 0.0
  %7700 = vmatpush1.msra.mxu0 0.0
  %7701 = vmatprep.subr.mxu0 0.0
  %7702 = vmatpush1.msra.mxu0 0.0
  %7703 = vmatprep.subr.mxu0 0.0
  %7704 = vmatpush1.msra.mxu0 0.0
  %7705 = vmatprep.subr.mxu0 0.0
  %7706 = vmatpush1.msra.mxu0 0.0
  %7707 = vmatprep.subr.mxu0 0.0
  %7708 = vmatpush1.msra.mxu0 0.0
  %7709 = vmatprep.subr.mxu0 0.0
  %7710 = vmatpush1.msra.mxu0 0.0
  %7711 = vmatprep.subr.mxu0 0.0
  %7712 = vmatpush1.msra.mxu0 0.0
  %7713 = vmatprep.subr.mxu0 0.0
  %7714 = vmatpush1.msra.mxu0 0.0
  %7715 = vmatprep.subr.mxu0 0.0
  %7716 = vmatpush1.msra.mxu0 0.0
  %7717 = vmatprep.subr.mxu0 0.0
  %7718 = vmatpush1.msra.mxu0 0.0
  %7719 = vmatprep.subr.mxu0 0.0
  %7720 = vmatpush1.msra.mxu0 0.0
  %7721 = vmatprep.subr.mxu0 0.0
  %7722 = vmatpush1.msra.mxu0 0.0
  %7723 = vmatprep.subr.mxu0 0.0
  %7724 = vmatpush1.msra.mxu0 0.0
  %7725 = vmatprep.subr.mxu0 0.0
  %7726 = vmatpush1.msra.mxu0 0.0
  %7727 = vmatprep.subr.mxu0 0.0
  %7728 = vmatpush1.msra.mxu0 0.0
  %7729 = vmatprep.mubr.f32.mxu0 0.0
  %v7730 = vand.u32 %v7427, 4294901760
  %v7731 = vsub.f32 %v7427, %v7730
  %v7732 = vand.u32 %v7731, 4294901760
  %7733 = vmatmul.mubr.f32.gmra.mrb[0].mxu0 %v7732
  %v7734 = vpop.f32.mrb[0].mxu0
  %v7735 = vadd.f32 %v7660, %v7734
  %v7736 = vpop.f32.mrb[0].mxu0
  %7737 = vdwg.mxu0
  %7738 = vmatprep.subr.mxu0 0.0
  %v7739 = vand.u32 %v7423, 4294901760
  %v7740 = vsub.f32 %v7423, %v7739
  %v7741 = vand.u32 %v7740, 4294901760
  %7742 = vmatpush1.msra.mxu0 %v7741
  %7743 = vmatprep.subr.mxu0 0.0
  %v7744 = vand.u32 %v7424, 4294901760
  %v7745 = vsub.f32 %v7424, %v7744
  %v7746 = vand.u32 %v7745, 4294901760
  %7747 = vmatpush1.msra.mxu0 %v7746
  %7748 = vmatprep.subr.mxu0 0.0
  %7749 = vmatpush1.msra.mxu0 0.0
  %7750 = vmatprep.subr.mxu0 0.0
  %7751 = vmatpush1.msra.mxu0 0.0
  %7752 = vmatprep.subr.mxu0 0.0
  %7753 = vmatpush1.msra.mxu0 0.0
  %7754 = vmatprep.subr.mxu0 0.0
  %7755 = vmatpush1.msra.mxu0 0.0
  %7756 = vmatprep.subr.mxu0 0.0
  %7757 = vmatpush1.msra.mxu0 0.0
  %7758 = vmatprep.subr.mxu0 0.0
  %7759 = vmatpush1.msra.mxu0 0.0
  %7760 = vmatprep.subr.mxu0 0.0
  %7761 = vmatpush1.msra.mxu0 0.0
  %7762 = vmatprep.subr.mxu0 0.0
  %7763 = vmatpush1.msra.mxu0 0.0
  %7764 = vmatprep.subr.mxu0 0.0
  %7765 = vmatpush1.msra.mxu0 0.0
  %7766 = vmatprep.subr.mxu0 0.0
  %7767 = vmatpush1.msra.mxu0 0.0
  %7768 = vmatprep.subr.mxu0 0.0
  %7769 = vmatpush1.msra.mxu0 0.0
  %7770 = vmatprep.subr.mxu0 0.0
  %7771 = vmatpush1.msra.mxu0 0.0
  %7772 = vmatprep.subr.mxu0 0.0
  %7773 = vmatpush1.msra.mxu0 0.0
  %7774 = vmatprep.subr.mxu0 0.0
  %7775 = vmatpush1.msra.mxu0 0.0
  %7776 = vmatprep.subr.mxu0 0.0
  %7777 = vmatpush1.msra.mxu0 0.0
  %7778 = vmatprep.subr.mxu0 0.0
  %7779 = vmatpush1.msra.mxu0 0.0
  %7780 = vmatprep.subr.mxu0 0.0
  %7781 = vmatpush1.msra.mxu0 0.0
  %7782 = vmatprep.subr.mxu0 0.0
  %7783 = vmatpush1.msra.mxu0 0.0
  %7784 = vmatprep.subr.mxu0 0.0
  %7785 = vmatpush1.msra.mxu0 0.0
  %7786 = vmatprep.subr.mxu0 0.0
  %7787 = vmatpush1.msra.mxu0 0.0
  %7788 = vmatprep.subr.mxu0 0.0
  %7789 = vmatpush1.msra.mxu0 0.0
  %7790 = vmatprep.subr.mxu0 0.0
  %7791 = vmatpush1.msra.mxu0 0.0
  %7792 = vmatprep.subr.mxu0 0.0
  %7793 = vmatpush1.msra.mxu0 0.0
  %7794 = vmatprep.subr.mxu0 0.0
  %7795 = vmatpush1.msra.mxu0 0.0
  %7796 = vmatprep.subr.mxu0 0.0
  %7797 = vmatpush1.msra.mxu0 0.0
  %7798 = vmatprep.subr.mxu0 0.0
  %7799 = vmatpush1.msra.mxu0 0.0
  %7800 = vmatprep.subr.mxu0 0.0
  %7801 = vmatpush1.msra.mxu0 0.0
  %7802 = vmatprep.subr.mxu0 0.0
  %7803 = vmatpush1.msra.mxu0 0.0
  %7804 = vmatprep.subr.mxu0 0.0
  %7805 = vmatpush1.msra.mxu0 0.0
  %7806 = vmatprep.subr.mxu0 0.0
  %7807 = vmatpush1.msra.mxu0 0.0
  %7808 = vmatprep.mubr.f32.mxu0 0.0
  %v7809 = vand.u32 %v7427, 4294901760
  %7810 = vmatmul.mubr.f32.gmra.mrb[0].mxu0 %v7809
  %v7811 = vpop.f32.mrb[0].mxu0
  %v7812 = vadd.f32 %v7735, %v7811
  %v7813 = vpop.f32.mrb[0].mxu0
  %7814 = vdwg.mxu0
  %7815 = vmatprep.subr.mxu0 0.0
  %v7816 = vand.u32 %v7423, 4294901760
  %7817 = vmatpush1.msra.mxu0 %v7816
  %7818 = vmatprep.subr.mxu0 0.0
  %v7819 = vand.u32 %v7424, 4294901760
  %7820 = vmatpush1.msra.mxu0 %v7819
  %7821 = vmatprep.subr.mxu0 0.0
  %7822 = vmatpush1.msra.mxu0 0.0
  %7823 = vmatprep.subr.mxu0 0.0
  %7824 = vmatpush1.msra.mxu0 0.0
  %7825 = vmatprep.subr.mxu0 0.0
  %7826 = vmatpush1.msra.mxu0 0.0
  %7827 = vmatprep.subr.mxu0 0.0
  %7828 = vmatpush1.msra.mxu0 0.0
  %7829 = vmatprep.subr.mxu0 0.0
  %7830 = vmatpush1.msra.mxu0 0.0
  %7831 = vmatprep.subr.mxu0 0.0
  %7832 = vmatpush1.msra.mxu0 0.0
  %7833 = vmatprep.subr.mxu0 0.0
  %7834 = vmatpush1.msra.mxu0 0.0
  %7835 = vmatprep.subr.mxu0 0.0
  %7836 = vmatpush1.msra.mxu0 0.0
  %7837 = vmatprep.subr.mxu0 0.0
  %7838 = vmatpush1.msra.mxu0 0.0
  %7839 = vmatprep.subr.mxu0 0.0
  %7840 = vmatpush1.msra.mxu0 0.0
  %7841 = vmatprep.subr.mxu0 0.0
  %7842 = vmatpush1.msra.mxu0 0.0
  %7843 = vmatprep.subr.mxu0 0.0
  %7844 = vmatpush1.msra.mxu0 0.0
  %7845 = vmatprep.subr.mxu0 0.0
  %7846 = vmatpush1.msra.mxu0 0.0
  %7847 = vmatprep.subr.mxu0 0.0
  %7848 = vmatpush1.msra.mxu0 0.0
  %7849 = vmatprep.subr.mxu0 0.0
  %7850 = vmatpush1.msra.mxu0 0.0
  %7851 = vmatprep.subr.mxu0 0.0
  %7852 = vmatpush1.msra.mxu0 0.0
  %7853 = vmatprep.subr.mxu0 0.0
  %7854 = vmatpush1.msra.mxu0 0.0
  %7855 = vmatprep.subr.mxu0 0.0
  %7856 = vmatpush1.msra.mxu0 0.0
  %7857 = vmatprep.subr.mxu0 0.0
  %7858 = vmatpush1.msra.mxu0 0.0
  %7859 = vmatprep.subr.mxu0 0.0
  %7860 = vmatpush1.msra.mxu0 0.0
  %7861 = vmatprep.subr.mxu0 0.0
  %7862 = vmatpush1.msra.mxu0 0.0
  %7863 = vmatprep.subr.mxu0 0.0
  %7864 = vmatpush1.msra.mxu0 0.0
  %7865 = vmatprep.subr.mxu0 0.0
  %7866 = vmatpush1.msra.mxu0 0.0
  %7867 = vmatprep.subr.mxu0 0.0
  %7868 = vmatpush1.msra.mxu0 0.0
  %7869 = vmatprep.subr.mxu0 0.0
  %7870 = vmatpush1.msra.mxu0 0.0
  %7871 = vmatprep.subr.mxu0 0.0
  %7872 = vmatpush1.msra.mxu0 0.0
  %7873 = vmatprep.subr.mxu0 0.0
  %7874 = vmatpush1.msra.mxu0 0.0
  %7875 = vmatprep.subr.mxu0 0.0
  %7876 = vmatpush1.msra.mxu0 0.0
  %7877 = vmatprep.subr.mxu0 0.0
  %7878 = vmatpush1.msra.mxu0 0.0
  %7879 = vmatprep.subr.mxu0 0.0
  %7880 = vmatpush1.msra.mxu0 0.0
  %7881 = vmatprep.mubr.f32.mxu0 0.0
  %v7882 = vand.u32 %v7427, 4294901760
  %7883 = vmatmul.mubr.f32.gmra.mrb[0].mxu0 %v7882
  %v7884 = vpop.f32.mrb[0].mxu0
  %v7885 = vadd.f32 %v7812, %v7884
  %v7886 = vpop.f32.mrb[0].mxu0
  %7887 = vdwg.mxu0
  %v7888 = vld [vmem:[%s16] sm:$0xff]
  %v7890 = vsel %vm4933, %v7888, 0
  %7892 = vmatprep.subr.mxu0 0.0
  %v7893 = vand.u32 %v7423, 4294901760
  %7894 = vmatpush1.msra.mxu0 %v7893
  %7895 = vmatprep.subr.mxu0 0.0
  %v7896 = vand.u32 %v7424, 4294901760
  %7897 = vmatpush1.msra.mxu0 %v7896
  %7898 = vmatprep.subr.mxu0 0.0
  %7899 = vmatpush1.msra.mxu0 0.0
  %7900 = vmatprep.subr.mxu0 0.0
  %7901 = vmatpush1.msra.mxu0 0.0
  %7902 = vmatprep.subr.mxu0 0.0
  %7903 = vmatpush1.msra.mxu0 0.0
  %7904 = vmatprep.subr.mxu0 0.0
  %7905 = vmatpush1.msra.mxu0 0.0
  %7906 = vmatprep.subr.mxu0 0.0
  %7907 = vmatpush1.msra.mxu0 0.0
  %7908 = vmatprep.subr.mxu0 0.0
  %7909 = vmatpush1.msra.mxu0 0.0
  %7910 = vmatprep.subr.mxu0 0.0
  %7911 = vmatpush1.msra.mxu0 0.0
  %7912 = vmatprep.subr.mxu0 0.0
  %7913 = vmatpush1.msra.mxu0 0.0
  %7914 = vmatprep.subr.mxu0 0.0
  %7915 = vmatpush1.msra.mxu0 0.0
  %7916 = vmatprep.subr.mxu0 0.0
  %7917 = vmatpush1.msra.mxu0 0.0
  %7918 = vmatprep.subr.mxu0 0.0
  %7919 = vmatpush1.msra.mxu0 0.0
  %7920 = vmatprep.subr.mxu0 0.0
  %7921 = vmatpush1.msra.mxu0 0.0
  %7922 = vmatprep.subr.mxu0 0.0
  %7923 = vmatpush1.msra.mxu0 0.0
  %7924 = vmatprep.subr.mxu0 0.0
  %7925 = vmatpush1.msra.mxu0 0.0
  %7926 = vmatprep.subr.mxu0 0.0
  %7927 = vmatpush1.msra.mxu0 0.0
  %7928 = vmatprep.subr.mxu0 0.0
  %7929 = vmatpush1.msra.mxu0 0.0
  %7930 = vmatprep.subr.mxu0 0.0
  %7931 = vmatpush1.msra.mxu0 0.0
  %7932 = vmatprep.subr.mxu0 0.0
  %7933 = vmatpush1.msra.mxu0 0.0
  %7934 = vmatprep.subr.mxu0 0.0
  %7935 = vmatpush1.msra.mxu0 0.0
  %7936 = vmatprep.subr.mxu0 0.0
  %7937 = vmatpush1.msra.mxu0 0.0
  %7938 = vmatprep.subr.mxu0 0.0
  %7939 = vmatpush1.msra.mxu0 0.0
  %7940 = vmatprep.subr.mxu0 0.0
  %7941 = vmatpush1.msra.mxu0 0.0
  %7942 = vmatprep.subr.mxu0 0.0
  %7943 = vmatpush1.msra.mxu0 0.0
  %7944 = vmatprep.subr.mxu0 0.0
  %7945 = vmatpush1.msra.mxu0 0.0
  %7946 = vmatprep.subr.mxu0 0.0
  %7947 = vmatpush1.msra.mxu0 0.0
  %7948 = vmatprep.subr.mxu0 0.0
  %7949 = vmatpush1.msra.mxu0 0.0
  %7950 = vmatprep.subr.mxu0 0.0
  %7951 = vmatpush1.msra.mxu0 0.0
  %7952 = vmatprep.subr.mxu0 0.0
  %7953 = vmatpush1.msra.mxu0 0.0
  %7954 = vmatprep.subr.mxu0 0.0
  %7955 = vmatpush1.msra.mxu0 0.0
  %7956 = vmatprep.subr.mxu0 0.0
  %7957 = vmatpush1.msra.mxu0 0.0
  %7958 = vmatprep.mubr.f32.mxu0 0.0
  %v7959 = vand.u32 %v7890, 4294901760
  %v7960 = vsub.f32 %v7890, %v7959
  %v7961 = vand.u32 %v7960, 4294901760
  %v7962 = vsub.f32 %v7960, %v7961
  %v7963 = vand.u32 %v7962, 4294901760
  %7964 = vmatmul.mubr.f32.gmra.mrb[0].mxu0 %v7963
  %v7965 = vpop.f32.mrb[0].mxu0
  %v7966 = vadd.f32 0.0, %v7965
  %v7967 = vpop.f32.mrb[0].mxu0
  %7968 = vdwg.mxu0
  %7969 = vmatprep.subr.mxu0 0.0
  %v7970 = vand.u32 %v7423, 4294901760
  %v7971 = vsub.f32 %v7423, %v7970
  %v7972 = vand.u32 %v7971, 4294901760
  %v7973 = vsub.f32 %v7971, %v7972
  %v7974 = vand.u32 %v7973, 4294901760
  %7975 = vmatpush1.msra.mxu0 %v7974
  %7976 = vmatprep.subr.mxu0 0.0
  %v7977 = vand.u32 %v7424, 4294901760
  %v7978 = vsub.f32 %v7424, %v7977
  %v7979 = vand.u32 %v7978, 4294901760
  %v7980 = vsub.f32 %v7978, %v7979
  %v7981 = vand.u32 %v7980, 4294901760
  %7982 = vmatpush1.msra.mxu0 %v7981
  %7983 = vmatprep.subr.mxu0 0.0
  %7984 = vmatpush1.msra.mxu0 0.0
  %7985 = vmatprep.subr.mxu0 0.0
  %7986 = vmatpush1.msra.mxu0 0.0
  %7987 = vmatprep.subr.mxu0 0.0
  %7988 = vmatpush1.msra.mxu0 0.0
  %7989 = vmatprep.subr.mxu0 0.0
  %7990 = vmatpush1.msra.mxu0 0.0
  %7991 = vmatprep.subr.mxu0 0.0
  %7992 = vmatpush1.msra.mxu0 0.0
  %7993 = vmatprep.subr.mxu0 0.0
  %7994 = vmatpush1.msra.mxu0 0.0
  %7995 = vmatprep.subr.mxu0 0.0
  %7996 = vmatpush1.msra.mxu0 0.0
  %7997 = vmatprep.subr.mxu0 0.0
  %7998 = vmatpush1.msra.mxu0 0.0
  %7999 = vmatprep.subr.mxu0 0.0
  %8000 = vmatpush1.msra.mxu0 0.0
  %8001 = vmatprep.subr.mxu0 0.0
  %8002 = vmatpush1.msra.mxu0 0.0
  %8003 = vmatprep.subr.mxu0 0.0
  %8004 = vmatpush1.msra.mxu0 0.0
  %8005 = vmatprep.subr.mxu0 0.0
  %8006 = vmatpush1.msra.mxu0 0.0
  %8007 = vmatprep.subr.mxu0 0.0
  %8008 = vmatpush1.msra.mxu0 0.0
  %8009 = vmatprep.subr.mxu0 0.0
  %8010 = vmatpush1.msra.mxu0 0.0
  %8011 = vmatprep.subr.mxu0 0.0
  %8012 = vmatpush1.msra.mxu0 0.0
  %8013 = vmatprep.subr.mxu0 0.0
  %8014 = vmatpush1.msra.mxu0 0.0
  %8015 = vmatprep.subr.mxu0 0.0
  %8016 = vmatpush1.msra.mxu0 0.0
  %8017 = vmatprep.subr.mxu0 0.0
  %8018 = vmatpush1.msra.mxu0 0.0
  %8019 = vmatprep.subr.mxu0 0.0
  %8020 = vmatpush1.msra.mxu0 0.0
  %8021 = vmatprep.subr.mxu0 0.0
  %8022 = vmatpush1.msra.mxu0 0.0
  %8023 = vmatprep.subr.mxu0 0.0
  %8024 = vmatpush1.msra.mxu0 0.0
  %8025 = vmatprep.subr.mxu0 0.0
  %8026 = vmatpush1.msra.mxu0 0.0
  %8027 = vmatprep.subr.mxu0 0.0
  %8028 = vmatpush1.msra.mxu0 0.0
  %8029 = vmatprep.subr.mxu0 0.0
  %8030 = vmatpush1.msra.mxu0 0.0
  %8031 = vmatprep.subr.mxu0 0.0
  %8032 = vmatpush1.msra.mxu0 0.0
  %8033 = vmatprep.subr.mxu0 0.0
  %8034 = vmatpush1.msra.mxu0 0.0
  %8035 = vmatprep.subr.mxu0 0.0
  %8036 = vmatpush1.msra.mxu0 0.0
  %8037 = vmatprep.subr.mxu0 0.0
  %8038 = vmatpush1.msra.mxu0 0.0
  %8039 = vmatprep.subr.mxu0 0.0
  %8040 = vmatpush1.msra.mxu0 0.0
  %8041 = vmatprep.subr.mxu0 0.0
  %8042 = vmatpush1.msra.mxu0 0.0
  %8043 = vmatprep.mubr.f32.mxu0 0.0
  %v8044 = vand.u32 %v7890, 4294901760
  %8045 = vmatmul.mubr.f32.gmra.mrb[0].mxu0 %v8044
  %v8046 = vpop.f32.mrb[0].mxu0
  %v8047 = vadd.f32 %v7966, %v8046
  %v8048 = vpop.f32.mrb[0].mxu0
  %8049 = vdwg.mxu0
  %8050 = vmatprep.subr.mxu0 0.0
  %v8051 = vand.u32 %v7423, 4294901760
  %v8052 = vsub.f32 %v7423, %v8051
  %8053 = vmatpush1.msra.mxu0 %v8052
  %8054 = vmatprep.subr.mxu0 0.0
  %v8055 = vand.u32 %v7424, 4294901760
  %v8056 = vsub.f32 %v7424, %v8055
  %8057 = vmatpush1.msra.mxu0 %v8056
  %8058 = vmatprep.subr.mxu0 0.0
  %8059 = vmatpush1.msra.mxu0 0.0
  %8060 = vmatprep.subr.mxu0 0.0
  %8061 = vmatpush1.msra.mxu0 0.0
  %8062 = vmatprep.subr.mxu0 0.0
  %8063 = vmatpush1.msra.mxu0 0.0
  %8064 = vmatprep.subr.mxu0 0.0
  %8065 = vmatpush1.msra.mxu0 0.0
  %8066 = vmatprep.subr.mxu0 0.0
  %8067 = vmatpush1.msra.mxu0 0.0
  %8068 = vmatprep.subr.mxu0 0.0
  %8069 = vmatpush1.msra.mxu0 0.0
  %8070 = vmatprep.subr.mxu0 0.0
  %8071 = vmatpush1.msra.mxu0 0.0
  %8072 = vmatprep.subr.mxu0 0.0
  %8073 = vmatpush1.msra.mxu0 0.0
  %8074 = vmatprep.subr.mxu0 0.0
  %8075 = vmatpush1.msra.mxu0 0.0
  %8076 = vmatprep.subr.mxu0 0.0
  %8077 = vmatpush1.msra.mxu0 0.0
  %8078 = vmatprep.subr.mxu0 0.0
  %8079 = vmatpush1.msra.mxu0 0.0
  %8080 = vmatprep.subr.mxu0 0.0
  %8081 = vmatpush1.msra.mxu0 0.0
  %8082 = vmatprep.subr.mxu0 0.0
  %8083 = vmatpush1.msra.mxu0 0.0
  %8084 = vmatprep.subr.mxu0 0.0
  %8085 = vmatpush1.msra.mxu0 0.0
  %8086 = vmatprep.subr.mxu0 0.0
  %8087 = vmatpush1.msra.mxu0 0.0
  %8088 = vmatprep.subr.mxu0 0.0
  %8089 = vmatpush1.msra.mxu0 0.0
  %8090 = vmatprep.subr.mxu0 0.0
  %8091 = vmatpush1.msra.mxu0 0.0
  %8092 = vmatprep.subr.mxu0 0.0
  %8093 = vmatpush1.msra.mxu0 0.0
  %8094 = vmatprep.subr.mxu0 0.0
  %8095 = vmatpush1.msra.mxu0 0.0
  %8096 = vmatprep.subr.mxu0 0.0
  %8097 = vmatpush1.msra.mxu0 0.0
  %8098 = vmatprep.subr.mxu0 0.0
  %8099 = vmatpush1.msra.mxu0 0.0
  %8100 = vmatprep.subr.mxu0 0.0
  %8101 = vmatpush1.msra.mxu0 0.0
  %8102 = vmatprep.subr.mxu0 0.0
  %8103 = vmatpush1.msra.mxu0 0.0
  %8104 = vmatprep.subr.mxu0 0.0
  %8105 = vmatpush1.msra.mxu0 0.0
  %8106 = vmatprep.subr.mxu0 0.0
  %8107 = vmatpush1.msra.mxu0 0.0
  %8108 = vmatprep.subr.mxu0 0.0
  %8109 = vmatpush1.msra.mxu0 0.0
  %8110 = vmatprep.subr.mxu0 0.0
  %8111 = vmatpush1.msra.mxu0 0.0
  %8112 = vmatprep.subr.mxu0 0.0
  %8113 = vmatpush1.msra.mxu0 0.0
  %8114 = vmatprep.subr.mxu0 0.0
  %8115 = vmatpush1.msra.mxu0 0.0
  %8116 = vmatprep.subr.mxu0 0.0
  %8117 = vmatpush1.msra.mxu0 0.0
  %8118 = vmatprep.mubr.f32.mxu0 0.0
  %v8119 = vand.u32 %v7890, 4294901760
  %v8120 = vsub.f32 %v7890, %v8119
  %8121 = vmatmul.mubr.f32.gmra.mrb[0].mxu0 %v8120
  %v8122 = vpop.f32.mrb[0].mxu0
  %v8123 = vadd.f32 %v8047, %v8122
  %v8124 = vpop.f32.mrb[0].mxu0
  %8125 = vdwg.mxu0
  %8126 = vmatprep.subr.mxu0 0.0
  %v8127 = vand.u32 %v7423, 4294901760
  %8128 = vmatpush1.msra.mxu0 %v8127
  %8129 = vmatprep.subr.mxu0 0.0
  %v8130 = vand.u32 %v7424, 4294901760
  %8131 = vmatpush1.msra.mxu0 %v8130
  %8132 = vmatprep.subr.mxu0 0.0
  %8133 = vmatpush1.msra.mxu0 0.0
  %8134 = vmatprep.subr.mxu0 0.0
  %8135 = vmatpush1.msra.mxu0 0.0
  %8136 = vmatprep.subr.mxu0 0.0
  %8137 = vmatpush1.msra.mxu0 0.0
  %8138 = vmatprep.subr.mxu0 0.0
  %8139 = vmatpush1.msra.mxu0 0.0
  %8140 = vmatprep.subr.mxu0 0.0
  %8141 = vmatpush1.msra.mxu0 0.0
  %8142 = vmatprep.subr.mxu0 0.0
  %8143 = vmatpush1.msra.mxu0 0.0
  %8144 = vmatprep.subr.mxu0 0.0
  %8145 = vmatpush1.msra.mxu0 0.0
  %8146 = vmatprep.subr.mxu0 0.0
  %8147 = vmatpush1.msra.mxu0 0.0
  %8148 = vmatprep.subr.mxu0 0.0
  %8149 = vmatpush1.msra.mxu0 0.0
  %8150 = vmatprep.subr.mxu0 0.0
  %8151 = vmatpush1.msra.mxu0 0.0
  %8152 = vmatprep.subr.mxu0 0.0
  %8153 = vmatpush1.msra.mxu0 0.0
  %8154 = vmatprep.subr.mxu0 0.0
  %8155 = vmatpush1.msra.mxu0 0.0
  %8156 = vmatprep.subr.mxu0 0.0
  %8157 = vmatpush1.msra.mxu0 0.0
  %8158 = vmatprep.subr.mxu0 0.0
  %8159 = vmatpush1.msra.mxu0 0.0
  %8160 = vmatprep.subr.mxu0 0.0
  %8161 = vmatpush1.msra.mxu0 0.0
  %8162 = vmatprep.subr.mxu0 0.0
  %8163 = vmatpush1.msra.mxu0 0.0
  %8164 = vmatprep.subr.mxu0 0.0
  %8165 = vmatpush1.msra.mxu0 0.0
  %8166 = vmatprep.subr.mxu0 0.0
  %8167 = vmatpush1.msra.mxu0 0.0
  %8168 = vmatprep.subr.mxu0 0.0
  %8169 = vmatpush1.msra.mxu0 0.0
  %8170 = vmatprep.subr.mxu0 0.0
  %8171 = vmatpush1.msra.mxu0 0.0
  %8172 = vmatprep.subr.mxu0 0.0
  %8173 = vmatpush1.msra.mxu0 0.0
  %8174 = vmatprep.subr.mxu0 0.0
  %8175 = vmatpush1.msra.mxu0 0.0
  %8176 = vmatprep.subr.mxu0 0.0
  %8177 = vmatpush1.msra.mxu0 0.0
  %8178 = vmatprep.subr.mxu0 0.0
  %8179 = vmatpush1.msra.mxu0 0.0
  %8180 = vmatprep.subr.mxu0 0.0
  %8181 = vmatpush1.msra.mxu0 0.0
  %8182 = vmatprep.subr.mxu0 0.0
  %8183 = vmatpush1.msra.mxu0 0.0
  %8184 = vmatprep.subr.mxu0 0.0
  %8185 = vmatpush1.msra.mxu0 0.0
  %8186 = vmatprep.subr.mxu0 0.0
  %8187 = vmatpush1.msra.mxu0 0.0
  %8188 = vmatprep.subr.mxu0 0.0
  %8189 = vmatpush1.msra.mxu0 0.0
  %8190 = vmatprep.subr.mxu0 0.0
  %8191 = vmatpush1.msra.mxu0 0.0
  %8192 = vmatprep.mubr.f32.mxu0 0.0
  %v8193 = vand.u32 %v7890, 4294901760
  %v8194 = vsub.f32 %v7890, %v8193
  %v8195 = vand.u32 %v8194, 4294901760
  %8196 = vmatmul.mubr.f32.gmra.mrb[0].mxu0 %v8195
  %v8197 = vpop.f32.mrb[0].mxu0
  %v8198 = vadd.f32 %v8123, %v8197
  %v8199 = vpop.f32.mrb[0].mxu0
  %8200 = vdwg.mxu0
  %8201 = vmatprep.subr.mxu0 0.0
  %v8202 = vand.u32 %v7423, 4294901760
  %v8203 = vsub.f32 %v7423, %v8202
  %v8204 = vand.u32 %v8203, 4294901760
  %8205 = vmatpush1.msra.mxu0 %v8204
  %8206 = vmatprep.subr.mxu0 0.0
  %v8207 = vand.u32 %v7424, 4294901760
  %v8208 = vsub.f32 %v7424, %v8207
  %v8209 = vand.u32 %v8208, 4294901760
  %8210 = vmatpush1.msra.mxu0 %v8209
  %8211 = vmatprep.subr.mxu0 0.0
  %8212 = vmatpush1.msra.mxu0 0.0
  %8213 = vmatprep.subr.mxu0 0.0
  %8214 = vmatpush1.msra.mxu0 0.0
  %8215 = vmatprep.subr.mxu0 0.0
  %8216 = vmatpush1.msra.mxu0 0.0
  %8217 = vmatprep.subr.mxu0 0.0
  %8218 = vmatpush1.msra.mxu0 0.0
  %8219 = vmatprep.subr.mxu0 0.0
  %8220 = vmatpush1.msra.mxu0 0.0
  %8221 = vmatprep.subr.mxu0 0.0
  %8222 = vmatpush1.msra.mxu0 0.0
  %8223 = vmatprep.subr.mxu0 0.0
  %8224 = vmatpush1.msra.mxu0 0.0
  %8225 = vmatprep.subr.mxu0 0.0
  %8226 = vmatpush1.msra.mxu0 0.0
  %8227 = vmatprep.subr.mxu0 0.0
  %8228 = vmatpush1.msra.mxu0 0.0
  %8229 = vmatprep.subr.mxu0 0.0
  %8230 = vmatpush1.msra.mxu0 0.0
  %8231 = vmatprep.subr.mxu0 0.0
  %8232 = vmatpush1.msra.mxu0 0.0
  %8233 = vmatprep.subr.mxu0 0.0
  %8234 = vmatpush1.msra.mxu0 0.0
  %8235 = vmatprep.subr.mxu0 0.0
  %8236 = vmatpush1.msra.mxu0 0.0
  %8237 = vmatprep.subr.mxu0 0.0
  %8238 = vmatpush1.msra.mxu0 0.0
  %8239 = vmatprep.subr.mxu0 0.0
  %8240 = vmatpush1.msra.mxu0 0.0
  %8241 = vmatprep.subr.mxu0 0.0
  %8242 = vmatpush1.msra.mxu0 0.0
  %8243 = vmatprep.subr.mxu0 0.0
  %8244 = vmatpush1.msra.mxu0 0.0
  %8245 = vmatprep.subr.mxu0 0.0
  %8246 = vmatpush1.msra.mxu0 0.0
  %8247 = vmatprep.subr.mxu0 0.0
  %8248 = vmatpush1.msra.mxu0 0.0
  %8249 = vmatprep.subr.mxu0 0.0
  %8250 = vmatpush1.msra.mxu0 0.0
  %8251 = vmatprep.subr.mxu0 0.0
  %8252 = vmatpush1.msra.mxu0 0.0
  %8253 = vmatprep.subr.mxu0 0.0
  %8254 = vmatpush1.msra.mxu0 0.0
  %8255 = vmatprep.subr.mxu0 0.0
  %8256 = vmatpush1.msra.mxu0 0.0
  %8257 = vmatprep.subr.mxu0 0.0
  %8258 = vmatpush1.msra.mxu0 0.0
  %8259 = vmatprep.subr.mxu0 0.0
  %8260 = vmatpush1.msra.mxu0 0.0
  %8261 = vmatprep.subr.mxu0 0.0
  %8262 = vmatpush1.msra.mxu0 0.0
  %8263 = vmatprep.subr.mxu0 0.0
  %8264 = vmatpush1.msra.mxu0 0.0
  %8265 = vmatprep.subr.mxu0 0.0
  %8266 = vmatpush1.msra.mxu0 0.0
  %8267 = vmatprep.subr.mxu0 0.0
  %8268 = vmatpush1.msra.mxu0 0.0
  %8269 = vmatprep.subr.mxu0 0.0
  %8270 = vmatpush1.msra.mxu0 0.0
  %8271 = vmatprep.mubr.f32.mxu0 0.0
  %v8272 = vand.u32 %v7890, 4294901760
  %8273 = vmatmul.mubr.f32.gmra.mrb[0].mxu0 %v8272
  %v8274 = vpop.f32.mrb[0].mxu0
  %v8275 = vadd.f32 %v8198, %v8274
  %v8276 = vpop.f32.mrb[0].mxu0
  %8277 = vdwg.mxu0
  %8278 = vmatprep.subr.mxu0 0.0
  %v8279 = vand.u32 %v7423, 4294901760
  %8280 = vmatpush1.msra.mxu0 %v8279
  %8281 = vmatprep.subr.mxu0 0.0
  %v8282 = vand.u32 %v7424, 4294901760
  %8283 = vmatpush1.msra.mxu0 %v8282
  %8284 = vmatprep.subr.mxu0 0.0
  %8285 = vmatpush1.msra.mxu0 0.0
  %8286 = vmatprep.subr.mxu0 0.0
  %8287 = vmatpush1.msra.mxu0 0.0
  %8288 = vmatprep.subr.mxu0 0.0
  %8289 = vmatpush1.msra.mxu0 0.0
  %8290 = vmatprep.subr.mxu0 0.0
  %8291 = vmatpush1.msra.mxu0 0.0
  %8292 = vmatprep.subr.mxu0 0.0
  %8293 = vmatpush1.msra.mxu0 0.0
  %8294 = vmatprep.subr.mxu0 0.0
  %8295 = vmatpush1.msra.mxu0 0.0
  %8296 = vmatprep.subr.mxu0 0.0
  %8297 = vmatpush1.msra.mxu0 0.0
  %8298 = vmatprep.subr.mxu0 0.0
  %8299 = vmatpush1.msra.mxu0 0.0
  %8300 = vmatprep.subr.mxu0 0.0
  %8301 = vmatpush1.msra.mxu0 0.0
  %8302 = vmatprep.subr.mxu0 0.0
  %8303 = vmatpush1.msra.mxu0 0.0
  %8304 = vmatprep.subr.mxu0 0.0
  %8305 = vmatpush1.msra.mxu0 0.0
  %8306 = vmatprep.subr.mxu0 0.0
  %8307 = vmatpush1.msra.mxu0 0.0
  %8308 = vmatprep.subr.mxu0 0.0
  %8309 = vmatpush1.msra.mxu0 0.0
  %8310 = vmatprep.subr.mxu0 0.0
  %8311 = vmatpush1.msra.mxu0 0.0
  %8312 = vmatprep.subr.mxu0 0.0
  %8313 = vmatpush1.msra.mxu0 0.0
  %8314 = vmatprep.subr.mxu0 0.0
  %8315 = vmatpush1.msra.mxu0 0.0
  %8316 = vmatprep.subr.mxu0 0.0
  %8317 = vmatpush1.msra.mxu0 0.0
  %8318 = vmatprep.subr.mxu0 0.0
  %8319 = vmatpush1.msra.mxu0 0.0
  %8320 = vmatprep.subr.mxu0 0.0
  %8321 = vmatpush1.msra.mxu0 0.0
  %8322 = vmatprep.subr.mxu0 0.0
  %8323 = vmatpush1.msra.mxu0 0.0
  %8324 = vmatprep.subr.mxu0 0.0
  %8325 = vmatpush1.msra.mxu0 0.0
  %8326 = vmatprep.subr.mxu0 0.0
  %8327 = vmatpush1.msra.mxu0 0.0
  %8328 = vmatprep.subr.mxu0 0.0
  %8329 = vmatpush1.msra.mxu0 0.0
  %8330 = vmatprep.subr.mxu0 0.0
  %8331 = vmatpush1.msra.mxu0 0.0
  %8332 = vmatprep.subr.mxu0 0.0
  %8333 = vmatpush1.msra.mxu0 0.0
  %8334 = vmatprep.subr.mxu0 0.0
  %8335 = vmatpush1.msra.mxu0 0.0
  %8336 = vmatprep.subr.mxu0 0.0
  %8337 = vmatpush1.msra.mxu0 0.0
  %8338 = vmatprep.subr.mxu0 0.0
  %8339 = vmatpush1.msra.mxu0 0.0
  %8340 = vmatprep.subr.mxu0 0.0
  %8341 = vmatpush1.msra.mxu0 0.0
  %8342 = vmatprep.subr.mxu0 0.0
  %8343 = vmatpush1.msra.mxu0 0.0
  %8344 = vmatprep.mubr.f32.mxu0 0.0
  %v8345 = vand.u32 %v7890, 4294901760
  %8346 = vmatmul.mubr.f32.gmra.mrb[0].mxu0 %v8345
  %v8347 = vpop.f32.mrb[0].mxu0
  %v8348 = vadd.f32 %v8275, %v8347
  %v8349 = vpop.f32.mrb[0].mxu0
  %8350 = vdwg.mxu0
  %v8351 = vmax.f32 %v7885, %v8348
  %v8352 = vld [vmem:[%s19] sm:$0xff]
  %vm8353 = vcmask 64512
  %v8355 = vsel %vm8353, %v8352, 0
  %8357 = vmatprep.subr.mxu0 0.0
  %v8358 = vand.u32 %v8351, 4294901760
  %8359 = vmatpush1.msra.mxu0 %v8358
  %8360 = vmatprep.subr.mxu0 0.0
  %8361 = vmatpush1.msra.mxu0 0.0
  %8362 = vmatprep.subr.mxu0 0.0
  %8363 = vmatpush1.msra.mxu0 0.0
  %8364 = vmatprep.subr.mxu0 0.0
  %8365 = vmatpush1.msra.mxu0 0.0
  %8366 = vmatprep.subr.mxu0 0.0
  %8367 = vmatpush1.msra.mxu0 0.0
  %8368 = vmatprep.subr.mxu0 0.0
  %8369 = vmatpush1.msra.mxu0 0.0
  %8370 = vmatprep.subr.mxu0 0.0
  %8371 = vmatpush1.msra.mxu0 0.0
  %8372 = vmatprep.subr.mxu0 0.0
  %8373 = vmatpush1.msra.mxu0 0.0
  %8374 = vmatprep.subr.mxu0 0.0
  %8375 = vmatpush1.msra.mxu0 0.0
  %8376 = vmatprep.subr.mxu0 0.0
  %8377 = vmatpush1.msra.mxu0 0.0
  %8378 = vmatprep.subr.mxu0 0.0
  %8379 = vmatpush1.msra.mxu0 0.0
  %8380 = vmatprep.subr.mxu0 0.0
  %8381 = vmatpush1.msra.mxu0 0.0
  %8382 = vmatprep.subr.mxu0 0.0
  %8383 = vmatpush1.msra.mxu0 0.0
  %8384 = vmatprep.subr.mxu0 0.0
  %8385 = vmatpush1.msra.mxu0 0.0
  %8386 = vmatprep.subr.mxu0 0.0
  %8387 = vmatpush1.msra.mxu0 0.0
  %8388 = vmatprep.subr.mxu0 0.0
  %8389 = vmatpush1.msra.mxu0 0.0
  %8390 = vmatprep.subr.mxu0 0.0
  %8391 = vmatpush1.msra.mxu0 0.0
  %8392 = vmatprep.subr.mxu0 0.0
  %8393 = vmatpush1.msra.mxu0 0.0
  %8394 = vmatprep.subr.mxu0 0.0
  %8395 = vmatpush1.msra.mxu0 0.0
  %8396 = vmatprep.subr.mxu0 0.0
  %8397 = vmatpush1.msra.mxu0 0.0
  %8398 = vmatprep.subr.mxu0 0.0
  %8399 = vmatpush1.msra.mxu0 0.0
  %8400 = vmatprep.subr.mxu0 0.0
  %8401 = vmatpush1.msra.mxu0 0.0
  %8402 = vmatprep.subr.mxu0 0.0
  %8403 = vmatpush1.msra.mxu0 0.0
  %8404 = vmatprep.subr.mxu0 0.0
  %8405 = vmatpush1.msra.mxu0 0.0
  %8406 = vmatprep.subr.mxu0 0.0
  %8407 = vmatpush1.msra.mxu0 0.0
  %8408 = vmatprep.subr.mxu0 0.0
  %8409 = vmatpush1.msra.mxu0 0.0
  %8410 = vmatprep.subr.mxu0 0.0
  %8411 = vmatpush1.msra.mxu0 0.0
  %8412 = vmatprep.subr.mxu0 0.0
  %8413 = vmatpush1.msra.mxu0 0.0
  %8414 = vmatprep.subr.mxu0 0.0
  %8415 = vmatpush1.msra.mxu0 0.0
  %8416 = vmatprep.subr.mxu0 0.0
  %8417 = vmatpush1.msra.mxu0 0.0
  %8418 = vmatprep.subr.mxu0 0.0
  %8419 = vmatpush1.msra.mxu0 0.0
  %8420 = vmatprep.subr.mxu0 0.0
  %8421 = vmatpush1.msra.mxu0 0.0
  %8422 = vmatprep.mubr.f32.mxu0 0.0
  %v8423 = vand.u32 %v8355, 4294901760
  %v8424 = vsub.f32 %v8355, %v8423
  %v8425 = vand.u32 %v8424, 4294901760
  %v8426 = vsub.f32 %v8424, %v8425
  %v8427 = vand.u32 %v8426, 4294901760
  %8428 = vmatmul.mubr.f32.gmra.mrb[0].mxu0 %v8427
  %v8429 = vpop.f32.mrb[0].mxu0
  %v8430 = vadd.f32 0.0, %v8429
  %v8431 = vpop.f32.mrb[0].mxu0
  %8432 = vdwg.mxu0
  %8433 = vmatprep.subr.mxu0 0.0
  %v8434 = vand.u32 %v8351, 4294901760
  %v8435 = vsub.f32 %v8351, %v8434
  %v8436 = vand.u32 %v8435, 4294901760
  %v8437 = vsub.f32 %v8435, %v8436
  %v8438 = vand.u32 %v8437, 4294901760
  %8439 = vmatpush1.msra.mxu0 %v8438
  %8440 = vmatprep.subr.mxu0 0.0
  %8441 = vmatpush1.msra.mxu0 0.0
  %8442 = vmatprep.subr.mxu0 0.0
  %8443 = vmatpush1.msra.mxu0 0.0
  %8444 = vmatprep.subr.mxu0 0.0
  %8445 = vmatpush1.msra.mxu0 0.0
  %8446 = vmatprep.subr.mxu0 0.0
  %8447 = vmatpush1.msra.mxu0 0.0
  %8448 = vmatprep.subr.mxu0 0.0
  %8449 = vmatpush1.msra.mxu0 0.0
  %8450 = vmatprep.subr.mxu0 0.0
  %8451 = vmatpush1.msra.mxu0 0.0
  %8452 = vmatprep.subr.mxu0 0.0
  %8453 = vmatpush1.msra.mxu0 0.0
  %8454 = vmatprep.subr.mxu0 0.0
  %8455 = vmatpush1.msra.mxu0 0.0
  %8456 = vmatprep.subr.mxu0 0.0
  %8457 = vmatpush1.msra.mxu0 0.0
  %8458 = vmatprep.subr.mxu0 0.0
  %8459 = vmatpush1.msra.mxu0 0.0
  %8460 = vmatprep.subr.mxu0 0.0
  %8461 = vmatpush1.msra.mxu0 0.0
  %8462 = vmatprep.subr.mxu0 0.0
  %8463 = vmatpush1.msra.mxu0 0.0
  %8464 = vmatprep.subr.mxu0 0.0
  %8465 = vmatpush1.msra.mxu0 0.0
  %8466 = vmatprep.subr.mxu0 0.0
  %8467 = vmatpush1.msra.mxu0 0.0
  %8468 = vmatprep.subr.mxu0 0.0
  %8469 = vmatpush1.msra.mxu0 0.0
  %8470 = vmatprep.subr.mxu0 0.0
  %8471 = vmatpush1.msra.mxu0 0.0
  %8472 = vmatprep.subr.mxu0 0.0
  %8473 = vmatpush1.msra.mxu0 0.0
  %8474 = vmatprep.subr.mxu0 0.0
  %8475 = vmatpush1.msra.mxu0 0.0
  %8476 = vmatprep.subr.mxu0 0.0
  %8477 = vmatpush1.msra.mxu0 0.0
  %8478 = vmatprep.subr.mxu0 0.0
  %8479 = vmatpush1.msra.mxu0 0.0
  %8480 = vmatprep.subr.mxu0 0.0
  %8481 = vmatpush1.msra.mxu0 0.0
  %8482 = vmatprep.subr.mxu0 0.0
  %8483 = vmatpush1.msra.mxu0 0.0
  %8484 = vmatprep.subr.mxu0 0.0
  %8485 = vmatpush1.msra.mxu0 0.0
  %8486 = vmatprep.subr.mxu0 0.0
  %8487 = vmatpush1.msra.mxu0 0.0
  %8488 = vmatprep.subr.mxu0 0.0
  %8489 = vmatpush1.msra.mxu0 0.0
  %8490 = vmatprep.subr.mxu0 0.0
  %8491 = vmatpush1.msra.mxu0 0.0
  %8492 = vmatprep.subr.mxu0 0.0
  %8493 = vmatpush1.msra.mxu0 0.0
  %8494 = vmatprep.subr.mxu0 0.0
  %8495 = vmatpush1.msra.mxu0 0.0
  %8496 = vmatprep.subr.mxu0 0.0
  %8497 = vmatpush1.msra.mxu0 0.0
  %8498 = vmatprep.subr.mxu0 0.0
  %8499 = vmatpush1.msra.mxu0 0.0
  %8500 = vmatprep.subr.mxu0 0.0
  %8501 = vmatpush1.msra.mxu0 0.0
  %8502 = vmatprep.mubr.f32.mxu0 0.0
  %v8503 = vand.u32 %v8355, 4294901760
  %8504 = vmatmul.mubr.f32.gmra.mrb[0].mxu0 %v8503
  %v8505 = vpop.f32.mrb[0].mxu0
  %v8506 = vadd.f32 %v8430, %v8505
  %v8507 = vpop.f32.mrb[0].mxu0
  %8508 = vdwg.mxu0
  %8509 = vmatprep.subr.mxu0 0.0
  %v8510 = vand.u32 %v8351, 4294901760
  %v8511 = vsub.f32 %v8351, %v8510
  %8512 = vmatpush1.msra.mxu0 %v8511
  %8513 = vmatprep.subr.mxu0 0.0
  %8514 = vmatpush1.msra.mxu0 0.0
  %8515 = vmatprep.subr.mxu0 0.0
  %8516 = vmatpush1.msra.mxu0 0.0
  %8517 = vmatprep.subr.mxu0 0.0
  %8518 = vmatpush1.msra.mxu0 0.0
  %8519 = vmatprep.subr.mxu0 0.0
  %8520 = vmatpush1.msra.mxu0 0.0
  %8521 = vmatprep.subr.mxu0 0.0
  %8522 = vmatpush1.msra.mxu0 0.0
  %8523 = vmatprep.subr.mxu0 0.0
  %8524 = vmatpush1.msra.mxu0 0.0
  %8525 = vmatprep.subr.mxu0 0.0
  %8526 = vmatpush1.msra.mxu0 0.0
  %8527 = vmatprep.subr.mxu0 0.0
  %8528 = vmatpush1.msra.mxu0 0.0
  %8529 = vmatprep.subr.mxu0 0.0
  %8530 = vmatpush1.msra.mxu0 0.0
  %8531 = vmatprep.subr.mxu0 0.0
  %8532 = vmatpush1.msra.mxu0 0.0
  %8533 = vmatprep.subr.mxu0 0.0
  %8534 = vmatpush1.msra.mxu0 0.0
  %8535 = vmatprep.subr.mxu0 0.0
  %8536 = vmatpush1.msra.mxu0 0.0
  %8537 = vmatprep.subr.mxu0 0.0
  %8538 = vmatpush1.msra.mxu0 0.0
  %8539 = vmatprep.subr.mxu0 0.0
  %8540 = vmatpush1.msra.mxu0 0.0
  %8541 = vmatprep.subr.mxu0 0.0
  %8542 = vmatpush1.msra.mxu0 0.0
  %8543 = vmatprep.subr.mxu0 0.0
  %8544 = vmatpush1.msra.mxu0 0.0
  %8545 = vmatprep.subr.mxu0 0.0
  %8546 = vmatpush1.msra.mxu0 0.0
  %8547 = vmatprep.subr.mxu0 0.0
  %8548 = vmatpush1.msra.mxu0 0.0
  %8549 = vmatprep.subr.mxu0 0.0
  %8550 = vmatpush1.msra.mxu0 0.0
  %8551 = vmatprep.subr.mxu0 0.0
  %8552 = vmatpush1.msra.mxu0 0.0
  %8553 = vmatprep.subr.mxu0 0.0
  %8554 = vmatpush1.msra.mxu0 0.0
  %8555 = vmatprep.subr.mxu0 0.0
  %8556 = vmatpush1.msra.mxu0 0.0
  %8557 = vmatprep.subr.mxu0 0.0
  %8558 = vmatpush1.msra.mxu0 0.0
  %8559 = vmatprep.subr.mxu0 0.0
  %8560 = vmatpush1.msra.mxu0 0.0
  %8561 = vmatprep.subr.mxu0 0.0
  %8562 = vmatpush1.msra.mxu0 0.0
  %8563 = vmatprep.subr.mxu0 0.0
  %8564 = vmatpush1.msra.mxu0 0.0
  %8565 = vmatprep.subr.mxu0 0.0
  %8566 = vmatpush1.msra.mxu0 0.0
  %8567 = vmatprep.subr.mxu0 0.0
  %8568 = vmatpush1.msra.mxu0 0.0
  %8569 = vmatprep.subr.mxu0 0.0
  %8570 = vmatpush1.msra.mxu0 0.0
  %8571 = vmatprep.subr.mxu0 0.0
  %8572 = vmatpush1.msra.mxu0 0.0
  %8573 = vmatprep.subr.mxu0 0.0
  %8574 = vmatpush1.msra.mxu0 0.0
  %8575 = vmatprep.mubr.f32.mxu0 0.0
  %v8576 = vand.u32 %v8355, 4294901760
  %v8577 = vsub.f32 %v8355, %v8576
  %8578 = vmatmul.mubr.f32.gmra.mrb[0].mxu0 %v8577
  %v8579 = vpop.f32.mrb[0].mxu0
  %v8580 = vadd.f32 %v8506, %v8579
  %v8581 = vpop.f32.mrb[0].mxu0
  %8582 = vdwg.mxu0
  %8583 = vmatprep.subr.mxu0 0.0
  %v8584 = vand.u32 %v8351, 4294901760
  %8585 = vmatpush1.msra.mxu0 %v8584
  %8586 = vmatprep.subr.mxu0 0.0
  %8587 = vmatpush1.msra.mxu0 0.0
  %8588 = vmatprep.subr.mxu0 0.0
  %8589 = vmatpush1.msra.mxu0 0.0
  %8590 = vmatprep.subr.mxu0 0.0
  %8591 = vmatpush1.msra.mxu0 0.0
  %8592 = vmatprep.subr.mxu0 0.0
  %8593 = vmatpush1.msra.mxu0 0.0
  %8594 = vmatprep.subr.mxu0 0.0
  %8595 = vmatpush1.msra.mxu0 0.0
  %8596 = vmatprep.subr.mxu0 0.0
  %8597 = vmatpush1.msra.mxu0 0.0
  %8598 = vmatprep.subr.mxu0 0.0
  %8599 = vmatpush1.msra.mxu0 0.0
  %8600 = vmatprep.subr.mxu0 0.0
  %8601 = vmatpush1.msra.mxu0 0.0
  %8602 = vmatprep.subr.mxu0 0.0
  %8603 = vmatpush1.msra.mxu0 0.0
  %8604 = vmatprep.subr.mxu0 0.0
  %8605 = vmatpush1.msra.mxu0 0.0
  %8606 = vmatprep.subr.mxu0 0.0
  %8607 = vmatpush1.msra.mxu0 0.0
  %8608 = vmatprep.subr.mxu0 0.0
  %8609 = vmatpush1.msra.mxu0 0.0
  %8610 = vmatprep.subr.mxu0 0.0
  %8611 = vmatpush1.msra.mxu0 0.0
  %8612 = vmatprep.subr.mxu0 0.0
  %8613 = vmatpush1.msra.mxu0 0.0
  %8614 = vmatprep.subr.mxu0 0.0
  %8615 = vmatpush1.msra.mxu0 0.0
  %8616 = vmatprep.subr.mxu0 0.0
  %8617 = vmatpush1.msra.mxu0 0.0
  %8618 = vmatprep.subr.mxu0 0.0
  %8619 = vmatpush1.msra.mxu0 0.0
  %8620 = vmatprep.subr.mxu0 0.0
  %8621 = vmatpush1.msra.mxu0 0.0
  %8622 = vmatprep.subr.mxu0 0.0
  %8623 = vmatpush1.msra.mxu0 0.0
  %8624 = vmatprep.subr.mxu0 0.0
  %8625 = vmatpush1.msra.mxu0 0.0
  %8626 = vmatprep.subr.mxu0 0.0
  %8627 = vmatpush1.msra.mxu0 0.0
  %8628 = vmatprep.subr.mxu0 0.0
  %8629 = vmatpush1.msra.mxu0 0.0
  %8630 = vmatprep.subr.mxu0 0.0
  %8631 = vmatpush1.msra.mxu0 0.0
  %8632 = vmatprep.subr.mxu0 0.0
  %8633 = vmatpush1.msra.mxu0 0.0
  %8634 = vmatprep.subr.mxu0 0.0
  %8635 = vmatpush1.msra.mxu0 0.0
  %8636 = vmatprep.subr.mxu0 0.0
  %8637 = vmatpush1.msra.mxu0 0.0
  %8638 = vmatprep.subr.mxu0 0.0
  %8639 = vmatpush1.msra.mxu0 0.0
  %8640 = vmatprep.subr.mxu0 0.0
  %8641 = vmatpush1.msra.mxu0 0.0
  %8642 = vmatprep.subr.mxu0 0.0
  %8643 = vmatpush1.msra.mxu0 0.0
  %8644 = vmatprep.subr.mxu0 0.0
  %8645 = vmatpush1.msra.mxu0 0.0
  %8646 = vmatprep.subr.mxu0 0.0
  %8647 = vmatpush1.msra.mxu0 0.0
  %8648 = vmatprep.mubr.f32.mxu0 0.0
  %v8649 = vand.u32 %v8355, 4294901760
  %v8650 = vsub.f32 %v8355, %v8649
  %v8651 = vand.u32 %v8650, 4294901760
  %8652 = vmatmul.mubr.f32.gmra.mrb[0].mxu0 %v8651
  %v8653 = vpop.f32.mrb[0].mxu0
  %v8654 = vadd.f32 %v8580, %v8653
  %v8655 = vpop.f32.mrb[0].mxu0
  %8656 = vdwg.mxu0
  %8657 = vmatprep.subr.mxu0 0.0
  %v8658 = vand.u32 %v8351, 4294901760
  %v8659 = vsub.f32 %v8351, %v8658
  %v8660 = vand.u32 %v8659, 4294901760
  %8661 = vmatpush1.msra.mxu0 %v8660
  %8662 = vmatprep.subr.mxu0 0.0
  %8663 = vmatpush1.msra.mxu0 0.0
  %8664 = vmatprep.subr.mxu0 0.0
  %8665 = vmatpush1.msra.mxu0 0.0
  %8666 = vmatprep.subr.mxu0 0.0
  %8667 = vmatpush1.msra.mxu0 0.0
  %8668 = vmatprep.subr.mxu0 0.0
  %8669 = vmatpush1.msra.mxu0 0.0
  %8670 = vmatprep.subr.mxu0 0.0
  %8671 = vmatpush1.msra.mxu0 0.0
  %8672 = vmatprep.subr.mxu0 0.0
  %8673 = vmatpush1.msra.mxu0 0.0
  %8674 = vmatprep.subr.mxu0 0.0
  %8675 = vmatpush1.msra.mxu0 0.0
  %8676 = vmatprep.subr.mxu0 0.0
  %8677 = vmatpush1.msra.mxu0 0.0
  %8678 = vmatprep.subr.mxu0 0.0
  %8679 = vmatpush1.msra.mxu0 0.0
  %8680 = vmatprep.subr.mxu0 0.0
  %8681 = vmatpush1.msra.mxu0 0.0
  %8682 = vmatprep.subr.mxu0 0.0
  %8683 = vmatpush1.msra.mxu0 0.0
  %8684 = vmatprep.subr.mxu0 0.0
  %8685 = vmatpush1.msra.mxu0 0.0
  %8686 = vmatprep.subr.mxu0 0.0
  %8687 = vmatpush1.msra.mxu0 0.0
  %8688 = vmatprep.subr.mxu0 0.0
  %8689 = vmatpush1.msra.mxu0 0.0
  %8690 = vmatprep.subr.mxu0 0.0
  %8691 = vmatpush1.msra.mxu0 0.0
  %8692 = vmatprep.subr.mxu0 0.0
  %8693 = vmatpush1.msra.mxu0 0.0
  %8694 = vmatprep.subr.mxu0 0.0
  %8695 = vmatpush1.msra.mxu0 0.0
  %8696 = vmatprep.subr.mxu0 0.0
  %8697 = vmatpush1.msra.mxu0 0.0
  %8698 = vmatprep.subr.mxu0 0.0
  %8699 = vmatpush1.msra.mxu0 0.0
  %8700 = vmatprep.subr.mxu0 0.0
  %8701 = vmatpush1.msra.mxu0 0.0
  %8702 = vmatprep.subr.mxu0 0.0
  %8703 = vmatpush1.msra.mxu0 0.0
  %8704 = vmatprep.subr.mxu0 0.0
  %8705 = vmatpush1.msra.mxu0 0.0
  %8706 = vmatprep.subr.mxu0 0.0
  %8707 = vmatpush1.msra.mxu0 0.0
  %8708 = vmatprep.subr.mxu0 0.0
  %8709 = vmatpush1.msra.mxu0 0.0
  %8710 = vmatprep.subr.mxu0 0.0
  %8711 = vmatpush1.msra.mxu0 0.0
  %8712 = vmatprep.subr.mxu0 0.0
  %8713 = vmatpush1.msra.mxu0 0.0
  %8714 = vmatprep.subr.mxu0 0.0
  %8715 = vmatpush1.msra.mxu0 0.0
  %8716 = vmatprep.subr.mxu0 0.0
  %8717 = vmatpush1.msra.mxu0 0.0
  %8718 = vmatprep.subr.mxu0 0.0
  %8719 = vmatpush1.msra.mxu0 0.0
  %8720 = vmatprep.subr.mxu0 0.0
  %8721 = vmatpush1.msra.mxu0 0.0
  %8722 = vmatprep.subr.mxu0 0.0
  %8723 = vmatpush1.msra.mxu0 0.0
  %8724 = vmatprep.mubr.f32.mxu0 0.0
  %v8725 = vand.u32 %v8355, 4294901760
  %8726 = vmatmul.mubr.f32.gmra.mrb[0].mxu0 %v8725
  %v8727 = vpop.f32.mrb[0].mxu0
  %v8728 = vadd.f32 %v8654, %v8727
  %v8729 = vpop.f32.mrb[0].mxu0
  %8730 = vdwg.mxu0
  %8731 = vmatprep.subr.mxu0 0.0
  %v8732 = vand.u32 %v8351, 4294901760
  %8733 = vmatpush1.msra.mxu0 %v8732
  %8734 = vmatprep.subr.mxu0 0.0
  %8735 = vmatpush1.msra.mxu0 0.0
  %8736 = vmatprep.subr.mxu0 0.0
  %8737 = vmatpush1.msra.mxu0 0.0
  %8738 = vmatprep.subr.mxu0 0.0
  %8739 = vmatpush1.msra.mxu0 0.0
  %8740 = vmatprep.subr.mxu0 0.0
  %8741 = vmatpush1.msra.mxu0 0.0
  %8742 = vmatprep.subr.mxu0 0.0
  %8743 = vmatpush1.msra.mxu0 0.0
  %8744 = vmatprep.subr.mxu0 0.0
  %8745 = vmatpush1.msra.mxu0 0.0
  %8746 = vmatprep.subr.mxu0 0.0
  %8747 = vmatpush1.msra.mxu0 0.0
  %8748 = vmatprep.subr.mxu0 0.0
  %8749 = vmatpush1.msra.mxu0 0.0
  %8750 = vmatprep.subr.mxu0 0.0
  %8751 = vmatpush1.msra.mxu0 0.0
  %8752 = vmatprep.subr.mxu0 0.0
  %8753 = vmatpush1.msra.mxu0 0.0
  %8754 = vmatprep.subr.mxu0 0.0
  %8755 = vmatpush1.msra.mxu0 0.0
  %8756 = vmatprep.subr.mxu0 0.0
  %8757 = vmatpush1.msra.mxu0 0.0
  %8758 = vmatprep.subr.mxu0 0.0
  %8759 = vmatpush1.msra.mxu0 0.0
  %8760 = vmatprep.subr.mxu0 0.0
  %8761 = vmatpush1.msra.mxu0 0.0
  %8762 = vmatprep.subr.mxu0 0.0
  %8763 = vmatpush1.msra.mxu0 0.0
  %8764 = vmatprep.subr.mxu0 0.0
  %8765 = vmatpush1.msra.mxu0 0.0
  %8766 = vmatprep.subr.mxu0 0.0
  %8767 = vmatpush1.msra.mxu0 0.0
  %8768 = vmatprep.subr.mxu0 0.0
  %8769 = vmatpush1.msra.mxu0 0.0
  %8770 = vmatprep.subr.mxu0 0.0
  %8771 = vmatpush1.msra.mxu0 0.0
  %8772 = vmatprep.subr.mxu0 0.0
  %8773 = vmatpush1.msra.mxu0 0.0
  %8774 = vmatprep.subr.mxu0 0.0
  %8775 = vmatpush1.msra.mxu0 0.0
  %8776 = vmatprep.subr.mxu0 0.0
  %8777 = vmatpush1.msra.mxu0 0.0
  %8778 = vmatprep.subr.mxu0 0.0
  %8779 = vmatpush1.msra.mxu0 0.0
  %8780 = vmatprep.subr.mxu0 0.0
  %8781 = vmatpush1.msra.mxu0 0.0
  %8782 = vmatprep.subr.mxu0 0.0
  %8783 = vmatpush1.msra.mxu0 0.0
  %8784 = vmatprep.subr.mxu0 0.0
  %8785 = vmatpush1.msra.mxu0 0.0
  %8786 = vmatprep.subr.mxu0 0.0
  %8787 = vmatpush1.msra.mxu0 0.0
  %8788 = vmatprep.subr.mxu0 0.0
  %8789 = vmatpush1.msra.mxu0 0.0
  %8790 = vmatprep.subr.mxu0 0.0
  %8791 = vmatpush1.msra.mxu0 0.0
  %8792 = vmatprep.subr.mxu0 0.0
  %8793 = vmatpush1.msra.mxu0 0.0
  %8794 = vmatprep.subr.mxu0 0.0
  %8795 = vmatpush1.msra.mxu0 0.0
  %8796 = vmatprep.mubr.f32.mxu0 0.0
  %v8797 = vand.u32 %v8355, 4294901760
  %8798 = vmatmul.mubr.f32.gmra.mrb[0].mxu0 %v8797
  %v8799 = vpop.f32.mrb[0].mxu0
  %v8800 = vadd.f32 %v8728, %v8799
  %v8801 = vpop.f32.mrb[0].mxu0
  %8802 = vdwg.mxu0
  %s8803 = scalar_lea.vmem %s17, 32
  %v8804 = vld [vmem:[%s8803] sm:$0xff]
  %v8805 = vld [vmem:[%s8803 + $0x8] sm:$0xff]
  %v8806 = vld [vmem:[%s8803 + $0x10] sm:$0xff]
  %v8807 = vld [vmem:[%s8803 + $0x18] sm:$0xff]
  %v8809 = vsel %vm94, %v8351, 0
  %8811 = vmatprep.subr.mxu0 0.0
  %8812 = vmatpush1.msra.mxu0 %v8804
  %8813 = vmatprep.subr.mxu0 0.0
  %8814 = vmatpush1.msra.mxu0 %v8805
  %8815 = vmatprep.subr.mxu0 0.0
  %8816 = vmatpush1.msra.mxu0 %v8806
  %8817 = vmatprep.subr.mxu0 0.0
  %8818 = vmatpush1.msra.mxu0 %v8807
  %8819 = vmatprep.subr.mxu0 0.0
  %8820 = vmatpush1.msra.mxu0 0.0
  %8821 = vmatprep.subr.mxu0 0.0
  %8822 = vmatpush1.msra.mxu0 0.0
  %8823 = vmatprep.subr.mxu0 0.0
  %8824 = vmatpush1.msra.mxu0 0.0
  %8825 = vmatprep.subr.mxu0 0.0
  %8826 = vmatpush1.msra.mxu0 0.0
  %8827 = vmatprep.subr.mxu0 0.0
  %8828 = vmatpush1.msra.mxu0 0.0
  %8829 = vmatprep.subr.mxu0 0.0
  %8830 = vmatpush1.msra.mxu0 0.0
  %8831 = vmatprep.subr.mxu0 0.0
  %8832 = vmatpush1.msra.mxu0 0.0
  %8833 = vmatprep.subr.mxu0 0.0
  %8834 = vmatpush1.msra.mxu0 0.0
  %8835 = vmatprep.subr.mxu0 0.0
  %8836 = vmatpush1.msra.mxu0 0.0
  %8837 = vmatprep.subr.mxu0 0.0
  %8838 = vmatpush1.msra.mxu0 0.0
  %8839 = vmatprep.subr.mxu0 0.0
  %8840 = vmatpush1.msra.mxu0 0.0
  %8841 = vmatprep.subr.mxu0 0.0
  %8842 = vmatpush1.msra.mxu0 0.0
  %8843 = vmatprep.subr.mxu0 0.0
  %8844 = vmatpush1.msra.mxu0 0.0
  %8845 = vmatprep.subr.mxu0 0.0
  %8846 = vmatpush1.msra.mxu0 0.0
  %8847 = vmatprep.subr.mxu0 0.0
  %8848 = vmatpush1.msra.mxu0 0.0
  %8849 = vmatprep.subr.mxu0 0.0
  %8850 = vmatpush1.msra.mxu0 0.0
  %8851 = vmatprep.subr.mxu0 0.0
  %8852 = vmatpush1.msra.mxu0 0.0
  %8853 = vmatprep.subr.mxu0 0.0
  %8854 = vmatpush1.msra.mxu0 0.0
  %8855 = vmatprep.subr.mxu0 0.0
  %8856 = vmatpush1.msra.mxu0 0.0
  %8857 = vmatprep.subr.mxu0 0.0
  %8858 = vmatpush1.msra.mxu0 0.0
  %8859 = vmatprep.subr.mxu0 0.0
  %8860 = vmatpush1.msra.mxu0 0.0
  %8861 = vmatprep.subr.mxu0 0.0
  %8862 = vmatpush1.msra.mxu0 0.0
  %8863 = vmatprep.subr.mxu0 0.0
  %8864 = vmatpush1.msra.mxu0 0.0
  %8865 = vmatprep.subr.mxu0 0.0
  %8866 = vmatpush1.msra.mxu0 0.0
  %8867 = vmatprep.subr.mxu0 0.0
  %8868 = vmatpush1.msra.mxu0 0.0
  %8869 = vmatprep.subr.mxu0 0.0
  %8870 = vmatpush1.msra.mxu0 0.0
  %8871 = vmatprep.subr.mxu0 0.0
  %8872 = vmatpush1.msra.mxu0 0.0
  %8873 = vmatprep.subr.mxu0 0.0
  %8874 = vmatpush1.msra.mxu0 0.0
  %8875 = vmatprep.mubr.f32.mxu0 0.0
  %8876 = vmatmul.mubr.f32.gmra.mrb[0].mxu0 %v8809
  %v8877 = vpop.f32.mrb[0].mxu0
  %v8878 = vadd.f32 0.0, %v8877
  %v8879 = vpop.f32.mrb[0].mxu0
  %8880 = vdwg.mxu0
  %s8881 = scalar_lea.vmem %s17, 64
  %v8882 = vld [vmem:[%s8881] sm:$0xff]
  %v8883 = vld [vmem:[%s8881 + $0x8] sm:$0xff]
  %v8884 = vld [vmem:[%s8881 + $0x10] sm:$0xff]
  %v8885 = vld [vmem:[%s8881 + $0x18] sm:$0xff]
  %v8886 = vld [vmem:[%s17] sm:$0xff]
  %v8887 = vld [vmem:[%s17 + $0x8] sm:$0xff]
  %v8888 = vld [vmem:[%s17 + $0x10] sm:$0xff]
  %v8889 = vld [vmem:[%s17 + $0x18] sm:$0xff]
  %v8891 = vsel %vm94, %v8800, 0
  %8893 = vmatprep.subr.mxu0 0.0
  %8894 = vmatpush1.msra.mxu0 %v8886
  %8895 = vmatprep.subr.mxu0 0.0
  %8896 = vmatpush1.msra.mxu0 %v8887
  %8897 = vmatprep.subr.mxu0 0.0
  %8898 = vmatpush1.msra.mxu0 %v8888
  %8899 = vmatprep.subr.mxu0 0.0
  %8900 = vmatpush1.msra.mxu0 %v8889
  %8901 = vmatprep.subr.mxu0 0.0
  %8902 = vmatpush1.msra.mxu0 0.0
  %8903 = vmatprep.subr.mxu0 0.0
  %8904 = vmatpush1.msra.mxu0 0.0
  %8905 = vmatprep.subr.mxu0 0.0
  %8906 = vmatpush1.msra.mxu0 0.0
  %8907 = vmatprep.subr.mxu0 0.0
  %8908 = vmatpush1.msra.mxu0 0.0
  %8909 = vmatprep.subr.mxu0 0.0
  %8910 = vmatpush1.msra.mxu0 0.0
  %8911 = vmatprep.subr.mxu0 0.0
  %8912 = vmatpush1.msra.mxu0 0.0
  %8913 = vmatprep.subr.mxu0 0.0
  %8914 = vmatpush1.msra.mxu0 0.0
  %8915 = vmatprep.subr.mxu0 0.0
  %8916 = vmatpush1.msra.mxu0 0.0
  %8917 = vmatprep.subr.mxu0 0.0
  %8918 = vmatpush1.msra.mxu0 0.0
  %8919 = vmatprep.subr.mxu0 0.0
  %8920 = vmatpush1.msra.mxu0 0.0
  %8921 = vmatprep.subr.mxu0 0.0
  %8922 = vmatpush1.msra.mxu0 0.0
  %8923 = vmatprep.subr.mxu0 0.0
  %8924 = vmatpush1.msra.mxu0 0.0
  %8925 = vmatprep.subr.mxu0 0.0
  %8926 = vmatpush1.msra.mxu0 0.0
  %8927 = vmatprep.subr.mxu0 0.0
  %8928 = vmatpush1.msra.mxu0 0.0
  %8929 = vmatprep.subr.mxu0 0.0
  %8930 = vmatpush1.msra.mxu0 0.0
  %8931 = vmatprep.subr.mxu0 0.0
  %8932 = vmatpush1.msra.mxu0 0.0
  %8933 = vmatprep.subr.mxu0 0.0
  %8934 = vmatpush1.msra.mxu0 0.0
  %8935 = vmatprep.subr.mxu0 0.0
  %8936 = vmatpush1.msra.mxu0 0.0
  %8937 = vmatprep.subr.mxu0 0.0
  %8938 = vmatpush1.msra.mxu0 0.0
  %8939 = vmatprep.subr.mxu0 0.0
  %8940 = vmatpush1.msra.mxu0 0.0
  %8941 = vmatprep.subr.mxu0 0.0
  %8942 = vmatpush1.msra.mxu0 0.0
  %8943 = vmatprep.subr.mxu0 0.0
  %8944 = vmatpush1.msra.mxu0 0.0
  %8945 = vmatprep.subr.mxu0 0.0
  %8946 = vmatpush1.msra.mxu0 0.0
  %8947 = vmatprep.subr.mxu0 0.0
  %8948 = vmatpush1.msra.mxu0 0.0
  %8949 = vmatprep.subr.mxu0 0.0
  %8950 = vmatpush1.msra.mxu0 0.0
  %8951 = vmatprep.subr.mxu0 0.0
  %8952 = vmatpush1.msra.mxu0 0.0
  %8953 = vmatprep.subr.mxu0 0.0
  %8954 = vmatpush1.msra.mxu0 0.0
  %8955 = vmatprep.subr.mxu0 0.0
  %8956 = vmatpush1.msra.mxu0 0.0
  %8957 = vmatprep.mubr.f32.mxu0 0.0
  %8958 = vmatmul.mubr.f32.gmra.mrb[0].mxu0 %v8891
  %v8959 = vpop.f32.mrb[0].mxu0
  %v8960 = vadd.f32 0.0, %v8959
  %v8961 = vpop.f32.mrb[0].mxu0
  %8962 = vdwg.mxu0
  %8963 = vmatprep.subr.mxu0 0.0
  %8964 = vmatpush1.msra.mxu0 %v8882
  %8965 = vmatprep.subr.mxu0 0.0
  %8966 = vmatpush1.msra.mxu0 %v8883
  %8967 = vmatprep.subr.mxu0 0.0
  %8968 = vmatpush1.msra.mxu0 %v8884
  %8969 = vmatprep.subr.mxu0 0.0
  %8970 = vmatpush1.msra.mxu0 %v8885
  %8971 = vmatprep.subr.mxu0 0.0
  %8972 = vmatpush1.msra.mxu0 0.0
  %8973 = vmatprep.subr.mxu0 0.0
  %8974 = vmatpush1.msra.mxu0 0.0
  %8975 = vmatprep.subr.mxu0 0.0
  %8976 = vmatpush1.msra.mxu0 0.0
  %8977 = vmatprep.subr.mxu0 0.0
  %8978 = vmatpush1.msra.mxu0 0.0
  %8979 = vmatprep.subr.mxu0 0.0
  %8980 = vmatpush1.msra.mxu0 0.0
  %8981 = vmatprep.subr.mxu0 0.0
  %8982 = vmatpush1.msra.mxu0 0.0
  %8983 = vmatprep.subr.mxu0 0.0
  %8984 = vmatpush1.msra.mxu0 0.0
  %8985 = vmatprep.subr.mxu0 0.0
  %8986 = vmatpush1.msra.mxu0 0.0
  %8987 = vmatprep.subr.mxu0 0.0
  %8988 = vmatpush1.msra.mxu0 0.0
  %8989 = vmatprep.subr.mxu0 0.0
  %8990 = vmatpush1.msra.mxu0 0.0
  %8991 = vmatprep.subr.mxu0 0.0
  %8992 = vmatpush1.msra.mxu0 0.0
  %8993 = vmatprep.subr.mxu0 0.0
  %8994 = vmatpush1.msra.mxu0 0.0
  %8995 = vmatprep.subr.mxu0 0.0
  %8996 = vmatpush1.msra.mxu0 0.0
  %8997 = vmatprep.subr.mxu0 0.0
  %8998 = vmatpush1.msra.mxu0 0.0
  %8999 = vmatprep.subr.mxu0 0.0
  %9000 = vmatpush1.msra.mxu0 0.0
  %9001 = vmatprep.subr.mxu0 0.0
  %9002 = vmatpush1.msra.mxu0 0.0
  %9003 = vmatprep.subr.mxu0 0.0
  %9004 = vmatpush1.msra.mxu0 0.0
  %9005 = vmatprep.subr.mxu0 0.0
  %9006 = vmatpush1.msra.mxu0 0.0
  %9007 = vmatprep.subr.mxu0 0.0
  %9008 = vmatpush1.msra.mxu0 0.0
  %9009 = vmatprep.subr.mxu0 0.0
  %9010 = vmatpush1.msra.mxu0 0.0
  %9011 = vmatprep.subr.mxu0 0.0
  %9012 = vmatpush1.msra.mxu0 0.0
  %9013 = vmatprep.subr.mxu0 0.0
  %9014 = vmatpush1.msra.mxu0 0.0
  %9015 = vmatprep.subr.mxu0 0.0
  %9016 = vmatpush1.msra.mxu0 0.0
  %9017 = vmatprep.subr.mxu0 0.0
  %9018 = vmatpush1.msra.mxu0 0.0
  %9019 = vmatprep.subr.mxu0 0.0
  %9020 = vmatpush1.msra.mxu0 0.0
  %9021 = vmatprep.subr.mxu0 0.0
  %9022 = vmatpush1.msra.mxu0 0.0
  %9023 = vmatprep.subr.mxu0 0.0
  %9024 = vmatpush1.msra.mxu0 0.0
  %9025 = vmatprep.subr.mxu0 0.0
  %9026 = vmatpush1.msra.mxu0 0.0
  %9027 = vmatprep.mubr.f32.mxu0 0.0
  %9028 = vmatmul.mubr.f32.gmra.mrb[0].mxu0 %v8809
  %v9029 = vpop.f32.mrb[0].mxu0
  %v9030 = vadd.f32 %v8960, %v9029
  %v9031 = vpop.f32.mrb[0].mxu0
  %9032 = vdwg.mxu0
  %v9033 = vld [vmem:[%s20] sm:$0xff]
  %v9034 = vld [vmem:[%s20 + $0x8] sm:$0xff]
  %v9035 = vld [vmem:[%s21] sm:$0xff]
  %v9036 = vld [vmem:[%s21 + $0x8] sm:$0xff]
  %v9038 = vsel %vm8353, %v9035, 0
  %v9041 = vsel %vm8353, %v9036, 0
  %9043 = vmatprep.subr.mxu0 0.0
  %v9044 = vand.u32 %v9030, 4294901760
  %9045 = vmatpush1.msra.mxu0 %v9044
  %9046 = vmatprep.subr.mxu0 0.0
  %9047 = vmatpush1.msra.mxu0 0.0
  %9048 = vmatprep.subr.mxu0 0.0
  %9049 = vmatpush1.msra.mxu0 0.0
  %9050 = vmatprep.subr.mxu0 0.0
  %9051 = vmatpush1.msra.mxu0 0.0
  %9052 = vmatprep.subr.mxu0 0.0
  %9053 = vmatpush1.msra.mxu0 0.0
  %9054 = vmatprep.subr.mxu0 0.0
  %9055 = vmatpush1.msra.mxu0 0.0
  %9056 = vmatprep.subr.mxu0 0.0
  %9057 = vmatpush1.msra.mxu0 0.0
  %9058 = vmatprep.subr.mxu0 0.0
  %9059 = vmatpush1.msra.mxu0 0.0
  %9060 = vmatprep.subr.mxu0 0.0
  %9061 = vmatpush1.msra.mxu0 0.0
  %9062 = vmatprep.subr.mxu0 0.0
  %9063 = vmatpush1.msra.mxu0 0.0
  %9064 = vmatprep.subr.mxu0 0.0
  %9065 = vmatpush1.msra.mxu0 0.0
  %9066 = vmatprep.subr.mxu0 0.0
  %9067 = vmatpush1.msra.mxu0 0.0
  %9068 = vmatprep.subr.mxu0 0.0
  %9069 = vmatpush1.msra.mxu0 0.0
  %9070 = vmatprep.subr.mxu0 0.0
  %9071 = vmatpush1.msra.mxu0 0.0
  %9072 = vmatprep.subr.mxu0 0.0
  %9073 = vmatpush1.msra.mxu0 0.0
  %9074 = vmatprep.subr.mxu0 0.0
  %9075 = vmatpush1.msra.mxu0 0.0
  %9076 = vmatprep.subr.mxu0 0.0
  %9077 = vmatpush1.msra.mxu0 0.0
  %9078 = vmatprep.subr.mxu0 0.0
  %9079 = vmatpush1.msra.mxu0 0.0
  %9080 = vmatprep.subr.mxu0 0.0
  %9081 = vmatpush1.msra.mxu0 0.0
  %9082 = vmatprep.subr.mxu0 0.0
  %9083 = vmatpush1.msra.mxu0 0.0
  %9084 = vmatprep.subr.mxu0 0.0
  %9085 = vmatpush1.msra.mxu0 0.0
  %9086 = vmatprep.subr.mxu0 0.0
  %9087 = vmatpush1.msra.mxu0 0.0
  %9088 = vmatprep.subr.mxu0 0.0
  %9089 = vmatpush1.msra.mxu0 0.0
  %9090 = vmatprep.subr.mxu0 0.0
  %9091 = vmatpush1.msra.mxu0 0.0
  %9092 = vmatprep.subr.mxu0 0.0
  %9093 = vmatpush1.msra.mxu0 0.0
  %9094 = vmatprep.subr.mxu0 0.0
  %9095 = vmatpush1.msra.mxu0 0.0
  %9096 = vmatprep.subr.mxu0 0.0
  %9097 = vmatpush1.msra.mxu0 0.0
  %9098 = vmatprep.subr.mxu0 0.0
  %9099 = vmatpush1.msra.mxu0 0.0
  %9100 = vmatprep.subr.mxu0 0.0
  %9101 = vmatpush1.msra.mxu0 0.0
  %9102 = vmatprep.subr.mxu0 0.0
  %9103 = vmatpush1.msra.mxu0 0.0
  %9104 = vmatprep.subr.mxu0 0.0
  %9105 = vmatpush1.msra.mxu0 0.0
  %9106 = vmatprep.subr.mxu0 0.0
  %9107 = vmatpush1.msra.mxu0 0.0
  %9108 = vmatprep.mubr.f32.mxu0 0.0
  %v9109 = vand.u32 %v9038, 4294901760
  %v9110 = vsub.f32 %v9038, %v9109
  %v9111 = vand.u32 %v9110, 4294901760
  %v9112 = vsub.f32 %v9110, %v9111
  %v9113 = vand.u32 %v9112, 4294901760
  %9114 = vmatmul.mubr.f32.gmra.mrb[0].mxu0 %v9113
  %v9115 = vpop.f32.mrb[0].mxu0
  %v9116 = vadd.f32 0.0, %v9115
  %v9117 = vpop.f32.mrb[0].mxu0
  %9118 = vmatprep.mubr.f32.mxu0 0.0
  %v9119 = vand.u32 %v9041, 4294901760
  %v9120 = vsub.f32 %v9041, %v9119
  %v9121 = vand.u32 %v9120, 4294901760
  %v9122 = vsub.f32 %v9120, %v9121
  %v9123 = vand.u32 %v9122, 4294901760
  %9124 = vmatmul.mubr.f32.gmra.mrb[0].mxu0 %v9123
  %v9125 = vpop.f32.mrb[0].mxu0
  %v9126 = vadd.f32 0.0, %v9125
  %v9127 = vpop.f32.mrb[0].mxu0
  %9128 = vdwg.mxu0
  %9129 = vmatprep.subr.mxu0 0.0
  %v9130 = vand.u32 %v9030, 4294901760
  %v9131 = vsub.f32 %v9030, %v9130
  %v9132 = vand.u32 %v9131, 4294901760
  %v9133 = vsub.f32 %v9131, %v9132
  %v9134 = vand.u32 %v9133, 4294901760
  %9135 = vmatpush1.msra.mxu0 %v9134
  %9136 = vmatprep.subr.mxu0 0.0
  %9137 = vmatpush1.msra.mxu0 0.0
  %9138 = vmatprep.subr.mxu0 0.0
  %9139 = vmatpush1.msra.mxu0 0.0
  %9140 = vmatprep.subr.mxu0 0.0
  %9141 = vmatpush1.msra.mxu0 0.0
  %9142 = vmatprep.subr.mxu0 0.0
  %9143 = vmatpush1.msra.mxu0 0.0
  %9144 = vmatprep.subr.mxu0 0.0
  %9145 = vmatpush1.msra.mxu0 0.0
  %9146 = vmatprep.subr.mxu0 0.0
  %9147 = vmatpush1.msra.mxu0 0.0
  %9148 = vmatprep.subr.mxu0 0.0
  %9149 = vmatpush1.msra.mxu0 0.0
  %9150 = vmatprep.subr.mxu0 0.0
  %9151 = vmatpush1.msra.mxu0 0.0
  %9152 = vmatprep.subr.mxu0 0.0
  %9153 = vmatpush1.msra.mxu0 0.0
  %9154 = vmatprep.subr.mxu0 0.0
  %9155 = vmatpush1.msra.mxu0 0.0
  %9156 = vmatprep.subr.mxu0 0.0
  %9157 = vmatpush1.msra.mxu0 0.0
  %9158 = vmatprep.subr.mxu0 0.0
  %9159 = vmatpush1.msra.mxu0 0.0
  %9160 = vmatprep.subr.mxu0 0.0
  %9161 = vmatpush1.msra.mxu0 0.0
  %9162 = vmatprep.subr.mxu0 0.0
  %9163 = vmatpush1.msra.mxu0 0.0
  %9164 = vmatprep.subr.mxu0 0.0
  %9165 = vmatpush1.msra.mxu0 0.0
  %9166 = vmatprep.subr.mxu0 0.0
  %9167 = vmatpush1.msra.mxu0 0.0
  %9168 = vmatprep.subr.mxu0 0.0
  %9169 = vmatpush1.msra.mxu0 0.0
  %9170 = vmatprep.subr.mxu0 0.0
  %9171 = vmatpush1.msra.mxu0 0.0
  %9172 = vmatprep.subr.mxu0 0.0
  %9173 = vmatpush1.msra.mxu0 0.0
  %9174 = vmatprep.subr.mxu0 0.0
  %9175 = vmatpush1.msra.mxu0 0.0
  %9176 = vmatprep.subr.mxu0 0.0
  %9177 = vmatpush1.msra.mxu0 0.0
  %9178 = vmatprep.subr.mxu0 0.0
  %9179 = vmatpush1.msra.mxu0 0.0
  %9180 = vmatprep.subr.mxu0 0.0
  %9181 = vmatpush1.msra.mxu0 0.0
  %9182 = vmatprep.subr.mxu0 0.0
  %9183 = vmatpush1.msra.mxu0 0.0
  %9184 = vmatprep.subr.mxu0 0.0
  %9185 = vmatpush1.msra.mxu0 0.0
  %9186 = vmatprep.subr.mxu0 0.0
  %9187 = vmatpush1.msra.mxu0 0.0
  %9188 = vmatprep.subr.mxu0 0.0
  %9189 = vmatpush1.msra.mxu0 0.0
  %9190 = vmatprep.subr.mxu0 0.0
  %9191 = vmatpush1.msra.mxu0 0.0
  %9192 = vmatprep.subr.mxu0 0.0
  %9193 = vmatpush1.msra.mxu0 0.0
  %9194 = vmatprep.subr.mxu0 0.0
  %9195 = vmatpush1.msra.mxu0 0.0
  %9196 = vmatprep.subr.mxu0 0.0
  %9197 = vmatpush1.msra.mxu0 0.0
  %9198 = vmatprep.mubr.f32.mxu0 0.0
  %v9199 = vand.u32 %v9038, 4294901760
  %9200 = vmatmul.mubr.f32.gmra.mrb[0].mxu0 %v9199
  %v9201 = vpop.f32.mrb[0].mxu0
  %v9202 = vadd.f32 %v9116, %v9201
  %v9203 = vpop.f32.mrb[0].mxu0
  %9204 = vmatprep.mubr.f32.mxu0 0.0
  %v9205 = vand.u32 %v9041, 4294901760
  %9206 = vmatmul.mubr.f32.gmra.mrb[0].mxu0 %v9205
  %v9207 = vpop.f32.mrb[0].mxu0
  %v9208 = vadd.f32 %v9126, %v9207
  %v9209 = vpop.f32.mrb[0].mxu0
  %9210 = vdwg.mxu0
  %9211 = vmatprep.subr.mxu0 0.0
  %v9212 = vand.u32 %v9030, 4294901760
  %v9213 = vsub.f32 %v9030, %v9212
  %9214 = vmatpush1.msra.mxu0 %v9213
  %9215 = vmatprep.subr.mxu0 0.0
  %9216 = vmatpush1.msra.mxu0 0.0
  %9217 = vmatprep.subr.mxu0 0.0
  %9218 = vmatpush1.msra.mxu0 0.0
  %9219 = vmatprep.subr.mxu0 0.0
  %9220 = vmatpush1.msra.mxu0 0.0
  %9221 = vmatprep.subr.mxu0 0.0
  %9222 = vmatpush1.msra.mxu0 0.0
  %9223 = vmatprep.subr.mxu0 0.0
  %9224 = vmatpush1.msra.mxu0 0.0
  %9225 = vmatprep.subr.mxu0 0.0
  %9226 = vmatpush1.msra.mxu0 0.0
  %9227 = vmatprep.subr.mxu0 0.0
  %9228 = vmatpush1.msra.mxu0 0.0
  %9229 = vmatprep.subr.mxu0 0.0
  %9230 = vmatpush1.msra.mxu0 0.0
  %9231 = vmatprep.subr.mxu0 0.0
  %9232 = vmatpush1.msra.mxu0 0.0
  %9233 = vmatprep.subr.mxu0 0.0
  %9234 = vmatpush1.msra.mxu0 0.0
  %9235 = vmatprep.subr.mxu0 0.0
  %9236 = vmatpush1.msra.mxu0 0.0
  %9237 = vmatprep.subr.mxu0 0.0
  %9238 = vmatpush1.msra.mxu0 0.0
  %9239 = vmatprep.subr.mxu0 0.0
  %9240 = vmatpush1.msra.mxu0 0.0
  %9241 = vmatprep.subr.mxu0 0.0
  %9242 = vmatpush1.msra.mxu0 0.0
  %9243 = vmatprep.subr.mxu0 0.0
  %9244 = vmatpush1.msra.mxu0 0.0
  %9245 = vmatprep.subr.mxu0 0.0
  %9246 = vmatpush1.msra.mxu0 0.0
  %9247 = vmatprep.subr.mxu0 0.0
  %9248 = vmatpush1.msra.mxu0 0.0
  %9249 = vmatprep.subr.mxu0 0.0
  %9250 = vmatpush1.msra.mxu0 0.0
  %9251 = vmatprep.subr.mxu0 0.0
  %9252 = vmatpush1.msra.mxu0 0.0
  %9253 = vmatprep.subr.mxu0 0.0
  %9254 = vmatpush1.msra.mxu0 0.0
  %9255 = vmatprep.subr.mxu0 0.0
  %9256 = vmatpush1.msra.mxu0 0.0
  %9257 = vmatprep.subr.mxu0 0.0
  %9258 = vmatpush1.msra.mxu0 0.0
  %9259 = vmatprep.subr.mxu0 0.0
  %9260 = vmatpush1.msra.mxu0 0.0
  %9261 = vmatprep.subr.mxu0 0.0
  %9262 = vmatpush1.msra.mxu0 0.0
  %9263 = vmatprep.subr.mxu0 0.0
  %9264 = vmatpush1.msra.mxu0 0.0
  %9265 = vmatprep.subr.mxu0 0.0
  %9266 = vmatpush1.msra.mxu0 0.0
  %9267 = vmatprep.subr.mxu0 0.0
  %9268 = vmatpush1.msra.mxu0 0.0
  %9269 = vmatprep.subr.mxu0 0.0
  %9270 = vmatpush1.msra.mxu0 0.0
  %9271 = vmatprep.subr.mxu0 0.0
  %9272 = vmatpush1.msra.mxu0 0.0
  %9273 = vmatprep.subr.mxu0 0.0
  %9274 = vmatpush1.msra.mxu0 0.0
  %9275 = vmatprep.subr.mxu0 0.0
  %9276 = vmatpush1.msra.mxu0 0.0
  %9277 = vmatprep.mubr.f32.mxu0 0.0
  %v9278 = vand.u32 %v9038, 4294901760
  %v9279 = vsub.f32 %v9038, %v9278
  %9280 = vmatmul.mubr.f32.gmra.mrb[0].mxu0 %v9279
  %v9281 = vpop.f32.mrb[0].mxu0
  %v9282 = vadd.f32 %v9202, %v9281
  %v9283 = vpop.f32.mrb[0].mxu0
  %9284 = vmatprep.mubr.f32.mxu0 0.0
  %v9285 = vand.u32 %v9041, 4294901760
  %v9286 = vsub.f32 %v9041, %v9285
  %9287 = vmatmul.mubr.f32.gmra.mrb[0].mxu0 %v9286
  %v9288 = vpop.f32.mrb[0].mxu0
  %v9289 = vadd.f32 %v9208, %v9288
  %v9290 = vpop.f32.mrb[0].mxu0
  %9291 = vdwg.mxu0
  %9292 = vmatprep.subr.mxu0 0.0
  %v9293 = vand.u32 %v9030, 4294901760
  %9294 = vmatpush1.msra.mxu0 %v9293
  %9295 = vmatprep.subr.mxu0 0.0
  %9296 = vmatpush1.msra.mxu0 0.0
  %9297 = vmatprep.subr.mxu0 0.0
  %9298 = vmatpush1.msra.mxu0 0.0
  %9299 = vmatprep.subr.mxu0 0.0
  %9300 = vmatpush1.msra.mxu0 0.0
  %9301 = vmatprep.subr.mxu0 0.0
  %9302 = vmatpush1.msra.mxu0 0.0
  %9303 = vmatprep.subr.mxu0 0.0
  %9304 = vmatpush1.msra.mxu0 0.0
  %9305 = vmatprep.subr.mxu0 0.0
  %9306 = vmatpush1.msra.mxu0 0.0
  %9307 = vmatprep.subr.mxu0 0.0
  %9308 = vmatpush1.msra.mxu0 0.0
  %9309 = vmatprep.subr.mxu0 0.0
  %9310 = vmatpush1.msra.mxu0 0.0
  %9311 = vmatprep.subr.mxu0 0.0
  %9312 = vmatpush1.msra.mxu0 0.0
  %9313 = vmatprep.subr.mxu0 0.0
  %9314 = vmatpush1.msra.mxu0 0.0
  %9315 = vmatprep.subr.mxu0 0.0
  %9316 = vmatpush1.msra.mxu0 0.0
  %9317 = vmatprep.subr.mxu0 0.0
  %9318 = vmatpush1.msra.mxu0 0.0
  %9319 = vmatprep.subr.mxu0 0.0
  %9320 = vmatpush1.msra.mxu0 0.0
  %9321 = vmatprep.subr.mxu0 0.0
  %9322 = vmatpush1.msra.mxu0 0.0
  %9323 = vmatprep.subr.mxu0 0.0
  %9324 = vmatpush1.msra.mxu0 0.0
  %9325 = vmatprep.subr.mxu0 0.0
  %9326 = vmatpush1.msra.mxu0 0.0
  %9327 = vmatprep.subr.mxu0 0.0
  %9328 = vmatpush1.msra.mxu0 0.0
  %9329 = vmatprep.subr.mxu0 0.0
  %9330 = vmatpush1.msra.mxu0 0.0
  %9331 = vmatprep.subr.mxu0 0.0
  %9332 = vmatpush1.msra.mxu0 0.0
  %9333 = vmatprep.subr.mxu0 0.0
  %9334 = vmatpush1.msra.mxu0 0.0
  %9335 = vmatprep.subr.mxu0 0.0
  %9336 = vmatpush1.msra.mxu0 0.0
  %9337 = vmatprep.subr.mxu0 0.0
  %9338 = vmatpush1.msra.mxu0 0.0
  %9339 = vmatprep.subr.mxu0 0.0
  %9340 = vmatpush1.msra.mxu0 0.0
  %9341 = vmatprep.subr.mxu0 0.0
  %9342 = vmatpush1.msra.mxu0 0.0
  %9343 = vmatprep.subr.mxu0 0.0
  %9344 = vmatpush1.msra.mxu0 0.0
  %9345 = vmatprep.subr.mxu0 0.0
  %9346 = vmatpush1.msra.mxu0 0.0
  %9347 = vmatprep.subr.mxu0 0.0
  %9348 = vmatpush1.msra.mxu0 0.0
  %9349 = vmatprep.subr.mxu0 0.0
  %9350 = vmatpush1.msra.mxu0 0.0
  %9351 = vmatprep.subr.mxu0 0.0
  %9352 = vmatpush1.msra.mxu0 0.0
  %9353 = vmatprep.subr.mxu0 0.0
  %9354 = vmatpush1.msra.mxu0 0.0
  %9355 = vmatprep.subr.mxu0 0.0
  %9356 = vmatpush1.msra.mxu0 0.0
  %9357 = vmatprep.mubr.f32.mxu0 0.0
  %v9358 = vand.u32 %v9038, 4294901760
  %v9359 = vsub.f32 %v9038, %v9358
  %v9360 = vand.u32 %v9359, 4294901760
  %9361 = vmatmul.mubr.f32.gmra.mrb[0].mxu0 %v9360
  %v9362 = vpop.f32.mrb[0].mxu0
  %v9363 = vadd.f32 %v9282, %v9362
  %v9364 = vpop.f32.mrb[0].mxu0
  %9365 = vmatprep.mubr.f32.mxu0 0.0
  %v9366 = vand.u32 %v9041, 4294901760
  %v9367 = vsub.f32 %v9041, %v9366
  %v9368 = vand.u32 %v9367, 4294901760
  %9369 = vmatmul.mubr.f32.gmra.mrb[0].mxu0 %v9368
  %v9370 = vpop.f32.mrb[0].mxu0
  %v9371 = vadd.f32 %v9289, %v9370
  %v9372 = vpop.f32.mrb[0].mxu0
  %9373 = vdwg.mxu0
  %9374 = vmatprep.subr.mxu0 0.0
  %v9375 = vand.u32 %v9030, 4294901760
  %v9376 = vsub.f32 %v9030, %v9375
  %v9377 = vand.u32 %v9376, 4294901760
  %9378 = vmatpush1.msra.mxu0 %v9377
  %9379 = vmatprep.subr.mxu0 0.0
  %9380 = vmatpush1.msra.mxu0 0.0
  %9381 = vmatprep.subr.mxu0 0.0
  %9382 = vmatpush1.msra.mxu0 0.0
  %9383 = vmatprep.subr.mxu0 0.0
  %9384 = vmatpush1.msra.mxu0 0.0
  %9385 = vmatprep.subr.mxu0 0.0
  %9386 = vmatpush1.msra.mxu0 0.0
  %9387 = vmatprep.subr.mxu0 0.0
  %9388 = vmatpush1.msra.mxu0 0.0
  %9389 = vmatprep.subr.mxu0 0.0
  %9390 = vmatpush1.msra.mxu0 0.0
  %9391 = vmatprep.subr.mxu0 0.0
  %9392 = vmatpush1.msra.mxu0 0.0
  %9393 = vmatprep.subr.mxu0 0.0
  %9394 = vmatpush1.msra.mxu0 0.0
  %9395 = vmatprep.subr.mxu0 0.0
  %9396 = vmatpush1.msra.mxu0 0.0
  %9397 = vmatprep.subr.mxu0 0.0
  %9398 = vmatpush1.msra.mxu0 0.0
  %9399 = vmatprep.subr.mxu0 0.0
  %9400 = vmatpush1.msra.mxu0 0.0
  %9401 = vmatprep.subr.mxu0 0.0
  %9402 = vmatpush1.msra.mxu0 0.0
  %9403 = vmatprep.subr.mxu0 0.0
  %9404 = vmatpush1.msra.mxu0 0.0
  %9405 = vmatprep.subr.mxu0 0.0
  %9406 = vmatpush1.msra.mxu0 0.0
  %9407 = vmatprep.subr.mxu0 0.0
  %9408 = vmatpush1.msra.mxu0 0.0
  %9409 = vmatprep.subr.mxu0 0.0
  %9410 = vmatpush1.msra.mxu0 0.0
  %9411 = vmatprep.subr.mxu0 0.0
  %9412 = vmatpush1.msra.mxu0 0.0
  %9413 = vmatprep.subr.mxu0 0.0
  %9414 = vmatpush1.msra.mxu0 0.0
  %9415 = vmatprep.subr.mxu0 0.0
  %9416 = vmatpush1.msra.mxu0 0.0
  %9417 = vmatprep.subr.mxu0 0.0
  %9418 = vmatpush1.msra.mxu0 0.0
  %9419 = vmatprep.subr.mxu0 0.0
  %9420 = vmatpush1.msra.mxu0 0.0
  %9421 = vmatprep.subr.mxu0 0.0
  %9422 = vmatpush1.msra.mxu0 0.0
  %9423 = vmatprep.subr.mxu0 0.0
  %9424 = vmatpush1.msra.mxu0 0.0
  %9425 = vmatprep.subr.mxu0 0.0
  %9426 = vmatpush1.msra.mxu0 0.0
  %9427 = vmatprep.subr.mxu0 0.0
  %9428 = vmatpush1.msra.mxu0 0.0
  %9429 = vmatprep.subr.mxu0 0.0
  %9430 = vmatpush1.msra.mxu0 0.0
  %9431 = vmatprep.subr.mxu0 0.0
  %9432 = vmatpush1.msra.mxu0 0.0
  %9433 = vmatprep.subr.mxu0 0.0
  %9434 = vmatpush1.msra.mxu0 0.0
  %9435 = vmatprep.subr.mxu0 0.0
  %9436 = vmatpush1.msra.mxu0 0.0
  %9437 = vmatprep.subr.mxu0 0.0
  %9438 = vmatpush1.msra.mxu0 0.0
  %9439 = vmatprep.subr.mxu0 0.0
  %9440 = vmatpush1.msra.mxu0 0.0
  %9441 = vmatprep.mubr.f32.mxu0 0.0
  %v9442 = vand.u32 %v9038, 4294901760
  %9443 = vmatmul.mubr.f32.gmra.mrb[0].mxu0 %v9442
  %v9444 = vpop.f32.mrb[0].mxu0
  %v9445 = vadd.f32 %v9363, %v9444
  %v9446 = vpop.f32.mrb[0].mxu0
  %9447 = vmatprep.mubr.f32.mxu0 0.0
  %v9448 = vand.u32 %v9041, 4294901760
  %9449 = vmatmul.mubr.f32.gmra.mrb[0].mxu0 %v9448
  %v9450 = vpop.f32.mrb[0].mxu0
  %v9451 = vadd.f32 %v9371, %v9450
  %v9452 = vpop.f32.mrb[0].mxu0
  %9453 = vdwg.mxu0
  %9454 = vmatprep.subr.mxu0 0.0
  %v9455 = vand.u32 %v9030, 4294901760
  %9456 = vmatpush1.msra.mxu0 %v9455
  %9457 = vmatprep.subr.mxu0 0.0
  %9458 = vmatpush1.msra.mxu0 0.0
  %9459 = vmatprep.subr.mxu0 0.0
  %9460 = vmatpush1.msra.mxu0 0.0
  %9461 = vmatprep.subr.mxu0 0.0
  %9462 = vmatpush1.msra.mxu0 0.0
  %9463 = vmatprep.subr.mxu0 0.0
  %9464 = vmatpush1.msra.mxu0 0.0
  %9465 = vmatprep.subr.mxu0 0.0
  %9466 = vmatpush1.msra.mxu0 0.0
  %9467 = vmatprep.subr.mxu0 0.0
  %9468 = vmatpush1.msra.mxu0 0.0
  %9469 = vmatprep.subr.mxu0 0.0
  %9470 = vmatpush1.msra.mxu0 0.0
  %9471 = vmatprep.subr.mxu0 0.0
  %9472 = vmatpush1.msra.mxu0 0.0
  %9473 = vmatprep.subr.mxu0 0.0
  %9474 = vmatpush1.msra.mxu0 0.0
  %9475 = vmatprep.subr.mxu0 0.0
  %9476 = vmatpush1.msra.mxu0 0.0
  %9477 = vmatprep.subr.mxu0 0.0
  %9478 = vmatpush1.msra.mxu0 0.0
  %9479 = vmatprep.subr.mxu0 0.0
  %9480 = vmatpush1.msra.mxu0 0.0
  %9481 = vmatprep.subr.mxu0 0.0
  %9482 = vmatpush1.msra.mxu0 0.0
  %9483 = vmatprep.subr.mxu0 0.0
  %9484 = vmatpush1.msra.mxu0 0.0
  %9485 = vmatprep.subr.mxu0 0.0
  %9486 = vmatpush1.msra.mxu0 0.0
  %9487 = vmatprep.subr.mxu0 0.0
  %9488 = vmatpush1.msra.mxu0 0.0
  %9489 = vmatprep.subr.mxu0 0.0
  %9490 = vmatpush1.msra.mxu0 0.0
  %9491 = vmatprep.subr.mxu0 0.0
  %9492 = vmatpush1.msra.mxu0 0.0
  %9493 = vmatprep.subr.mxu0 0.0
  %9494 = vmatpush1.msra.mxu0 0.0
  %9495 = vmatprep.subr.mxu0 0.0
  %9496 = vmatpush1.msra.mxu0 0.0
  %9497 = vmatprep.subr.mxu0 0.0
  %9498 = vmatpush1.msra.mxu0 0.0
  %9499 = vmatprep.subr.mxu0 0.0
  %9500 = vmatpush1.msra.mxu0 0.0
  %9501 = vmatprep.subr.mxu0 0.0
  %9502 = vmatpush1.msra.mxu0 0.0
  %9503 = vmatprep.subr.mxu0 0.0
  %9504 = vmatpush1.msra.mxu0 0.0
  %9505 = vmatprep.subr.mxu0 0.0
  %9506 = vmatpush1.msra.mxu0 0.0
  %9507 = vmatprep.subr.mxu0 0.0
  %9508 = vmatpush1.msra.mxu0 0.0
  %9509 = vmatprep.subr.mxu0 0.0
  %9510 = vmatpush1.msra.mxu0 0.0
  %9511 = vmatprep.subr.mxu0 0.0
  %9512 = vmatpush1.msra.mxu0 0.0
  %9513 = vmatprep.subr.mxu0 0.0
  %9514 = vmatpush1.msra.mxu0 0.0
  %9515 = vmatprep.subr.mxu0 0.0
  %9516 = vmatpush1.msra.mxu0 0.0
  %9517 = vmatprep.subr.mxu0 0.0
  %9518 = vmatpush1.msra.mxu0 0.0
  %9519 = vmatprep.mubr.f32.mxu0 0.0
  %v9520 = vand.u32 %v9038, 4294901760
  %9521 = vmatmul.mubr.f32.gmra.mrb[0].mxu0 %v9520
  %v9522 = vpop.f32.mrb[0].mxu0
  %v9523 = vadd.f32 %v9445, %v9522
  %v9524 = vpop.f32.mrb[0].mxu0
  %9525 = vmatprep.mubr.f32.mxu0 0.0
  %v9526 = vand.u32 %v9041, 4294901760
  %9527 = vmatmul.mubr.f32.gmra.mrb[0].mxu0 %v9526
  %v9528 = vpop.f32.mrb[0].mxu0
  %v9529 = vadd.f32 %v9451, %v9528
  %v9530 = vpop.f32.mrb[0].mxu0
  %9531 = vdwg.mxu0
  %v9533 = vsel %vm8353, %v9033, 0
  %v9536 = vsel %vm8353, %v9034, 0
  %9538 = vmatprep.subr.mxu0 0.0
  %v9539 = vand.u32 %v8878, 4294901760
  %9540 = vmatpush1.msra.mxu0 %v9539
  %9541 = vmatprep.subr.mxu0 0.0
  %9542 = vmatpush1.msra.mxu0 0.0
  %9543 = vmatprep.subr.mxu0 0.0
  %9544 = vmatpush1.msra.mxu0 0.0
  %9545 = vmatprep.subr.mxu0 0.0
  %9546 = vmatpush1.msra.mxu0 0.0
  %9547 = vmatprep.subr.mxu0 0.0
  %9548 = vmatpush1.msra.mxu0 0.0
  %9549 = vmatprep.subr.mxu0 0.0
  %9550 = vmatpush1.msra.mxu0 0.0
  %9551 = vmatprep.subr.mxu0 0.0
  %9552 = vmatpush1.msra.mxu0 0.0
  %9553 = vmatprep.subr.mxu0 0.0
  %9554 = vmatpush1.msra.mxu0 0.0
  %9555 = vmatprep.subr.mxu0 0.0
  %9556 = vmatpush1.msra.mxu0 0.0
  %9557 = vmatprep.subr.mxu0 0.0
  %9558 = vmatpush1.msra.mxu0 0.0
  %9559 = vmatprep.subr.mxu0 0.0
  %9560 = vmatpush1.msra.mxu0 0.0
  %9561 = vmatprep.subr.mxu0 0.0
  %9562 = vmatpush1.msra.mxu0 0.0
  %9563 = vmatprep.subr.mxu0 0.0
  %9564 = vmatpush1.msra.mxu0 0.0
  %9565 = vmatprep.subr.mxu0 0.0
  %9566 = vmatpush1.msra.mxu0 0.0
  %9567 = vmatprep.subr.mxu0 0.0
  %9568 = vmatpush1.msra.mxu0 0.0
  %9569 = vmatprep.subr.mxu0 0.0
  %9570 = vmatpush1.msra.mxu0 0.0
  %9571 = vmatprep.subr.mxu0 0.0
  %9572 = vmatpush1.msra.mxu0 0.0
  %9573 = vmatprep.subr.mxu0 0.0
  %9574 = vmatpush1.msra.mxu0 0.0
  %9575 = vmatprep.subr.mxu0 0.0
  %9576 = vmatpush1.msra.mxu0 0.0
  %9577 = vmatprep.subr.mxu0 0.0
  %9578 = vmatpush1.msra.mxu0 0.0
  %9579 = vmatprep.subr.mxu0 0.0
  %9580 = vmatpush1.msra.mxu0 0.0
  %9581 = vmatprep.subr.mxu0 0.0
  %9582 = vmatpush1.msra.mxu0 0.0
  %9583 = vmatprep.subr.mxu0 0.0
  %9584 = vmatpush1.msra.mxu0 0.0
  %9585 = vmatprep.subr.mxu0 0.0
  %9586 = vmatpush1.msra.mxu0 0.0
  %9587 = vmatprep.subr.mxu0 0.0
  %9588 = vmatpush1.msra.mxu0 0.0
  %9589 = vmatprep.subr.mxu0 0.0
  %9590 = vmatpush1.msra.mxu0 0.0
  %9591 = vmatprep.subr.mxu0 0.0
  %9592 = vmatpush1.msra.mxu0 0.0
  %9593 = vmatprep.subr.mxu0 0.0
  %9594 = vmatpush1.msra.mxu0 0.0
  %9595 = vmatprep.subr.mxu0 0.0
  %9596 = vmatpush1.msra.mxu0 0.0
  %9597 = vmatprep.subr.mxu0 0.0
  %9598 = vmatpush1.msra.mxu0 0.0
  %9599 = vmatprep.subr.mxu0 0.0
  %9600 = vmatpush1.msra.mxu0 0.0
  %9601 = vmatprep.subr.mxu0 0.0
  %9602 = vmatpush1.msra.mxu0 0.0
  %9603 = vmatprep.mubr.f32.mxu0 0.0
  %v9604 = vand.u32 %v9533, 4294901760
  %v9605 = vsub.f32 %v9533, %v9604
  %v9606 = vand.u32 %v9605, 4294901760
  %v9607 = vsub.f32 %v9605, %v9606
  %v9608 = vand.u32 %v9607, 4294901760
  %9609 = vmatmul.mubr.f32.gmra.mrb[0].mxu0 %v9608
  %v9610 = vpop.f32.mrb[0].mxu0
  %v9611 = vadd.f32 %v9523, %v9610
  %v9612 = vpop.f32.mrb[0].mxu0
  %9613 = vmatprep.mubr.f32.mxu0 0.0
  %v9614 = vand.u32 %v9536, 4294901760
  %v9615 = vsub.f32 %v9536, %v9614
  %v9616 = vand.u32 %v9615, 4294901760
  %v9617 = vsub.f32 %v9615, %v9616
  %v9618 = vand.u32 %v9617, 4294901760
  %9619 = vmatmul.mubr.f32.gmra.mrb[0].mxu0 %v9618
  %v9620 = vpop.f32.mrb[0].mxu0
  %v9621 = vadd.f32 %v9529, %v9620
  %v9622 = vpop.f32.mrb[0].mxu0
  %9623 = vdwg.mxu0
  %9624 = vmatprep.subr.mxu0 0.0
  %v9625 = vand.u32 %v8878, 4294901760
  %v9626 = vsub.f32 %v8878, %v9625
  %v9627 = vand.u32 %v9626, 4294901760
  %v9628 = vsub.f32 %v9626, %v9627
  %v9629 = vand.u32 %v9628, 4294901760
  %9630 = vmatpush1.msra.mxu0 %v9629
  %9631 = vmatprep.subr.mxu0 0.0
  %9632 = vmatpush1.msra.mxu0 0.0
  %9633 = vmatprep.subr.mxu0 0.0
  %9634 = vmatpush1.msra.mxu0 0.0
  %9635 = vmatprep.subr.mxu0 0.0
  %9636 = vmatpush1.msra.mxu0 0.0
  %9637 = vmatprep.subr.mxu0 0.0
  %9638 = vmatpush1.msra.mxu0 0.0
  %9639 = vmatprep.subr.mxu0 0.0
  %9640 = vmatpush1.msra.mxu0 0.0
  %9641 = vmatprep.subr.mxu0 0.0
  %9642 = vmatpush1.msra.mxu0 0.0
  %9643 = vmatprep.subr.mxu0 0.0
  %9644 = vmatpush1.msra.mxu0 0.0
  %9645 = vmatprep.subr.mxu0 0.0
  %9646 = vmatpush1.msra.mxu0 0.0
  %9647 = vmatprep.subr.mxu0 0.0
  %9648 = vmatpush1.msra.mxu0 0.0
  %9649 = vmatprep.subr.mxu0 0.0
  %9650 = vmatpush1.msra.mxu0 0.0
  %9651 = vmatprep.subr.mxu0 0.0
  %9652 = vmatpush1.msra.mxu0 0.0
  %9653 = vmatprep.subr.mxu0 0.0
  %9654 = vmatpush1.msra.mxu0 0.0
  %9655 = vmatprep.subr.mxu0 0.0
  %9656 = vmatpush1.msra.mxu0 0.0
  %9657 = vmatprep.subr.mxu0 0.0
  %9658 = vmatpush1.msra.mxu0 0.0
  %9659 = vmatprep.subr.mxu0 0.0
  %9660 = vmatpush1.msra.mxu0 0.0
  %9661 = vmatprep.subr.mxu0 0.0
  %9662 = vmatpush1.msra.mxu0 0.0
  %9663 = vmatprep.subr.mxu0 0.0
  %9664 = vmatpush1.msra.mxu0 0.0
  %9665 = vmatprep.subr.mxu0 0.0
  %9666 = vmatpush1.msra.mxu0 0.0
  %9667 = vmatprep.subr.mxu0 0.0
  %9668 = vmatpush1.msra.mxu0 0.0
  %9669 = vmatprep.subr.mxu0 0.0
  %9670 = vmatpush1.msra.mxu0 0.0
  %9671 = vmatprep.subr.mxu0 0.0
  %9672 = vmatpush1.msra.mxu0 0.0
  %9673 = vmatprep.subr.mxu0 0.0
  %9674 = vmatpush1.msra.mxu0 0.0
  %9675 = vmatprep.subr.mxu0 0.0
  %9676 = vmatpush1.msra.mxu0 0.0
  %9677 = vmatprep.subr.mxu0 0.0
  %9678 = vmatpush1.msra.mxu0 0.0
  %9679 = vmatprep.subr.mxu0 0.0
  %9680 = vmatpush1.msra.mxu0 0.0
  %9681 = vmatprep.subr.mxu0 0.0
  %9682 = vmatpush1.msra.mxu0 0.0
  %9683 = vmatprep.subr.mxu0 0.0
  %9684 = vmatpush1.msra.mxu0 0.0
  %9685 = vmatprep.subr.mxu0 0.0
  %9686 = vmatpush1.msra.mxu0 0.0
  %9687 = vmatprep.subr.mxu0 0.0
  %9688 = vmatpush1.msra.mxu0 0.0
  %9689 = vmatprep.subr.mxu0 0.0
  %9690 = vmatpush1.msra.mxu0 0.0
  %9691 = vmatprep.subr.mxu0 0.0
  %9692 = vmatpush1.msra.mxu0 0.0
  %9693 = vmatprep.mubr.f32.mxu0 0.0
  %v9694 = vand.u32 %v9533, 4294901760
  %9695 = vmatmul.mubr.f32.gmra.mrb[0].mxu0 %v9694
  %v9696 = vpop.f32.mrb[0].mxu0
  %v9697 = vadd.f32 %v9611, %v9696
  %v9698 = vpop.f32.mrb[0].mxu0
  %9699 = vmatprep.mubr.f32.mxu0 0.0
  %v9700 = vand.u32 %v9536, 4294901760
  %9701 = vmatmul.mubr.f32.gmra.mrb[0].mxu0 %v9700
  %v9702 = vpop.f32.mrb[0].mxu0
  %v9703 = vadd.f32 %v9621, %v9702
  %v9704 = vpop.f32.mrb[0].mxu0
  %9705 = vdwg.mxu0
  %9706 = vmatprep.subr.mxu0 0.0
  %v9707 = vand.u32 %v8878, 4294901760
  %v9708 = vsub.f32 %v8878, %v9707
  %9709 = vmatpush1.msra.mxu0 %v9708
  %9710 = vmatprep.subr.mxu0 0.0
  %9711 = vmatpush1.msra.mxu0 0.0
  %9712 = vmatprep.subr.mxu0 0.0
  %9713 = vmatpush1.msra.mxu0 0.0
  %9714 = vmatprep.subr.mxu0 0.0
  %9715 = vmatpush1.msra.mxu0 0.0
  %9716 = vmatprep.subr.mxu0 0.0
  %9717 = vmatpush1.msra.mxu0 0.0
  %9718 = vmatprep.subr.mxu0 0.0
  %9719 = vmatpush1.msra.mxu0 0.0
  %9720 = vmatprep.subr.mxu0 0.0
  %9721 = vmatpush1.msra.mxu0 0.0
  %9722 = vmatprep.subr.mxu0 0.0
  %9723 = vmatpush1.msra.mxu0 0.0
  %9724 = vmatprep.subr.mxu0 0.0
  %9725 = vmatpush1.msra.mxu0 0.0
  %9726 = vmatprep.subr.mxu0 0.0
  %9727 = vmatpush1.msra.mxu0 0.0
  %9728 = vmatprep.subr.mxu0 0.0
  %9729 = vmatpush1.msra.mxu0 0.0
  %9730 = vmatprep.subr.mxu0 0.0
  %9731 = vmatpush1.msra.mxu0 0.0
  %9732 = vmatprep.subr.mxu0 0.0
  %9733 = vmatpush1.msra.mxu0 0.0
  %9734 = vmatprep.subr.mxu0 0.0
  %9735 = vmatpush1.msra.mxu0 0.0
  %9736 = vmatprep.subr.mxu0 0.0
  %9737 = vmatpush1.msra.mxu0 0.0
  %9738 = vmatprep.subr.mxu0 0.0
  %9739 = vmatpush1.msra.mxu0 0.0
  %9740 = vmatprep.subr.mxu0 0.0
  %9741 = vmatpush1.msra.mxu0 0.0
  %9742 = vmatprep.subr.mxu0 0.0
  %9743 = vmatpush1.msra.mxu0 0.0
  %9744 = vmatprep.subr.mxu0 0.0
  %9745 = vmatpush1.msra.mxu0 0.0
  %9746 = vmatprep.subr.mxu0 0.0
  %9747 = vmatpush1.msra.mxu0 0.0
  %9748 = vmatprep.subr.mxu0 0.0
  %9749 = vmatpush1.msra.mxu0 0.0
  %9750 = vmatprep.subr.mxu0 0.0
  %9751 = vmatpush1.msra.mxu0 0.0
  %9752 = vmatprep.subr.mxu0 0.0
  %9753 = vmatpush1.msra.mxu0 0.0
  %9754 = vmatprep.subr.mxu0 0.0
  %9755 = vmatpush1.msra.mxu0 0.0
  %9756 = vmatprep.subr.mxu0 0.0
  %9757 = vmatpush1.msra.mxu0 0.0
  %9758 = vmatprep.subr.mxu0 0.0
  %9759 = vmatpush1.msra.mxu0 0.0
  %9760 = vmatprep.subr.mxu0 0.0
  %9761 = vmatpush1.msra.mxu0 0.0
  %9762 = vmatprep.subr.mxu0 0.0
  %9763 = vmatpush1.msra.mxu0 0.0
  %9764 = vmatprep.subr.mxu0 0.0
  %9765 = vmatpush1.msra.mxu0 0.0
  %9766 = vmatprep.subr.mxu0 0.0
  %9767 = vmatpush1.msra.mxu0 0.0
  %9768 = vmatprep.subr.mxu0 0.0
  %9769 = vmatpush1.msra.mxu0 0.0
  %9770 = vmatprep.subr.mxu0 0.0
  %9771 = vmatpush1.msra.mxu0 0.0
  %9772 = vmatprep.mubr.f32.mxu0 0.0
  %v9773 = vand.u32 %v9533, 4294901760
  %v9774 = vsub.f32 %v9533, %v9773
  %9775 = vmatmul.mubr.f32.gmra.mrb[0].mxu0 %v9774
  %v9776 = vpop.f32.mrb[0].mxu0
  %v9777 = vadd.f32 %v9697, %v9776
  %v9778 = vpop.f32.mrb[0].mxu0
  %9779 = vmatprep.mubr.f32.mxu0 0.0
  %v9780 = vand.u32 %v9536, 4294901760
  %v9781 = vsub.f32 %v9536, %v9780
  %9782 = vmatmul.mubr.f32.gmra.mrb[0].mxu0 %v9781
  %v9783 = vpop.f32.mrb[0].mxu0
  %v9784 = vadd.f32 %v9703, %v9783
  %v9785 = vpop.f32.mrb[0].mxu0
  %9786 = vdwg.mxu0
  %9787 = vmatprep.subr.mxu0 0.0
  %v9788 = vand.u32 %v8878, 4294901760
  %9789 = vmatpush1.msra.mxu0 %v9788
  %9790 = vmatprep.subr.mxu0 0.0
  %9791 = vmatpush1.msra.mxu0 0.0
  %9792 = vmatprep.subr.mxu0 0.0
  %9793 = vmatpush1.msra.mxu0 0.0
  %9794 = vmatprep.subr.mxu0 0.0
  %9795 = vmatpush1.msra.mxu0 0.0
  %9796 = vmatprep.subr.mxu0 0.0
  %9797 = vmatpush1.msra.mxu0 0.0
  %9798 = vmatprep.subr.mxu0 0.0
  %9799 = vmatpush1.msra.mxu0 0.0
  %9800 = vmatprep.subr.mxu0 0.0
  %9801 = vmatpush1.msra.mxu0 0.0
  %9802 = vmatprep.subr.mxu0 0.0
  %9803 = vmatpush1.msra.mxu0 0.0
  %9804 = vmatprep.subr.mxu0 0.0
  %9805 = vmatpush1.msra.mxu0 0.0
  %9806 = vmatprep.subr.mxu0 0.0
  %9807 = vmatpush1.msra.mxu0 0.0
  %9808 = vmatprep.subr.mxu0 0.0
  %9809 = vmatpush1.msra.mxu0 0.0
  %9810 = vmatprep.subr.mxu0 0.0
  %9811 = vmatpush1.msra.mxu0 0.0
  %9812 = vmatprep.subr.mxu0 0.0
  %9813 = vmatpush1.msra.mxu0 0.0
  %9814 = vmatprep.subr.mxu0 0.0
  %9815 = vmatpush1.msra.mxu0 0.0
  %9816 = vmatprep.subr.mxu0 0.0
  %9817 = vmatpush1.msra.mxu0 0.0
  %9818 = vmatprep.subr.mxu0 0.0
  %9819 = vmatpush1.msra.mxu0 0.0
  %9820 = vmatprep.subr.mxu0 0.0
  %9821 = vmatpush1.msra.mxu0 0.0
  %9822 = vmatprep.subr.mxu0 0.0
  %9823 = vmatpush1.msra.mxu0 0.0
  %9824 = vmatprep.subr.mxu0 0.0
  %9825 = vmatpush1.msra.mxu0 0.0
  %9826 = vmatprep.subr.mxu0 0.0
  %9827 = vmatpush1.msra.mxu0 0.0
  %9828 = vmatprep.subr.mxu0 0.0
  %9829 = vmatpush1.msra.mxu0 0.0
  %9830 = vmatprep.subr.mxu0 0.0
  %9831 = vmatpush1.msra.mxu0 0.0
  %9832 = vmatprep.subr.mxu0 0.0
  %9833 = vmatpush1.msra.mxu0 0.0
  %9834 = vmatprep.subr.mxu0 0.0
  %9835 = vmatpush1.msra.mxu0 0.0
  %9836 = vmatprep.subr.mxu0 0.0
  %9837 = vmatpush1.msra.mxu0 0.0
  %9838 = vmatprep.subr.mxu0 0.0
  %9839 = vmatpush1.msra.mxu0 0.0
  %9840 = vmatprep.subr.mxu0 0.0
  %9841 = vmatpush1.msra.mxu0 0.0
  %9842 = vmatprep.subr.mxu0 0.0
  %9843 = vmatpush1.msra.mxu0 0.0
  %9844 = vmatprep.subr.mxu0 0.0
  %9845 = vmatpush1.msra.mxu0 0.0
  %9846 = vmatprep.subr.mxu0 0.0
  %9847 = vmatpush1.msra.mxu0 0.0
  %9848 = vmatprep.subr.mxu0 0.0
  %9849 = vmatpush1.msra.mxu0 0.0
  %9850 = vmatprep.subr.mxu0 0.0
  %9851 = vmatpush1.msra.mxu0 0.0
  %9852 = vmatprep.mubr.f32.mxu0 0.0
  %v9853 = vand.u32 %v9533, 4294901760
  %v9854 = vsub.f32 %v9533, %v9853
  %v9855 = vand.u32 %v9854, 4294901760
  %9856 = vmatmul.mubr.f32.gmra.mrb[0].mxu0 %v9855
  %v9857 = vpop.f32.mrb[0].mxu0
  %v9858 = vadd.f32 %v9777, %v9857
  %v9859 = vpop.f32.mrb[0].mxu0
  %9860 = vmatprep.mubr.f32.mxu0 0.0
  %v9861 = vand.u32 %v9536, 4294901760
  %v9862 = vsub.f32 %v9536, %v9861
  %v9863 = vand.u32 %v9862, 4294901760
  %9864 = vmatmul.mubr.f32.gmra.mrb[0].mxu0 %v9863
  %v9865 = vpop.f32.mrb[0].mxu0
  %v9866 = vadd.f32 %v9784, %v9865
  %v9867 = vpop.f32.mrb[0].mxu0
  %9868 = vdwg.mxu0
  %9869 = vmatprep.subr.mxu0 0.0
  %v9870 = vand.u32 %v8878, 4294901760
  %v9871 = vsub.f32 %v8878, %v9870
  %v9872 = vand.u32 %v9871, 4294901760
  %9873 = vmatpush1.msra.mxu0 %v9872
  %9874 = vmatprep.subr.mxu0 0.0
  %9875 = vmatpush1.msra.mxu0 0.0
  %9876 = vmatprep.subr.mxu0 0.0
  %9877 = vmatpush1.msra.mxu0 0.0
  %9878 = vmatprep.subr.mxu0 0.0
  %9879 = vmatpush1.msra.mxu0 0.0
  %9880 = vmatprep.subr.mxu0 0.0
  %9881 = vmatpush1.msra.mxu0 0.0
  %9882 = vmatprep.subr.mxu0 0.0
  %9883 = vmatpush1.msra.mxu0 0.0
  %9884 = vmatprep.subr.mxu0 0.0
  %9885 = vmatpush1.msra.mxu0 0.0
  %9886 = vmatprep.subr.mxu0 0.0
  %9887 = vmatpush1.msra.mxu0 0.0
  %9888 = vmatprep.subr.mxu0 0.0
  %9889 = vmatpush1.msra.mxu0 0.0
  %9890 = vmatprep.subr.mxu0 0.0
  %9891 = vmatpush1.msra.mxu0 0.0
  %9892 = vmatprep.subr.mxu0 0.0
  %9893 = vmatpush1.msra.mxu0 0.0
  %9894 = vmatprep.subr.mxu0 0.0
  %9895 = vmatpush1.msra.mxu0 0.0
  %9896 = vmatprep.subr.mxu0 0.0
  %9897 = vmatpush1.msra.mxu0 0.0
  %9898 = vmatprep.subr.mxu0 0.0
  %9899 = vmatpush1.msra.mxu0 0.0
  %9900 = vmatprep.subr.mxu0 0.0
  %9901 = vmatpush1.msra.mxu0 0.0
  %9902 = vmatprep.subr.mxu0 0.0
  %9903 = vmatpush1.msra.mxu0 0.0
  %9904 = vmatprep.subr.mxu0 0.0
  %9905 = vmatpush1.msra.mxu0 0.0
  %9906 = vmatprep.subr.mxu0 0.0
  %9907 = vmatpush1.msra.mxu0 0.0
  %9908 = vmatprep.subr.mxu0 0.0
  %9909 = vmatpush1.msra.mxu0 0.0
  %9910 = vmatprep.subr.mxu0 0.0
  %9911 = vmatpush1.msra.mxu0 0.0
  %9912 = vmatprep.subr.mxu0 0.0
  %9913 = vmatpush1.msra.mxu0 0.0
  %9914 = vmatprep.subr.mxu0 0.0
  %9915 = vmatpush1.msra.mxu0 0.0
  %9916 = vmatprep.subr.mxu0 0.0
  %9917 = vmatpush1.msra.mxu0 0.0
  %9918 = vmatprep.subr.mxu0 0.0
  %9919 = vmatpush1.msra.mxu0 0.0
  %9920 = vmatprep.subr.mxu0 0.0
  %9921 = vmatpush1.msra.mxu0 0.0
  %9922 = vmatprep.subr.mxu0 0.0
  %9923 = vmatpush1.msra.mxu0 0.0
  %9924 = vmatprep.subr.mxu0 0.0
  %9925 = vmatpush1.msra.mxu0 0.0
  %9926 = vmatprep.subr.mxu0 0.0
  %9927 = vmatpush1.msra.mxu0 0.0
  %9928 = vmatprep.subr.mxu0 0.0
  %9929 = vmatpush1.msra.mxu0 0.0
  %9930 = vmatprep.subr.mxu0 0.0
  %9931 = vmatpush1.msra.mxu0 0.0
  %9932 = vmatprep.subr.mxu0 0.0
  %9933 = vmatpush1.msra.mxu0 0.0
  %9934 = vmatprep.subr.mxu0 0.0
  %9935 = vmatpush1.msra.mxu0 0.0
  %9936 = vmatprep.mubr.f32.mxu0 0.0
  %v9937 = vand.u32 %v9533, 4294901760
  %9938 = vmatmul.mubr.f32.gmra.mrb[0].mxu0 %v9937
  %v9939 = vpop.f32.mrb[0].mxu0
  %v9940 = vadd.f32 %v9858, %v9939
  %v9941 = vpop.f32.mrb[0].mxu0
  %9942 = vmatprep.mubr.f32.mxu0 0.0
  %v9943 = vand.u32 %v9536, 4294901760
  %9944 = vmatmul.mubr.f32.gmra.mrb[0].mxu0 %v9943
  %v9945 = vpop.f32.mrb[0].mxu0
  %v9946 = vadd.f32 %v9866, %v9945
  %v9947 = vpop.f32.mrb[0].mxu0
  %9948 = vdwg.mxu0
  %9949 = vmatprep.subr.mxu0 0.0
  %v9950 = vand.u32 %v8878, 4294901760
  %9951 = vmatpush1.msra.mxu0 %v9950
  %9952 = vmatprep.subr.mxu0 0.0
  %9953 = vmatpush1.msra.mxu0 0.0
  %9954 = vmatprep.subr.mxu0 0.0
  %9955 = vmatpush1.msra.mxu0 0.0
  %9956 = vmatprep.subr.mxu0 0.0
  %9957 = vmatpush1.msra.mxu0 0.0
  %9958 = vmatprep.subr.mxu0 0.0
  %9959 = vmatpush1.msra.mxu0 0.0
  %9960 = vmatprep.subr.mxu0 0.0
  %9961 = vmatpush1.msra.mxu0 0.0
  %9962 = vmatprep.subr.mxu0 0.0
  %9963 = vmatpush1.msra.mxu0 0.0
  %9964 = vmatprep.subr.mxu0 0.0
  %9965 = vmatpush1.msra.mxu0 0.0
  %9966 = vmatprep.subr.mxu0 0.0
  %9967 = vmatpush1.msra.mxu0 0.0
  %9968 = vmatprep.subr.mxu0 0.0
  %9969 = vmatpush1.msra.mxu0 0.0
  %9970 = vmatprep.subr.mxu0 0.0
  %9971 = vmatpush1.msra.mxu0 0.0
  %9972 = vmatprep.subr.mxu0 0.0
  %9973 = vmatpush1.msra.mxu0 0.0
  %9974 = vmatprep.subr.mxu0 0.0
  %9975 = vmatpush1.msra.mxu0 0.0
  %9976 = vmatprep.subr.mxu0 0.0
  %9977 = vmatpush1.msra.mxu0 0.0
  %9978 = vmatprep.subr.mxu0 0.0
  %9979 = vmatpush1.msra.mxu0 0.0
  %9980 = vmatprep.subr.mxu0 0.0
  %9981 = vmatpush1.msra.mxu0 0.0
  %9982 = vmatprep.subr.mxu0 0.0
  %9983 = vmatpush1.msra.mxu0 0.0
  %9984 = vmatprep.subr.mxu0 0.0
  %9985 = vmatpush1.msra.mxu0 0.0
  %9986 = vmatprep.subr.mxu0 0.0
  %9987 = vmatpush1.msra.mxu0 0.0
  %9988 = vmatprep.subr.mxu0 0.0
  %9989 = vmatpush1.msra.mxu0 0.0
  %9990 = vmatprep.subr.mxu0 0.0
  %9991 = vmatpush1.msra.mxu0 0.0
  %9992 = vmatprep.subr.mxu0 0.0
  %9993 = vmatpush1.msra.mxu0 0.0
  %9994 = vmatprep.subr.mxu0 0.0
  %9995 = vmatpush1.msra.mxu0 0.0
  %9996 = vmatprep.subr.mxu0 0.0
  %9997 = vmatpush1.msra.mxu0 0.0
  %9998 = vmatprep.subr.mxu0 0.0
  %9999 = vmatpush1.msra.mxu0 0.0
  %10000 = vmatprep.subr.mxu0 0.0
  %10001 = vmatpush1.msra.mxu0 0.0
  %10002 = vmatprep.subr.mxu0 0.0
  %10003 = vmatpush1.msra.mxu0 0.0
  %10004 = vmatprep.subr.mxu0 0.0
  %10005 = vmatpush1.msra.mxu0 0.0
  %10006 = vmatprep.subr.mxu0 0.0
  %10007 = vmatpush1.msra.mxu0 0.0
  %10008 = vmatprep.subr.mxu0 0.0
  %10009 = vmatpush1.msra.mxu0 0.0
  %10010 = vmatprep.subr.mxu0 0.0
  %10011 = vmatpush1.msra.mxu0 0.0
  %10012 = vmatprep.subr.mxu0 0.0
  %10013 = vmatpush1.msra.mxu0 0.0
  %10014 = vmatprep.mubr.f32.mxu0 0.0
  %v10015 = vand.u32 %v9533, 4294901760
  %10016 = vmatmul.mubr.f32.gmra.mrb[0].mxu0 %v10015
  %v10017 = vpop.f32.mrb[0].mxu0
  %v10018 = vadd.f32 %v9940, %v10017
  %v10019 = vpop.f32.mrb[0].mxu0
  %10020 = vmatprep.mubr.f32.mxu0 0.0
  %v10021 = vand.u32 %v9536, 4294901760
  %10022 = vmatmul.mubr.f32.gmra.mrb[0].mxu0 %v10021
  %v10023 = vpop.f32.mrb[0].mxu0
  %v10024 = vadd.f32 %v9946, %v10023
  %v10025 = vpop.f32.mrb[0].mxu0
  %10026 = vdwg.mxu0
  %v10027 = vld [vmem:[%s18] sm:$0x1]
  %v10029 = vlaneseq
  %v10030 = vshrl.u32 %v10029, 7
  %v10031 = vsub.s32 0, %v10030
  %v10032 = vrot.slane %v10027, %v10031
  %v10034 = vadd.f32 %v10018, %v10032
  %v10035 = vadd.f32 %v10024, %v10032
  %v10036 = vmax.f32 %v10034, 0.0
  %v10037 = vmax.f32 %v10035, 0.0
  %v10038 = vld [vmem:[%s24] sm:$0xff]
  %v10039 = vld [vmem:[%s24 + $0x8] sm:$0xff]
  %v10041 = vsel %vm4933, %v10038, 0
  %v10044 = vsel %vm4933, %v10039, 0
  %10046 = vmatprep.subr.mxu0 0.0
  %v10047 = vand.u32 %v10036, 4294901760
  %10048 = vmatpush1.msra.mxu0 %v10047
  %10049 = vmatprep.subr.mxu0 0.0
  %v10050 = vand.u32 %v10037, 4294901760
  %10051 = vmatpush1.msra.mxu0 %v10050
  %10052 = vmatprep.subr.mxu0 0.0
  %10053 = vmatpush1.msra.mxu0 0.0
  %10054 = vmatprep.subr.mxu0 0.0
  %10055 = vmatpush1.msra.mxu0 0.0
  %10056 = vmatprep.subr.mxu0 0.0
  %10057 = vmatpush1.msra.mxu0 0.0
  %10058 = vmatprep.subr.mxu0 0.0
  %10059 = vmatpush1.msra.mxu0 0.0
  %10060 = vmatprep.subr.mxu0 0.0
  %10061 = vmatpush1.msra.mxu0 0.0
  %10062 = vmatprep.subr.mxu0 0.0
  %10063 = vmatpush1.msra.mxu0 0.0
  %10064 = vmatprep.subr.mxu0 0.0
  %10065 = vmatpush1.msra.mxu0 0.0
  %10066 = vmatprep.subr.mxu0 0.0
  %10067 = vmatpush1.msra.mxu0 0.0
  %10068 = vmatprep.subr.mxu0 0.0
  %10069 = vmatpush1.msra.mxu0 0.0
  %10070 = vmatprep.subr.mxu0 0.0
  %10071 = vmatpush1.msra.mxu0 0.0
  %10072 = vmatprep.subr.mxu0 0.0
  %10073 = vmatpush1.msra.mxu0 0.0
  %10074 = vmatprep.subr.mxu0 0.0
  %10075 = vmatpush1.msra.mxu0 0.0
  %10076 = vmatprep.subr.mxu0 0.0
  %10077 = vmatpush1.msra.mxu0 0.0
  %10078 = vmatprep.subr.mxu0 0.0
  %10079 = vmatpush1.msra.mxu0 0.0
  %10080 = vmatprep.subr.mxu0 0.0
  %10081 = vmatpush1.msra.mxu0 0.0
  %10082 = vmatprep.subr.mxu0 0.0
  %10083 = vmatpush1.msra.mxu0 0.0
  %10084 = vmatprep.subr.mxu0 0.0
  %10085 = vmatpush1.msra.mxu0 0.0
  %10086 = vmatprep.subr.mxu0 0.0
  %10087 = vmatpush1.msra.mxu0 0.0
  %10088 = vmatprep.subr.mxu0 0.0
  %10089 = vmatpush1.msra.mxu0 0.0
  %10090 = vmatprep.subr.mxu0 0.0
  %10091 = vmatpush1.msra.mxu0 0.0
  %10092 = vmatprep.subr.mxu0 0.0
  %10093 = vmatpush1.msra.mxu0 0.0
  %10094 = vmatprep.subr.mxu0 0.0
  %10095 = vmatpush1.msra.mxu0 0.0
  %10096 = vmatprep.subr.mxu0 0.0
  %10097 = vmatpush1.msra.mxu0 0.0
  %10098 = vmatprep.subr.mxu0 0.0
  %10099 = vmatpush1.msra.mxu0 0.0
  %10100 = vmatprep.subr.mxu0 0.0
  %10101 = vmatpush1.msra.mxu0 0.0
  %10102 = vmatprep.subr.mxu0 0.0
  %10103 = vmatpush1.msra.mxu0 0.0
  %10104 = vmatprep.subr.mxu0 0.0
  %10105 = vmatpush1.msra.mxu0 0.0
  %10106 = vmatprep.subr.mxu0 0.0
  %10107 = vmatpush1.msra.mxu0 0.0
  %10108 = vmatprep.subr.mxu0 0.0
  %10109 = vmatpush1.msra.mxu0 0.0
  %10110 = vmatprep.subr.mxu0 0.0
  %10111 = vmatpush1.msra.mxu0 0.0
  %10112 = vmatprep.mubr.f32.mxu0 0.0
  %v10113 = vand.u32 %v10041, 4294901760
  %v10114 = vsub.f32 %v10041, %v10113
  %v10115 = vand.u32 %v10114, 4294901760
  %v10116 = vsub.f32 %v10114, %v10115
  %v10117 = vand.u32 %v10116, 4294901760
  %10118 = vmatmul.mubr.f32.gmra.mrb[0].mxu0 %v10117
  %v10119 = vpop.f32.mrb[0].mxu0
  %v10120 = vadd.f32 0.0, %v10119
  %v10121 = vpop.f32.mrb[0].mxu0
  %10122 = vmatprep.mubr.f32.mxu0 0.0
  %v10123 = vand.u32 %v10044, 4294901760
  %v10124 = vsub.f32 %v10044, %v10123
  %v10125 = vand.u32 %v10124, 4294901760
  %v10126 = vsub.f32 %v10124, %v10125
  %v10127 = vand.u32 %v10126, 4294901760
  %10128 = vmatmul.mubr.f32.gmra.mrb[0].mxu0 %v10127
  %v10129 = vpop.f32.mrb[0].mxu0
  %v10130 = vadd.f32 0.0, %v10129
  %v10131 = vpop.f32.mrb[0].mxu0
  %10132 = vdwg.mxu0
  %10133 = vmatprep.subr.mxu0 0.0
  %v10134 = vand.u32 %v10036, 4294901760
  %v10135 = vsub.f32 %v10036, %v10134
  %v10136 = vand.u32 %v10135, 4294901760
  %v10137 = vsub.f32 %v10135, %v10136
  %v10138 = vand.u32 %v10137, 4294901760
  %10139 = vmatpush1.msra.mxu0 %v10138
  %10140 = vmatprep.subr.mxu0 0.0
  %v10141 = vand.u32 %v10037, 4294901760
  %v10142 = vsub.f32 %v10037, %v10141
  %v10143 = vand.u32 %v10142, 4294901760
  %v10144 = vsub.f32 %v10142, %v10143
  %v10145 = vand.u32 %v10144, 4294901760
  %10146 = vmatpush1.msra.mxu0 %v10145
  %10147 = vmatprep.subr.mxu0 0.0
  %10148 = vmatpush1.msra.mxu0 0.0
  %10149 = vmatprep.subr.mxu0 0.0
  %10150 = vmatpush1.msra.mxu0 0.0
  %10151 = vmatprep.subr.mxu0 0.0
  %10152 = vmatpush1.msra.mxu0 0.0
  %10153 = vmatprep.subr.mxu0 0.0
  %10154 = vmatpush1.msra.mxu0 0.0
  %10155 = vmatprep.subr.mxu0 0.0
  %10156 = vmatpush1.msra.mxu0 0.0
  %10157 = vmatprep.subr.mxu0 0.0
  %10158 = vmatpush1.msra.mxu0 0.0
  %10159 = vmatprep.subr.mxu0 0.0
  %10160 = vmatpush1.msra.mxu0 0.0
  %10161 = vmatprep.subr.mxu0 0.0
  %10162 = vmatpush1.msra.mxu0 0.0
  %10163 = vmatprep.subr.mxu0 0.0
  %10164 = vmatpush1.msra.mxu0 0.0
  %10165 = vmatprep.subr.mxu0 0.0
  %10166 = vmatpush1.msra.mxu0 0.0
  %10167 = vmatprep.subr.mxu0 0.0
  %10168 = vmatpush1.msra.mxu0 0.0
  %10169 = vmatprep.subr.mxu0 0.0
  %10170 = vmatpush1.msra.mxu0 0.0
  %10171 = vmatprep.subr.mxu0 0.0
  %10172 = vmatpush1.msra.mxu0 0.0
  %10173 = vmatprep.subr.mxu0 0.0
  %10174 = vmatpush1.msra.mxu0 0.0
  %10175 = vmatprep.subr.mxu0 0.0
  %10176 = vmatpush1.msra.mxu0 0.0
  %10177 = vmatprep.subr.mxu0 0.0
  %10178 = vmatpush1.msra.mxu0 0.0
  %10179 = vmatprep.subr.mxu0 0.0
  %10180 = vmatpush1.msra.mxu0 0.0
  %10181 = vmatprep.subr.mxu0 0.0
  %10182 = vmatpush1.msra.mxu0 0.0
  %10183 = vmatprep.subr.mxu0 0.0
  %10184 = vmatpush1.msra.mxu0 0.0
  %10185 = vmatprep.subr.mxu0 0.0
  %10186 = vmatpush1.msra.mxu0 0.0
  %10187 = vmatprep.subr.mxu0 0.0
  %10188 = vmatpush1.msra.mxu0 0.0
  %10189 = vmatprep.subr.mxu0 0.0
  %10190 = vmatpush1.msra.mxu0 0.0
  %10191 = vmatprep.subr.mxu0 0.0
  %10192 = vmatpush1.msra.mxu0 0.0
  %10193 = vmatprep.subr.mxu0 0.0
  %10194 = vmatpush1.msra.mxu0 0.0
  %10195 = vmatprep.subr.mxu0 0.0
  %10196 = vmatpush1.msra.mxu0 0.0
  %10197 = vmatprep.subr.mxu0 0.0
  %10198 = vmatpush1.msra.mxu0 0.0
  %10199 = vmatprep.subr.mxu0 0.0
  %10200 = vmatpush1.msra.mxu0 0.0
  %10201 = vmatprep.subr.mxu0 0.0
  %10202 = vmatpush1.msra.mxu0 0.0
  %10203 = vmatprep.subr.mxu0 0.0
  %10204 = vmatpush1.msra.mxu0 0.0
  %10205 = vmatprep.subr.mxu0 0.0
  %10206 = vmatpush1.msra.mxu0 0.0
  %10207 = vmatprep.mubr.f32.mxu0 0.0
  %v10208 = vand.u32 %v10041, 4294901760
  %10209 = vmatmul.mubr.f32.gmra.mrb[0].mxu0 %v10208
  %v10210 = vpop.f32.mrb[0].mxu0
  %v10211 = vadd.f32 %v10120, %v10210
  %v10212 = vpop.f32.mrb[0].mxu0
  %10213 = vmatprep.mubr.f32.mxu0 0.0
  %v10214 = vand.u32 %v10044, 4294901760
  %10215 = vmatmul.mubr.f32.gmra.mrb[0].mxu0 %v10214
  %v10216 = vpop.f32.mrb[0].mxu0
  %v10217 = vadd.f32 %v10130, %v10216
  %v10218 = vpop.f32.mrb[0].mxu0
  %10219 = vdwg.mxu0
  %10220 = vmatprep.subr.mxu0 0.0
  %v10221 = vand.u32 %v10036, 4294901760
  %v10222 = vsub.f32 %v10036, %v10221
  %10223 = vmatpush1.msra.mxu0 %v10222
  %10224 = vmatprep.subr.mxu0 0.0
  %v10225 = vand.u32 %v10037, 4294901760
  %v10226 = vsub.f32 %v10037, %v10225
  %10227 = vmatpush1.msra.mxu0 %v10226
  %10228 = vmatprep.subr.mxu0 0.0
  %10229 = vmatpush1.msra.mxu0 0.0
  %10230 = vmatprep.subr.mxu0 0.0
  %10231 = vmatpush1.msra.mxu0 0.0
  %10232 = vmatprep.subr.mxu0 0.0
  %10233 = vmatpush1.msra.mxu0 0.0
  %10234 = vmatprep.subr.mxu0 0.0
  %10235 = vmatpush1.msra.mxu0 0.0
  %10236 = vmatprep.subr.mxu0 0.0
  %10237 = vmatpush1.msra.mxu0 0.0
  %10238 = vmatprep.subr.mxu0 0.0
  %10239 = vmatpush1.msra.mxu0 0.0
  %10240 = vmatprep.subr.mxu0 0.0
  %10241 = vmatpush1.msra.mxu0 0.0
  %10242 = vmatprep.subr.mxu0 0.0
  %10243 = vmatpush1.msra.mxu0 0.0
  %10244 = vmatprep.subr.mxu0 0.0
  %10245 = vmatpush1.msra.mxu0 0.0
  %10246 = vmatprep.subr.mxu0 0.0
  %10247 = vmatpush1.msra.mxu0 0.0
  %10248 = vmatprep.subr.mxu0 0.0
  %10249 = vmatpush1.msra.mxu0 0.0
  %10250 = vmatprep.subr.mxu0 0.0
  %10251 = vmatpush1.msra.mxu0 0.0
  %10252 = vmatprep.subr.mxu0 0.0
  %10253 = vmatpush1.msra.mxu0 0.0
  %10254 = vmatprep.subr.mxu0 0.0
  %10255 = vmatpush1.msra.mxu0 0.0
  %10256 = vmatprep.subr.mxu0 0.0
  %10257 = vmatpush1.msra.mxu0 0.0
  %10258 = vmatprep.subr.mxu0 0.0
  %10259 = vmatpush1.msra.mxu0 0.0
  %10260 = vmatprep.subr.mxu0 0.0
  %10261 = vmatpush1.msra.mxu0 0.0
  %10262 = vmatprep.subr.mxu0 0.0
  %10263 = vmatpush1.msra.mxu0 0.0
  %10264 = vmatprep.subr.mxu0 0.0
  %10265 = vmatpush1.msra.mxu0 0.0
  %10266 = vmatprep.subr.mxu0 0.0
  %10267 = vmatpush1.msra.mxu0 0.0
  %10268 = vmatprep.subr.mxu0 0.0
  %10269 = vmatpush1.msra.mxu0 0.0
  %10270 = vmatprep.subr.mxu0 0.0
  %10271 = vmatpush1.msra.mxu0 0.0
  %10272 = vmatprep.subr.mxu0 0.0
  %10273 = vmatpush1.msra.mxu0 0.0
  %10274 = vmatprep.subr.mxu0 0.0
  %10275 = vmatpush1.msra.mxu0 0.0
  %10276 = vmatprep.subr.mxu0 0.0
  %10277 = vmatpush1.msra.mxu0 0.0
  %10278 = vmatprep.subr.mxu0 0.0
  %10279 = vmatpush1.msra.mxu0 0.0
  %10280 = vmatprep.subr.mxu0 0.0
  %10281 = vmatpush1.msra.mxu0 0.0
  %10282 = vmatprep.subr.mxu0 0.0
  %10283 = vmatpush1.msra.mxu0 0.0
  %10284 = vmatprep.subr.mxu0 0.0
  %10285 = vmatpush1.msra.mxu0 0.0
  %10286 = vmatprep.subr.mxu0 0.0
  %10287 = vmatpush1.msra.mxu0 0.0
  %10288 = vmatprep.mubr.f32.mxu0 0.0
  %v10289 = vand.u32 %v10041, 4294901760
  %v10290 = vsub.f32 %v10041, %v10289
  %10291 = vmatmul.mubr.f32.gmra.mrb[0].mxu0 %v10290
  %v10292 = vpop.f32.mrb[0].mxu0
  %v10293 = vadd.f32 %v10211, %v10292
  %v10294 = vpop.f32.mrb[0].mxu0
  %10295 = vmatprep.mubr.f32.mxu0 0.0
  %v10296 = vand.u32 %v10044, 4294901760
  %v10297 = vsub.f32 %v10044, %v10296
  %10298 = vmatmul.mubr.f32.gmra.mrb[0].mxu0 %v10297
  %v10299 = vpop.f32.mrb[0].mxu0
  %v10300 = vadd.f32 %v10217, %v10299
  %v10301 = vpop.f32.mrb[0].mxu0
  %10302 = vdwg.mxu0
  %10303 = vmatprep.subr.mxu0 0.0
  %v10304 = vand.u32 %v10036, 4294901760
  %10305 = vmatpush1.msra.mxu0 %v10304
  %10306 = vmatprep.subr.mxu0 0.0
  %v10307 = vand.u32 %v10037, 4294901760
  %10308 = vmatpush1.msra.mxu0 %v10307
  %10309 = vmatprep.subr.mxu0 0.0
  %10310 = vmatpush1.msra.mxu0 0.0
  %10311 = vmatprep.subr.mxu0 0.0
  %10312 = vmatpush1.msra.mxu0 0.0
  %10313 = vmatprep.subr.mxu0 0.0
  %10314 = vmatpush1.msra.mxu0 0.0
  %10315 = vmatprep.subr.mxu0 0.0
  %10316 = vmatpush1.msra.mxu0 0.0
  %10317 = vmatprep.subr.mxu0 0.0
  %10318 = vmatpush1.msra.mxu0 0.0
  %10319 = vmatprep.subr.mxu0 0.0
  %10320 = vmatpush1.msra.mxu0 0.0
  %10321 = vmatprep.subr.mxu0 0.0
  %10322 = vmatpush1.msra.mxu0 0.0
  %10323 = vmatprep.subr.mxu0 0.0
  %10324 = vmatpush1.msra.mxu0 0.0
  %10325 = vmatprep.subr.mxu0 0.0
  %10326 = vmatpush1.msra.mxu0 0.0
  %10327 = vmatprep.subr.mxu0 0.0
  %10328 = vmatpush1.msra.mxu0 0.0
  %10329 = vmatprep.subr.mxu0 0.0
  %10330 = vmatpush1.msra.mxu0 0.0
  %10331 = vmatprep.subr.mxu0 0.0
  %10332 = vmatpush1.msra.mxu0 0.0
  %10333 = vmatprep.subr.mxu0 0.0
  %10334 = vmatpush1.msra.mxu0 0.0
  %10335 = vmatprep.subr.mxu0 0.0
  %10336 = vmatpush1.msra.mxu0 0.0
  %10337 = vmatprep.subr.mxu0 0.0
  %10338 = vmatpush1.msra.mxu0 0.0
  %10339 = vmatprep.subr.mxu0 0.0
  %10340 = vmatpush1.msra.mxu0 0.0
  %10341 = vmatprep.subr.mxu0 0.0
  %10342 = vmatpush1.msra.mxu0 0.0
  %10343 = vmatprep.subr.mxu0 0.0
  %10344 = vmatpush1.msra.mxu0 0.0
  %10345 = vmatprep.subr.mxu0 0.0
  %10346 = vmatpush1.msra.mxu0 0.0
  %10347 = vmatprep.subr.mxu0 0.0
  %10348 = vmatpush1.msra.mxu0 0.0
  %10349 = vmatprep.subr.mxu0 0.0
  %10350 = vmatpush1.msra.mxu0 0.0
  %10351 = vmatprep.subr.mxu0 0.0
  %10352 = vmatpush1.msra.mxu0 0.0
  %10353 = vmatprep.subr.mxu0 0.0
  %10354 = vmatpush1.msra.mxu0 0.0
  %10355 = vmatprep.subr.mxu0 0.0
  %10356 = vmatpush1.msra.mxu0 0.0
  %10357 = vmatprep.subr.mxu0 0.0
  %10358 = vmatpush1.msra.mxu0 0.0
  %10359 = vmatprep.subr.mxu0 0.0
  %10360 = vmatpush1.msra.mxu0 0.0
  %10361 = vmatprep.subr.mxu0 0.0
  %10362 = vmatpush1.msra.mxu0 0.0
  %10363 = vmatprep.subr.mxu0 0.0
  %10364 = vmatpush1.msra.mxu0 0.0
  %10365 = vmatprep.subr.mxu0 0.0
  %10366 = vmatpush1.msra.mxu0 0.0
  %10367 = vmatprep.subr.mxu0 0.0
  %10368 = vmatpush1.msra.mxu0 0.0
  %10369 = vmatprep.mubr.f32.mxu0 0.0
  %v10370 = vand.u32 %v10041, 4294901760
  %v10371 = vsub.f32 %v10041, %v10370
  %v10372 = vand.u32 %v10371, 4294901760
  %10373 = vmatmul.mubr.f32.gmra.mrb[0].mxu0 %v10372
  %v10374 = vpop.f32.mrb[0].mxu0
  %v10375 = vadd.f32 %v10293, %v10374
  %v10376 = vpop.f32.mrb[0].mxu0
  %10377 = vmatprep.mubr.f32.mxu0 0.0
  %v10378 = vand.u32 %v10044, 4294901760
  %v10379 = vsub.f32 %v10044, %v10378
  %v10380 = vand.u32 %v10379, 4294901760
  %10381 = vmatmul.mubr.f32.gmra.mrb[0].mxu0 %v10380
  %v10382 = vpop.f32.mrb[0].mxu0
  %v10383 = vadd.f32 %v10300, %v10382
  %v10384 = vpop.f32.mrb[0].mxu0
  %10385 = vdwg.mxu0
  %10386 = vmatprep.subr.mxu0 0.0
  %v10387 = vand.u32 %v10036, 4294901760
  %v10388 = vsub.f32 %v10036, %v10387
  %v10389 = vand.u32 %v10388, 4294901760
  %10390 = vmatpush1.msra.mxu0 %v10389
  %10391 = vmatprep.subr.mxu0 0.0
  %v10392 = vand.u32 %v10037, 4294901760
  %v10393 = vsub.f32 %v10037, %v10392
  %v10394 = vand.u32 %v10393, 4294901760
  %10395 = vmatpush1.msra.mxu0 %v10394
  %10396 = vmatprep.subr.mxu0 0.0
  %10397 = vmatpush1.msra.mxu0 0.0
  %10398 = vmatprep.subr.mxu0 0.0
  %10399 = vmatpush1.msra.mxu0 0.0
  %10400 = vmatprep.subr.mxu0 0.0
  %10401 = vmatpush1.msra.mxu0 0.0
  %10402 = vmatprep.subr.mxu0 0.0
  %10403 = vmatpush1.msra.mxu0 0.0
  %10404 = vmatprep.subr.mxu0 0.0
  %10405 = vmatpush1.msra.mxu0 0.0
  %10406 = vmatprep.subr.mxu0 0.0
  %10407 = vmatpush1.msra.mxu0 0.0
  %10408 = vmatprep.subr.mxu0 0.0
  %10409 = vmatpush1.msra.mxu0 0.0
  %10410 = vmatprep.subr.mxu0 0.0
  %10411 = vmatpush1.msra.mxu0 0.0
  %10412 = vmatprep.subr.mxu0 0.0
  %10413 = vmatpush1.msra.mxu0 0.0
  %10414 = vmatprep.subr.mxu0 0.0
  %10415 = vmatpush1.msra.mxu0 0.0
  %10416 = vmatprep.subr.mxu0 0.0
  %10417 = vmatpush1.msra.mxu0 0.0
  %10418 = vmatprep.subr.mxu0 0.0
  %10419 = vmatpush1.msra.mxu0 0.0
  %10420 = vmatprep.subr.mxu0 0.0
  %10421 = vmatpush1.msra.mxu0 0.0
  %10422 = vmatprep.subr.mxu0 0.0
  %10423 = vmatpush1.msra.mxu0 0.0
  %10424 = vmatprep.subr.mxu0 0.0
  %10425 = vmatpush1.msra.mxu0 0.0
  %10426 = vmatprep.subr.mxu0 0.0
  %10427 = vmatpush1.msra.mxu0 0.0
  %10428 = vmatprep.subr.mxu0 0.0
  %10429 = vmatpush1.msra.mxu0 0.0
  %10430 = vmatprep.subr.mxu0 0.0
  %10431 = vmatpush1.msra.mxu0 0.0
  %10432 = vmatprep.subr.mxu0 0.0
  %10433 = vmatpush1.msra.mxu0 0.0
  %10434 = vmatprep.subr.mxu0 0.0
  %10435 = vmatpush1.msra.mxu0 0.0
  %10436 = vmatprep.subr.mxu0 0.0
  %10437 = vmatpush1.msra.mxu0 0.0
  %10438 = vmatprep.subr.mxu0 0.0
  %10439 = vmatpush1.msra.mxu0 0.0
  %10440 = vmatprep.subr.mxu0 0.0
  %10441 = vmatpush1.msra.mxu0 0.0
  %10442 = vmatprep.subr.mxu0 0.0
  %10443 = vmatpush1.msra.mxu0 0.0
  %10444 = vmatprep.subr.mxu0 0.0
  %10445 = vmatpush1.msra.mxu0 0.0
  %10446 = vmatprep.subr.mxu0 0.0
  %10447 = vmatpush1.msra.mxu0 0.0
  %10448 = vmatprep.subr.mxu0 0.0
  %10449 = vmatpush1.msra.mxu0 0.0
  %10450 = vmatprep.subr.mxu0 0.0
  %10451 = vmatpush1.msra.mxu0 0.0
  %10452 = vmatprep.subr.mxu0 0.0
  %10453 = vmatpush1.msra.mxu0 0.0
  %10454 = vmatprep.subr.mxu0 0.0
  %10455 = vmatpush1.msra.mxu0 0.0
  %10456 = vmatprep.mubr.f32.mxu0 0.0
  %v10457 = vand.u32 %v10041, 4294901760
  %10458 = vmatmul.mubr.f32.gmra.mrb[0].mxu0 %v10457
  %v10459 = vpop.f32.mrb[0].mxu0
  %v10460 = vadd.f32 %v10375, %v10459
  %v10461 = vpop.f32.mrb[0].mxu0
  %10462 = vmatprep.mubr.f32.mxu0 0.0
  %v10463 = vand.u32 %v10044, 4294901760
  %10464 = vmatmul.mubr.f32.gmra.mrb[0].mxu0 %v10463
  %v10465 = vpop.f32.mrb[0].mxu0
  %v10466 = vadd.f32 %v10383, %v10465
  %v10467 = vpop.f32.mrb[0].mxu0
  %10468 = vdwg.mxu0
  %10469 = vmatprep.subr.mxu0 0.0
  %v10470 = vand.u32 %v10036, 4294901760
  %10471 = vmatpush1.msra.mxu0 %v10470
  %10472 = vmatprep.subr.mxu0 0.0
  %v10473 = vand.u32 %v10037, 4294901760
  %10474 = vmatpush1.msra.mxu0 %v10473
  %10475 = vmatprep.subr.mxu0 0.0
  %10476 = vmatpush1.msra.mxu0 0.0
  %10477 = vmatprep.subr.mxu0 0.0
  %10478 = vmatpush1.msra.mxu0 0.0
  %10479 = vmatprep.subr.mxu0 0.0
  %10480 = vmatpush1.msra.mxu0 0.0
  %10481 = vmatprep.subr.mxu0 0.0
  %10482 = vmatpush1.msra.mxu0 0.0
  %10483 = vmatprep.subr.mxu0 0.0
  %10484 = vmatpush1.msra.mxu0 0.0
  %10485 = vmatprep.subr.mxu0 0.0
  %10486 = vmatpush1.msra.mxu0 0.0
  %10487 = vmatprep.subr.mxu0 0.0
  %10488 = vmatpush1.msra.mxu0 0.0
  %10489 = vmatprep.subr.mxu0 0.0
  %10490 = vmatpush1.msra.mxu0 0.0
  %10491 = vmatprep.subr.mxu0 0.0
  %10492 = vmatpush1.msra.mxu0 0.0
  %10493 = vmatprep.subr.mxu0 0.0
  %10494 = vmatpush1.msra.mxu0 0.0
  %10495 = vmatprep.subr.mxu0 0.0
  %10496 = vmatpush1.msra.mxu0 0.0
  %10497 = vmatprep.subr.mxu0 0.0
  %10498 = vmatpush1.msra.mxu0 0.0
  %10499 = vmatprep.subr.mxu0 0.0
  %10500 = vmatpush1.msra.mxu0 0.0
  %10501 = vmatprep.subr.mxu0 0.0
  %10502 = vmatpush1.msra.mxu0 0.0
  %10503 = vmatprep.subr.mxu0 0.0
  %10504 = vmatpush1.msra.mxu0 0.0
  %10505 = vmatprep.subr.mxu0 0.0
  %10506 = vmatpush1.msra.mxu0 0.0
  %10507 = vmatprep.subr.mxu0 0.0
  %10508 = vmatpush1.msra.mxu0 0.0
  %10509 = vmatprep.subr.mxu0 0.0
  %10510 = vmatpush1.msra.mxu0 0.0
  %10511 = vmatprep.subr.mxu0 0.0
  %10512 = vmatpush1.msra.mxu0 0.0
  %10513 = vmatprep.subr.mxu0 0.0
  %10514 = vmatpush1.msra.mxu0 0.0
  %10515 = vmatprep.subr.mxu0 0.0
  %10516 = vmatpush1.msra.mxu0 0.0
  %10517 = vmatprep.subr.mxu0 0.0
  %10518 = vmatpush1.msra.mxu0 0.0
  %10519 = vmatprep.subr.mxu0 0.0
  %10520 = vmatpush1.msra.mxu0 0.0
  %10521 = vmatprep.subr.mxu0 0.0
  %10522 = vmatpush1.msra.mxu0 0.0
  %10523 = vmatprep.subr.mxu0 0.0
  %10524 = vmatpush1.msra.mxu0 0.0
  %10525 = vmatprep.subr.mxu0 0.0
  %10526 = vmatpush1.msra.mxu0 0.0
  %10527 = vmatprep.subr.mxu0 0.0
  %10528 = vmatpush1.msra.mxu0 0.0
  %10529 = vmatprep.subr.mxu0 0.0
  %10530 = vmatpush1.msra.mxu0 0.0
  %10531 = vmatprep.subr.mxu0 0.0
  %10532 = vmatpush1.msra.mxu0 0.0
  %10533 = vmatprep.subr.mxu0 0.0
  %10534 = vmatpush1.msra.mxu0 0.0
  %10535 = vmatprep.mubr.f32.mxu0 0.0
  %v10536 = vand.u32 %v10041, 4294901760
  %10537 = vmatmul.mubr.f32.gmra.mrb[0].mxu0 %v10536
  %v10538 = vpop.f32.mrb[0].mxu0
  %v10539 = vadd.f32 %v10460, %v10538
  %v10540 = vpop.f32.mrb[0].mxu0
  %10541 = vmatprep.mubr.f32.mxu0 0.0
  %v10542 = vand.u32 %v10044, 4294901760
  %10543 = vmatmul.mubr.f32.gmra.mrb[0].mxu0 %v10542
  %v10544 = vpop.f32.mrb[0].mxu0
  %v10545 = vadd.f32 %v10466, %v10544
  %v10546 = vpop.f32.mrb[0].mxu0
  %10547 = vdwg.mxu0
  %s10548 = scalar_lea.vmem %s22, 128
  %v10549 = vld [vmem:[%s10548] sm:$0xff]
  %v10550 = vld [vmem:[%s10548 + $0x8] sm:$0xff]
  %v10551 = vld [vmem:[%s10548 + $0x10] sm:$0xff]
  %v10552 = vld [vmem:[%s10548 + $0x18] sm:$0xff]
  %v10553 = vld [vmem:[%s10548 + $0x20] sm:$0xff]
  %v10554 = vld [vmem:[%s10548 + $0x28] sm:$0xff]
  %v10555 = vld [vmem:[%s10548 + $0x30] sm:$0xff]
  %v10556 = vld [vmem:[%s10548 + $0x38] sm:$0xff]
  %v10557 = vld [vmem:[%s10548 + $0x40] sm:$0xff]
  %v10558 = vld [vmem:[%s10548 + $0x48] sm:$0xff]
  %v10559 = vld [vmem:[%s10548 + $0x50] sm:$0xff]
  %v10560 = vld [vmem:[%s10548 + $0x58] sm:$0xff]
  %v10561 = vld [vmem:[%s10548 + $0x60] sm:$0xff]
  %v10562 = vld [vmem:[%s10548 + $0x68] sm:$0xff]
  %v10563 = vld [vmem:[%s10548 + $0x70] sm:$0xff]
  %v10564 = vld [vmem:[%s10548 + $0x78] sm:$0xff]
  %10565 = vmatprep.subr.mxu0 0.0
  %10566 = vmatpush1.msra.mxu0 %v10549
  %10567 = vmatprep.subr.mxu0 0.0
  %10568 = vmatpush1.msra.mxu0 %v10550
  %10569 = vmatprep.subr.mxu0 0.0
  %10570 = vmatpush1.msra.mxu0 %v10551
  %10571 = vmatprep.subr.mxu0 0.0
  %10572 = vmatpush1.msra.mxu0 %v10552
  %10573 = vmatprep.subr.mxu0 0.0
  %10574 = vmatpush1.msra.mxu0 %v10553
  %10575 = vmatprep.subr.mxu0 0.0
  %10576 = vmatpush1.msra.mxu0 %v10554
  %10577 = vmatprep.subr.mxu0 0.0
  %10578 = vmatpush1.msra.mxu0 %v10555
  %10579 = vmatprep.subr.mxu0 0.0
  %10580 = vmatpush1.msra.mxu0 %v10556
  %10581 = vmatprep.subr.mxu0 0.0
  %10582 = vmatpush1.msra.mxu0 %v10557
  %10583 = vmatprep.subr.mxu0 0.0
  %10584 = vmatpush1.msra.mxu0 %v10558
  %10585 = vmatprep.subr.mxu0 0.0
  %10586 = vmatpush1.msra.mxu0 %v10559
  %10587 = vmatprep.subr.mxu0 0.0
  %10588 = vmatpush1.msra.mxu0 %v10560
  %10589 = vmatprep.subr.mxu0 0.0
  %10590 = vmatpush1.msra.mxu0 %v10561
  %10591 = vmatprep.subr.mxu0 0.0
  %10592 = vmatpush1.msra.mxu0 %v10562
  %10593 = vmatprep.subr.mxu0 0.0
  %10594 = vmatpush1.msra.mxu0 %v10563
  %10595 = vmatprep.subr.mxu0 0.0
  %10596 = vmatpush1.msra.mxu0 %v10564
  %10597 = vmatprep.subr.mxu0 0.0
  %10598 = vmatpush1.msra.mxu0 0.0
  %10599 = vmatprep.subr.mxu0 0.0
  %10600 = vmatpush1.msra.mxu0 0.0
  %10601 = vmatprep.subr.mxu0 0.0
  %10602 = vmatpush1.msra.mxu0 0.0
  %10603 = vmatprep.subr.mxu0 0.0
  %10604 = vmatpush1.msra.mxu0 0.0
  %10605 = vmatprep.subr.mxu0 0.0
  %10606 = vmatpush1.msra.mxu0 0.0
  %10607 = vmatprep.subr.mxu0 0.0
  %10608 = vmatpush1.msra.mxu0 0.0
  %10609 = vmatprep.subr.mxu0 0.0
  %10610 = vmatpush1.msra.mxu0 0.0
  %10611 = vmatprep.subr.mxu0 0.0
  %10612 = vmatpush1.msra.mxu0 0.0
  %10613 = vmatprep.subr.mxu0 0.0
  %10614 = vmatpush1.msra.mxu0 0.0
  %10615 = vmatprep.subr.mxu0 0.0
  %10616 = vmatpush1.msra.mxu0 0.0
  %10617 = vmatprep.subr.mxu0 0.0
  %10618 = vmatpush1.msra.mxu0 0.0
  %10619 = vmatprep.subr.mxu0 0.0
  %10620 = vmatpush1.msra.mxu0 0.0
  %10621 = vmatprep.subr.mxu0 0.0
  %10622 = vmatpush1.msra.mxu0 0.0
  %10623 = vmatprep.subr.mxu0 0.0
  %10624 = vmatpush1.msra.mxu0 0.0
  %10625 = vmatprep.subr.mxu0 0.0
  %10626 = vmatpush1.msra.mxu0 0.0
  %10627 = vmatprep.subr.mxu0 0.0
  %10628 = vmatpush1.msra.mxu0 0.0
  %10629 = vmatprep.mubr.f32.mxu0 0.0
  %10630 = vmatmul.mubr.f32.gmra.mrb[0].mxu0 %v10036
  %v10631 = vpop.f32.mrb[0].mxu0
  %v10632 = vadd.f32 0.0, %v10631
  %v10633 = vpop.f32.mrb[0].mxu0
  %10634 = vmatprep.mubr.f32.mxu0 0.0
  %10635 = vmatmul.mubr.f32.gmra.mrb[0].mxu0 %v10037
  %v10636 = vpop.f32.mrb[0].mxu0
  %v10637 = vadd.f32 0.0, %v10636
  %v10638 = vpop.f32.mrb[0].mxu0
  %10639 = vdwg.mxu0
  %s10640 = scalar_lea.vmem %s22, 256
  %v10641 = vld [vmem:[%s10640] sm:$0xff]
  %v10642 = vld [vmem:[%s10640 + $0x8] sm:$0xff]
  %v10643 = vld [vmem:[%s10640 + $0x10] sm:$0xff]
  %v10644 = vld [vmem:[%s10640 + $0x18] sm:$0xff]
  %v10645 = vld [vmem:[%s10640 + $0x20] sm:$0xff]
  %v10646 = vld [vmem:[%s10640 + $0x28] sm:$0xff]
  %v10647 = vld [vmem:[%s10640 + $0x30] sm:$0xff]
  %v10648 = vld [vmem:[%s10640 + $0x38] sm:$0xff]
  %v10649 = vld [vmem:[%s10640 + $0x40] sm:$0xff]
  %v10650 = vld [vmem:[%s10640 + $0x48] sm:$0xff]
  %v10651 = vld [vmem:[%s10640 + $0x50] sm:$0xff]
  %v10652 = vld [vmem:[%s10640 + $0x58] sm:$0xff]
  %v10653 = vld [vmem:[%s10640 + $0x60] sm:$0xff]
  %v10654 = vld [vmem:[%s10640 + $0x68] sm:$0xff]
  %v10655 = vld [vmem:[%s10640 + $0x70] sm:$0xff]
  %v10656 = vld [vmem:[%s10640 + $0x78] sm:$0xff]
  %v10657 = vld [vmem:[%s22] sm:$0xff]
  %v10658 = vld [vmem:[%s22 + $0x8] sm:$0xff]
  %v10659 = vld [vmem:[%s22 + $0x10] sm:$0xff]
  %v10660 = vld [vmem:[%s22 + $0x18] sm:$0xff]
  %v10661 = vld [vmem:[%s22 + $0x20] sm:$0xff]
  %v10662 = vld [vmem:[%s22 + $0x28] sm:$0xff]
  %v10663 = vld [vmem:[%s22 + $0x30] sm:$0xff]
  %v10664 = vld [vmem:[%s22 + $0x38] sm:$0xff]
  %v10665 = vld [vmem:[%s22 + $0x40] sm:$0xff]
  %v10666 = vld [vmem:[%s22 + $0x48] sm:$0xff]
  %v10667 = vld [vmem:[%s22 + $0x50] sm:$0xff]
  %v10668 = vld [vmem:[%s22 + $0x58] sm:$0xff]
  %v10669 = vld [vmem:[%s22 + $0x60] sm:$0xff]
  %v10670 = vld [vmem:[%s22 + $0x68] sm:$0xff]
  %v10671 = vld [vmem:[%s22 + $0x70] sm:$0xff]
  %v10672 = vld [vmem:[%s22 + $0x78] sm:$0xff]
  %10673 = vmatprep.subr.mxu0 0.0
  %10674 = vmatpush1.msra.mxu0 %v10657
  %10675 = vmatprep.subr.mxu0 0.0
  %10676 = vmatpush1.msra.mxu0 %v10658
  %10677 = vmatprep.subr.mxu0 0.0
  %10678 = vmatpush1.msra.mxu0 %v10659
  %10679 = vmatprep.subr.mxu0 0.0
  %10680 = vmatpush1.msra.mxu0 %v10660
  %10681 = vmatprep.subr.mxu0 0.0
  %10682 = vmatpush1.msra.mxu0 %v10661
  %10683 = vmatprep.subr.mxu0 0.0
  %10684 = vmatpush1.msra.mxu0 %v10662
  %10685 = vmatprep.subr.mxu0 0.0
  %10686 = vmatpush1.msra.mxu0 %v10663
  %10687 = vmatprep.subr.mxu0 0.0
  %10688 = vmatpush1.msra.mxu0 %v10664
  %10689 = vmatprep.subr.mxu0 0.0
  %10690 = vmatpush1.msra.mxu0 %v10665
  %10691 = vmatprep.subr.mxu0 0.0
  %10692 = vmatpush1.msra.mxu0 %v10666
  %10693 = vmatprep.subr.mxu0 0.0
  %10694 = vmatpush1.msra.mxu0 %v10667
  %10695 = vmatprep.subr.mxu0 0.0
  %10696 = vmatpush1.msra.mxu0 %v10668
  %10697 = vmatprep.subr.mxu0 0.0
  %10698 = vmatpush1.msra.mxu0 %v10669
  %10699 = vmatprep.subr.mxu0 0.0
  %10700 = vmatpush1.msra.mxu0 %v10670
  %10701 = vmatprep.subr.mxu0 0.0
  %10702 = vmatpush1.msra.mxu0 %v10671
  %10703 = vmatprep.subr.mxu0 0.0
  %10704 = vmatpush1.msra.mxu0 %v10672
  %10705 = vmatprep.subr.mxu0 0.0
  %10706 = vmatpush1.msra.mxu0 0.0
  %10707 = vmatprep.subr.mxu0 0.0
  %10708 = vmatpush1.msra.mxu0 0.0
  %10709 = vmatprep.subr.mxu0 0.0
  %10710 = vmatpush1.msra.mxu0 0.0
  %10711 = vmatprep.subr.mxu0 0.0
  %10712 = vmatpush1.msra.mxu0 0.0
  %10713 = vmatprep.subr.mxu0 0.0
  %10714 = vmatpush1.msra.mxu0 0.0
  %10715 = vmatprep.subr.mxu0 0.0
  %10716 = vmatpush1.msra.mxu0 0.0
  %10717 = vmatprep.subr.mxu0 0.0
  %10718 = vmatpush1.msra.mxu0 0.0
  %10719 = vmatprep.subr.mxu0 0.0
  %10720 = vmatpush1.msra.mxu0 0.0
  %10721 = vmatprep.subr.mxu0 0.0
  %10722 = vmatpush1.msra.mxu0 0.0
  %10723 = vmatprep.subr.mxu0 0.0
  %10724 = vmatpush1.msra.mxu0 0.0
  %10725 = vmatprep.subr.mxu0 0.0
  %10726 = vmatpush1.msra.mxu0 0.0
  %10727 = vmatprep.subr.mxu0 0.0
  %10728 = vmatpush1.msra.mxu0 0.0
  %10729 = vmatprep.subr.mxu0 0.0
  %10730 = vmatpush1.msra.mxu0 0.0
  %10731 = vmatprep.subr.mxu0 0.0
  %10732 = vmatpush1.msra.mxu0 0.0
  %10733 = vmatprep.subr.mxu0 0.0
  %10734 = vmatpush1.msra.mxu0 0.0
  %10735 = vmatprep.subr.mxu0 0.0
  %10736 = vmatpush1.msra.mxu0 0.0
  %10737 = vmatprep.mubr.f32.mxu0 0.0
  %10738 = vmatmul.mubr.f32.gmra.mrb[0].mxu0 %v10539
  %v10739 = vpop.f32.mrb[0].mxu0
  %v10740 = vadd.f32 0.0, %v10739
  %v10741 = vpop.f32.mrb[0].mxu0
  %10742 = vmatprep.mubr.f32.mxu0 0.0
  %10743 = vmatmul.mubr.f32.gmra.mrb[0].mxu0 %v10545
  %v10744 = vpop.f32.mrb[0].mxu0
  %v10745 = vadd.f32 0.0, %v10744
  %v10746 = vpop.f32.mrb[0].mxu0
  %10747 = vdwg.mxu0
  %10748 = vmatprep.subr.mxu0 0.0
  %10749 = vmatpush1.msra.mxu0 %v10641
  %10750 = vmatprep.subr.mxu0 0.0
  %10751 = vmatpush1.msra.mxu0 %v10642
  %10752 = vmatprep.subr.mxu0 0.0
  %10753 = vmatpush1.msra.mxu0 %v10643
  %10754 = vmatprep.subr.mxu0 0.0
  %10755 = vmatpush1.msra.mxu0 %v10644
  %10756 = vmatprep.subr.mxu0 0.0
  %10757 = vmatpush1.msra.mxu0 %v10645
  %10758 = vmatprep.subr.mxu0 0.0
  %10759 = vmatpush1.msra.mxu0 %v10646
  %10760 = vmatprep.subr.mxu0 0.0
  %10761 = vmatpush1.msra.mxu0 %v10647
  %10762 = vmatprep.subr.mxu0 0.0
  %10763 = vmatpush1.msra.mxu0 %v10648
  %10764 = vmatprep.subr.mxu0 0.0
  %10765 = vmatpush1.msra.mxu0 %v10649
  %10766 = vmatprep.subr.mxu0 0.0
  %10767 = vmatpush1.msra.mxu0 %v10650
  %10768 = vmatprep.subr.mxu0 0.0
  %10769 = vmatpush1.msra.mxu0 %v10651
  %10770 = vmatprep.subr.mxu0 0.0
  %10771 = vmatpush1.msra.mxu0 %v10652
  %10772 = vmatprep.subr.mxu0 0.0
  %10773 = vmatpush1.msra.mxu0 %v10653
  %10774 = vmatprep.subr.mxu0 0.0
  %10775 = vmatpush1.msra.mxu0 %v10654
  %10776 = vmatprep.subr.mxu0 0.0
  %10777 = vmatpush1.msra.mxu0 %v10655
  %10778 = vmatprep.subr.mxu0 0.0
  %10779 = vmatpush1.msra.mxu0 %v10656
  %10780 = vmatprep.subr.mxu0 0.0
  %10781 = vmatpush1.msra.mxu0 0.0
  %10782 = vmatprep.subr.mxu0 0.0
  %10783 = vmatpush1.msra.mxu0 0.0
  %10784 = vmatprep.subr.mxu0 0.0
  %10785 = vmatpush1.msra.mxu0 0.0
  %10786 = vmatprep.subr.mxu0 0.0
  %10787 = vmatpush1.msra.mxu0 0.0
  %10788 = vmatprep.subr.mxu0 0.0
  %10789 = vmatpush1.msra.mxu0 0.0
  %10790 = vmatprep.subr.mxu0 0.0
  %10791 = vmatpush1.msra.mxu0 0.0
  %10792 = vmatprep.subr.mxu0 0.0
  %10793 = vmatpush1.msra.mxu0 0.0
  %10794 = vmatprep.subr.mxu0 0.0
  %10795 = vmatpush1.msra.mxu0 0.0
  %10796 = vmatprep.subr.mxu0 0.0
  %10797 = vmatpush1.msra.mxu0 0.0
  %10798 = vmatprep.subr.mxu0 0.0
  %10799 = vmatpush1.msra.mxu0 0.0
  %10800 = vmatprep.subr.mxu0 0.0
  %10801 = vmatpush1.msra.mxu0 0.0
  %10802 = vmatprep.subr.mxu0 0.0
  %10803 = vmatpush1.msra.mxu0 0.0
  %10804 = vmatprep.subr.mxu0 0.0
  %10805 = vmatpush1.msra.mxu0 0.0
  %10806 = vmatprep.subr.mxu0 0.0
  %10807 = vmatpush1.msra.mxu0 0.0
  %10808 = vmatprep.subr.mxu0 0.0
  %10809 = vmatpush1.msra.mxu0 0.0
  %10810 = vmatprep.subr.mxu0 0.0
  %10811 = vmatpush1.msra.mxu0 0.0
  %10812 = vmatprep.mubr.f32.mxu0 0.0
  %10813 = vmatmul.mubr.f32.gmra.mrb[0].mxu0 %v10036
  %v10814 = vpop.f32.mrb[0].mxu0
  %v10815 = vadd.f32 %v10740, %v10814
  %v10816 = vpop.f32.mrb[0].mxu0
  %10817 = vmatprep.mubr.f32.mxu0 0.0
  %10818 = vmatmul.mubr.f32.gmra.mrb[0].mxu0 %v10037
  %v10819 = vpop.f32.mrb[0].mxu0
  %v10820 = vadd.f32 %v10745, %v10819
  %v10821 = vpop.f32.mrb[0].mxu0
  %10822 = vdwg.mxu0
  %v10823 = vld [vmem:[%s25] sm:$0xff]
  %v10824 = vld [vmem:[%s25 + $0x8] sm:$0xff]
  %v10825 = vld [vmem:[%s25 + $0x10] sm:$0xff]
  %v10826 = vld [vmem:[%s25 + $0x18] sm:$0xff]
  %v10827 = vld [vmem:[%s26] sm:$0xff]
  %v10828 = vld [vmem:[%s26 + $0x8] sm:$0xff]
  %v10829 = vld [vmem:[%s26 + $0x10] sm:$0xff]
  %v10830 = vld [vmem:[%s26 + $0x18] sm:$0xff]
  %v10832 = vsel %vm4933, %v10827, 0
  %v10835 = vsel %vm4933, %v10828, 0
  %v10838 = vsel %vm4933, %v10829, 0
  %v10841 = vsel %vm4933, %v10830, 0
  %10843 = vmatprep.subr.mxu0 0.0
  %v10844 = vand.u32 %v10815, 4294901760
  %10845 = vmatpush1.msra.mxu0 %v10844
  %10846 = vmatprep.subr.mxu0 0.0
  %v10847 = vand.u32 %v10820, 4294901760
  %10848 = vmatpush1.msra.mxu0 %v10847
  %10849 = vmatprep.subr.mxu0 0.0
  %10850 = vmatpush1.msra.mxu0 0.0
  %10851 = vmatprep.subr.mxu0 0.0
  %10852 = vmatpush1.msra.mxu0 0.0
  %10853 = vmatprep.subr.mxu0 0.0
  %10854 = vmatpush1.msra.mxu0 0.0
  %10855 = vmatprep.subr.mxu0 0.0
  %10856 = vmatpush1.msra.mxu0 0.0
  %10857 = vmatprep.subr.mxu0 0.0
  %10858 = vmatpush1.msra.mxu0 0.0
  %10859 = vmatprep.subr.mxu0 0.0
  %10860 = vmatpush1.msra.mxu0 0.0
  %10861 = vmatprep.subr.mxu0 0.0
  %10862 = vmatpush1.msra.mxu0 0.0
  %10863 = vmatprep.subr.mxu0 0.0
  %10864 = vmatpush1.msra.mxu0 0.0
  %10865 = vmatprep.subr.mxu0 0.0
  %10866 = vmatpush1.msra.mxu0 0.0
  %10867 = vmatprep.subr.mxu0 0.0
  %10868 = vmatpush1.msra.mxu0 0.0
  %10869 = vmatprep.subr.mxu0 0.0
  %10870 = vmatpush1.msra.mxu0 0.0
  %10871 = vmatprep.subr.mxu0 0.0
  %10872 = vmatpush1.msra.mxu0 0.0
  %10873 = vmatprep.subr.mxu0 0.0
  %10874 = vmatpush1.msra.mxu0 0.0
  %10875 = vmatprep.subr.mxu0 0.0
  %10876 = vmatpush1.msra.mxu0 0.0
  %10877 = vmatprep.subr.mxu0 0.0
  %10878 = vmatpush1.msra.mxu0 0.0
  %10879 = vmatprep.subr.mxu0 0.0
  %10880 = vmatpush1.msra.mxu0 0.0
  %10881 = vmatprep.subr.mxu0 0.0
  %10882 = vmatpush1.msra.mxu0 0.0
  %10883 = vmatprep.subr.mxu0 0.0
  %10884 = vmatpush1.msra.mxu0 0.0
  %10885 = vmatprep.subr.mxu0 0.0
  %10886 = vmatpush1.msra.mxu0 0.0
  %10887 = vmatprep.subr.mxu0 0.0
  %10888 = vmatpush1.msra.mxu0 0.0
  %10889 = vmatprep.subr.mxu0 0.0
  %10890 = vmatpush1.msra.mxu0 0.0
  %10891 = vmatprep.subr.mxu0 0.0
  %10892 = vmatpush1.msra.mxu0 0.0
  %10893 = vmatprep.subr.mxu0 0.0
  %10894 = vmatpush1.msra.mxu0 0.0
  %10895 = vmatprep.subr.mxu0 0.0
  %10896 = vmatpush1.msra.mxu0 0.0
  %10897 = vmatprep.subr.mxu0 0.0
  %10898 = vmatpush1.msra.mxu0 0.0
  %10899 = vmatprep.subr.mxu0 0.0
  %10900 = vmatpush1.msra.mxu0 0.0
  %10901 = vmatprep.subr.mxu0 0.0
  %10902 = vmatpush1.msra.mxu0 0.0
  %10903 = vmatprep.subr.mxu0 0.0
  %10904 = vmatpush1.msra.mxu0 0.0
  %10905 = vmatprep.subr.mxu0 0.0
  %10906 = vmatpush1.msra.mxu0 0.0
  %10907 = vmatprep.subr.mxu0 0.0
  %10908 = vmatpush1.msra.mxu0 0.0
  %10909 = vmatprep.mubr.f32.mxu0 0.0
  %v10910 = vand.u32 %v10832, 4294901760
  %v10911 = vsub.f32 %v10832, %v10910
  %v10912 = vand.u32 %v10911, 4294901760
  %v10913 = vsub.f32 %v10911, %v10912
  %v10914 = vand.u32 %v10913, 4294901760
  %10915 = vmatmul.mubr.f32.gmra.mrb[0].mxu0 %v10914
  %v10916 = vpop.f32.mrb[0].mxu0
  %v10917 = vadd.f32 0.0, %v10916
  %v10918 = vpop.f32.mrb[0].mxu0
  %10919 = vmatprep.mubr.f32.mxu0 0.0
  %v10920 = vand.u32 %v10835, 4294901760
  %v10921 = vsub.f32 %v10835, %v10920
  %v10922 = vand.u32 %v10921, 4294901760
  %v10923 = vsub.f32 %v10921, %v10922
  %v10924 = vand.u32 %v10923, 4294901760
  %10925 = vmatmul.mubr.f32.gmra.mrb[0].mxu0 %v10924
  %v10926 = vpop.f32.mrb[0].mxu0
  %v10927 = vadd.f32 0.0, %v10926
  %v10928 = vpop.f32.mrb[0].mxu0
  %10929 = vmatprep.mubr.f32.mxu0 0.0
  %v10930 = vand.u32 %v10838, 4294901760
  %v10931 = vsub.f32 %v10838, %v10930
  %v10932 = vand.u32 %v10931, 4294901760
  %v10933 = vsub.f32 %v10931, %v10932
  %v10934 = vand.u32 %v10933, 4294901760
  %10935 = vmatmul.mubr.f32.gmra.mrb[0].mxu0 %v10934
  %v10936 = vpop.f32.mrb[0].mxu0
  %v10937 = vadd.f32 0.0, %v10936
  %v10938 = vpop.f32.mrb[0].mxu0
  %10939 = vmatprep.mubr.f32.mxu0 0.0
  %v10940 = vand.u32 %v10841, 4294901760
  %v10941 = vsub.f32 %v10841, %v10940
  %v10942 = vand.u32 %v10941, 4294901760
  %v10943 = vsub.f32 %v10941, %v10942
  %v10944 = vand.u32 %v10943, 4294901760
  %10945 = vmatmul.mubr.f32.gmra.mrb[0].mxu0 %v10944
  %v10946 = vpop.f32.mrb[0].mxu0
  %v10947 = vadd.f32 0.0, %v10946
  %v10948 = vpop.f32.mrb[0].mxu0
  %10949 = vdwg.mxu0
  %10950 = vmatprep.subr.mxu0 0.0
  %v10951 = vand.u32 %v10815, 4294901760
  %v10952 = vsub.f32 %v10815, %v10951
  %v10953 = vand.u32 %v10952, 4294901760
  %v10954 = vsub.f32 %v10952, %v10953
  %v10955 = vand.u32 %v10954, 4294901760
  %10956 = vmatpush1.msra.mxu0 %v10955
  %10957 = vmatprep.subr.mxu0 0.0
  %v10958 = vand.u32 %v10820, 4294901760
  %v10959 = vsub.f32 %v10820, %v10958
  %v10960 = vand.u32 %v10959, 4294901760
  %v10961 = vsub.f32 %v10959, %v10960
  %v10962 = vand.u32 %v10961, 4294901760
  %10963 = vmatpush1.msra.mxu0 %v10962
  %10964 = vmatprep.subr.mxu0 0.0
  %10965 = vmatpush1.msra.mxu0 0.0
  %10966 = vmatprep.subr.mxu0 0.0
  %10967 = vmatpush1.msra.mxu0 0.0
  %10968 = vmatprep.subr.mxu0 0.0
  %10969 = vmatpush1.msra.mxu0 0.0
  %10970 = vmatprep.subr.mxu0 0.0
  %10971 = vmatpush1.msra.mxu0 0.0
  %10972 = vmatprep.subr.mxu0 0.0
  %10973 = vmatpush1.msra.mxu0 0.0
  %10974 = vmatprep.subr.mxu0 0.0
  %10975 = vmatpush1.msra.mxu0 0.0
  %10976 = vmatprep.subr.mxu0 0.0
  %10977 = vmatpush1.msra.mxu0 0.0
  %10978 = vmatprep.subr.mxu0 0.0
  %10979 = vmatpush1.msra.mxu0 0.0
  %10980 = vmatprep.subr.mxu0 0.0
  %10981 = vmatpush1.msra.mxu0 0.0
  %10982 = vmatprep.subr.mxu0 0.0
  %10983 = vmatpush1.msra.mxu0 0.0
  %10984 = vmatprep.subr.mxu0 0.0
  %10985 = vmatpush1.msra.mxu0 0.0
  %10986 = vmatprep.subr.mxu0 0.0
  %10987 = vmatpush1.msra.mxu0 0.0
  %10988 = vmatprep.subr.mxu0 0.0
  %10989 = vmatpush1.msra.mxu0 0.0
  %10990 = vmatprep.subr.mxu0 0.0
  %10991 = vmatpush1.msra.mxu0 0.0
  %10992 = vmatprep.subr.mxu0 0.0
  %10993 = vmatpush1.msra.mxu0 0.0
  %10994 = vmatprep.subr.mxu0 0.0
  %10995 = vmatpush1.msra.mxu0 0.0
  %10996 = vmatprep.subr.mxu0 0.0
  %10997 = vmatpush1.msra.mxu0 0.0
  %10998 = vmatprep.subr.mxu0 0.0
  %10999 = vmatpush1.msra.mxu0 0.0
  %11000 = vmatprep.subr.mxu0 0.0
  %11001 = vmatpush1.msra.mxu0 0.0
  %11002 = vmatprep.subr.mxu0 0.0
  %11003 = vmatpush1.msra.mxu0 0.0
  %11004 = vmatprep.subr.mxu0 0.0
  %11005 = vmatpush1.msra.mxu0 0.0
  %11006 = vmatprep.subr.mxu0 0.0
  %11007 = vmatpush1.msra.mxu0 0.0
  %11008 = vmatprep.subr.mxu0 0.0
  %11009 = vmatpush1.msra.mxu0 0.0
  %11010 = vmatprep.subr.mxu0 0.0
  %11011 = vmatpush1.msra.mxu0 0.0
  %11012 = vmatprep.subr.mxu0 0.0
  %11013 = vmatpush1.msra.mxu0 0.0
  %11014 = vmatprep.subr.mxu0 0.0
  %11015 = vmatpush1.msra.mxu0 0.0
  %11016 = vmatprep.subr.mxu0 0.0
  %11017 = vmatpush1.msra.mxu0 0.0
  %11018 = vmatprep.subr.mxu0 0.0
  %11019 = vmatpush1.msra.mxu0 0.0
  %11020 = vmatprep.subr.mxu0 0.0
  %11021 = vmatpush1.msra.mxu0 0.0
  %11022 = vmatprep.subr.mxu0 0.0
  %11023 = vmatpush1.msra.mxu0 0.0
  %11024 = vmatprep.mubr.f32.mxu0 0.0
  %v11025 = vand.u32 %v10832, 4294901760
  %11026 = vmatmul.mubr.f32.gmra.mrb[0].mxu0 %v11025
  %v11027 = vpop.f32.mrb[0].mxu0
  %v11028 = vadd.f32 %v10917, %v11027
  %v11029 = vpop.f32.mrb[0].mxu0
  %11030 = vmatprep.mubr.f32.mxu0 0.0
  %v11031 = vand.u32 %v10835, 4294901760
  %11032 = vmatmul.mubr.f32.gmra.mrb[0].mxu0 %v11031
  %v11033 = vpop.f32.mrb[0].mxu0
  %v11034 = vadd.f32 %v10927, %v11033
  %v11035 = vpop.f32.mrb[0].mxu0
  %11036 = vmatprep.mubr.f32.mxu0 0.0
  %v11037 = vand.u32 %v10838, 4294901760
  %11038 = vmatmul.mubr.f32.gmra.mrb[0].mxu0 %v11037
  %v11039 = vpop.f32.mrb[0].mxu0
  %v11040 = vadd.f32 %v10937, %v11039
  %v11041 = vpop.f32.mrb[0].mxu0
  %11042 = vmatprep.mubr.f32.mxu0 0.0
  %v11043 = vand.u32 %v10841, 4294901760
  %11044 = vmatmul.mubr.f32.gmra.mrb[0].mxu0 %v11043
  %v11045 = vpop.f32.mrb[0].mxu0
  %v11046 = vadd.f32 %v10947, %v11045
  %v11047 = vpop.f32.mrb[0].mxu0
  %11048 = vdwg.mxu0
  %11049 = vmatprep.subr.mxu0 0.0
  %v11050 = vand.u32 %v10815, 4294901760
  %v11051 = vsub.f32 %v10815, %v11050
  %11052 = vmatpush1.msra.mxu0 %v11051
  %11053 = vmatprep.subr.mxu0 0.0
  %v11054 = vand.u32 %v10820, 4294901760
  %v11055 = vsub.f32 %v10820, %v11054
  %11056 = vmatpush1.msra.mxu0 %v11055
  %11057 = vmatprep.subr.mxu0 0.0
  %11058 = vmatpush1.msra.mxu0 0.0
  %11059 = vmatprep.subr.mxu0 0.0
  %11060 = vmatpush1.msra.mxu0 0.0
  %11061 = vmatprep.subr.mxu0 0.0
  %11062 = vmatpush1.msra.mxu0 0.0
  %11063 = vmatprep.subr.mxu0 0.0
  %11064 = vmatpush1.msra.mxu0 0.0
  %11065 = vmatprep.subr.mxu0 0.0
  %11066 = vmatpush1.msra.mxu0 0.0
  %11067 = vmatprep.subr.mxu0 0.0
  %11068 = vmatpush1.msra.mxu0 0.0
  %11069 = vmatprep.subr.mxu0 0.0
  %11070 = vmatpush1.msra.mxu0 0.0
  %11071 = vmatprep.subr.mxu0 0.0
  %11072 = vmatpush1.msra.mxu0 0.0
  %11073 = vmatprep.subr.mxu0 0.0
  %11074 = vmatpush1.msra.mxu0 0.0
  %11075 = vmatprep.subr.mxu0 0.0
  %11076 = vmatpush1.msra.mxu0 0.0
  %11077 = vmatprep.subr.mxu0 0.0
  %11078 = vmatpush1.msra.mxu0 0.0
  %11079 = vmatprep.subr.mxu0 0.0
  %11080 = vmatpush1.msra.mxu0 0.0
  %11081 = vmatprep.subr.mxu0 0.0
  %11082 = vmatpush1.msra.mxu0 0.0
  %11083 = vmatprep.subr.mxu0 0.0
  %11084 = vmatpush1.msra.mxu0 0.0
  %11085 = vmatprep.subr.mxu0 0.0
  %11086 = vmatpush1.msra.mxu0 0.0
  %11087 = vmatprep.subr.mxu0 0.0
  %11088 = vmatpush1.msra.mxu0 0.0
  %11089 = vmatprep.subr.mxu0 0.0
  %11090 = vmatpush1.msra.mxu0 0.0
  %11091 = vmatprep.subr.mxu0 0.0
  %11092 = vmatpush1.msra.mxu0 0.0
  %11093 = vmatprep.subr.mxu0 0.0
  %11094 = vmatpush1.msra.mxu0 0.0
  %11095 = vmatprep.subr.mxu0 0.0
  %11096 = vmatpush1.msra.mxu0 0.0
  %11097 = vmatprep.subr.mxu0 0.0
  %11098 = vmatpush1.msra.mxu0 0.0
  %11099 = vmatprep.subr.mxu0 0.0
  %11100 = vmatpush1.msra.mxu0 0.0
  %11101 = vmatprep.subr.mxu0 0.0
  %11102 = vmatpush1.msra.mxu0 0.0
  %11103 = vmatprep.subr.mxu0 0.0
  %11104 = vmatpush1.msra.mxu0 0.0
  %11105 = vmatprep.subr.mxu0 0.0
  %11106 = vmatpush1.msra.mxu0 0.0
  %11107 = vmatprep.subr.mxu0 0.0
  %11108 = vmatpush1.msra.mxu0 0.0
  %11109 = vmatprep.subr.mxu0 0.0
  %11110 = vmatpush1.msra.mxu0 0.0
  %11111 = vmatprep.subr.mxu0 0.0
  %11112 = vmatpush1.msra.mxu0 0.0
  %11113 = vmatprep.subr.mxu0 0.0
  %11114 = vmatpush1.msra.mxu0 0.0
  %11115 = vmatprep.subr.mxu0 0.0
  %11116 = vmatpush1.msra.mxu0 0.0
  %11117 = vmatprep.mubr.f32.mxu0 0.0
  %v11118 = vand.u32 %v10832, 4294901760
  %v11119 = vsub.f32 %v10832, %v11118
  %11120 = vmatmul.mubr.f32.gmra.mrb[0].mxu0 %v11119
  %v11121 = vpop.f32.mrb[0].mxu0
  %v11122 = vadd.f32 %v11028, %v11121
  %v11123 = vpop.f32.mrb[0].mxu0
  %11124 = vmatprep.mubr.f32.mxu0 0.0
  %v11125 = vand.u32 %v10835, 4294901760
  %v11126 = vsub.f32 %v10835, %v11125
  %11127 = vmatmul.mubr.f32.gmra.mrb[0].mxu0 %v11126
  %v11128 = vpop.f32.mrb[0].mxu0
  %v11129 = vadd.f32 %v11034, %v11128
  %v11130 = vpop.f32.mrb[0].mxu0
  %11131 = vmatprep.mubr.f32.mxu0 0.0
  %v11132 = vand.u32 %v10838, 4294901760
  %v11133 = vsub.f32 %v10838, %v11132
  %11134 = vmatmul.mubr.f32.gmra.mrb[0].mxu0 %v11133
  %v11135 = vpop.f32.mrb[0].mxu0
  %v11136 = vadd.f32 %v11040, %v11135
  %v11137 = vpop.f32.mrb[0].mxu0
  %11138 = vmatprep.mubr.f32.mxu0 0.0
  %v11139 = vand.u32 %v10841, 4294901760
  %v11140 = vsub.f32 %v10841, %v11139
  %11141 = vmatmul.mubr.f32.gmra.mrb[0].mxu0 %v11140
  %v11142 = vpop.f32.mrb[0].mxu0
  %v11143 = vadd.f32 %v11046, %v11142
  %v11144 = vpop.f32.mrb[0].mxu0
  %11145 = vdwg.mxu0
  %11146 = vmatprep.subr.mxu0 0.0
  %v11147 = vand.u32 %v10815, 4294901760
  %11148 = vmatpush1.msra.mxu0 %v11147
  %11149 = vmatprep.subr.mxu0 0.0
  %v11150 = vand.u32 %v10820, 4294901760
  %11151 = vmatpush1.msra.mxu0 %v11150
  %11152 = vmatprep.subr.mxu0 0.0
  %11153 = vmatpush1.msra.mxu0 0.0
  %11154 = vmatprep.subr.mxu0 0.0
  %11155 = vmatpush1.msra.mxu0 0.0
  %11156 = vmatprep.subr.mxu0 0.0
  %11157 = vmatpush1.msra.mxu0 0.0
  %11158 = vmatprep.subr.mxu0 0.0
  %11159 = vmatpush1.msra.mxu0 0.0
  %11160 = vmatprep.subr.mxu0 0.0
  %11161 = vmatpush1.msra.mxu0 0.0
  %11162 = vmatprep.subr.mxu0 0.0
  %11163 = vmatpush1.msra.mxu0 0.0
  %11164 = vmatprep.subr.mxu0 0.0
  %11165 = vmatpush1.msra.mxu0 0.0
  %11166 = vmatprep.subr.mxu0 0.0
  %11167 = vmatpush1.msra.mxu0 0.0
  %11168 = vmatprep.subr.mxu0 0.0
  %11169 = vmatpush1.msra.mxu0 0.0
  %11170 = vmatprep.subr.mxu0 0.0
  %11171 = vmatpush1.msra.mxu0 0.0
  %11172 = vmatprep.subr.mxu0 0.0
  %11173 = vmatpush1.msra.mxu0 0.0
  %11174 = vmatprep.subr.mxu0 0.0
  %11175 = vmatpush1.msra.mxu0 0.0
  %11176 = vmatprep.subr.mxu0 0.0
  %11177 = vmatpush1.msra.mxu0 0.0
  %11178 = vmatprep.subr.mxu0 0.0
  %11179 = vmatpush1.msra.mxu0 0.0
  %11180 = vmatprep.subr.mxu0 0.0
  %11181 = vmatpush1.msra.mxu0 0.0
  %11182 = vmatprep.subr.mxu0 0.0
  %11183 = vmatpush1.msra.mxu0 0.0
  %11184 = vmatprep.subr.mxu0 0.0
  %11185 = vmatpush1.msra.mxu0 0.0
  %11186 = vmatprep.subr.mxu0 0.0
  %11187 = vmatpush1.msra.mxu0 0.0
  %11188 = vmatprep.subr.mxu0 0.0
  %11189 = vmatpush1.msra.mxu0 0.0
  %11190 = vmatprep.subr.mxu0 0.0
  %11191 = vmatpush1.msra.mxu0 0.0
  %11192 = vmatprep.subr.mxu0 0.0
  %11193 = vmatpush1.msra.mxu0 0.0
  %11194 = vmatprep.subr.mxu0 0.0
  %11195 = vmatpush1.msra.mxu0 0.0
  %11196 = vmatprep.subr.mxu0 0.0
  %11197 = vmatpush1.msra.mxu0 0.0
  %11198 = vmatprep.subr.mxu0 0.0
  %11199 = vmatpush1.msra.mxu0 0.0
  %11200 = vmatprep.subr.mxu0 0.0
  %11201 = vmatpush1.msra.mxu0 0.0
  %11202 = vmatprep.subr.mxu0 0.0
  %11203 = vmatpush1.msra.mxu0 0.0
  %11204 = vmatprep.subr.mxu0 0.0
  %11205 = vmatpush1.msra.mxu0 0.0
  %11206 = vmatprep.subr.mxu0 0.0
  %11207 = vmatpush1.msra.mxu0 0.0
  %11208 = vmatprep.subr.mxu0 0.0
  %11209 = vmatpush1.msra.mxu0 0.0
  %11210 = vmatprep.subr.mxu0 0.0
  %11211 = vmatpush1.msra.mxu0 0.0
  %11212 = vmatprep.mubr.f32.mxu0 0.0
  %v11213 = vand.u32 %v10832, 4294901760
  %v11214 = vsub.f32 %v10832, %v11213
  %v11215 = vand.u32 %v11214, 4294901760
  %11216 = vmatmul.mubr.f32.gmra.mrb[0].mxu0 %v11215
  %v11217 = vpop.f32.mrb[0].mxu0
  %v11218 = vadd.f32 %v11122, %v11217
  %v11219 = vpop.f32.mrb[0].mxu0
  %11220 = vmatprep.mubr.f32.mxu0 0.0
  %v11221 = vand.u32 %v10835, 4294901760
  %v11222 = vsub.f32 %v10835, %v11221
  %v11223 = vand.u32 %v11222, 4294901760
  %11224 = vmatmul.mubr.f32.gmra.mrb[0].mxu0 %v11223
  %v11225 = vpop.f32.mrb[0].mxu0
  %v11226 = vadd.f32 %v11129, %v11225
  %v11227 = vpop.f32.mrb[0].mxu0
  %11228 = vmatprep.mubr.f32.mxu0 0.0
  %v11229 = vand.u32 %v10838, 4294901760
  %v11230 = vsub.f32 %v10838, %v11229
  %v11231 = vand.u32 %v11230, 4294901760
  %11232 = vmatmul.mubr.f32.gmra.mrb[0].mxu0 %v11231
  %v11233 = vpop.f32.mrb[0].mxu0
  %v11234 = vadd.f32 %v11136, %v11233
  %v11235 = vpop.f32.mrb[0].mxu0
  %11236 = vmatprep.mubr.f32.mxu0 0.0
  %v11237 = vand.u32 %v10841, 4294901760
  %v11238 = vsub.f32 %v10841, %v11237
  %v11239 = vand.u32 %v11238, 4294901760
  %11240 = vmatmul.mubr.f32.gmra.mrb[0].mxu0 %v11239
  %v11241 = vpop.f32.mrb[0].mxu0
  %v11242 = vadd.f32 %v11143, %v11241
  %v11243 = vpop.f32.mrb[0].mxu0
  %11244 = vdwg.mxu0
  %11245 = vmatprep.subr.mxu0 0.0
  %v11246 = vand.u32 %v10815, 4294901760
  %v11247 = vsub.f32 %v10815, %v11246
  %v11248 = vand.u32 %v11247, 4294901760
  %11249 = vmatpush1.msra.mxu0 %v11248
  %11250 = vmatprep.subr.mxu0 0.0
  %v11251 = vand.u32 %v10820, 4294901760
  %v11252 = vsub.f32 %v10820, %v11251
  %v11253 = vand.u32 %v11252, 4294901760
  %11254 = vmatpush1.msra.mxu0 %v11253
  %11255 = vmatprep.subr.mxu0 0.0
  %11256 = vmatpush1.msra.mxu0 0.0
  %11257 = vmatprep.subr.mxu0 0.0
  %11258 = vmatpush1.msra.mxu0 0.0
  %11259 = vmatprep.subr.mxu0 0.0
  %11260 = vmatpush1.msra.mxu0 0.0
  %11261 = vmatprep.subr.mxu0 0.0
  %11262 = vmatpush1.msra.mxu0 0.0
  %11263 = vmatprep.subr.mxu0 0.0
  %11264 = vmatpush1.msra.mxu0 0.0
  %11265 = vmatprep.subr.mxu0 0.0
  %11266 = vmatpush1.msra.mxu0 0.0
  %11267 = vmatprep.subr.mxu0 0.0
  %11268 = vmatpush1.msra.mxu0 0.0
  %11269 = vmatprep.subr.mxu0 0.0
  %11270 = vmatpush1.msra.mxu0 0.0
  %11271 = vmatprep.subr.mxu0 0.0
  %11272 = vmatpush1.msra.mxu0 0.0
  %11273 = vmatprep.subr.mxu0 0.0
  %11274 = vmatpush1.msra.mxu0 0.0
  %11275 = vmatprep.subr.mxu0 0.0
  %11276 = vmatpush1.msra.mxu0 0.0
  %11277 = vmatprep.subr.mxu0 0.0
  %11278 = vmatpush1.msra.mxu0 0.0
  %11279 = vmatprep.subr.mxu0 0.0
  %11280 = vmatpush1.msra.mxu0 0.0
  %11281 = vmatprep.subr.mxu0 0.0
  %11282 = vmatpush1.msra.mxu0 0.0
  %11283 = vmatprep.subr.mxu0 0.0
  %11284 = vmatpush1.msra.mxu0 0.0
  %11285 = vmatprep.subr.mxu0 0.0
  %11286 = vmatpush1.msra.mxu0 0.0
  %11287 = vmatprep.subr.mxu0 0.0
  %11288 = vmatpush1.msra.mxu0 0.0
  %11289 = vmatprep.subr.mxu0 0.0
  %11290 = vmatpush1.msra.mxu0 0.0
  %11291 = vmatprep.subr.mxu0 0.0
  %11292 = vmatpush1.msra.mxu0 0.0
  %11293 = vmatprep.subr.mxu0 0.0
  %11294 = vmatpush1.msra.mxu0 0.0
  %11295 = vmatprep.subr.mxu0 0.0
  %11296 = vmatpush1.msra.mxu0 0.0
  %11297 = vmatprep.subr.mxu0 0.0
  %11298 = vmatpush1.msra.mxu0 0.0
  %11299 = vmatprep.subr.mxu0 0.0
  %11300 = vmatpush1.msra.mxu0 0.0
  %11301 = vmatprep.subr.mxu0 0.0
  %11302 = vmatpush1.msra.mxu0 0.0
  %11303 = vmatprep.subr.mxu0 0.0
  %11304 = vmatpush1.msra.mxu0 0.0
  %11305 = vmatprep.subr.mxu0 0.0
  %11306 = vmatpush1.msra.mxu0 0.0
  %11307 = vmatprep.subr.mxu0 0.0
  %11308 = vmatpush1.msra.mxu0 0.0
  %11309 = vmatprep.subr.mxu0 0.0
  %11310 = vmatpush1.msra.mxu0 0.0
  %11311 = vmatprep.subr.mxu0 0.0
  %11312 = vmatpush1.msra.mxu0 0.0
  %11313 = vmatprep.subr.mxu0 0.0
  %11314 = vmatpush1.msra.mxu0 0.0
  %11315 = vmatprep.mubr.f32.mxu0 0.0
  %v11316 = vand.u32 %v10832, 4294901760
  %11317 = vmatmul.mubr.f32.gmra.mrb[0].mxu0 %v11316
  %v11318 = vpop.f32.mrb[0].mxu0
  %v11319 = vadd.f32 %v11218, %v11318
  %v11320 = vpop.f32.mrb[0].mxu0
  %11321 = vmatprep.mubr.f32.mxu0 0.0
  %v11322 = vand.u32 %v10835, 4294901760
  %11323 = vmatmul.mubr.f32.gmra.mrb[0].mxu0 %v11322
  %v11324 = vpop.f32.mrb[0].mxu0
  %v11325 = vadd.f32 %v11226, %v11324
  %v11326 = vpop.f32.mrb[0].mxu0
  %11327 = vmatprep.mubr.f32.mxu0 0.0
  %v11328 = vand.u32 %v10838, 4294901760
  %11329 = vmatmul.mubr.f32.gmra.mrb[0].mxu0 %v11328
  %v11330 = vpop.f32.mrb[0].mxu0
  %v11331 = vadd.f32 %v11234, %v11330
  %v11332 = vpop.f32.mrb[0].mxu0
  %11333 = vmatprep.mubr.f32.mxu0 0.0
  %v11334 = vand.u32 %v10841, 4294901760
  %11335 = vmatmul.mubr.f32.gmra.mrb[0].mxu0 %v11334
  %v11336 = vpop.f32.mrb[0].mxu0
  %v11337 = vadd.f32 %v11242, %v11336
  %v11338 = vpop.f32.mrb[0].mxu0
  %11339 = vdwg.mxu0
  %11340 = vmatprep.subr.mxu0 0.0
  %v11341 = vand.u32 %v10815, 4294901760
  %11342 = vmatpush1.msra.mxu0 %v11341
  %11343 = vmatprep.subr.mxu0 0.0
  %v11344 = vand.u32 %v10820, 4294901760
  %11345 = vmatpush1.msra.mxu0 %v11344
  %11346 = vmatprep.subr.mxu0 0.0
  %11347 = vmatpush1.msra.mxu0 0.0
  %11348 = vmatprep.subr.mxu0 0.0
  %11349 = vmatpush1.msra.mxu0 0.0
  %11350 = vmatprep.subr.mxu0 0.0
  %11351 = vmatpush1.msra.mxu0 0.0
  %11352 = vmatprep.subr.mxu0 0.0
  %11353 = vmatpush1.msra.mxu0 0.0
  %11354 = vmatprep.subr.mxu0 0.0
  %11355 = vmatpush1.msra.mxu0 0.0
  %11356 = vmatprep.subr.mxu0 0.0
  %11357 = vmatpush1.msra.mxu0 0.0
  %11358 = vmatprep.subr.mxu0 0.0
  %11359 = vmatpush1.msra.mxu0 0.0
  %11360 = vmatprep.subr.mxu0 0.0
  %11361 = vmatpush1.msra.mxu0 0.0
  %11362 = vmatprep.subr.mxu0 0.0
  %11363 = vmatpush1.msra.mxu0 0.0
  %11364 = vmatprep.subr.mxu0 0.0
  %11365 = vmatpush1.msra.mxu0 0.0
  %11366 = vmatprep.subr.mxu0 0.0
  %11367 = vmatpush1.msra.mxu0 0.0
  %11368 = vmatprep.subr.mxu0 0.0
  %11369 = vmatpush1.msra.mxu0 0.0
  %11370 = vmatprep.subr.mxu0 0.0
  %11371 = vmatpush1.msra.mxu0 0.0
  %11372 = vmatprep.subr.mxu0 0.0
  %11373 = vmatpush1.msra.mxu0 0.0
  %11374 = vmatprep.subr.mxu0 0.0
  %11375 = vmatpush1.msra.mxu0 0.0
  %11376 = vmatprep.subr.mxu0 0.0
  %11377 = vmatpush1.msra.mxu0 0.0
  %11378 = vmatprep.subr.mxu0 0.0
  %11379 = vmatpush1.msra.mxu0 0.0
  %11380 = vmatprep.subr.mxu0 0.0
  %11381 = vmatpush1.msra.mxu0 0.0
  %11382 = vmatprep.subr.mxu0 0.0
  %11383 = vmatpush1.msra.mxu0 0.0
  %11384 = vmatprep.subr.mxu0 0.0
  %11385 = vmatpush1.msra.mxu0 0.0
  %11386 = vmatprep.subr.mxu0 0.0
  %11387 = vmatpush1.msra.mxu0 0.0
  %11388 = vmatprep.subr.mxu0 0.0
  %11389 = vmatpush1.msra.mxu0 0.0
  %11390 = vmatprep.subr.mxu0 0.0
  %11391 = vmatpush1.msra.mxu0 0.0
  %11392 = vmatprep.subr.mxu0 0.0
  %11393 = vmatpush1.msra.mxu0 0.0
  %11394 = vmatprep.subr.mxu0 0.0
  %11395 = vmatpush1.msra.mxu0 0.0
  %11396 = vmatprep.subr.mxu0 0.0
  %11397 = vmatpush1.msra.mxu0 0.0
  %11398 = vmatprep.subr.mxu0 0.0
  %11399 = vmatpush1.msra.mxu0 0.0
  %11400 = vmatprep.subr.mxu0 0.0
  %11401 = vmatpush1.msra.mxu0 0.0
  %11402 = vmatprep.subr.mxu0 0.0
  %11403 = vmatpush1.msra.mxu0 0.0
  %11404 = vmatprep.subr.mxu0 0.0
  %11405 = vmatpush1.msra.mxu0 0.0
  %11406 = vmatprep.mubr.f32.mxu0 0.0
  %v11407 = vand.u32 %v10832, 4294901760
  %11408 = vmatmul.mubr.f32.gmra.mrb[0].mxu0 %v11407
  %v11409 = vpop.f32.mrb[0].mxu0
  %v11410 = vadd.f32 %v11319, %v11409
  %v11411 = vpop.f32.mrb[0].mxu0
  %11412 = vmatprep.mubr.f32.mxu0 0.0
  %v11413 = vand.u32 %v10835, 4294901760
  %11414 = vmatmul.mubr.f32.gmra.mrb[0].mxu0 %v11413
  %v11415 = vpop.f32.mrb[0].mxu0
  %v11416 = vadd.f32 %v11325, %v11415
  %v11417 = vpop.f32.mrb[0].mxu0
  %11418 = vmatprep.mubr.f32.mxu0 0.0
  %v11419 = vand.u32 %v10838, 4294901760
  %11420 = vmatmul.mubr.f32.gmra.mrb[0].mxu0 %v11419
  %v11421 = vpop.f32.mrb[0].mxu0
  %v11422 = vadd.f32 %v11331, %v11421
  %v11423 = vpop.f32.mrb[0].mxu0
  %11424 = vmatprep.mubr.f32.mxu0 0.0
  %v11425 = vand.u32 %v10841, 4294901760
  %11426 = vmatmul.mubr.f32.gmra.mrb[0].mxu0 %v11425
  %v11427 = vpop.f32.mrb[0].mxu0
  %v11428 = vadd.f32 %v11337, %v11427
  %v11429 = vpop.f32.mrb[0].mxu0
  %11430 = vdwg.mxu0
  %v11432 = vsel %vm4933, %v10823, 0
  %v11435 = vsel %vm4933, %v10824, 0
  %v11438 = vsel %vm4933, %v10825, 0
  %v11441 = vsel %vm4933, %v10826, 0
  %11443 = vmatprep.subr.mxu0 0.0
  %v11444 = vand.u32 %v10632, 4294901760
  %11445 = vmatpush1.msra.mxu0 %v11444
  %11446 = vmatprep.subr.mxu0 0.0
  %v11447 = vand.u32 %v10637, 4294901760
  %11448 = vmatpush1.msra.mxu0 %v11447
  %11449 = vmatprep.subr.mxu0 0.0
  %11450 = vmatpush1.msra.mxu0 0.0
  %11451 = vmatprep.subr.mxu0 0.0
  %11452 = vmatpush1.msra.mxu0 0.0
  %11453 = vmatprep.subr.mxu0 0.0
  %11454 = vmatpush1.msra.mxu0 0.0
  %11455 = vmatprep.subr.mxu0 0.0
  %11456 = vmatpush1.msra.mxu0 0.0
  %11457 = vmatprep.subr.mxu0 0.0
  %11458 = vmatpush1.msra.mxu0 0.0
  %11459 = vmatprep.subr.mxu0 0.0
  %11460 = vmatpush1.msra.mxu0 0.0
  %11461 = vmatprep.subr.mxu0 0.0
  %11462 = vmatpush1.msra.mxu0 0.0
  %11463 = vmatprep.subr.mxu0 0.0
  %11464 = vmatpush1.msra.mxu0 0.0
  %11465 = vmatprep.subr.mxu0 0.0
  %11466 = vmatpush1.msra.mxu0 0.0
  %11467 = vmatprep.subr.mxu0 0.0
  %11468 = vmatpush1.msra.mxu0 0.0
  %11469 = vmatprep.subr.mxu0 0.0
  %11470 = vmatpush1.msra.mxu0 0.0
  %11471 = vmatprep.subr.mxu0 0.0
  %11472 = vmatpush1.msra.mxu0 0.0
  %11473 = vmatprep.subr.mxu0 0.0
  %11474 = vmatpush1.msra.mxu0 0.0
  %11475 = vmatprep.subr.mxu0 0.0
  %11476 = vmatpush1.msra.mxu0 0.0
  %11477 = vmatprep.subr.mxu0 0.0
  %11478 = vmatpush1.msra.mxu0 0.0
  %11479 = vmatprep.subr.mxu0 0.0
  %11480 = vmatpush1.msra.mxu0 0.0
  %11481 = vmatprep.subr.mxu0 0.0
  %11482 = vmatpush1.msra.mxu0 0.0
  %11483 = vmatprep.subr.mxu0 0.0
  %11484 = vmatpush1.msra.mxu0 0.0
  %11485 = vmatprep.subr.mxu0 0.0
  %11486 = vmatpush1.msra.mxu0 0.0
  %11487 = vmatprep.subr.mxu0 0.0
  %11488 = vmatpush1.msra.mxu0 0.0
  %11489 = vmatprep.subr.mxu0 0.0
  %11490 = vmatpush1.msra.mxu0 0.0
  %11491 = vmatprep.subr.mxu0 0.0
  %11492 = vmatpush1.msra.mxu0 0.0
  %11493 = vmatprep.subr.mxu0 0.0
  %11494 = vmatpush1.msra.mxu0 0.0
  %11495 = vmatprep.subr.mxu0 0.0
  %11496 = vmatpush1.msra.mxu0 0.0
  %11497 = vmatprep.subr.mxu0 0.0
  %11498 = vmatpush1.msra.mxu0 0.0
  %11499 = vmatprep.subr.mxu0 0.0
  %11500 = vmatpush1.msra.mxu0 0.0
  %11501 = vmatprep.subr.mxu0 0.0
  %11502 = vmatpush1.msra.mxu0 0.0
  %11503 = vmatprep.subr.mxu0 0.0
  %11504 = vmatpush1.msra.mxu0 0.0
  %11505 = vmatprep.subr.mxu0 0.0
  %11506 = vmatpush1.msra.mxu0 0.0
  %11507 = vmatprep.subr.mxu0 0.0
  %11508 = vmatpush1.msra.mxu0 0.0
  %11509 = vmatprep.mubr.f32.mxu0 0.0
  %v11510 = vand.u32 %v11432, 4294901760
  %v11511 = vsub.f32 %v11432, %v11510
  %v11512 = vand.u32 %v11511, 4294901760
  %v11513 = vsub.f32 %v11511, %v11512
  %v11514 = vand.u32 %v11513, 4294901760
  %11515 = vmatmul.mubr.f32.gmra.mrb[0].mxu0 %v11514
  %v11516 = vpop.f32.mrb[0].mxu0
  %v11517 = vadd.f32 %v11410, %v11516
  %v11518 = vpop.f32.mrb[0].mxu0
  %11519 = vmatprep.mubr.f32.mxu0 0.0
  %v11520 = vand.u32 %v11435, 4294901760
  %v11521 = vsub.f32 %v11435, %v11520
  %v11522 = vand.u32 %v11521, 4294901760
  %v11523 = vsub.f32 %v11521, %v11522
  %v11524 = vand.u32 %v11523, 4294901760
  %11525 = vmatmul.mubr.f32.gmra.mrb[0].mxu0 %v11524
  %v11526 = vpop.f32.mrb[0].mxu0
  %v11527 = vadd.f32 %v11416, %v11526
  %v11528 = vpop.f32.mrb[0].mxu0
  %11529 = vmatprep.mubr.f32.mxu0 0.0
  %v11530 = vand.u32 %v11438, 4294901760
  %v11531 = vsub.f32 %v11438, %v11530
  %v11532 = vand.u32 %v11531, 4294901760
  %v11533 = vsub.f32 %v11531, %v11532
  %v11534 = vand.u32 %v11533, 4294901760
  %11535 = vmatmul.mubr.f32.gmra.mrb[0].mxu0 %v11534
  %v11536 = vpop.f32.mrb[0].mxu0
  %v11537 = vadd.f32 %v11422, %v11536
  %v11538 = vpop.f32.mrb[0].mxu0
  %11539 = vmatprep.mubr.f32.mxu0 0.0
  %v11540 = vand.u32 %v11441, 4294901760
  %v11541 = vsub.f32 %v11441, %v11540
  %v11542 = vand.u32 %v11541, 4294901760
  %v11543 = vsub.f32 %v11541, %v11542
  %v11544 = vand.u32 %v11543, 4294901760
  %11545 = vmatmul.mubr.f32.gmra.mrb[0].mxu0 %v11544
  %v11546 = vpop.f32.mrb[0].mxu0
  %v11547 = vadd.f32 %v11428, %v11546
  %v11548 = vpop.f32.mrb[0].mxu0
  %11549 = vdwg.mxu0
  %11550 = vmatprep.subr.mxu0 0.0
  %v11551 = vand.u32 %v10632, 4294901760
  %v11552 = vsub.f32 %v10632, %v11551
  %v11553 = vand.u32 %v11552, 4294901760
  %v11554 = vsub.f32 %v11552, %v11553
  %v11555 = vand.u32 %v11554, 4294901760
  %11556 = vmatpush1.msra.mxu0 %v11555
  %11557 = vmatprep.subr.mxu0 0.0
  %v11558 = vand.u32 %v10637, 4294901760
  %v11559 = vsub.f32 %v10637, %v11558
  %v11560 = vand.u32 %v11559, 4294901760
  %v11561 = vsub.f32 %v11559, %v11560
  %v11562 = vand.u32 %v11561, 4294901760
  %11563 = vmatpush1.msra.mxu0 %v11562
  %11564 = vmatprep.subr.mxu0 0.0
  %11565 = vmatpush1.msra.mxu0 0.0
  %11566 = vmatprep.subr.mxu0 0.0
  %11567 = vmatpush1.msra.mxu0 0.0
  %11568 = vmatprep.subr.mxu0 0.0
  %11569 = vmatpush1.msra.mxu0 0.0
  %11570 = vmatprep.subr.mxu0 0.0
  %11571 = vmatpush1.msra.mxu0 0.0
  %11572 = vmatprep.subr.mxu0 0.0
  %11573 = vmatpush1.msra.mxu0 0.0
  %11574 = vmatprep.subr.mxu0 0.0
  %11575 = vmatpush1.msra.mxu0 0.0
  %11576 = vmatprep.subr.mxu0 0.0
  %11577 = vmatpush1.msra.mxu0 0.0
  %11578 = vmatprep.subr.mxu0 0.0
  %11579 = vmatpush1.msra.mxu0 0.0
  %11580 = vmatprep.subr.mxu0 0.0
  %11581 = vmatpush1.msra.mxu0 0.0
  %11582 = vmatprep.subr.mxu0 0.0
  %11583 = vmatpush1.msra.mxu0 0.0
  %11584 = vmatprep.subr.mxu0 0.0
  %11585 = vmatpush1.msra.mxu0 0.0
  %11586 = vmatprep.subr.mxu0 0.0
  %11587 = vmatpush1.msra.mxu0 0.0
  %11588 = vmatprep.subr.mxu0 0.0
  %11589 = vmatpush1.msra.mxu0 0.0
  %11590 = vmatprep.subr.mxu0 0.0
  %11591 = vmatpush1.msra.mxu0 0.0
  %11592 = vmatprep.subr.mxu0 0.0
  %11593 = vmatpush1.msra.mxu0 0.0
  %11594 = vmatprep.subr.mxu0 0.0
  %11595 = vmatpush1.msra.mxu0 0.0
  %11596 = vmatprep.subr.mxu0 0.0
  %11597 = vmatpush1.msra.mxu0 0.0
  %11598 = vmatprep.subr.mxu0 0.0
  %11599 = vmatpush1.msra.mxu0 0.0
  %11600 = vmatprep.subr.mxu0 0.0
  %11601 = vmatpush1.msra.mxu0 0.0
  %11602 = vmatprep.subr.mxu0 0.0
  %11603 = vmatpush1.msra.mxu0 0.0
  %11604 = vmatprep.subr.mxu0 0.0
  %11605 = vmatpush1.msra.mxu0 0.0
  %11606 = vmatprep.subr.mxu0 0.0
  %11607 = vmatpush1.msra.mxu0 0.0
  %11608 = vmatprep.subr.mxu0 0.0
  %11609 = vmatpush1.msra.mxu0 0.0
  %11610 = vmatprep.subr.mxu0 0.0
  %11611 = vmatpush1.msra.mxu0 0.0
  %11612 = vmatprep.subr.mxu0 0.0
  %11613 = vmatpush1.msra.mxu0 0.0
  %11614 = vmatprep.subr.mxu0 0.0
  %11615 = vmatpush1.msra.mxu0 0.0
  %11616 = vmatprep.subr.mxu0 0.0
  %11617 = vmatpush1.msra.mxu0 0.0
  %11618 = vmatprep.subr.mxu0 0.0
  %11619 = vmatpush1.msra.mxu0 0.0
  %11620 = vmatprep.subr.mxu0 0.0
  %11621 = vmatpush1.msra.mxu0 0.0
  %11622 = vmatprep.subr.mxu0 0.0
  %11623 = vmatpush1.msra.mxu0 0.0
  %11624 = vmatprep.mubr.f32.mxu0 0.0
  %v11625 = vand.u32 %v11432, 4294901760
  %11626 = vmatmul.mubr.f32.gmra.mrb[0].mxu0 %v11625
  %v11627 = vpop.f32.mrb[0].mxu0
  %v11628 = vadd.f32 %v11517, %v11627
  %v11629 = vpop.f32.mrb[0].mxu0
  %11630 = vmatprep.mubr.f32.mxu0 0.0
  %v11631 = vand.u32 %v11435, 4294901760
  %11632 = vmatmul.mubr.f32.gmra.mrb[0].mxu0 %v11631
  %v11633 = vpop.f32.mrb[0].mxu0
  %v11634 = vadd.f32 %v11527, %v11633
  %v11635 = vpop.f32.mrb[0].mxu0
  %11636 = vmatprep.mubr.f32.mxu0 0.0
  %v11637 = vand.u32 %v11438, 4294901760
  %11638 = vmatmul.mubr.f32.gmra.mrb[0].mxu0 %v11637
  %v11639 = vpop.f32.mrb[0].mxu0
  %v11640 = vadd.f32 %v11537, %v11639
  %v11641 = vpop.f32.mrb[0].mxu0
  %11642 = vmatprep.mubr.f32.mxu0 0.0
  %v11643 = vand.u32 %v11441, 4294901760
  %11644 = vmatmul.mubr.f32.gmra.mrb[0].mxu0 %v11643
  %v11645 = vpop.f32.mrb[0].mxu0
  %v11646 = vadd.f32 %v11547, %v11645
  %v11647 = vpop.f32.mrb[0].mxu0
  %11648 = vdwg.mxu0
  %11649 = vmatprep.subr.mxu0 0.0
  %v11650 = vand.u32 %v10632, 4294901760
  %v11651 = vsub.f32 %v10632, %v11650
  %11652 = vmatpush1.msra.mxu0 %v11651
  %11653 = vmatprep.subr.mxu0 0.0
  %v11654 = vand.u32 %v10637, 4294901760
  %v11655 = vsub.f32 %v10637, %v11654
  %11656 = vmatpush1.msra.mxu0 %v11655
  %11657 = vmatprep.subr.mxu0 0.0
  %11658 = vmatpush1.msra.mxu0 0.0
  %11659 = vmatprep.subr.mxu0 0.0
  %11660 = vmatpush1.msra.mxu0 0.0
  %11661 = vmatprep.subr.mxu0 0.0
  %11662 = vmatpush1.msra.mxu0 0.0
  %11663 = vmatprep.subr.mxu0 0.0
  %11664 = vmatpush1.msra.mxu0 0.0
  %11665 = vmatprep.subr.mxu0 0.0
  %11666 = vmatpush1.msra.mxu0 0.0
  %11667 = vmatprep.subr.mxu0 0.0
  %11668 = vmatpush1.msra.mxu0 0.0
  %11669 = vmatprep.subr.mxu0 0.0
  %11670 = vmatpush1.msra.mxu0 0.0
  %11671 = vmatprep.subr.mxu0 0.0
  %11672 = vmatpush1.msra.mxu0 0.0
  %11673 = vmatprep.subr.mxu0 0.0
  %11674 = vmatpush1.msra.mxu0 0.0
  %11675 = vmatprep.subr.mxu0 0.0
  %11676 = vmatpush1.msra.mxu0 0.0
  %11677 = vmatprep.subr.mxu0 0.0
  %11678 = vmatpush1.msra.mxu0 0.0
  %11679 = vmatprep.subr.mxu0 0.0
  %11680 = vmatpush1.msra.mxu0 0.0
  %11681 = vmatprep.subr.mxu0 0.0
  %11682 = vmatpush1.msra.mxu0 0.0
  %11683 = vmatprep.subr.mxu0 0.0
  %11684 = vmatpush1.msra.mxu0 0.0
  %11685 = vmatprep.subr.mxu0 0.0
  %11686 = vmatpush1.msra.mxu0 0.0
  %11687 = vmatprep.subr.mxu0 0.0
  %11688 = vmatpush1.msra.mxu0 0.0
  %11689 = vmatprep.subr.mxu0 0.0
  %11690 = vmatpush1.msra.mxu0 0.0
  %11691 = vmatprep.subr.mxu0 0.0
  %11692 = vmatpush1.msra.mxu0 0.0
  %11693 = vmatprep.subr.mxu0 0.0
  %11694 = vmatpush1.msra.mxu0 0.0
  %11695 = vmatprep.subr.mxu0 0.0
  %11696 = vmatpush1.msra.mxu0 0.0
  %11697 = vmatprep.subr.mxu0 0.0
  %11698 = vmatpush1.msra.mxu0 0.0
  %11699 = vmatprep.subr.mxu0 0.0
  %11700 = vmatpush1.msra.mxu0 0.0
  %11701 = vmatprep.subr.mxu0 0.0
  %11702 = vmatpush1.msra.mxu0 0.0
  %11703 = vmatprep.subr.mxu0 0.0
  %11704 = vmatpush1.msra.mxu0 0.0
  %11705 = vmatprep.subr.mxu0 0.0
  %11706 = vmatpush1.msra.mxu0 0.0
  %11707 = vmatprep.subr.mxu0 0.0
  %11708 = vmatpush1.msra.mxu0 0.0
  %11709 = vmatprep.subr.mxu0 0.0
  %11710 = vmatpush1.msra.mxu0 0.0
  %11711 = vmatprep.subr.mxu0 0.0
  %11712 = vmatpush1.msra.mxu0 0.0
  %11713 = vmatprep.subr.mxu0 0.0
  %11714 = vmatpush1.msra.mxu0 0.0
  %11715 = vmatprep.subr.mxu0 0.0
  %11716 = vmatpush1.msra.mxu0 0.0
  %11717 = vmatprep.mubr.f32.mxu0 0.0
  %v11718 = vand.u32 %v11432, 4294901760
  %v11719 = vsub.f32 %v11432, %v11718
  %11720 = vmatmul.mubr.f32.gmra.mrb[0].mxu0 %v11719
  %v11721 = vpop.f32.mrb[0].mxu0
  %v11722 = vadd.f32 %v11628, %v11721
  %v11723 = vpop.f32.mrb[0].mxu0
  %11724 = vmatprep.mubr.f32.mxu0 0.0
  %v11725 = vand.u32 %v11435, 4294901760
  %v11726 = vsub.f32 %v11435, %v11725
  %11727 = vmatmul.mubr.f32.gmra.mrb[0].mxu0 %v11726
  %v11728 = vpop.f32.mrb[0].mxu0
  %v11729 = vadd.f32 %v11634, %v11728
  %v11730 = vpop.f32.mrb[0].mxu0
  %11731 = vmatprep.mubr.f32.mxu0 0.0
  %v11732 = vand.u32 %v11438, 4294901760
  %v11733 = vsub.f32 %v11438, %v11732
  %11734 = vmatmul.mubr.f32.gmra.mrb[0].mxu0 %v11733
  %v11735 = vpop.f32.mrb[0].mxu0
  %v11736 = vadd.f32 %v11640, %v11735
  %v11737 = vpop.f32.mrb[0].mxu0
  %11738 = vmatprep.mubr.f32.mxu0 0.0
  %v11739 = vand.u32 %v11441, 4294901760
  %v11740 = vsub.f32 %v11441, %v11739
  %11741 = vmatmul.mubr.f32.gmra.mrb[0].mxu0 %v11740
  %v11742 = vpop.f32.mrb[0].mxu0
  %v11743 = vadd.f32 %v11646, %v11742
  %v11744 = vpop.f32.mrb[0].mxu0
  %11745 = vdwg.mxu0
  %11746 = vmatprep.subr.mxu0 0.0
  %v11747 = vand.u32 %v10632, 4294901760
  %11748 = vmatpush1.msra.mxu0 %v11747
  %11749 = vmatprep.subr.mxu0 0.0
  %v11750 = vand.u32 %v10637, 4294901760
  %11751 = vmatpush1.msra.mxu0 %v11750
  %11752 = vmatprep.subr.mxu0 0.0
  %11753 = vmatpush1.msra.mxu0 0.0
  %11754 = vmatprep.subr.mxu0 0.0
  %11755 = vmatpush1.msra.mxu0 0.0
  %11756 = vmatprep.subr.mxu0 0.0
  %11757 = vmatpush1.msra.mxu0 0.0
  %11758 = vmatprep.subr.mxu0 0.0
  %11759 = vmatpush1.msra.mxu0 0.0
  %11760 = vmatprep.subr.mxu0 0.0
  %11761 = vmatpush1.msra.mxu0 0.0
  %11762 = vmatprep.subr.mxu0 0.0
  %11763 = vmatpush1.msra.mxu0 0.0
  %11764 = vmatprep.subr.mxu0 0.0
  %11765 = vmatpush1.msra.mxu0 0.0
  %11766 = vmatprep.subr.mxu0 0.0
  %11767 = vmatpush1.msra.mxu0 0.0
  %11768 = vmatprep.subr.mxu0 0.0
  %11769 = vmatpush1.msra.mxu0 0.0
  %11770 = vmatprep.subr.mxu0 0.0
  %11771 = vmatpush1.msra.mxu0 0.0
  %11772 = vmatprep.subr.mxu0 0.0
  %11773 = vmatpush1.msra.mxu0 0.0
  %11774 = vmatprep.subr.mxu0 0.0
  %11775 = vmatpush1.msra.mxu0 0.0
  %11776 = vmatprep.subr.mxu0 0.0
  %11777 = vmatpush1.msra.mxu0 0.0
  %11778 = vmatprep.subr.mxu0 0.0
  %11779 = vmatpush1.msra.mxu0 0.0
  %11780 = vmatprep.subr.mxu0 0.0
  %11781 = vmatpush1.msra.mxu0 0.0
  %11782 = vmatprep.subr.mxu0 0.0
  %11783 = vmatpush1.msra.mxu0 0.0
  %11784 = vmatprep.subr.mxu0 0.0
  %11785 = vmatpush1.msra.mxu0 0.0
  %11786 = vmatprep.subr.mxu0 0.0
  %11787 = vmatpush1.msra.mxu0 0.0
  %11788 = vmatprep.subr.mxu0 0.0
  %11789 = vmatpush1.msra.mxu0 0.0
  %11790 = vmatprep.subr.mxu0 0.0
  %11791 = vmatpush1.msra.mxu0 0.0
  %11792 = vmatprep.subr.mxu0 0.0
  %11793 = vmatpush1.msra.mxu0 0.0
  %11794 = vmatprep.subr.mxu0 0.0
  %11795 = vmatpush1.msra.mxu0 0.0
  %11796 = vmatprep.subr.mxu0 0.0
  %11797 = vmatpush1.msra.mxu0 0.0
  %11798 = vmatprep.subr.mxu0 0.0
  %11799 = vmatpush1.msra.mxu0 0.0
  %11800 = vmatprep.subr.mxu0 0.0
  %11801 = vmatpush1.msra.mxu0 0.0
  %11802 = vmatprep.subr.mxu0 0.0
  %11803 = vmatpush1.msra.mxu0 0.0
  %11804 = vmatprep.subr.mxu0 0.0
  %11805 = vmatpush1.msra.mxu0 0.0
  %11806 = vmatprep.subr.mxu0 0.0
  %11807 = vmatpush1.msra.mxu0 0.0
  %11808 = vmatprep.subr.mxu0 0.0
  %11809 = vmatpush1.msra.mxu0 0.0
  %11810 = vmatprep.subr.mxu0 0.0
  %11811 = vmatpush1.msra.mxu0 0.0
  %11812 = vmatprep.mubr.f32.mxu0 0.0
  %v11813 = vand.u32 %v11432, 4294901760
  %v11814 = vsub.f32 %v11432, %v11813
  %v11815 = vand.u32 %v11814, 4294901760
  %11816 = vmatmul.mubr.f32.gmra.mrb[0].mxu0 %v11815
  %v11817 = vpop.f32.mrb[0].mxu0
  %v11818 = vadd.f32 %v11722, %v11817
  %v11819 = vpop.f32.mrb[0].mxu0
  %11820 = vmatprep.mubr.f32.mxu0 0.0
  %v11821 = vand.u32 %v11435, 4294901760
  %v11822 = vsub.f32 %v11435, %v11821
  %v11823 = vand.u32 %v11822, 4294901760
  %11824 = vmatmul.mubr.f32.gmra.mrb[0].mxu0 %v11823
  %v11825 = vpop.f32.mrb[0].mxu0
  %v11826 = vadd.f32 %v11729, %v11825
  %v11827 = vpop.f32.mrb[0].mxu0
  %11828 = vmatprep.mubr.f32.mxu0 0.0
  %v11829 = vand.u32 %v11438, 4294901760
  %v11830 = vsub.f32 %v11438, %v11829
  %v11831 = vand.u32 %v11830, 4294901760
  %11832 = vmatmul.mubr.f32.gmra.mrb[0].mxu0 %v11831
  %v11833 = vpop.f32.mrb[0].mxu0
  %v11834 = vadd.f32 %v11736, %v11833
  %v11835 = vpop.f32.mrb[0].mxu0
  %11836 = vmatprep.mubr.f32.mxu0 0.0
  %v11837 = vand.u32 %v11441, 4294901760
  %v11838 = vsub.f32 %v11441, %v11837
  %v11839 = vand.u32 %v11838, 4294901760
  %11840 = vmatmul.mubr.f32.gmra.mrb[0].mxu0 %v11839
  %v11841 = vpop.f32.mrb[0].mxu0
  %v11842 = vadd.f32 %v11743, %v11841
  %v11843 = vpop.f32.mrb[0].mxu0
  %11844 = vdwg.mxu0
  %11845 = vmatprep.subr.mxu0 0.0
  %v11846 = vand.u32 %v10632, 4294901760
  %v11847 = vsub.f32 %v10632, %v11846
  %v11848 = vand.u32 %v11847, 4294901760
  %11849 = vmatpush1.msra.mxu0 %v11848
  %11850 = vmatprep.subr.mxu0 0.0
  %v11851 = vand.u32 %v10637, 4294901760
  %v11852 = vsub.f32 %v10637, %v11851
  %v11853 = vand.u32 %v11852, 4294901760
  %11854 = vmatpush1.msra.mxu0 %v11853
  %11855 = vmatprep.subr.mxu0 0.0
  %11856 = vmatpush1.msra.mxu0 0.0
  %11857 = vmatprep.subr.mxu0 0.0
  %11858 = vmatpush1.msra.mxu0 0.0
  %11859 = vmatprep.subr.mxu0 0.0
  %11860 = vmatpush1.msra.mxu0 0.0
  %11861 = vmatprep.subr.mxu0 0.0
  %11862 = vmatpush1.msra.mxu0 0.0
  %11863 = vmatprep.subr.mxu0 0.0
  %11864 = vmatpush1.msra.mxu0 0.0
  %11865 = vmatprep.subr.mxu0 0.0
  %11866 = vmatpush1.msra.mxu0 0.0
  %11867 = vmatprep.subr.mxu0 0.0
  %11868 = vmatpush1.msra.mxu0 0.0
  %11869 = vmatprep.subr.mxu0 0.0
  %11870 = vmatpush1.msra.mxu0 0.0
  %11871 = vmatprep.subr.mxu0 0.0
  %11872 = vmatpush1.msra.mxu0 0.0
  %11873 = vmatprep.subr.mxu0 0.0
  %11874 = vmatpush1.msra.mxu0 0.0
  %11875 = vmatprep.subr.mxu0 0.0
  %11876 = vmatpush1.msra.mxu0 0.0
  %11877 = vmatprep.subr.mxu0 0.0
  %11878 = vmatpush1.msra.mxu0 0.0
  %11879 = vmatprep.subr.mxu0 0.0
  %11880 = vmatpush1.msra.mxu0 0.0
  %11881 = vmatprep.subr.mxu0 0.0
  %11882 = vmatpush1.msra.mxu0 0.0
  %11883 = vmatprep.subr.mxu0 0.0
  %11884 = vmatpush1.msra.mxu0 0.0
  %11885 = vmatprep.subr.mxu0 0.0
  %11886 = vmatpush1.msra.mxu0 0.0
  %11887 = vmatprep.subr.mxu0 0.0
  %11888 = vmatpush1.msra.mxu0 0.0
  %11889 = vmatprep.subr.mxu0 0.0
  %11890 = vmatpush1.msra.mxu0 0.0
  %11891 = vmatprep.subr.mxu0 0.0
  %11892 = vmatpush1.msra.mxu0 0.0
  %11893 = vmatprep.subr.mxu0 0.0
  %11894 = vmatpush1.msra.mxu0 0.0
  %11895 = vmatprep.subr.mxu0 0.0
  %11896 = vmatpush1.msra.mxu0 0.0
  %11897 = vmatprep.subr.mxu0 0.0
  %11898 = vmatpush1.msra.mxu0 0.0
  %11899 = vmatprep.subr.mxu0 0.0
  %11900 = vmatpush1.msra.mxu0 0.0
  %11901 = vmatprep.subr.mxu0 0.0
  %11902 = vmatpush1.msra.mxu0 0.0
  %11903 = vmatprep.subr.mxu0 0.0
  %11904 = vmatpush1.msra.mxu0 0.0
  %11905 = vmatprep.subr.mxu0 0.0
  %11906 = vmatpush1.msra.mxu0 0.0
  %11907 = vmatprep.subr.mxu0 0.0
  %11908 = vmatpush1.msra.mxu0 0.0
  %11909 = vmatprep.subr.mxu0 0.0
  %11910 = vmatpush1.msra.mxu0 0.0
  %11911 = vmatprep.subr.mxu0 0.0
  %11912 = vmatpush1.msra.mxu0 0.0
  %11913 = vmatprep.subr.mxu0 0.0
  %11914 = vmatpush1.msra.mxu0 0.0
  %11915 = vmatprep.mubr.f32.mxu0 0.0
  %v11916 = vand.u32 %v11432, 4294901760
  %11917 = vmatmul.mubr.f32.gmra.mrb[0].mxu0 %v11916
  %v11918 = vpop.f32.mrb[0].mxu0
  %v11919 = vadd.f32 %v11818, %v11918
  %v11920 = vpop.f32.mrb[0].mxu0
  %11921 = vmatprep.mubr.f32.mxu0 0.0
  %v11922 = vand.u32 %v11435, 4294901760
  %11923 = vmatmul.mubr.f32.gmra.mrb[0].mxu0 %v11922
  %v11924 = vpop.f32.mrb[0].mxu0
  %v11925 = vadd.f32 %v11826, %v11924
  %v11926 = vpop.f32.mrb[0].mxu0
  %11927 = vmatprep.mubr.f32.mxu0 0.0
  %v11928 = vand.u32 %v11438, 4294901760
  %11929 = vmatmul.mubr.f32.gmra.mrb[0].mxu0 %v11928
  %v11930 = vpop.f32.mrb[0].mxu0
  %v11931 = vadd.f32 %v11834, %v11930
  %v11932 = vpop.f32.mrb[0].mxu0
  %11933 = vmatprep.mubr.f32.mxu0 0.0
  %v11934 = vand.u32 %v11441, 4294901760
  %11935 = vmatmul.mubr.f32.gmra.mrb[0].mxu0 %v11934
  %v11936 = vpop.f32.mrb[0].mxu0
  %v11937 = vadd.f32 %v11842, %v11936
  %v11938 = vpop.f32.mrb[0].mxu0
  %11939 = vdwg.mxu0
  %11940 = vmatprep.subr.mxu0 0.0
  %v11941 = vand.u32 %v10632, 4294901760
  %11942 = vmatpush1.msra.mxu0 %v11941
  %11943 = vmatprep.subr.mxu0 0.0
  %v11944 = vand.u32 %v10637, 4294901760
  %11945 = vmatpush1.msra.mxu0 %v11944
  %11946 = vmatprep.subr.mxu0 0.0
  %11947 = vmatpush1.msra.mxu0 0.0
  %11948 = vmatprep.subr.mxu0 0.0
  %11949 = vmatpush1.msra.mxu0 0.0
  %11950 = vmatprep.subr.mxu0 0.0
  %11951 = vmatpush1.msra.mxu0 0.0
  %11952 = vmatprep.subr.mxu0 0.0
  %11953 = vmatpush1.msra.mxu0 0.0
  %11954 = vmatprep.subr.mxu0 0.0
  %11955 = vmatpush1.msra.mxu0 0.0
  %11956 = vmatprep.subr.mxu0 0.0
  %11957 = vmatpush1.msra.mxu0 0.0
  %11958 = vmatprep.subr.mxu0 0.0
  %11959 = vmatpush1.msra.mxu0 0.0
  %11960 = vmatprep.subr.mxu0 0.0
  %11961 = vmatpush1.msra.mxu0 0.0
  %11962 = vmatprep.subr.mxu0 0.0
  %11963 = vmatpush1.msra.mxu0 0.0
  %11964 = vmatprep.subr.mxu0 0.0
  %11965 = vmatpush1.msra.mxu0 0.0
  %11966 = vmatprep.subr.mxu0 0.0
  %11967 = vmatpush1.msra.mxu0 0.0
  %11968 = vmatprep.subr.mxu0 0.0
  %11969 = vmatpush1.msra.mxu0 0.0
  %11970 = vmatprep.subr.mxu0 0.0
  %11971 = vmatpush1.msra.mxu0 0.0
  %11972 = vmatprep.subr.mxu0 0.0
  %11973 = vmatpush1.msra.mxu0 0.0
  %11974 = vmatprep.subr.mxu0 0.0
  %11975 = vmatpush1.msra.mxu0 0.0
  %11976 = vmatprep.subr.mxu0 0.0
  %11977 = vmatpush1.msra.mxu0 0.0
  %11978 = vmatprep.subr.mxu0 0.0
  %11979 = vmatpush1.msra.mxu0 0.0
  %11980 = vmatprep.subr.mxu0 0.0
  %11981 = vmatpush1.msra.mxu0 0.0
  %11982 = vmatprep.subr.mxu0 0.0
  %11983 = vmatpush1.msra.mxu0 0.0
  %11984 = vmatprep.subr.mxu0 0.0
  %11985 = vmatpush1.msra.mxu0 0.0
  %11986 = vmatprep.subr.mxu0 0.0
  %11987 = vmatpush1.msra.mxu0 0.0
  %11988 = vmatprep.subr.mxu0 0.0
  %11989 = vmatpush1.msra.mxu0 0.0
  %11990 = vmatprep.subr.mxu0 0.0
  %11991 = vmatpush1.msra.mxu0 0.0
  %11992 = vmatprep.subr.mxu0 0.0
  %11993 = vmatpush1.msra.mxu0 0.0
  %11994 = vmatprep.subr.mxu0 0.0
  %11995 = vmatpush1.msra.mxu0 0.0
  %11996 = vmatprep.subr.mxu0 0.0
  %11997 = vmatpush1.msra.mxu0 0.0
  %11998 = vmatprep.subr.mxu0 0.0
  %11999 = vmatpush1.msra.mxu0 0.0
  %12000 = vmatprep.subr.mxu0 0.0
  %12001 = vmatpush1.msra.mxu0 0.0
  %12002 = vmatprep.subr.mxu0 0.0
  %12003 = vmatpush1.msra.mxu0 0.0
  %12004 = vmatprep.subr.mxu0 0.0
  %12005 = vmatpush1.msra.mxu0 0.0
  %12006 = vmatprep.mubr.f32.mxu0 0.0
  %v12007 = vand.u32 %v11432, 4294901760
  %12008 = vmatmul.mubr.f32.gmra.mrb[0].mxu0 %v12007
  %v12009 = vpop.f32.mrb[0].mxu0
  %v12010 = vadd.f32 %v11919, %v12009
  %v12011 = vpop.f32.mrb[0].mxu0
  %12012 = vmatprep.mubr.f32.mxu0 0.0
  %v12013 = vand.u32 %v11435, 4294901760
  %12014 = vmatmul.mubr.f32.gmra.mrb[0].mxu0 %v12013
  %v12015 = vpop.f32.mrb[0].mxu0
  %v12016 = vadd.f32 %v11925, %v12015
  %v12017 = vpop.f32.mrb[0].mxu0
  %12018 = vmatprep.mubr.f32.mxu0 0.0
  %v12019 = vand.u32 %v11438, 4294901760
  %12020 = vmatmul.mubr.f32.gmra.mrb[0].mxu0 %v12019
  %v12021 = vpop.f32.mrb[0].mxu0
  %v12022 = vadd.f32 %v11931, %v12021
  %v12023 = vpop.f32.mrb[0].mxu0
  %12024 = vmatprep.mubr.f32.mxu0 0.0
  %v12025 = vand.u32 %v11441, 4294901760
  %12026 = vmatmul.mubr.f32.gmra.mrb[0].mxu0 %v12025
  %v12027 = vpop.f32.mrb[0].mxu0
  %v12028 = vadd.f32 %v11937, %v12027
  %v12029 = vpop.f32.mrb[0].mxu0
  %12030 = vdwg.mxu0
  %v12031 = vld [vmem:[%s23] sm:$0x1]
  %v12033 = vlaneseq
  %v12034 = vshrl.u32 %v12033, 7
  %v12035 = vsub.s32 0, %v12034
  %v12036 = vrot.slane %v12031, %v12035
  %v12038 = vadd.f32 %v12010, %v12036
  %v12039 = vadd.f32 %v12016, %v12036
  %v12040 = vadd.f32 %v12022, %v12036
  %v12041 = vadd.f32 %v12028, %v12036
  %v12042 = vxor.u32 %v12038, 2147483648
  %v12043 = vxor.u32 %v12039, 2147483648
  %v12044 = vxor.u32 %v12040, 2147483648
  %v12045 = vxor.u32 %v12041, 2147483648
  %v12046 = vmul.f32 %v12042, 1.442695
  %v12047 = vpow.pop %v12046
  %v12048 = vmul.f32 %v12043, 1.442695
  %v12049 = vpow.pop %v12048
  %v12050 = vmul.f32 %v12044, 1.442695
  %v12051 = vpow.pop %v12050
  %v12052 = vmul.f32 %v12045, 1.442695
  %v12053 = vpow.pop %v12052
  %v12054 = vadd.f32 %v12047, 1.0
  %v12055 = vadd.f32 %v12049, 1.0
  %v12056 = vadd.f32 %v12051, 1.0
  %v12057 = vadd.f32 %v12053, 1.0
  %v12058 = vrcp.pop %v12054
  %v12059 = vmul.f32 1.0, %v12058
  %v12060 = vrcp.pop %v12055
  %v12061 = vmul.f32 1.0, %v12060
  %v12062 = vrcp.pop %v12056
  %v12063 = vmul.f32 1.0, %v12062
  %v12064 = vrcp.pop %v12057
  %v12065 = vmul.f32 1.0, %v12064
  %12066 = vst.msk [vmem:[%s27] sm:$0xff] %vm1376, %v12059
  %12067 = vst.msk [vmem:[%s27 + $0x8] sm:$0xff] %vm1376, %v12061
  %12068 = vst.msk [vmem:[%s27 + $0x10] sm:$0xff] %vm1376, %v12063
  %12069 = vst.msk [vmem:[%s27 + $0x18] sm:$0xff] %vm1376, %v12065
  // Predicated region
  $region110: #{autoencoder_forward.1} parent=0 // pred_check
    _
  $region111: #{autoencoder_forward.1} parent=0 // pred_check_branch
    %12071 = sbr.rel (0) target = $region113
  $region112: #{autoencoder_forward.1} parent=0 // pred_region
    _
  $region113: #{autoencoder_forward.1} parent=0 // pred_fallthru
    _
  // Predicated region
  $region114: #{autoencoder_forward.1} parent=0 // pred_check
    _
  $region115: #{autoencoder_forward.1} parent=0 // pred_check_branch
    %12073 = sbr.rel (0) target = $region117
  $region116: #{autoencoder_forward.1} parent=0 // pred_region
    _
  $region117: #{autoencoder_forward.1} parent=0 // pred_fallthru
    _

</llo_original>
